<compile_context>
chip_gen: v7x
topology: tpu7x:2x2x1
jax: 0.10.0
libtpu: 0.0.40
codegen_flags: <defaults>
</compile_context>

<pallas_src>
import functools
import math

import jax
import jax.numpy as jnp
import numpy as np
from jax.experimental import pallas as pl
from jax.experimental.pallas import tpu as pltpu


# ---------------------------------------------------------------------------
# Static network geometry (LeNet-5 on 28x28x1, as implied by fc1 = 4*4*50).
# ---------------------------------------------------------------------------
KSIZE = 5
C_IN, C1, C2 = 1, 20, 50
H_IN = W_IN = 28
H1 = H_IN - KSIZE + 1            # 24  conv1 output spatial
P1 = H1 // 2                     # 12  pool1 output spatial
ROWS1 = 16                       # pool1 rows padded 12 -> 16 (two full sublane tiles)
H2 = P1 - KSIZE + 1              # 8   conv2 output spatial
P2 = H2 // 2                     # 4   pool2 output spatial
FC1_OUT, FC2_OUT = 500, 10

K1 = KSIZE * W_IN                # 140: conv1 Toeplitz contraction axis (ky, input col)
N1 = 512                         # conv1 output lanes: dxp*256 + jp*20 + co   (jp<12, co<20)
KP1 = 256                        # pool1 lanes:        jp*20 + c              (240 used)
N2 = 512                         # conv2 output lanes: dxp*256 + jp2*50 + co  (jp2<4, co<50)
KP2 = 256                        # pool2 lanes:        jp2*50 + co            (200 used)


# ---------------------------------------------------------------------------
# The fused Pallas kernel (one batch tile of `nb` samples per grid step)
# ---------------------------------------------------------------------------
def lenet5_vb_kernel(xc_ref, t1_ref, b1_ref, t2_ref, b2_ref,
                     wf1_ref, bf1_ref, wf2_ref, bf2_ref,
                     o_ref, pool1_ref, a2_ref, *, nb):
    """xc_ref  : [2, nb*16, 140] bf16  conv1 operand, rows grouped by output-row
                                       parity (dy), 5 ky-shifted input rows
                                       concatenated along the last axis
       t1_ref  : [140, 512] bf16       conv1 Toeplitz weights
       t2_ref  : [5, 256, 512] bf16    conv2 Toeplitz weights (one per ky tap)
       wf1_ref : [4, 256, 500] bf16    fc1 weights, one block per pooled row h
       wf2_ref : [500, 10] bf16
       b*_ref  : f32 biases, tiled to the matching lane layouts
       o_ref   : [nb, 10] f32 logits
       scratch : pool1_ref [nb, 16, 256] bf16,  a2_ref [nb, 8, 512] f32
    """
    f32, bf16 = jnp.float32, jnp.bfloat16

    # --- conv1 (Toeplitz matmul) + 2x2 max-pool + bias + ReLU ----------------
    # Pool over H = max of the two row-parity matmul results; pool over W =
    # max of the two 128-aligned lane halves (T1 columns are parity-split).
    # Bias/ReLU commute with max-pool, so they are applied once, after pooling.
    a1_even = jnp.dot(xc_ref[0], t1_ref[...], preferred_element_type=f32)
    a1_odd = jnp.dot(xc_ref[1], t1_ref[...], preferred_element_type=f32)
    ph = jnp.maximum(a1_even, a1_odd)                       # [nb*16, 512]
    pw = jnp.maximum(ph[:, :KP1], ph[:, KP1:])              # [nb*16, 256]
    p1 = jnp.maximum(pw + b1_ref[...], 0.0)
    pool1_ref[...] = p1.reshape(nb, ROWS1, KP1).astype(bf16)
    # NOTE: pool1 rows 12..15 hold relu(b1) coming from the zero-padded conv1
    # rows; they are never read because the conv2 window below ends at row
    # ky + 7 <= 11.  Keep the window bound in sync if this slicing changes.

    # --- conv2: 5 ky taps, each a Toeplitz matmul over (pooled col, channel) --
    acc2 = jnp.dot(pool1_ref[:, 0:H2, :].reshape(nb * H2, KP1), t2_ref[0],
                   preferred_element_type=f32)
    for ky in range(1, KSIZE):
        lhs = pool1_ref[:, ky:ky + H2, :].reshape(nb * H2, KP1)
        acc2 = acc2 + jnp.dot(lhs, t2_ref[ky], preferred_element_type=f32)
    a2_ref[...] = acc2.reshape(nb, H2, N2)                  # rows = conv2 output rows

    # --- 2x2 max-pool #2 + bias + ReLU + fc1 (accumulated over pooled rows) --
    z = jnp.zeros((nb, FC1_OUT), f32)
    for h in range(P2):
        m = jnp.maximum(a2_ref[:, 2 * h, :], a2_ref[:, 2 * h + 1, :])   # pool H
        m = jnp.maximum(m[:, :KP2], m[:, KP2:])                         # pool W
        m = jnp.maximum(m + b2_ref[...], 0.0)
        z = z + jnp.dot(m.astype(bf16), wf1_ref[h], preferred_element_type=f32)
    z = jnp.maximum(z + bf1_ref[...], 0.0)

    # --- fc2 ------------------------------------------------------------------
    y = jnp.dot(z.astype(bf16), wf2_ref[...], preferred_element_type=f32)
    o_ref[...] = y + bf2_ref[...]


# ---------------------------------------------------------------------------
# Wrapper glue (XLA): cheap input reshuffle + one batch-tiled pallas_call
# ---------------------------------------------------------------------------
def lenet5_vb_forward(x_nchw, kp, batch_tile=64):
    """x_nchw: [N, 1, 28, 28] -> logits [N, 10]."""
    n = x_nchw.shape[0]
    x = x_nchw.reshape(n, H_IN, W_IN).astype(jnp.float32)

    nb = batch_tile if n >= batch_tile else -(-n // 8) * 8
    pad_n = -(-n // nb) * nb
    grid = pad_n // nb

    # conv1 operand: for each output-row parity dy, row (sample, i) holds the
    # 5 ky-shifted input rows 2*i + dy + ky concatenated along the last axis,
    # so conv1 is a single matmul per parity against a Toeplitz weight matrix.
    halves = []
    for dy in (0, 1):
        taps = [x[:, dy + ky:dy + ky + H1:2, :] for ky in range(KSIZE)]  # [n,12,28]
        blk = jnp.concatenate(taps, axis=-1)                             # [n,12,140]
        blk = jnp.pad(blk, ((0, pad_n - n), (0, ROWS1 - P1), (0, 0)))    # [pad_n,16,140]
        halves.append(blk)
    xcat = jnp.stack(halves, axis=0).reshape(2, pad_n * ROWS1, K1).astype(jnp.bfloat16)

    weight_args = (kp["t1"], kp["b1"], kp["t2"], kp["b2"],
                   kp["wf1"], kp["bf1"], kp["wf2"], kp["bf2"])

    macs = pad_n * (2 * ROWS1 * K1 * N1 + KSIZE * H2 * KP1 * N2
                    + P2 * KP2 * FC1_OUT + FC1_OUT * FC2_OUT)
    bytes_accessed = int(xcat.size * 2 + pad_n * FC2_OUT * 4
                         + sum(int(np.prod(w.shape)) * w.dtype.itemsize
                               for w in weight_args))

    in_specs = [
        pl.BlockSpec((2, nb * ROWS1, K1), lambda b: (0, b, 0)),      # input tile
        pl.BlockSpec((K1, N1), lambda b: (0, 0)),                    # t1 (resident)
        pl.BlockSpec((1, KP1), lambda b: (0, 0)),                    # b1
        pl.BlockSpec((KSIZE, KP1, N2), lambda b: (0, 0, 0)),         # t2
        pl.BlockSpec((1, KP2), lambda b: (0, 0)),                    # b2
        pl.BlockSpec((P2, KP2, FC1_OUT), lambda b: (0, 0, 0)),       # wf1
        pl.BlockSpec((1, FC1_OUT), lambda b: (0, 0)),                # bf1
        pl.BlockSpec((FC1_OUT, FC2_OUT), lambda b: (0, 0)),          # wf2
        pl.BlockSpec((1, FC2_OUT), lambda b: (0, 0)),                # bf2
    ]

    out = pl.pallas_call(
        functools.partial(lenet5_vb_kernel, nb=nb),
        out_shape=jax.ShapeDtypeStruct((pad_n, FC2_OUT), jnp.float32),
        grid=(grid,),
        in_specs=in_specs,
        out_specs=pl.BlockSpec((nb, FC2_OUT), lambda b: (b, 0)),
        scratch_shapes=[
            pltpu.VMEM((nb, ROWS1, KP1), jnp.bfloat16),   # pool1
            pltpu.VMEM((nb, H2, N2), jnp.float32),        # conv2 output (pre-pool2)
        ],
        compiler_params=pltpu.CompilerParams(
            dimension_semantics=("parallel",),
            vmem_limit_bytes=48 * 1024 * 1024),
        cost_estimate=pl.CostEstimate(flops=2 * macs, transcendentals=0,
                                      bytes_accessed=bytes_accessed),
    )(xcat, *weight_args)
    return out[:n]


# ---------------------------------------------------------------------------
# Parameters (deterministic synthetic VB reparameterized weights)
# ---------------------------------------------------------------------------
def make_raw_params(key):
    """PyTorch-shaped, VB-sampled (mu + softplus(rho) * eps) parameters."""
    ks = jax.random.split(key, 16)

    def vb_sample(k_mu, k_eps, shape, fan_in):
        bound = 1.0 / math.sqrt(fan_in)
        mu = jax.random.uniform(k_mu, shape, jnp.float32, -bound, bound)
        rho = jnp.full(shape, -5.0, jnp.float32)          # sigma = softplus(rho)
        eps = jax.random.normal(k_eps, shape, jnp.float32)
        return mu + jax.nn.softplus(rho) * eps

    return dict(
        w1=vb_sample(ks[0], ks[1], (C1, C_IN, KSIZE, KSIZE), C_IN * KSIZE * KSIZE),
        b1=vb_sample(ks[2], ks[3], (C1,), C_IN * KSIZE * KSIZE),
        w2=vb_sample(ks[4], ks[5], (C2, C1, KSIZE, KSIZE), C1 * KSIZE * KSIZE),
        b2=vb_sample(ks[6], ks[7], (C2,), C1 * KSIZE * KSIZE),
        wf1=vb_sample(ks[8], ks[9], (FC1_OUT, P2 * P2 * C2), P2 * P2 * C2),
        bf1=vb_sample(ks[10], ks[11], (FC1_OUT,), P2 * P2 * C2),
        wf2=vb_sample(ks[12], ks[13], (FC2_OUT, FC1_OUT), FC1_OUT),
        bf2=vb_sample(ks[14], ks[15], (FC2_OUT,), FC1_OUT),
    )


def prepare_kernel_params(raw):
    """Expand PyTorch-shaped params into the kernel's Toeplitz bf16 layouts."""
    w1 = np.asarray(raw["w1"], np.float32)    # [20, 1, 5, 5]
    b1 = np.asarray(raw["b1"], np.float32)
    w2 = np.asarray(raw["w2"], np.float32)    # [50, 20, 5, 5]
    b2 = np.asarray(raw["b2"], np.float32)
    wf1 = np.asarray(raw["wf1"], np.float32)  # [500, 800]
    bf1 = np.asarray(raw["bf1"], np.float32)
    wf2 = np.asarray(raw["wf2"], np.float32)  # [10, 500]
    bf2 = np.asarray(raw["bf2"], np.float32)

    # conv1 Toeplitz: rows (ky, input col j'), cols (W-parity, pooled col, channel)
    t1 = np.zeros((K1, N1), np.float32)
    for ky in range(KSIZE):
        for j in range(H1):
            jp, dxp = j // 2, j % 2
            col0 = dxp * 256 + jp * C1
            for kx in range(KSIZE):
                t1[ky * W_IN + j + kx, col0:col0 + C1] = w1[:, 0, ky, kx]
    b1t = np.zeros((1, KP1), np.float32)
    for jp in range(P1):
        b1t[0, jp * C1:jp * C1 + C1] = b1

    # conv2 Toeplitz (one per ky): rows (pool1 col, channel), cols (W-parity, pooled col, channel)
    t2 = np.zeros((KSIZE, KP1, N2), np.float32)
    for ky in range(KSIZE):
        for j2 in range(H2):
            jp2, dxp2 = j2 // 2, j2 % 2
            col0 = dxp2 * 256 + jp2 * C2
            for kx in range(KSIZE):
                w_in = j2 + kx
                t2[ky, w_in * C1:w_in * C1 + C1, col0:col0 + C2] = w2[:, :, ky, kx].T
    b2t = np.zeros((1, KP2), np.float32)
    for jp2 in range(P2):
        b2t[0, jp2 * C2:jp2 * C2 + C2] = b2

    # fc1: one weight block per pooled output row h, rows ordered (pooled col, channel)
    # matching PyTorch's NCHW flatten index c*16 + h*4 + w.
    wf1p = np.zeros((P2, KP2, FC1_OUT), np.float32)
    for h in range(P2):
        for jp2 in range(P2):
            for co in range(C2):
                wf1p[h, jp2 * C2 + co, :] = wf1[:, co * 16 + h * 4 + jp2]

    bf16 = jnp.bfloat16
    return dict(
        t1=jnp.asarray(t1, bf16), b1=jnp.asarray(b1t),
        t2=jnp.asarray(t2, bf16), b2=jnp.asarray(b2t),
        wf1=jnp.asarray(wf1p, bf16), bf1=jnp.asarray(bf1.reshape(1, -1)),
        wf2=jnp.asarray(wf2.T, bf16), bf2=jnp.asarray(bf2.reshape(1, -1)),
    )


# ---------------------------------------------------------------------------
# Plain-JAX float32 reference (PyTorch semantics) for a tolerance check
# ---------------------------------------------------------------------------
def lenet5_reference(x_nchw, raw):
    def conv_relu(x, w, b):
        y = jax.lax.conv_general_dilated(
            x, w, (1, 1), "VALID", dimension_numbers=("NCHW", "OIHW", "NCHW"))
        return jax.nn.relu(y + b[None, :, None, None])

    def pool(x):
        n, c, h, w = x.shape
        return x.reshape(n, c, h // 2, 2, w // 2, 2).max(axis=(3, 5))

    a = pool(conv_relu(x_nchw.astype(jnp.float32), raw["w1"], raw["b1"]))
    a = pool(conv_relu(a, raw["w2"], raw["b2"]))
    a = a.reshape(a.shape[0], P2 * P2 * C2)
    a = jax.nn.relu(a @ raw["wf1"].T + raw["bf1"])
    return a @ raw["wf2"].T + raw["bf2"]


if __name__ == "__main__":
    key = jax.random.PRNGKey(0)
    pkey, xkey = jax.random.split(key)
    raw = make_raw_params(pkey)
    kp = prepare_kernel_params(raw)

    # LeNet-5 geometry forces 28x28 single-channel input (fc1 expects 4*4*50).
    x = jax.random.normal(xkey, (8, C_IN, H_IN, W_IN), jnp.float32)

    fwd = jax.jit(lambda inp: lenet5_vb_forward(inp, kp))
    out = jax.block_until_ready(fwd(x))

    assert out.shape == (8, FC2_OUT)
    assert out.dtype == jnp.float32
    assert bool(jnp.all(jnp.isfinite(out)))

    # bf16-level tolerance check against the float32 reference.
    ref = lenet5_reference(x, raw)
    err = float(jnp.max(jnp.abs(out - ref)))
    scale = float(jnp.max(jnp.abs(ref)))
    assert err <= 3e-2 + 5e-2 * scale, (err, scale)

    print("KERNEL_OK")
</pallas_src>

<mosaic_0001>
module attributes {stable_mosaic.version = 11 : i64} {
  func.func @lenet5_vb_kernel(%arg0: i32, %arg1: memref<2x128x140xbf16, #tpu.memory_space<vmem>>, %arg2: memref<140x512xbf16, #tpu.memory_space<vmem>>, %arg3: memref<1x256xf32, #tpu.memory_space<vmem>>, %arg4: memref<5x256x512xbf16, #tpu.memory_space<vmem>>, %arg5: memref<1x256xf32, #tpu.memory_space<vmem>>, %arg6: memref<4x256x500xbf16, #tpu.memory_space<vmem>>, %arg7: memref<1x500xf32, #tpu.memory_space<vmem>>, %arg8: memref<500x10xbf16, #tpu.memory_space<vmem>>, %arg9: memref<1x10xf32, #tpu.memory_space<vmem>>, %arg10: memref<8x10xf32, #tpu.memory_space<vmem>>, %arg11: memref<8x16x256xbf16, #tpu.memory_space<vmem>>, %arg12: memref<8x8x512xf32, #tpu.memory_space<vmem>>) attributes {dimension_semantics = [#tpu.dimension_semantics<parallel>], iteration_bounds = array<i64: 1>, scalar_prefetch = 0 : i64, scratch_operands = 2 : i64, tpu.core_type = #tpu.core_type<tc>, window_params = [{transform_indices = @transform_0, window_bounds = array<i64: 2, 128, 140>}, {pipeline_mode = #tpu.pipeline_mode<synchronous>, transform_indices = @transform_1, window_bounds = array<i64: 140, 512>}, {pipeline_mode = #tpu.pipeline_mode<synchronous>, transform_indices = @transform_2, window_bounds = array<i64: 1, 256>}, {pipeline_mode = #tpu.pipeline_mode<synchronous>, transform_indices = @transform_3, window_bounds = array<i64: 5, 256, 512>}, {pipeline_mode = #tpu.pipeline_mode<synchronous>, transform_indices = @transform_4, window_bounds = array<i64: 1, 256>}, {pipeline_mode = #tpu.pipeline_mode<synchronous>, transform_indices = @transform_5, window_bounds = array<i64: 4, 256, 500>}, {pipeline_mode = #tpu.pipeline_mode<synchronous>, transform_indices = @transform_6, window_bounds = array<i64: 1, 500>}, {pipeline_mode = #tpu.pipeline_mode<synchronous>, transform_indices = @transform_7, window_bounds = array<i64: 500, 10>}, {pipeline_mode = #tpu.pipeline_mode<synchronous>, transform_indices = @transform_8, window_bounds = array<i64: 1, 10>}, {transform_indices = @transform_9, window_bounds = array<i64: 8, 10>}]} {
    %c0 = arith.constant 0 : index
    %c0_0 = arith.constant 0 : index
    %c0_1 = arith.constant 0 : index
    %0 = vector.load %arg1[%c0, %c0_0, %c0_1] : memref<2x128x140xbf16, #tpu.memory_space<vmem>>, vector<1x128x140xbf16>
    %1 = vector.shape_cast %0 : vector<1x128x140xbf16> to vector<128x140xbf16>
    %c0_2 = arith.constant 0 : index
    %c0_3 = arith.constant 0 : index
    %2 = vector.load %arg2[%c0_2, %c0_3] : memref<140x512xbf16, #tpu.memory_space<vmem>>, vector<140x512xbf16>
    %cst = arith.constant dense<0.000000e+00> : vector<128x512xf32>
    %3 = tpu.matmul %1, %2, %cst {dimension_numbers = #tpu.dot_dimension_numbers<[1], [0], [0], [1], [0, 0, 1, 1], [], []>} : vector<128x140xbf16>, vector<140x512xbf16>, vector<128x512xf32> -> vector<128x512xf32>
    %c1 = arith.constant 1 : index
    %c0_4 = arith.constant 0 : index
    %c0_5 = arith.constant 0 : index
    %4 = vector.load %arg1[%c1, %c0_4, %c0_5] : memref<2x128x140xbf16, #tpu.memory_space<vmem>>, vector<1x128x140xbf16>
    %5 = vector.shape_cast %4 : vector<1x128x140xbf16> to vector<128x140xbf16>
    %c0_6 = arith.constant 0 : index
    %c0_7 = arith.constant 0 : index
    %6 = vector.load %arg2[%c0_6, %c0_7] : memref<140x512xbf16, #tpu.memory_space<vmem>>, vector<140x512xbf16>
    %cst_8 = arith.constant dense<0.000000e+00> : vector<128x512xf32>
    %7 = tpu.matmul %5, %6, %cst_8 {dimension_numbers = #tpu.dot_dimension_numbers<[1], [0], [0], [1], [0, 0, 1, 1], [], []>} : vector<128x140xbf16>, vector<140x512xbf16>, vector<128x512xf32> -> vector<128x512xf32>
    %8 = arith.maximumf %3, %7 : vector<128x512xf32>
    %9 = vector.extract_strided_slice %8 {offsets = [0, 0], sizes = [128, 256], strides = [1, 1]} : vector<128x512xf32> to vector<128x256xf32>
    %10 = vector.extract_strided_slice %8 {offsets = [0, 256], sizes = [128, 256], strides = [1, 1]} : vector<128x512xf32> to vector<128x256xf32>
    %11 = arith.maximumf %9, %10 : vector<128x256xf32>
    %c0_9 = arith.constant 0 : index
    %c0_10 = arith.constant 0 : index
    %12 = vector.load %arg3[%c0_9, %c0_10] : memref<1x256xf32, #tpu.memory_space<vmem>>, vector<1x256xf32>
    %13 = vector.broadcast %12 : vector<1x256xf32> to vector<128x256xf32>
    %14 = arith.addf %11, %13 : vector<128x256xf32>
    %cst_11 = arith.constant 0.000000e+00 : f32
    %15 = vector.broadcast %cst_11 : f32 to vector<128x256xf32>
    %16 = arith.maximumf %14, %15 : vector<128x256xf32>
    %17 = vector.shape_cast %16 : vector<128x256xf32> to vector<8x16x256xf32>
    %18 = arith.truncf %17 : vector<8x16x256xf32> to vector<8x16x256xbf16>
    %c0_12 = arith.constant 0 : index
    %c0_13 = arith.constant 0 : index
    %c0_14 = arith.constant 0 : index
    %19 = vector.load %arg11[%c0_12, %c0_13, %c0_14] : memref<8x16x256xbf16, #tpu.memory_space<vmem>>, vector<8x16x256xbf16>
    tpu.vector_store %arg11[%c0_12, %c0_13, %c0_14], %18 {strides = array<i32>} : memref<8x16x256xbf16, #tpu.memory_space<vmem>>, vector<8x16x256xbf16>,
    %c0_15 = arith.constant 0 : index
    %c0_16 = arith.constant 0 : index
    %c0_17 = arith.constant 0 : index
    %20 = vector.load %arg11[%c0_15, %c0_16, %c0_17] : memref<8x16x256xbf16, #tpu.memory_space<vmem>>, vector<8x8x256xbf16>
    %21 = vector.shape_cast %20 : vector<8x8x256xbf16> to vector<64x256xbf16>
    %c0_18 = arith.constant 0 : index
    %c0_19 = arith.constant 0 : index
    %c0_20 = arith.constant 0 : index
    %22 = vector.load %arg4[%c0_18, %c0_19, %c0_20] : memref<5x256x512xbf16, #tpu.memory_space<vmem>>, vector<1x256x512xbf16>
    %23 = vector.shape_cast %22 : vector<1x256x512xbf16> to vector<256x512xbf16>
    %cst_21 = arith.constant dense<0.000000e+00> : vector<64x512xf32>
    %24 = tpu.matmul %21, %23, %cst_21 {dimension_numbers = #tpu.dot_dimension_numbers<[1], [0], [0], [1], [0, 0, 1, 1], [], []>} : vector<64x256xbf16>, vector<256x512xbf16>, vector<64x512xf32> -> vector<64x512xf32>
    %c0_22 = arith.constant 0 : index
    %c1_23 = arith.constant 1 : index
    %c0_24 = arith.constant 0 : index
    %25 = vector.load %arg11[%c0_22, %c1_23, %c0_24] : memref<8x16x256xbf16, #tpu.memory_space<vmem>>, vector<8x8x256xbf16>
    %26 = vector.shape_cast %25 : vector<8x8x256xbf16> to vector<64x256xbf16>
    %c1_25 = arith.constant 1 : index
    %c0_26 = arith.constant 0 : index
    %c0_27 = arith.constant 0 : index
    %27 = vector.load %arg4[%c1_25, %c0_26, %c0_27] : memref<5x256x512xbf16, #tpu.memory_space<vmem>>, vector<1x256x512xbf16>
    %28 = vector.shape_cast %27 : vector<1x256x512xbf16> to vector<256x512xbf16>
    %cst_28 = arith.constant dense<0.000000e+00> : vector<64x512xf32>
    %29 = tpu.matmul %26, %28, %cst_28 {dimension_numbers = #tpu.dot_dimension_numbers<[1], [0], [0], [1], [0, 0, 1, 1], [], []>} : vector<64x256xbf16>, vector<256x512xbf16>, vector<64x512xf32> -> vector<64x512xf32>
    %30 = arith.addf %24, %29 : vector<64x512xf32>
    %c0_29 = arith.constant 0 : index
    %c2 = arith.constant 2 : index
    %c0_30 = arith.constant 0 : index
    %31 = vector.load %arg11[%c0_29, %c2, %c0_30] : memref<8x16x256xbf16, #tpu.memory_space<vmem>>, vector<8x8x256xbf16>
    %32 = vector.shape_cast %31 : vector<8x8x256xbf16> to vector<64x256xbf16>
    %c2_31 = arith.constant 2 : index
    %c0_32 = arith.constant 0 : index
    %c0_33 = arith.constant 0 : index
    %33 = vector.load %arg4[%c2_31, %c0_32, %c0_33] : memref<5x256x512xbf16, #tpu.memory_space<vmem>>, vector<1x256x512xbf16>
    %34 = vector.shape_cast %33 : vector<1x256x512xbf16> to vector<256x512xbf16>
    %cst_34 = arith.constant dense<0.000000e+00> : vector<64x512xf32>
    %35 = tpu.matmul %32, %34, %cst_34 {dimension_numbers = #tpu.dot_dimension_numbers<[1], [0], [0], [1], [0, 0, 1, 1], [], []>} : vector<64x256xbf16>, vector<256x512xbf16>, vector<64x512xf32> -> vector<64x512xf32>
    %36 = arith.addf %30, %35 : vector<64x512xf32>
    %c0_35 = arith.constant 0 : index
    %c3 = arith.constant 3 : index
    %c0_36 = arith.constant 0 : index
    %37 = vector.load %arg11[%c0_35, %c3, %c0_36] : memref<8x16x256xbf16, #tpu.memory_space<vmem>>, vector<8x8x256xbf16>
    %38 = vector.shape_cast %37 : vector<8x8x256xbf16> to vector<64x256xbf16>
    %c3_37 = arith.constant 3 : index
    %c0_38 = arith.constant 0 : index
    %c0_39 = arith.constant 0 : index
    %39 = vector.load %arg4[%c3_37, %c0_38, %c0_39] : memref<5x256x512xbf16, #tpu.memory_space<vmem>>, vector<1x256x512xbf16>
    %40 = vector.shape_cast %39 : vector<1x256x512xbf16> to vector<256x512xbf16>
    %cst_40 = arith.constant dense<0.000000e+00> : vector<64x512xf32>
    %41 = tpu.matmul %38, %40, %cst_40 {dimension_numbers = #tpu.dot_dimension_numbers<[1], [0], [0], [1], [0, 0, 1, 1], [], []>} : vector<64x256xbf16>, vector<256x512xbf16>, vector<64x512xf32> -> vector<64x512xf32>
    %42 = arith.addf %36, %41 : vector<64x512xf32>
    %c0_41 = arith.constant 0 : index
    %c4 = arith.constant 4 : index
    %c0_42 = arith.constant 0 : index
    %43 = vector.load %arg11[%c0_41, %c4, %c0_42] : memref<8x16x256xbf16, #tpu.memory_space<vmem>>, vector<8x8x256xbf16>
    %44 = vector.shape_cast %43 : vector<8x8x256xbf16> to vector<64x256xbf16>
    %c4_43 = arith.constant 4 : index
    %c0_44 = arith.constant 0 : index
    %c0_45 = arith.constant 0 : index
    %45 = vector.load %arg4[%c4_43, %c0_44, %c0_45] : memref<5x256x512xbf16, #tpu.memory_space<vmem>>, vector<1x256x512xbf16>
    %46 = vector.shape_cast %45 : vector<1x256x512xbf16> to vector<256x512xbf16>
    %cst_46 = arith.constant dense<0.000000e+00> : vector<64x512xf32>
    %47 = tpu.matmul %44, %46, %cst_46 {dimension_numbers = #tpu.dot_dimension_numbers<[1], [0], [0], [1], [0, 0, 1, 1], [], []>} : vector<64x256xbf16>, vector<256x512xbf16>, vector<64x512xf32> -> vector<64x512xf32>
    %48 = arith.addf %42, %47 : vector<64x512xf32>
    %49 = vector.shape_cast %48 : vector<64x512xf32> to vector<8x8x512xf32>
    %c0_47 = arith.constant 0 : index
    %c0_48 = arith.constant 0 : index
    %c0_49 = arith.constant 0 : index
    %50 = vector.load %arg12[%c0_47, %c0_48, %c0_49] : memref<8x8x512xf32, #tpu.memory_space<vmem>>, vector<8x8x512xf32>
    tpu.vector_store %arg12[%c0_47, %c0_48, %c0_49], %49 {strides = array<i32>} : memref<8x8x512xf32, #tpu.memory_space<vmem>>, vector<8x8x512xf32>,
    %cst_50 = arith.constant 0.000000e+00 : f32
    %51 = vector.broadcast %cst_50 : f32 to vector<8x500xf32>
    %c0_51 = arith.constant 0 : index
    %c0_52 = arith.constant 0 : index
    %c0_53 = arith.constant 0 : index
    %52 = vector.load %arg12[%c0_51, %c0_52, %c0_53] : memref<8x8x512xf32, #tpu.memory_space<vmem>>, vector<8x1x512xf32>
    %53 = vector.shape_cast %52 : vector<8x1x512xf32> to vector<8x512xf32>
    %c0_54 = arith.constant 0 : index
    %c1_55 = arith.constant 1 : index
    %c0_56 = arith.constant 0 : index
    %54 = vector.load %arg12[%c0_54, %c1_55, %c0_56] : memref<8x8x512xf32, #tpu.memory_space<vmem>>, vector<8x1x512xf32>
    %55 = vector.shape_cast %54 : vector<8x1x512xf32> to vector<8x512xf32>
    %56 = arith.maximumf %53, %55 : vector<8x512xf32>
    %57 = vector.extract_strided_slice %56 {offsets = [0, 0], sizes = [8, 256], strides = [1, 1]} : vector<8x512xf32> to vector<8x256xf32>
    %58 = vector.extract_strided_slice %56 {offsets = [0, 256], sizes = [8, 256], strides = [1, 1]} : vector<8x512xf32> to vector<8x256xf32>
    %59 = arith.maximumf %57, %58 : vector<8x256xf32>
    %c0_57 = arith.constant 0 : index
    %c0_58 = arith.constant 0 : index
    %60 = vector.load %arg5[%c0_57, %c0_58] : memref<1x256xf32, #tpu.memory_space<vmem>>, vector<1x256xf32>
    %61 = vector.broadcast %60 : vector<1x256xf32> to vector<8x256xf32>
    %62 = arith.addf %59, %61 : vector<8x256xf32>
    %cst_59 = arith.constant 0.000000e+00 : f32
    %63 = vector.broadcast %cst_59 : f32 to vector<8x256xf32>
    %64 = arith.maximumf %62, %63 : vector<8x256xf32>
    %65 = arith.truncf %64 : vector<8x256xf32> to vector<8x256xbf16>
    %c0_60 = arith.constant 0 : index
    %c0_61 = arith.constant 0 : index
    %c0_62 = arith.constant 0 : index
    %66 = vector.load %arg6[%c0_60, %c0_61, %c0_62] : memref<4x256x500xbf16, #tpu.memory_space<vmem>>, vector<1x256x500xbf16>
    %67 = vector.shape_cast %66 : vector<1x256x500xbf16> to vector<256x500xbf16>
    %cst_63 = arith.constant dense<0.000000e+00> : vector<8x500xf32>
    %68 = tpu.matmul %65, %67, %cst_63 {dimension_numbers = #tpu.dot_dimension_numbers<[1], [0], [0], [1], [0, 0, 1, 1], [], []>} : vector<8x256xbf16>, vector<256x500xbf16>, vector<8x500xf32> -> vector<8x500xf32>
    %69 = arith.addf %51, %68 : vector<8x500xf32>
    %c0_64 = arith.constant 0 : index
    %c2_65 = arith.constant 2 : index
    %c0_66 = arith.constant 0 : index
    %70 = vector.load %arg12[%c0_64, %c2_65, %c0_66] : memref<8x8x512xf32, #tpu.memory_space<vmem>>, vector<8x1x512xf32>
    %71 = vector.shape_cast %70 : vector<8x1x512xf32> to vector<8x512xf32>
    %c0_67 = arith.constant 0 : index
    %c3_68 = arith.constant 3 : index
    %c0_69 = arith.constant 0 : index
    %72 = vector.load %arg12[%c0_67, %c3_68, %c0_69] : memref<8x8x512xf32, #tpu.memory_space<vmem>>, vector<8x1x512xf32>
    %73 = vector.shape_cast %72 : vector<8x1x512xf32> to vector<8x512xf32>
    %74 = arith.maximumf %71, %73 : vector<8x512xf32>
    %75 = vector.extract_strided_slice %74 {offsets = [0, 0], sizes = [8, 256], strides = [1, 1]} : vector<8x512xf32> to vector<8x256xf32>
    %76 = vector.extract_strided_slice %74 {offsets = [0, 256], sizes = [8, 256], strides = [1, 1]} : vector<8x512xf32> to vector<8x256xf32>
    %77 = arith.maximumf %75, %76 : vector<8x256xf32>
    %c0_70 = arith.constant 0 : index
    %c0_71 = arith.constant 0 : index
    %78 = vector.load %arg5[%c0_70, %c0_71] : memref<1x256xf32, #tpu.memory_space<vmem>>, vector<1x256xf32>
    %79 = vector.broadcast %78 : vector<1x256xf32> to vector<8x256xf32>
    %80 = arith.addf %77, %79 : vector<8x256xf32>
    %cst_72 = arith.constant 0.000000e+00 : f32
    %81 = vector.broadcast %cst_72 : f32 to vector<8x256xf32>
    %82 = arith.maximumf %80, %81 : vector<8x256xf32>
    %83 = arith.truncf %82 : vector<8x256xf32> to vector<8x256xbf16>
    %c1_73 = arith.constant 1 : index
    %c0_74 = arith.constant 0 : index
    %c0_75 = arith.constant 0 : index
    %84 = vector.load %arg6[%c1_73, %c0_74, %c0_75] : memref<4x256x500xbf16, #tpu.memory_space<vmem>>, vector<1x256x500xbf16>
    %85 = vector.shape_cast %84 : vector<1x256x500xbf16> to vector<256x500xbf16>
    %cst_76 = arith.constant dense<0.000000e+00> : vector<8x500xf32>
    %86 = tpu.matmul %83, %85, %cst_76 {dimension_numbers = #tpu.dot_dimension_numbers<[1], [0], [0], [1], [0, 0, 1, 1], [], []>} : vector<8x256xbf16>, vector<256x500xbf16>, vector<8x500xf32> -> vector<8x500xf32>
    %87 = arith.addf %69, %86 : vector<8x500xf32>
    %c0_77 = arith.constant 0 : index
    %c4_78 = arith.constant 4 : index
    %c0_79 = arith.constant 0 : index
    %88 = vector.load %arg12[%c0_77, %c4_78, %c0_79] : memref<8x8x512xf32, #tpu.memory_space<vmem>>, vector<8x1x512xf32>
    %89 = vector.shape_cast %88 : vector<8x1x512xf32> to vector<8x512xf32>
    %c0_80 = arith.constant 0 : index
    %c5 = arith.constant 5 : index
    %c0_81 = arith.constant 0 : index
    %90 = vector.load %arg12[%c0_80, %c5, %c0_81] : memref<8x8x512xf32, #tpu.memory_space<vmem>>, vector<8x1x512xf32>
    %91 = vector.shape_cast %90 : vector<8x1x512xf32> to vector<8x512xf32>
    %92 = arith.maximumf %89, %91 : vector<8x512xf32>
    %93 = vector.extract_strided_slice %92 {offsets = [0, 0], sizes = [8, 256], strides = [1, 1]} : vector<8x512xf32> to vector<8x256xf32>
    %94 = vector.extract_strided_slice %92 {offsets = [0, 256], sizes = [8, 256], strides = [1, 1]} : vector<8x512xf32> to vector<8x256xf32>
    %95 = arith.maximumf %93, %94 : vector<8x256xf32>
    %c0_82 = arith.constant 0 : index
    %c0_83 = arith.constant 0 : index
    %96 = vector.load %arg5[%c0_82, %c0_83] : memref<1x256xf32, #tpu.memory_space<vmem>>, vector<1x256xf32>
    %97 = vector.broadcast %96 : vector<1x256xf32> to vector<8x256xf32>
    %98 = arith.addf %95, %97 : vector<8x256xf32>
    %cst_84 = arith.constant 0.000000e+00 : f32
    %99 = vector.broadcast %cst_84 : f32 to vector<8x256xf32>
    %100 = arith.maximumf %98, %99 : vector<8x256xf32>
    %101 = arith.truncf %100 : vector<8x256xf32> to vector<8x256xbf16>
    %c2_85 = arith.constant 2 : index
    %c0_86 = arith.constant 0 : index
    %c0_87 = arith.constant 0 : index
    %102 = vector.load %arg6[%c2_85, %c0_86, %c0_87] : memref<4x256x500xbf16, #tpu.memory_space<vmem>>, vector<1x256x500xbf16>
    %103 = vector.shape_cast %102 : vector<1x256x500xbf16> to vector<256x500xbf16>
    %cst_88 = arith.constant dense<0.000000e+00> : vector<8x500xf32>
    %104 = tpu.matmul %101, %103, %cst_88 {dimension_numbers = #tpu.dot_dimension_numbers<[1], [0], [0], [1], [0, 0, 1, 1], [], []>} : vector<8x256xbf16>, vector<256x500xbf16>, vector<8x500xf32> -> vector<8x500xf32>
    %105 = arith.addf %87, %104 : vector<8x500xf32>
    %c0_89 = arith.constant 0 : index
    %c6 = arith.constant 6 : index
    %c0_90 = arith.constant 0 : index
    %106 = vector.load %arg12[%c0_89, %c6, %c0_90] : memref<8x8x512xf32, #tpu.memory_space<vmem>>, vector<8x1x512xf32>
    %107 = vector.shape_cast %106 : vector<8x1x512xf32> to vector<8x512xf32>
    %c0_91 = arith.constant 0 : index
    %c7 = arith.constant 7 : index
    %c0_92 = arith.constant 0 : index
    %108 = vector.load %arg12[%c0_91, %c7, %c0_92] : memref<8x8x512xf32, #tpu.memory_space<vmem>>, vector<8x1x512xf32>
    %109 = vector.shape_cast %108 : vector<8x1x512xf32> to vector<8x512xf32>
    %110 = arith.maximumf %107, %109 : vector<8x512xf32>
    %111 = vector.extract_strided_slice %110 {offsets = [0, 0], sizes = [8, 256], strides = [1, 1]} : vector<8x512xf32> to vector<8x256xf32>
    %112 = vector.extract_strided_slice %110 {offsets = [0, 256], sizes = [8, 256], strides = [1, 1]} : vector<8x512xf32> to vector<8x256xf32>
    %113 = arith.maximumf %111, %112 : vector<8x256xf32>
    %c0_93 = arith.constant 0 : index
    %c0_94 = arith.constant 0 : index
    %114 = vector.load %arg5[%c0_93, %c0_94] : memref<1x256xf32, #tpu.memory_space<vmem>>, vector<1x256xf32>
    %115 = vector.broadcast %114 : vector<1x256xf32> to vector<8x256xf32>
    %116 = arith.addf %113, %115 : vector<8x256xf32>
    %cst_95 = arith.constant 0.000000e+00 : f32
    %117 = vector.broadcast %cst_95 : f32 to vector<8x256xf32>
    %118 = arith.maximumf %116, %117 : vector<8x256xf32>
    %119 = arith.truncf %118 : vector<8x256xf32> to vector<8x256xbf16>
    %c3_96 = arith.constant 3 : index
    %c0_97 = arith.constant 0 : index
    %c0_98 = arith.constant 0 : index
    %120 = vector.load %arg6[%c3_96, %c0_97, %c0_98] : memref<4x256x500xbf16, #tpu.memory_space<vmem>>, vector<1x256x500xbf16>
    %121 = vector.shape_cast %120 : vector<1x256x500xbf16> to vector<256x500xbf16>
    %cst_99 = arith.constant dense<0.000000e+00> : vector<8x500xf32>
    %122 = tpu.matmul %119, %121, %cst_99 {dimension_numbers = #tpu.dot_dimension_numbers<[1], [0], [0], [1], [0, 0, 1, 1], [], []>} : vector<8x256xbf16>, vector<256x500xbf16>, vector<8x500xf32> -> vector<8x500xf32>
    %123 = arith.addf %105, %122 : vector<8x500xf32>
    %c0_100 = arith.constant 0 : index
    %c0_101 = arith.constant 0 : index
    %124 = vector.load %arg7[%c0_100, %c0_101] : memref<1x500xf32, #tpu.memory_space<vmem>>, vector<1x500xf32>
    %125 = vector.broadcast %124 : vector<1x500xf32> to vector<8x500xf32>
    %126 = arith.addf %123, %125 : vector<8x500xf32>
    %cst_102 = arith.constant 0.000000e+00 : f32
    %127 = vector.broadcast %cst_102 : f32 to vector<8x500xf32>
    %128 = arith.maximumf %126, %127 : vector<8x500xf32>
    %129 = arith.truncf %128 : vector<8x500xf32> to vector<8x500xbf16>
    %c0_103 = arith.constant 0 : index
    %c0_104 = arith.constant 0 : index
    %130 = vector.load %arg8[%c0_103, %c0_104] : memref<500x10xbf16, #tpu.memory_space<vmem>>, vector<500x10xbf16>
    %cst_105 = arith.constant dense<0.000000e+00> : vector<8x10xf32>
    %131 = tpu.matmul %129, %130, %cst_105 {dimension_numbers = #tpu.dot_dimension_numbers<[1], [0], [0], [1], [0, 0, 1, 1], [], []>} : vector<8x500xbf16>, vector<500x10xbf16>, vector<8x10xf32> -> vector<8x10xf32>
    %c0_106 = arith.constant 0 : index
    %c0_107 = arith.constant 0 : index
    %132 = vector.load %arg9[%c0_106, %c0_107] : memref<1x10xf32, #tpu.memory_space<vmem>>, vector<1x10xf32>
    %133 = vector.broadcast %132 : vector<1x10xf32> to vector<8x10xf32>
    %134 = arith.addf %131, %133 : vector<8x10xf32>
    %c0_108 = arith.constant 0 : index
    %c0_109 = arith.constant 0 : index
    %135 = vector.load %arg10[%c0_108, %c0_109] : memref<8x10xf32, #tpu.memory_space<vmem>>, vector<8x10xf32>
    tpu.vector_store %arg10[%c0_108, %c0_109], %134 {strides = array<i32>} : memref<8x10xf32, #tpu.memory_space<vmem>>, vector<8x10xf32>,
    return
  }
  func.func @transform_0(%arg0: i32) -> (i32, i32, i32) {
    %c0_i32 = arith.constant 0 : i32
    %c0_i32_0 = arith.constant 0 : i32
    %c0_i32_1 = arith.constant 0 : i32
    return %c0_i32, %arg0, %c0_i32_0 : i32, i32, i32
  }
  func.func @transform_1(%arg0: i32) -> (i32, i32) {
    %c0_i32 = arith.constant 0 : i32
    %c0_i32_0 = arith.constant 0 : i32
    %c0_i32_1 = arith.constant 0 : i32
    return %c0_i32, %c0_i32_0 : i32, i32
  }
  func.func @transform_2(%arg0: i32) -> (i32, i32) {
    %c0_i32 = arith.constant 0 : i32
    %c0_i32_0 = arith.constant 0 : i32
    %c0_i32_1 = arith.constant 0 : i32
    return %c0_i32, %c0_i32_0 : i32, i32
  }
  func.func @transform_3(%arg0: i32) -> (i32, i32, i32) {
    %c0_i32 = arith.constant 0 : i32
    %c0_i32_0 = arith.constant 0 : i32
    %c0_i32_1 = arith.constant 0 : i32
    %c0_i32_2 = arith.constant 0 : i32
    return %c0_i32, %c0_i32_0, %c0_i32_1 : i32, i32, i32
  }
  func.func @transform_4(%arg0: i32) -> (i32, i32) {
    %c0_i32 = arith.constant 0 : i32
    %c0_i32_0 = arith.constant 0 : i32
    %c0_i32_1 = arith.constant 0 : i32
    return %c0_i32, %c0_i32_0 : i32, i32
  }
  func.func @transform_5(%arg0: i32) -> (i32, i32, i32) {
    %c0_i32 = arith.constant 0 : i32
    %c0_i32_0 = arith.constant 0 : i32
    %c0_i32_1 = arith.constant 0 : i32
    %c0_i32_2 = arith.constant 0 : i32
    return %c0_i32, %c0_i32_0, %c0_i32_1 : i32, i32, i32
  }
  func.func @transform_6(%arg0: i32) -> (i32, i32) {
    %c0_i32 = arith.constant 0 : i32
    %c0_i32_0 = arith.constant 0 : i32
    %c0_i32_1 = arith.constant 0 : i32
    return %c0_i32, %c0_i32_0 : i32, i32
  }
  func.func @transform_7(%arg0: i32) -> (i32, i32) {
    %c0_i32 = arith.constant 0 : i32
    %c0_i32_0 = arith.constant 0 : i32
    %c0_i32_1 = arith.constant 0 : i32
    return %c0_i32, %c0_i32_0 : i32, i32
  }
  func.func @transform_8(%arg0: i32) -> (i32, i32) {
    %c0_i32 = arith.constant 0 : i32
    %c0_i32_0 = arith.constant 0 : i32
    %c0_i32_1 = arith.constant 0 : i32
    return %c0_i32, %c0_i32_0 : i32, i32
  }
  func.func @transform_9(%arg0: i32) -> (i32, i32) {
    %c0_i32 = arith.constant 0 : i32
    %c0_i32_0 = arith.constant 0 : i32
    return %arg0, %c0_i32 : i32, i32
  }
}

</mosaic_0001>

<llo_original>
// kernel: _lambda_.1
$region0: #{_lambda_.1}
  #allocation0 [shape = 'u32[]', space=smem, size = 0x4, offset = 0x4, fixed_abs, tag = 'smem constant byte address 0x4 - core index']
  #allocation1 [shape = 'u32[144,128]{1,0:T(1,128)}', space=vmem, size = 0x12000, scoped, tag = 'internal scratch']
  #allocation2 [shape = 'bf16[8,16,256]{2,1,0:T(16,128)(2,1)}', space=vmem, size = 0x10000, scoped, tag = 'scratch operand']
  #allocation3 [shape = 'f32[8,8,512]{2,1,0:T(8,128)}', space=vmem, size = 0x20000, scoped, tag = 'scratch operand']
  %s0 = inlined_call_operand.vmem [shape: bf16[2,128,140], index: 0, kind: input, shape index: {}]
  %s1 = inlined_call_operand.vmem [shape: bf16[140,512], index: 1, kind: input, shape index: {}]
  %s2 = inlined_call_operand.vmem [shape: f32[1,256], index: 2, kind: input, shape index: {}]
  %s3 = inlined_call_operand.vmem [shape: bf16[5,256,512], index: 3, kind: input, shape index: {}]
  %s4 = inlined_call_operand.vmem [shape: f32[1,256], index: 4, kind: input, shape index: {}]
  %s5 = inlined_call_operand.vmem [shape: bf16[4,256,500], index: 5, kind: input, shape index: {}]
  %s6 = inlined_call_operand.vmem [shape: f32[1,500], index: 6, kind: input, shape index: {}]
  %s7 = inlined_call_operand.vmem [shape: bf16[500,10], index: 7, kind: input, shape index: {}]
  %s8 = inlined_call_operand.vmem [shape: f32[1,10], index: 8, kind: input, shape index: {}]
  %s9 = inlined_call_operand.hbm [shape: f32[8,10], index: 9, kind: output, shape index: {}]
  %s10 = sld [smem:[#allocation0]]
  $region46: #{_lambda_.1} parent=0
    _
  %s12 = ssub.s32 1, %s10
  %s13 = scalar_select 0, %s12, %s10
  $region1: #{_lambda_.1} parent=0
    #allocation4 [shape = 'u8[4096]{0}', space=vmem, size = 0x1000, scoped, tag = 'output window, operand 0, single buffered']
    #allocation5 [shape = 's32[1]{0}', space=sflag, size = 0x4, scoped, tag = 'scoped memory for _lambda_.1']
    %14 = vsyncpa [#allocation5], 0
    // Predicated region
    $region2: #{_lambda_.1} parent=1 // pred_check
      _
    $region3: #{_lambda_.1} parent=1 // pred_check_branch
      %16 = sbr.rel (0) target = $region5
    $region4: #{_lambda_.1} parent=1 // pred_region
      _
    $region5: #{_lambda_.1} parent=1 // pred_fallthru
      _
    // Predicated region
    $region6: #{_lambda_.1} parent=1 // pred_check
      _
    $region7: #{_lambda_.1} parent=1 // pred_check_branch
      %18 = sbr.rel (0) target = $region9
    $region8: #{_lambda_.1} parent=1 // pred_region
      _
    $region9: #{_lambda_.1} parent=1 // pred_fallthru
      _
    // Predicated region
    $region10: #{_lambda_.1} parent=1 // pred_check
      _
    $region11: #{_lambda_.1} parent=1 // pred_check_branch
      %20 = sbr.rel (0) target = $region13
    $region12: #{_lambda_.1} parent=1 // pred_region
      _
    $region13: #{_lambda_.1} parent=1 // pred_fallthru
      _
    // Predicated region
    $region14: #{_lambda_.1} parent=1 // pred_check
      _
    $region15: #{_lambda_.1} parent=1 // pred_check_branch
      %22 = sbr.rel (0) target = $region17
    $region16: #{_lambda_.1} parent=1 // pred_region
      _
    $region17: #{_lambda_.1} parent=1 // pred_fallthru
      _
    // Predicated region
    $region18: #{_lambda_.1} parent=1 // pred_check
      _
    $region19: #{_lambda_.1} parent=1 // pred_check_branch
      %24 = sbr.rel (0) target = $region21
    $region20: #{_lambda_.1} parent=1 // pred_region
      _
    $region21: #{_lambda_.1} parent=1 // pred_fallthru
      _
    // Predicated region
    $region22: #{_lambda_.1} parent=1 // pred_check
      _
    $region23: #{_lambda_.1} parent=1 // pred_check_branch
      %26 = sbr.rel (0) target = $region25
    $region24: #{_lambda_.1} parent=1 // pred_region
      _
    $region25: #{_lambda_.1} parent=1 // pred_fallthru
      _
    // Predicated region
    $region26: #{_lambda_.1} parent=1 // pred_check
      _
    $region27: #{_lambda_.1} parent=1 // pred_check_branch
      %28 = sbr.rel (0) target = $region29
    $region28: #{_lambda_.1} parent=1 // pred_region
      _
    $region29: #{_lambda_.1} parent=1 // pred_fallthru
      _
    // Predicated region
    $region30: #{_lambda_.1} parent=1 // pred_check
      _
    $region31: #{_lambda_.1} parent=1 // pred_check_branch
      %30 = sbr.rel (0) target = $region33
    $region32: #{_lambda_.1} parent=1 // pred_region
      _
    $region33: #{_lambda_.1} parent=1 // pred_fallthru
      _
    // Predicated region
    $region34: #{_lambda_.1} parent=1 // pred_check
      _
    $region35: #{_lambda_.1} parent=1 // pred_check_branch
      %32 = sbr.rel (0) target = $region37
    $region36: #{_lambda_.1} parent=1 // pred_region
      _
    $region37: #{_lambda_.1} parent=1 // pred_fallthru
      _
    %v34 = vld [vmem:[%s0] sm:$0xff]
    %v35 = vld [vmem:[%s0 + $0x8] sm:$0xff]
    %v36 = vld [vmem:[%s0 + $0x10] sm:$0xff]
    %v37 = vld [vmem:[%s0 + $0x18] sm:$0xff]
    %v38 = vld [vmem:[%s0 + $0x20] sm:$0xff]
    %v39 = vld [vmem:[%s0 + $0x28] sm:$0xff]
    %v40 = vld [vmem:[%s0 + $0x30] sm:$0xff]
    %v41 = vld [vmem:[%s0 + $0x38] sm:$0xff]
    %v42 = vld [vmem:[%s0 + $0x40] sm:$0xff]
    %v43 = vld [vmem:[%s0 + $0x48] sm:$0xff]
    %v44 = vld [vmem:[%s0 + $0x50] sm:$0xff]
    %v45 = vld [vmem:[%s0 + $0x58] sm:$0xff]
    %v46 = vld [vmem:[%s0 + $0x60] sm:$0xff]
    %v47 = vld [vmem:[%s0 + $0x68] sm:$0xff]
    %v48 = vld [vmem:[%s0 + $0x70] sm:$0xff]
    %v49 = vld [vmem:[%s0 + $0x78] sm:$0xff]
    %v50 = vld [vmem:[%s1] sm:$0xff]
    %v51 = vld [vmem:[%s1 + $0x8] sm:$0xff]
    %v52 = vld [vmem:[%s1 + $0x10] sm:$0xff]
    %v53 = vld [vmem:[%s1 + $0x18] sm:$0xff]
    %v54 = vld [vmem:[%s1 + $0x20] sm:$0xff]
    %v55 = vld [vmem:[%s1 + $0x28] sm:$0xff]
    %v56 = vld [vmem:[%s1 + $0x30] sm:$0xff]
    %v57 = vld [vmem:[%s1 + $0x38] sm:$0xff]
    %v58 = vld [vmem:[%s1 + $0x40] sm:$0xff]
    %v59 = vld [vmem:[%s1 + $0x48] sm:$0xff]
    %v60 = vld [vmem:[%s1 + $0x50] sm:$0xff]
    %v61 = vld [vmem:[%s1 + $0x58] sm:$0xff]
    %v62 = vld [vmem:[%s1 + $0x60] sm:$0xff]
    %v63 = vld [vmem:[%s1 + $0x68] sm:$0xff]
    %v64 = vld [vmem:[%s1 + $0x70] sm:$0xff]
    %v65 = vld [vmem:[%s1 + $0x78] sm:$0xff]
    %v66 = vld [vmem:[%s1 + $0x80] sm:$0xff]
    %v67 = vld [vmem:[%s1 + $0x88] sm:$0xff]
    %v68 = vld [vmem:[%s1 + $0x90] sm:$0xff]
    %v69 = vld [vmem:[%s1 + $0x98] sm:$0xff]
    %v70 = vld [vmem:[%s1 + $0xa0] sm:$0xff]
    %v71 = vld [vmem:[%s1 + $0xa8] sm:$0xff]
    %v72 = vld [vmem:[%s1 + $0xb0] sm:$0xff]
    %v73 = vld [vmem:[%s1 + $0xb8] sm:$0xff]
    %v74 = vld [vmem:[%s1 + $0xc0] sm:$0xff]
    %v75 = vld [vmem:[%s1 + $0xc8] sm:$0xff]
    %v76 = vld [vmem:[%s1 + $0xd0] sm:$0xff]
    %v77 = vld [vmem:[%s1 + $0xd8] sm:$0xff]
    %v78 = vld [vmem:[%s1 + $0xe0] sm:$0xff]
    %v79 = vld [vmem:[%s1 + $0xe8] sm:$0xff]
    %v80 = vld [vmem:[%s1 + $0xf0] sm:$0xff]
    %v81 = vld [vmem:[%s1 + $0xf8] sm:$0xff]
    %v82 = vld [vmem:[%s1 + $0x100] sm:$0xff]
    %v83 = vld [vmem:[%s1 + $0x108] sm:$0xff]
    %v84 = vld [vmem:[%s1 + $0x110] sm:$0x33]
    %v85 = vld [vmem:[%s1 + $0x118] sm:$0x33]
    %v102 = vunpack.c.l.b16 %v34
    %v103 = vunpack.c.h.b16 %v34
    %v104 = vunpack.c.l.b16 %v35
    %v105 = vunpack.c.h.b16 %v35
    %v106 = vunpack.c.l.b16 %v36
    %v107 = vunpack.c.h.b16 %v36
    %v108 = vunpack.c.l.b16 %v37
    %v109 = vunpack.c.h.b16 %v37
    %v110 = vunpack.c.l.b16 %v38
    %v111 = vunpack.c.h.b16 %v38
    %v112 = vunpack.c.l.b16 %v39
    %v113 = vunpack.c.h.b16 %v39
    %v114 = vunpack.c.l.b16 %v40
    %v115 = vunpack.c.h.b16 %v40
    %v116 = vunpack.c.l.b16 %v41
    %v117 = vunpack.c.h.b16 %v41
    %v118 = vunpack.c.l.b16 %v42
    %v119 = vunpack.c.h.b16 %v42
    %v120 = vunpack.c.l.b16 %v43
    %v121 = vunpack.c.h.b16 %v43
    %v122 = vunpack.c.l.b16 %v44
    %v123 = vunpack.c.h.b16 %v44
    %v124 = vunpack.c.l.b16 %v45
    %v125 = vunpack.c.h.b16 %v45
    %v126 = vunpack.c.l.b16 %v46
    %v127 = vunpack.c.h.b16 %v46
    %v128 = vunpack.c.l.b16 %v47
    %v129 = vunpack.c.h.b16 %v47
    %v130 = vunpack.c.l.b16 %v48
    %v131 = vunpack.c.h.b16 %v48
    %v132 = vunpack.c.l.b16 %v49
    %v133 = vunpack.c.h.b16 %v49
    %v134 = vpack.c.b16 %v104, %v102
    %v135 = vpack.c.b16 %v105, %v103
    %v136 = vpack.c.b16 %v108, %v106
    %v137 = vpack.c.b16 %v109, %v107
    %v138 = vpack.c.b16 %v112, %v110
    %v139 = vpack.c.b16 %v113, %v111
    %v140 = vpack.c.b16 %v116, %v114
    %v141 = vpack.c.b16 %v117, %v115
    %v142 = vpack.c.b16 %v120, %v118
    %v143 = vpack.c.b16 %v121, %v119
    %v144 = vpack.c.b16 %v124, %v122
    %v145 = vpack.c.b16 %v125, %v123
    %v146 = vpack.c.b16 %v128, %v126
    %v147 = vpack.c.b16 %v129, %v127
    %v148 = vpack.c.b16 %v132, %v130
    %v149 = vpack.c.b16 %v133, %v131
    %v194 = vunpack.c.l.b16 %v50
    %v195 = vunpack.c.h.b16 %v50
    %v196 = vunpack.c.l.b16 %v51
    %v197 = vunpack.c.h.b16 %v51
    %v198 = vunpack.c.l.b16 %v52
    %v199 = vunpack.c.h.b16 %v52
    %v200 = vunpack.c.l.b16 %v53
    %v201 = vunpack.c.h.b16 %v53
    %v202 = vunpack.c.l.b16 %v54
    %v203 = vunpack.c.h.b16 %v54
    %v204 = vunpack.c.l.b16 %v55
    %v205 = vunpack.c.h.b16 %v55
    %v206 = vunpack.c.l.b16 %v56
    %v207 = vunpack.c.h.b16 %v56
    %v208 = vunpack.c.l.b16 %v57
    %v209 = vunpack.c.h.b16 %v57
    %v210 = vunpack.c.l.b16 %v58
    %v211 = vunpack.c.h.b16 %v58
    %v212 = vunpack.c.l.b16 %v59
    %v213 = vunpack.c.h.b16 %v59
    %v214 = vunpack.c.l.b16 %v60
    %v215 = vunpack.c.h.b16 %v60
    %v216 = vunpack.c.l.b16 %v61
    %v217 = vunpack.c.h.b16 %v61
    %v218 = vunpack.c.l.b16 %v62
    %v219 = vunpack.c.h.b16 %v62
    %v220 = vunpack.c.l.b16 %v63
    %v221 = vunpack.c.h.b16 %v63
    %v222 = vunpack.c.l.b16 %v64
    %v223 = vunpack.c.h.b16 %v64
    %v224 = vunpack.c.l.b16 %v65
    %v225 = vunpack.c.h.b16 %v65
    %v226 = vunpack.c.l.b16 %v66
    %v227 = vunpack.c.h.b16 %v66
    %v228 = vunpack.c.l.b16 %v67
    %v229 = vunpack.c.h.b16 %v67
    %v230 = vunpack.c.l.b16 %v68
    %v231 = vunpack.c.h.b16 %v68
    %v232 = vunpack.c.l.b16 %v69
    %v233 = vunpack.c.h.b16 %v69
    %v234 = vunpack.c.l.b16 %v70
    %v235 = vunpack.c.h.b16 %v70
    %v236 = vunpack.c.l.b16 %v71
    %v237 = vunpack.c.h.b16 %v71
    %v238 = vunpack.c.l.b16 %v72
    %v239 = vunpack.c.h.b16 %v72
    %v240 = vunpack.c.l.b16 %v73
    %v241 = vunpack.c.h.b16 %v73
    %v242 = vunpack.c.l.b16 %v74
    %v243 = vunpack.c.h.b16 %v74
    %v244 = vunpack.c.l.b16 %v75
    %v245 = vunpack.c.h.b16 %v75
    %v246 = vunpack.c.l.b16 %v76
    %v247 = vunpack.c.h.b16 %v76
    %v248 = vunpack.c.l.b16 %v77
    %v249 = vunpack.c.h.b16 %v77
    %v250 = vunpack.c.l.b16 %v78
    %v251 = vunpack.c.h.b16 %v78
    %v252 = vunpack.c.l.b16 %v79
    %v253 = vunpack.c.h.b16 %v79
    %v254 = vunpack.c.l.b16 %v80
    %v255 = vunpack.c.h.b16 %v80
    %v256 = vunpack.c.l.b16 %v81
    %v257 = vunpack.c.h.b16 %v81
    %v258 = vunpack.c.l.b16 %v82
    %v259 = vunpack.c.h.b16 %v82
    %v260 = vunpack.c.l.b16 %v83
    %v261 = vunpack.c.h.b16 %v83
    %v262 = vunpack.c.l.b16 %v84
    %v263 = vunpack.c.h.b16 %v84
    %v264 = vunpack.c.l.b16 %v85
    %v265 = vunpack.c.h.b16 %v85
    %v266 = vpack.c.b16 %v198, %v194
    %v267 = vpack.c.b16 %v199, %v195
    %v268 = vpack.c.b16 %v200, %v196
    %v269 = vpack.c.b16 %v201, %v197
    %v270 = vpack.c.b16 %v206, %v202
    %v271 = vpack.c.b16 %v207, %v203
    %v272 = vpack.c.b16 %v208, %v204
    %v273 = vpack.c.b16 %v209, %v205
    %v274 = vpack.c.b16 %v214, %v210
    %v275 = vpack.c.b16 %v215, %v211
    %v276 = vpack.c.b16 %v216, %v212
    %v277 = vpack.c.b16 %v217, %v213
    %v278 = vpack.c.b16 %v222, %v218
    %v279 = vpack.c.b16 %v223, %v219
    %v280 = vpack.c.b16 %v224, %v220
    %v281 = vpack.c.b16 %v225, %v221
    %v282 = vpack.c.b16 %v230, %v226
    %v283 = vpack.c.b16 %v231, %v227
    %v284 = vpack.c.b16 %v232, %v228
    %v285 = vpack.c.b16 %v233, %v229
    %v286 = vpack.c.b16 %v238, %v234
    %v287 = vpack.c.b16 %v239, %v235
    %v288 = vpack.c.b16 %v240, %v236
    %v289 = vpack.c.b16 %v241, %v237
    %v290 = vpack.c.b16 %v246, %v242
    %v291 = vpack.c.b16 %v247, %v243
    %v292 = vpack.c.b16 %v248, %v244
    %v293 = vpack.c.b16 %v249, %v245
    %v294 = vpack.c.b16 %v254, %v250
    %v295 = vpack.c.b16 %v255, %v251
    %v296 = vpack.c.b16 %v256, %v252
    %v297 = vpack.c.b16 %v257, %v253
    %v298 = vpack.c.b16 %v262, %v258
    %v299 = vpack.c.b16 %v263, %v259
    %v300 = vpack.c.b16 %v264, %v260
    %v301 = vpack.c.b16 %v265, %v261
    %vm334 = vcmask 97280
    %v336 = vsel %vm334, %v135, 0
    %v339 = vsel %vm334, %v137, 0
    %v342 = vsel %vm334, %v139, 0
    %v345 = vsel %vm334, %v141, 0
    %v348 = vsel %vm334, %v143, 0
    %v351 = vsel %vm334, %v145, 0
    %v354 = vsel %vm334, %v147, 0
    %v357 = vsel %vm334, %v149, 0
    %vm359 = vcmask 1045504
    %v361 = vsel %vm359, %v298, 0
    %v364 = vsel %vm359, %v299, 0
    %v367 = vsel %vm359, %v300, 0
    %v370 = vsel %vm359, %v301, 0
    %372 = vmatprep.subr.bf16.mxu0 %v267
    %373 = vmatpush1.bf16.msra.mxu0 %v266
    %374 = vmatprep.subr.bf16.mxu0 %v271
    %375 = vmatpush1.bf16.msra.mxu0 %v270
    %376 = vmatprep.subr.bf16.mxu0 %v275
    %377 = vmatpush1.bf16.msra.mxu0 %v274
    %378 = vmatprep.subr.bf16.mxu0 %v279
    %379 = vmatpush1.bf16.msra.mxu0 %v278
    %380 = vmatprep.subr.bf16.mxu0 %v283
    %381 = vmatpush1.bf16.msra.mxu0 %v282
    %382 = vmatprep.subr.bf16.mxu0 %v287
    %383 = vmatpush1.bf16.msra.mxu0 %v286
    %384 = vmatprep.subr.bf16.mxu0 %v291
    %385 = vmatpush1.bf16.msra.mxu0 %v290
    %386 = vmatprep.subr.bf16.mxu0 %v295
    %387 = vmatpush1.bf16.msra.mxu0 %v294
    %388 = vmatprep.subr.bf16.mxu0 %v364
    %389 = vmatpush1.bf16.msra.mxu0 %v361
    %390 = vmatprep.subr.bf16.mxu0 0
    %391 = vmatpush1.bf16.msra.mxu0 0
    %392 = vmatprep.subr.bf16.mxu0 0
    %393 = vmatpush1.bf16.msra.mxu0 0
    %394 = vmatprep.subr.bf16.mxu0 0
    %395 = vmatpush1.bf16.msra.mxu0 0
    %396 = vmatprep.subr.bf16.mxu0 0
    %397 = vmatpush1.bf16.msra.mxu0 0
    %398 = vmatprep.subr.bf16.mxu0 0
    %399 = vmatpush1.bf16.msra.mxu0 0
    %400 = vmatprep.subr.bf16.mxu0 0
    %401 = vmatpush1.bf16.msra.mxu0 0
    %402 = vmatprep.subr.bf16.mxu0 0
    %403 = vmatpush1.bf16.msra.mxu0 0
    %404 = vmatprep.mubr.bf16.mxu0 %v336
    %405 = vmatmul.mubr.bf16.gmra.mrb[0].mxu0 %v134
    %v406 = vpop.f32.mrb[0].mxu0
    %v407 = vadd.f32 0.0, %v406
    %v408 = vpop.f32.mrb[0].mxu0
    %v409 = vadd.f32 0.0, %v408
    %v410 = vpop.f32.mrb[0].mxu0
    %v411 = vadd.f32 0.0, %v410
    %v412 = vpop.f32.mrb[0].mxu0
    %v413 = vadd.f32 0.0, %v412
    %414 = vmatprep.mubr.bf16.mxu0 %v339
    %415 = vmatmul.mubr.bf16.gmra.mrb[0].mxu0 %v136
    %v416 = vpop.f32.mrb[0].mxu0
    %v417 = vadd.f32 0.0, %v416
    %v418 = vpop.f32.mrb[0].mxu0
    %v419 = vadd.f32 0.0, %v418
    %v420 = vpop.f32.mrb[0].mxu0
    %v421 = vadd.f32 0.0, %v420
    %v422 = vpop.f32.mrb[0].mxu0
    %v423 = vadd.f32 0.0, %v422
    %424 = vmatprep.mubr.bf16.mxu0 %v342
    %425 = vmatmul.mubr.bf16.gmra.mrb[0].mxu0 %v138
    %v426 = vpop.f32.mrb[0].mxu0
    %v427 = vadd.f32 0.0, %v426
    %v428 = vpop.f32.mrb[0].mxu0
    %v429 = vadd.f32 0.0, %v428
    %v430 = vpop.f32.mrb[0].mxu0
    %v431 = vadd.f32 0.0, %v430
    %v432 = vpop.f32.mrb[0].mxu0
    %v433 = vadd.f32 0.0, %v432
    %434 = vmatprep.mubr.bf16.mxu0 %v345
    %435 = vmatmul.mubr.bf16.gmra.mrb[0].mxu0 %v140
    %v436 = vpop.f32.mrb[0].mxu0
    %v437 = vadd.f32 0.0, %v436
    %v438 = vpop.f32.mrb[0].mxu0
    %v439 = vadd.f32 0.0, %v438
    %v440 = vpop.f32.mrb[0].mxu0
    %v441 = vadd.f32 0.0, %v440
    %v442 = vpop.f32.mrb[0].mxu0
    %v443 = vadd.f32 0.0, %v442
    %444 = vmatprep.mubr.bf16.mxu0 %v348
    %445 = vmatmul.mubr.bf16.gmra.mrb[0].mxu0 %v142
    %v446 = vpop.f32.mrb[0].mxu0
    %v447 = vadd.f32 0.0, %v446
    %v448 = vpop.f32.mrb[0].mxu0
    %v449 = vadd.f32 0.0, %v448
    %v450 = vpop.f32.mrb[0].mxu0
    %v451 = vadd.f32 0.0, %v450
    %v452 = vpop.f32.mrb[0].mxu0
    %v453 = vadd.f32 0.0, %v452
    %454 = vmatprep.mubr.bf16.mxu0 %v351
    %455 = vmatmul.mubr.bf16.gmra.mrb[0].mxu0 %v144
    %v456 = vpop.f32.mrb[0].mxu0
    %v457 = vadd.f32 0.0, %v456
    %v458 = vpop.f32.mrb[0].mxu0
    %v459 = vadd.f32 0.0, %v458
    %v460 = vpop.f32.mrb[0].mxu0
    %v461 = vadd.f32 0.0, %v460
    %v462 = vpop.f32.mrb[0].mxu0
    %v463 = vadd.f32 0.0, %v462
    %464 = vmatprep.mubr.bf16.mxu0 %v354
    %465 = vmatmul.mubr.bf16.gmra.mrb[0].mxu0 %v146
    %v466 = vpop.f32.mrb[0].mxu0
    %v467 = vadd.f32 0.0, %v466
    %v468 = vpop.f32.mrb[0].mxu0
    %v469 = vadd.f32 0.0, %v468
    %v470 = vpop.f32.mrb[0].mxu0
    %v471 = vadd.f32 0.0, %v470
    %v472 = vpop.f32.mrb[0].mxu0
    %v473 = vadd.f32 0.0, %v472
    %474 = vmatprep.mubr.bf16.mxu0 %v357
    %475 = vmatmul.mubr.bf16.gmra.mrb[0].mxu0 %v148
    %v476 = vpop.f32.mrb[0].mxu0
    %v477 = vadd.f32 0.0, %v476
    %v478 = vpop.f32.mrb[0].mxu0
    %v479 = vadd.f32 0.0, %v478
    %v480 = vpop.f32.mrb[0].mxu0
    %v481 = vadd.f32 0.0, %v480
    %v482 = vpop.f32.mrb[0].mxu0
    %v483 = vadd.f32 0.0, %v482
    %484 = vdwg.mxu0
    %485 = vmatprep.subr.bf16.mxu0 %v269
    %486 = vmatpush1.bf16.msra.mxu0 %v268
    %487 = vmatprep.subr.bf16.mxu0 %v273
    %488 = vmatpush1.bf16.msra.mxu0 %v272
    %489 = vmatprep.subr.bf16.mxu0 %v277
    %490 = vmatpush1.bf16.msra.mxu0 %v276
    %491 = vmatprep.subr.bf16.mxu0 %v281
    %492 = vmatpush1.bf16.msra.mxu0 %v280
    %493 = vmatprep.subr.bf16.mxu0 %v285
    %494 = vmatpush1.bf16.msra.mxu0 %v284
    %495 = vmatprep.subr.bf16.mxu0 %v289
    %496 = vmatpush1.bf16.msra.mxu0 %v288
    %497 = vmatprep.subr.bf16.mxu0 %v293
    %498 = vmatpush1.bf16.msra.mxu0 %v292
    %499 = vmatprep.subr.bf16.mxu0 %v297
    %500 = vmatpush1.bf16.msra.mxu0 %v296
    %501 = vmatprep.subr.bf16.mxu0 %v370
    %502 = vmatpush1.bf16.msra.mxu0 %v367
    %503 = vmatprep.subr.bf16.mxu0 0
    %504 = vmatpush1.bf16.msra.mxu0 0
    %505 = vmatprep.subr.bf16.mxu0 0
    %506 = vmatpush1.bf16.msra.mxu0 0
    %507 = vmatprep.subr.bf16.mxu0 0
    %508 = vmatpush1.bf16.msra.mxu0 0
    %509 = vmatprep.subr.bf16.mxu0 0
    %510 = vmatpush1.bf16.msra.mxu0 0
    %511 = vmatprep.subr.bf16.mxu0 0
    %512 = vmatpush1.bf16.msra.mxu0 0
    %513 = vmatprep.subr.bf16.mxu0 0
    %514 = vmatpush1.bf16.msra.mxu0 0
    %515 = vmatprep.subr.bf16.mxu0 0
    %516 = vmatpush1.bf16.msra.mxu0 0
    %517 = vmatprep.mubr.bf16.mxu0 %v336
    %518 = vmatmul.mubr.bf16.gmra.mrb[0].mxu0 %v134
    %v519 = vpop.f32.mrb[0].mxu0
    %v520 = vadd.f32 0.0, %v519
    %v521 = vpop.f32.mrb[0].mxu0
    %v522 = vadd.f32 0.0, %v521
    %v523 = vpop.f32.mrb[0].mxu0
    %v524 = vadd.f32 0.0, %v523
    %v525 = vpop.f32.mrb[0].mxu0
    %v526 = vadd.f32 0.0, %v525
    %527 = vmatprep.mubr.bf16.mxu0 %v339
    %528 = vmatmul.mubr.bf16.gmra.mrb[0].mxu0 %v136
    %v529 = vpop.f32.mrb[0].mxu0
    %v530 = vadd.f32 0.0, %v529
    %v531 = vpop.f32.mrb[0].mxu0
    %v532 = vadd.f32 0.0, %v531
    %v533 = vpop.f32.mrb[0].mxu0
    %v534 = vadd.f32 0.0, %v533
    %v535 = vpop.f32.mrb[0].mxu0
    %v536 = vadd.f32 0.0, %v535
    %537 = vmatprep.mubr.bf16.mxu0 %v342
    %538 = vmatmul.mubr.bf16.gmra.mrb[0].mxu0 %v138
    %v539 = vpop.f32.mrb[0].mxu0
    %v540 = vadd.f32 0.0, %v539
    %v541 = vpop.f32.mrb[0].mxu0
    %v542 = vadd.f32 0.0, %v541
    %v543 = vpop.f32.mrb[0].mxu0
    %v544 = vadd.f32 0.0, %v543
    %v545 = vpop.f32.mrb[0].mxu0
    %v546 = vadd.f32 0.0, %v545
    %547 = vmatprep.mubr.bf16.mxu0 %v345
    %548 = vmatmul.mubr.bf16.gmra.mrb[0].mxu0 %v140
    %v549 = vpop.f32.mrb[0].mxu0
    %v550 = vadd.f32 0.0, %v549
    %v551 = vpop.f32.mrb[0].mxu0
    %v552 = vadd.f32 0.0, %v551
    %v553 = vpop.f32.mrb[0].mxu0
    %v554 = vadd.f32 0.0, %v553
    %v555 = vpop.f32.mrb[0].mxu0
    %v556 = vadd.f32 0.0, %v555
    %557 = vmatprep.mubr.bf16.mxu0 %v348
    %558 = vmatmul.mubr.bf16.gmra.mrb[0].mxu0 %v142
    %v559 = vpop.f32.mrb[0].mxu0
    %v560 = vadd.f32 0.0, %v559
    %v561 = vpop.f32.mrb[0].mxu0
    %v562 = vadd.f32 0.0, %v561
    %v563 = vpop.f32.mrb[0].mxu0
    %v564 = vadd.f32 0.0, %v563
    %v565 = vpop.f32.mrb[0].mxu0
    %v566 = vadd.f32 0.0, %v565
    %567 = vmatprep.mubr.bf16.mxu0 %v351
    %568 = vmatmul.mubr.bf16.gmra.mrb[0].mxu0 %v144
    %v569 = vpop.f32.mrb[0].mxu0
    %v570 = vadd.f32 0.0, %v569
    %v571 = vpop.f32.mrb[0].mxu0
    %v572 = vadd.f32 0.0, %v571
    %v573 = vpop.f32.mrb[0].mxu0
    %v574 = vadd.f32 0.0, %v573
    %v575 = vpop.f32.mrb[0].mxu0
    %v576 = vadd.f32 0.0, %v575
    %577 = vmatprep.mubr.bf16.mxu0 %v354
    %578 = vmatmul.mubr.bf16.gmra.mrb[0].mxu0 %v146
    %v579 = vpop.f32.mrb[0].mxu0
    %v580 = vadd.f32 0.0, %v579
    %v581 = vpop.f32.mrb[0].mxu0
    %v582 = vadd.f32 0.0, %v581
    %v583 = vpop.f32.mrb[0].mxu0
    %v584 = vadd.f32 0.0, %v583
    %v585 = vpop.f32.mrb[0].mxu0
    %v586 = vadd.f32 0.0, %v585
    %587 = vmatprep.mubr.bf16.mxu0 %v357
    %588 = vmatmul.mubr.bf16.gmra.mrb[0].mxu0 %v148
    %v589 = vpop.f32.mrb[0].mxu0
    %v590 = vadd.f32 0.0, %v589
    %v591 = vpop.f32.mrb[0].mxu0
    %v592 = vadd.f32 0.0, %v591
    %v593 = vpop.f32.mrb[0].mxu0
    %v594 = vadd.f32 0.0, %v593
    %v595 = vpop.f32.mrb[0].mxu0
    %v596 = vadd.f32 0.0, %v595
    %597 = vdwg.mxu0
    %s598 = scalar_lea.vmem %s0, 128
    %v599 = vld [vmem:[%s598] sm:$0xff]
    %v600 = vld [vmem:[%s598 + $0x8] sm:$0xff]
    %v601 = vld [vmem:[%s598 + $0x10] sm:$0xff]
    %v602 = vld [vmem:[%s598 + $0x18] sm:$0xff]
    %v603 = vld [vmem:[%s598 + $0x20] sm:$0xff]
    %v604 = vld [vmem:[%s598 + $0x28] sm:$0xff]
    %v605 = vld [vmem:[%s598 + $0x30] sm:$0xff]
    %v606 = vld [vmem:[%s598 + $0x38] sm:$0xff]
    %v607 = vld [vmem:[%s598 + $0x40] sm:$0xff]
    %v608 = vld [vmem:[%s598 + $0x48] sm:$0xff]
    %v609 = vld [vmem:[%s598 + $0x50] sm:$0xff]
    %v610 = vld [vmem:[%s598 + $0x58] sm:$0xff]
    %v611 = vld [vmem:[%s598 + $0x60] sm:$0xff]
    %v612 = vld [vmem:[%s598 + $0x68] sm:$0xff]
    %v613 = vld [vmem:[%s598 + $0x70] sm:$0xff]
    %v614 = vld [vmem:[%s598 + $0x78] sm:$0xff]
    %v631 = vunpack.c.l.b16 %v599
    %v632 = vunpack.c.h.b16 %v599
    %v633 = vunpack.c.l.b16 %v600
    %v634 = vunpack.c.h.b16 %v600
    %v635 = vunpack.c.l.b16 %v601
    %v636 = vunpack.c.h.b16 %v601
    %v637 = vunpack.c.l.b16 %v602
    %v638 = vunpack.c.h.b16 %v602
    %v639 = vunpack.c.l.b16 %v603
    %v640 = vunpack.c.h.b16 %v603
    %v641 = vunpack.c.l.b16 %v604
    %v642 = vunpack.c.h.b16 %v604
    %v643 = vunpack.c.l.b16 %v605
    %v644 = vunpack.c.h.b16 %v605
    %v645 = vunpack.c.l.b16 %v606
    %v646 = vunpack.c.h.b16 %v606
    %v647 = vunpack.c.l.b16 %v607
    %v648 = vunpack.c.h.b16 %v607
    %v649 = vunpack.c.l.b16 %v608
    %v650 = vunpack.c.h.b16 %v608
    %v651 = vunpack.c.l.b16 %v609
    %v652 = vunpack.c.h.b16 %v609
    %v653 = vunpack.c.l.b16 %v610
    %v654 = vunpack.c.h.b16 %v610
    %v655 = vunpack.c.l.b16 %v611
    %v656 = vunpack.c.h.b16 %v611
    %v657 = vunpack.c.l.b16 %v612
    %v658 = vunpack.c.h.b16 %v612
    %v659 = vunpack.c.l.b16 %v613
    %v660 = vunpack.c.h.b16 %v613
    %v661 = vunpack.c.l.b16 %v614
    %v662 = vunpack.c.h.b16 %v614
    %v663 = vpack.c.b16 %v633, %v631
    %v664 = vpack.c.b16 %v634, %v632
    %v665 = vpack.c.b16 %v637, %v635
    %v666 = vpack.c.b16 %v638, %v636
    %v667 = vpack.c.b16 %v641, %v639
    %v668 = vpack.c.b16 %v642, %v640
    %v669 = vpack.c.b16 %v645, %v643
    %v670 = vpack.c.b16 %v646, %v644
    %v671 = vpack.c.b16 %v649, %v647
    %v672 = vpack.c.b16 %v650, %v648
    %v673 = vpack.c.b16 %v653, %v651
    %v674 = vpack.c.b16 %v654, %v652
    %v675 = vpack.c.b16 %v657, %v655
    %v676 = vpack.c.b16 %v658, %v656
    %v677 = vpack.c.b16 %v661, %v659
    %v678 = vpack.c.b16 %v662, %v660
    %v688 = vsel %vm334, %v664, 0
    %v691 = vsel %vm334, %v666, 0
    %v694 = vsel %vm334, %v668, 0
    %v697 = vsel %vm334, %v670, 0
    %v700 = vsel %vm334, %v672, 0
    %v703 = vsel %vm334, %v674, 0
    %v706 = vsel %vm334, %v676, 0
    %v709 = vsel %vm334, %v678, 0
    %711 = vmatprep.subr.bf16.mxu0 %v267
    %712 = vmatpush1.bf16.msra.mxu0 %v266
    %713 = vmatprep.subr.bf16.mxu0 %v271
    %714 = vmatpush1.bf16.msra.mxu0 %v270
    %715 = vmatprep.subr.bf16.mxu0 %v275
    %716 = vmatpush1.bf16.msra.mxu0 %v274
    %717 = vmatprep.subr.bf16.mxu0 %v279
    %718 = vmatpush1.bf16.msra.mxu0 %v278
    %719 = vmatprep.subr.bf16.mxu0 %v283
    %720 = vmatpush1.bf16.msra.mxu0 %v282
    %721 = vmatprep.subr.bf16.mxu0 %v287
    %722 = vmatpush1.bf16.msra.mxu0 %v286
    %723 = vmatprep.subr.bf16.mxu0 %v291
    %724 = vmatpush1.bf16.msra.mxu0 %v290
    %725 = vmatprep.subr.bf16.mxu0 %v295
    %726 = vmatpush1.bf16.msra.mxu0 %v294
    %727 = vmatprep.subr.bf16.mxu0 %v364
    %728 = vmatpush1.bf16.msra.mxu0 %v361
    %729 = vmatprep.subr.bf16.mxu0 0
    %730 = vmatpush1.bf16.msra.mxu0 0
    %731 = vmatprep.subr.bf16.mxu0 0
    %732 = vmatpush1.bf16.msra.mxu0 0
    %733 = vmatprep.subr.bf16.mxu0 0
    %734 = vmatpush1.bf16.msra.mxu0 0
    %735 = vmatprep.subr.bf16.mxu0 0
    %736 = vmatpush1.bf16.msra.mxu0 0
    %737 = vmatprep.subr.bf16.mxu0 0
    %738 = vmatpush1.bf16.msra.mxu0 0
    %739 = vmatprep.subr.bf16.mxu0 0
    %740 = vmatpush1.bf16.msra.mxu0 0
    %741 = vmatprep.subr.bf16.mxu0 0
    %742 = vmatpush1.bf16.msra.mxu0 0
    %743 = vmatprep.mubr.bf16.mxu0 %v688
    %744 = vmatmul.mubr.bf16.gmra.mrb[0].mxu0 %v663
    %v745 = vpop.f32.mrb[0].mxu0
    %v746 = vadd.f32 0.0, %v745
    %v747 = vpop.f32.mrb[0].mxu0
    %v748 = vadd.f32 0.0, %v747
    %v749 = vpop.f32.mrb[0].mxu0
    %v750 = vadd.f32 0.0, %v749
    %v751 = vpop.f32.mrb[0].mxu0
    %v752 = vadd.f32 0.0, %v751
    %753 = vmatprep.mubr.bf16.mxu0 %v691
    %754 = vmatmul.mubr.bf16.gmra.mrb[0].mxu0 %v665
    %v755 = vpop.f32.mrb[0].mxu0
    %v756 = vadd.f32 0.0, %v755
    %v757 = vpop.f32.mrb[0].mxu0
    %v758 = vadd.f32 0.0, %v757
    %v759 = vpop.f32.mrb[0].mxu0
    %v760 = vadd.f32 0.0, %v759
    %v761 = vpop.f32.mrb[0].mxu0
    %v762 = vadd.f32 0.0, %v761
    %763 = vmatprep.mubr.bf16.mxu0 %v694
    %764 = vmatmul.mubr.bf16.gmra.mrb[0].mxu0 %v667
    %v765 = vpop.f32.mrb[0].mxu0
    %v766 = vadd.f32 0.0, %v765
    %v767 = vpop.f32.mrb[0].mxu0
    %v768 = vadd.f32 0.0, %v767
    %v769 = vpop.f32.mrb[0].mxu0
    %v770 = vadd.f32 0.0, %v769
    %v771 = vpop.f32.mrb[0].mxu0
    %v772 = vadd.f32 0.0, %v771
    %773 = vmatprep.mubr.bf16.mxu0 %v697
    %774 = vmatmul.mubr.bf16.gmra.mrb[0].mxu0 %v669
    %v775 = vpop.f32.mrb[0].mxu0
    %v776 = vadd.f32 0.0, %v775
    %v777 = vpop.f32.mrb[0].mxu0
    %v778 = vadd.f32 0.0, %v777
    %v779 = vpop.f32.mrb[0].mxu0
    %v780 = vadd.f32 0.0, %v779
    %v781 = vpop.f32.mrb[0].mxu0
    %v782 = vadd.f32 0.0, %v781
    %783 = vmatprep.mubr.bf16.mxu0 %v700
    %784 = vmatmul.mubr.bf16.gmra.mrb[0].mxu0 %v671
    %v785 = vpop.f32.mrb[0].mxu0
    %v786 = vadd.f32 0.0, %v785
    %v787 = vpop.f32.mrb[0].mxu0
    %v788 = vadd.f32 0.0, %v787
    %v789 = vpop.f32.mrb[0].mxu0
    %v790 = vadd.f32 0.0, %v789
    %v791 = vpop.f32.mrb[0].mxu0
    %v792 = vadd.f32 0.0, %v791
    %793 = vmatprep.mubr.bf16.mxu0 %v703
    %794 = vmatmul.mubr.bf16.gmra.mrb[0].mxu0 %v673
    %v795 = vpop.f32.mrb[0].mxu0
    %v796 = vadd.f32 0.0, %v795
    %v797 = vpop.f32.mrb[0].mxu0
    %v798 = vadd.f32 0.0, %v797
    %v799 = vpop.f32.mrb[0].mxu0
    %v800 = vadd.f32 0.0, %v799
    %v801 = vpop.f32.mrb[0].mxu0
    %v802 = vadd.f32 0.0, %v801
    %803 = vmatprep.mubr.bf16.mxu0 %v706
    %804 = vmatmul.mubr.bf16.gmra.mrb[0].mxu0 %v675
    %v805 = vpop.f32.mrb[0].mxu0
    %v806 = vadd.f32 0.0, %v805
    %v807 = vpop.f32.mrb[0].mxu0
    %v808 = vadd.f32 0.0, %v807
    %v809 = vpop.f32.mrb[0].mxu0
    %v810 = vadd.f32 0.0, %v809
    %v811 = vpop.f32.mrb[0].mxu0
    %v812 = vadd.f32 0.0, %v811
    %813 = vmatprep.mubr.bf16.mxu0 %v709
    %814 = vmatmul.mubr.bf16.gmra.mrb[0].mxu0 %v677
    %v815 = vpop.f32.mrb[0].mxu0
    %v816 = vadd.f32 0.0, %v815
    %v817 = vpop.f32.mrb[0].mxu0
    %v818 = vadd.f32 0.0, %v817
    %v819 = vpop.f32.mrb[0].mxu0
    %v820 = vadd.f32 0.0, %v819
    %v821 = vpop.f32.mrb[0].mxu0
    %v822 = vadd.f32 0.0, %v821
    %823 = vdwg.mxu0
    %824 = vmatprep.subr.bf16.mxu0 %v269
    %825 = vmatpush1.bf16.msra.mxu0 %v268
    %826 = vmatprep.subr.bf16.mxu0 %v273
    %827 = vmatpush1.bf16.msra.mxu0 %v272
    %828 = vmatprep.subr.bf16.mxu0 %v277
    %829 = vmatpush1.bf16.msra.mxu0 %v276
    %830 = vmatprep.subr.bf16.mxu0 %v281
    %831 = vmatpush1.bf16.msra.mxu0 %v280
    %832 = vmatprep.subr.bf16.mxu0 %v285
    %833 = vmatpush1.bf16.msra.mxu0 %v284
    %834 = vmatprep.subr.bf16.mxu0 %v289
    %835 = vmatpush1.bf16.msra.mxu0 %v288
    %836 = vmatprep.subr.bf16.mxu0 %v293
    %837 = vmatpush1.bf16.msra.mxu0 %v292
    %838 = vmatprep.subr.bf16.mxu0 %v297
    %839 = vmatpush1.bf16.msra.mxu0 %v296
    %840 = vmatprep.subr.bf16.mxu0 %v370
    %841 = vmatpush1.bf16.msra.mxu0 %v367
    %842 = vmatprep.subr.bf16.mxu0 0
    %843 = vmatpush1.bf16.msra.mxu0 0
    %844 = vmatprep.subr.bf16.mxu0 0
    %845 = vmatpush1.bf16.msra.mxu0 0
    %846 = vmatprep.subr.bf16.mxu0 0
    %847 = vmatpush1.bf16.msra.mxu0 0
    %848 = vmatprep.subr.bf16.mxu0 0
    %849 = vmatpush1.bf16.msra.mxu0 0
    %850 = vmatprep.subr.bf16.mxu0 0
    %851 = vmatpush1.bf16.msra.mxu0 0
    %852 = vmatprep.subr.bf16.mxu0 0
    %853 = vmatpush1.bf16.msra.mxu0 0
    %854 = vmatprep.subr.bf16.mxu0 0
    %855 = vmatpush1.bf16.msra.mxu0 0
    %856 = vmatprep.mubr.bf16.mxu0 %v688
    %857 = vmatmul.mubr.bf16.gmra.mrb[0].mxu0 %v663
    %v858 = vpop.f32.mrb[0].mxu0
    %v859 = vadd.f32 0.0, %v858
    %v860 = vpop.f32.mrb[0].mxu0
    %v861 = vadd.f32 0.0, %v860
    %v862 = vpop.f32.mrb[0].mxu0
    %v863 = vadd.f32 0.0, %v862
    %v864 = vpop.f32.mrb[0].mxu0
    %v865 = vadd.f32 0.0, %v864
    %866 = vmatprep.mubr.bf16.mxu0 %v691
    %867 = vmatmul.mubr.bf16.gmra.mrb[0].mxu0 %v665
    %v868 = vpop.f32.mrb[0].mxu0
    %v869 = vadd.f32 0.0, %v868
    %v870 = vpop.f32.mrb[0].mxu0
    %v871 = vadd.f32 0.0, %v870
    %v872 = vpop.f32.mrb[0].mxu0
    %v873 = vadd.f32 0.0, %v872
    %v874 = vpop.f32.mrb[0].mxu0
    %v875 = vadd.f32 0.0, %v874
    %876 = vmatprep.mubr.bf16.mxu0 %v694
    %877 = vmatmul.mubr.bf16.gmra.mrb[0].mxu0 %v667
    %v878 = vpop.f32.mrb[0].mxu0
    %v879 = vadd.f32 0.0, %v878
    %v880 = vpop.f32.mrb[0].mxu0
    %v881 = vadd.f32 0.0, %v880
    %v882 = vpop.f32.mrb[0].mxu0
    %v883 = vadd.f32 0.0, %v882
    %v884 = vpop.f32.mrb[0].mxu0
    %v885 = vadd.f32 0.0, %v884
    %886 = vmatprep.mubr.bf16.mxu0 %v697
    %887 = vmatmul.mubr.bf16.gmra.mrb[0].mxu0 %v669
    %v888 = vpop.f32.mrb[0].mxu0
    %v889 = vadd.f32 0.0, %v888
    %v890 = vpop.f32.mrb[0].mxu0
    %v891 = vadd.f32 0.0, %v890
    %v892 = vpop.f32.mrb[0].mxu0
    %v893 = vadd.f32 0.0, %v892
    %v894 = vpop.f32.mrb[0].mxu0
    %v895 = vadd.f32 0.0, %v894
    %896 = vmatprep.mubr.bf16.mxu0 %v700
    %897 = vmatmul.mubr.bf16.gmra.mrb[0].mxu0 %v671
    %v898 = vpop.f32.mrb[0].mxu0
    %v899 = vadd.f32 0.0, %v898
    %v900 = vpop.f32.mrb[0].mxu0
    %v901 = vadd.f32 0.0, %v900
    %v902 = vpop.f32.mrb[0].mxu0
    %v903 = vadd.f32 0.0, %v902
    %v904 = vpop.f32.mrb[0].mxu0
    %v905 = vadd.f32 0.0, %v904
    %906 = vmatprep.mubr.bf16.mxu0 %v703
    %907 = vmatmul.mubr.bf16.gmra.mrb[0].mxu0 %v673
    %v908 = vpop.f32.mrb[0].mxu0
    %v909 = vadd.f32 0.0, %v908
    %v910 = vpop.f32.mrb[0].mxu0
    %v911 = vadd.f32 0.0, %v910
    %v912 = vpop.f32.mrb[0].mxu0
    %v913 = vadd.f32 0.0, %v912
    %v914 = vpop.f32.mrb[0].mxu0
    %v915 = vadd.f32 0.0, %v914
    %916 = vmatprep.mubr.bf16.mxu0 %v706
    %917 = vmatmul.mubr.bf16.gmra.mrb[0].mxu0 %v675
    %v918 = vpop.f32.mrb[0].mxu0
    %v919 = vadd.f32 0.0, %v918
    %v920 = vpop.f32.mrb[0].mxu0
    %v921 = vadd.f32 0.0, %v920
    %v922 = vpop.f32.mrb[0].mxu0
    %v923 = vadd.f32 0.0, %v922
    %v924 = vpop.f32.mrb[0].mxu0
    %v925 = vadd.f32 0.0, %v924
    %926 = vmatprep.mubr.bf16.mxu0 %v709
    %927 = vmatmul.mubr.bf16.gmra.mrb[0].mxu0 %v677
    %v928 = vpop.f32.mrb[0].mxu0
    %v929 = vadd.f32 0.0, %v928
    %v930 = vpop.f32.mrb[0].mxu0
    %v931 = vadd.f32 0.0, %v930
    %v932 = vpop.f32.mrb[0].mxu0
    %v933 = vadd.f32 0.0, %v932
    %v934 = vpop.f32.mrb[0].mxu0
    %v935 = vadd.f32 0.0, %v934
    %936 = vdwg.mxu0
    %v937 = vmax.f32 %v407, %v746
    %v938 = vmax.f32 %v409, %v748
    %v939 = vmax.f32 %v520, %v859
    %v940 = vmax.f32 %v522, %v861
    %v941 = vmax.f32 %v411, %v750
    %v942 = vmax.f32 %v413, %v752
    %v943 = vmax.f32 %v524, %v863
    %v944 = vmax.f32 %v526, %v865
    %v945 = vmax.f32 %v417, %v756
    %v946 = vmax.f32 %v419, %v758
    %v947 = vmax.f32 %v530, %v869
    %v948 = vmax.f32 %v532, %v871
    %v949 = vmax.f32 %v421, %v760
    %v950 = vmax.f32 %v423, %v762
    %v951 = vmax.f32 %v534, %v873
    %v952 = vmax.f32 %v536, %v875
    %v953 = vmax.f32 %v427, %v766
    %v954 = vmax.f32 %v429, %v768
    %v955 = vmax.f32 %v540, %v879
    %v956 = vmax.f32 %v542, %v881
    %v957 = vmax.f32 %v431, %v770
    %v958 = vmax.f32 %v433, %v772
    %v959 = vmax.f32 %v544, %v883
    %v960 = vmax.f32 %v546, %v885
    %v961 = vmax.f32 %v437, %v776
    %v962 = vmax.f32 %v439, %v778
    %v963 = vmax.f32 %v550, %v889
    %v964 = vmax.f32 %v552, %v891
    %v965 = vmax.f32 %v441, %v780
    %v966 = vmax.f32 %v443, %v782
    %v967 = vmax.f32 %v554, %v893
    %v968 = vmax.f32 %v556, %v895
    %v969 = vmax.f32 %v447, %v786
    %v970 = vmax.f32 %v449, %v788
    %v971 = vmax.f32 %v560, %v899
    %v972 = vmax.f32 %v562, %v901
    %v973 = vmax.f32 %v451, %v790
    %v974 = vmax.f32 %v453, %v792
    %v975 = vmax.f32 %v564, %v903
    %v976 = vmax.f32 %v566, %v905
    %v977 = vmax.f32 %v457, %v796
    %v978 = vmax.f32 %v459, %v798
    %v979 = vmax.f32 %v570, %v909
    %v980 = vmax.f32 %v572, %v911
    %v981 = vmax.f32 %v461, %v800
    %v982 = vmax.f32 %v463, %v802
    %v983 = vmax.f32 %v574, %v913
    %v984 = vmax.f32 %v576, %v915
    %v985 = vmax.f32 %v467, %v806
    %v986 = vmax.f32 %v469, %v808
    %v987 = vmax.f32 %v580, %v919
    %v988 = vmax.f32 %v582, %v921
    %v989 = vmax.f32 %v471, %v810
    %v990 = vmax.f32 %v473, %v812
    %v991 = vmax.f32 %v584, %v923
    %v992 = vmax.f32 %v586, %v925
    %v993 = vmax.f32 %v477, %v816
    %v994 = vmax.f32 %v479, %v818
    %v995 = vmax.f32 %v590, %v929
    %v996 = vmax.f32 %v592, %v931
    %v997 = vmax.f32 %v481, %v820
    %v998 = vmax.f32 %v483, %v822
    %v999 = vmax.f32 %v594, %v933
    %v1000 = vmax.f32 %v596, %v935
    %v1001 = vmax.f32 %v937, %v939
    %v1002 = vmax.f32 %v938, %v940
    %v1003 = vmax.f32 %v941, %v943
    %v1004 = vmax.f32 %v942, %v944
    %v1005 = vmax.f32 %v945, %v947
    %v1006 = vmax.f32 %v946, %v948
    %v1007 = vmax.f32 %v949, %v951
    %v1008 = vmax.f32 %v950, %v952
    %v1009 = vmax.f32 %v953, %v955
    %v1010 = vmax.f32 %v954, %v956
    %v1011 = vmax.f32 %v957, %v959
    %v1012 = vmax.f32 %v958, %v960
    %v1013 = vmax.f32 %v961, %v963
    %v1014 = vmax.f32 %v962, %v964
    %v1015 = vmax.f32 %v965, %v967
    %v1016 = vmax.f32 %v966, %v968
    %v1017 = vmax.f32 %v969, %v971
    %v1018 = vmax.f32 %v970, %v972
    %v1019 = vmax.f32 %v973, %v975
    %v1020 = vmax.f32 %v974, %v976
    %v1021 = vmax.f32 %v977, %v979
    %v1022 = vmax.f32 %v978, %v980
    %v1023 = vmax.f32 %v981, %v983
    %v1024 = vmax.f32 %v982, %v984
    %v1025 = vmax.f32 %v985, %v987
    %v1026 = vmax.f32 %v986, %v988
    %v1027 = vmax.f32 %v989, %v991
    %v1028 = vmax.f32 %v990, %v992
    %v1029 = vmax.f32 %v993, %v995
    %v1030 = vmax.f32 %v994, %v996
    %v1031 = vmax.f32 %v997, %v999
    %v1032 = vmax.f32 %v998, %v1000
    %v1033 = vld [vmem:[%s2] sm:$0x3]
    %v1035 = vlaneseq
    %v1036 = vshrl.u32 %v1035, 7
    %v1037 = vsub.s32 0, %v1036
    %v1038 = vrot.slane %v1033, %v1037
    %v1039 = vlaneseq
    %v1040 = vshrl.u32 %v1039, 7
    %v1041 = vsub.s32 1, %v1040
    %v1042 = vrot.slane %v1033, %v1041
    %v1045 = vadd.f32 %v1001, %v1038
    %v1046 = vadd.f32 %v1002, %v1042
    %v1047 = vadd.f32 %v1003, %v1038
    %v1048 = vadd.f32 %v1004, %v1042
    %v1049 = vadd.f32 %v1005, %v1038
    %v1050 = vadd.f32 %v1006, %v1042
    %v1051 = vadd.f32 %v1007, %v1038
    %v1052 = vadd.f32 %v1008, %v1042
    %v1053 = vadd.f32 %v1009, %v1038
    %v1054 = vadd.f32 %v1010, %v1042
    %v1055 = vadd.f32 %v1011, %v1038
    %v1056 = vadd.f32 %v1012, %v1042
    %v1057 = vadd.f32 %v1013, %v1038
    %v1058 = vadd.f32 %v1014, %v1042
    %v1059 = vadd.f32 %v1015, %v1038
    %v1060 = vadd.f32 %v1016, %v1042
    %v1061 = vadd.f32 %v1017, %v1038
    %v1062 = vadd.f32 %v1018, %v1042
    %v1063 = vadd.f32 %v1019, %v1038
    %v1064 = vadd.f32 %v1020, %v1042
    %v1065 = vadd.f32 %v1021, %v1038
    %v1066 = vadd.f32 %v1022, %v1042
    %v1067 = vadd.f32 %v1023, %v1038
    %v1068 = vadd.f32 %v1024, %v1042
    %v1069 = vadd.f32 %v1025, %v1038
    %v1070 = vadd.f32 %v1026, %v1042
    %v1071 = vadd.f32 %v1027, %v1038
    %v1072 = vadd.f32 %v1028, %v1042
    %v1073 = vadd.f32 %v1029, %v1038
    %v1074 = vadd.f32 %v1030, %v1042
    %v1075 = vadd.f32 %v1031, %v1038
    %v1076 = vadd.f32 %v1032, %v1042
    %v1077 = vmax.f32 %v1045, 0.0
    %v1078 = vmax.f32 %v1046, 0.0
    %v1079 = vmax.f32 %v1047, 0.0
    %v1080 = vmax.f32 %v1048, 0.0
    %v1081 = vmax.f32 %v1049, 0.0
    %v1082 = vmax.f32 %v1050, 0.0
    %v1083 = vmax.f32 %v1051, 0.0
    %v1084 = vmax.f32 %v1052, 0.0
    %v1085 = vmax.f32 %v1053, 0.0
    %v1086 = vmax.f32 %v1054, 0.0
    %v1087 = vmax.f32 %v1055, 0.0
    %v1088 = vmax.f32 %v1056, 0.0
    %v1089 = vmax.f32 %v1057, 0.0
    %v1090 = vmax.f32 %v1058, 0.0
    %v1091 = vmax.f32 %v1059, 0.0
    %v1092 = vmax.f32 %v1060, 0.0
    %v1093 = vmax.f32 %v1061, 0.0
    %v1094 = vmax.f32 %v1062, 0.0
    %v1095 = vmax.f32 %v1063, 0.0
    %v1096 = vmax.f32 %v1064, 0.0
    %v1097 = vmax.f32 %v1065, 0.0
    %v1098 = vmax.f32 %v1066, 0.0
    %v1099 = vmax.f32 %v1067, 0.0
    %v1100 = vmax.f32 %v1068, 0.0
    %v1101 = vmax.f32 %v1069, 0.0
    %v1102 = vmax.f32 %v1070, 0.0
    %v1103 = vmax.f32 %v1071, 0.0
    %v1104 = vmax.f32 %v1072, 0.0
    %v1105 = vmax.f32 %v1073, 0.0
    %v1106 = vmax.f32 %v1074, 0.0
    %v1107 = vmax.f32 %v1075, 0.0
    %v1108 = vmax.f32 %v1076, 0.0
    %v1109 = vpack.c.bf16 %v1079, %v1077
    %v1110 = vpack.c.bf16 %v1080, %v1078
    %v1111 = vpack.c.bf16 %v1083, %v1081
    %v1112 = vpack.c.bf16 %v1084, %v1082
    %v1113 = vpack.c.bf16 %v1087, %v1085
    %v1114 = vpack.c.bf16 %v1088, %v1086
    %v1115 = vpack.c.bf16 %v1091, %v1089
    %v1116 = vpack.c.bf16 %v1092, %v1090
    %v1117 = vpack.c.bf16 %v1095, %v1093
    %v1118 = vpack.c.bf16 %v1096, %v1094
    %v1119 = vpack.c.bf16 %v1099, %v1097
    %v1120 = vpack.c.bf16 %v1100, %v1098
    %v1121 = vpack.c.bf16 %v1103, %v1101
    %v1122 = vpack.c.bf16 %v1104, %v1102
    %v1123 = vpack.c.bf16 %v1107, %v1105
    %v1124 = vpack.c.bf16 %v1108, %v1106
    %1125 = vst [vmem:[#allocation2] sm:$0xff] %v1109
    %1126 = vst [vmem:[#allocation2 + $0x8] sm:$0xff] %v1110
    %1127 = vst [vmem:[#allocation2 + $0x10] sm:$0xff] %v1111
    %1128 = vst [vmem:[#allocation2 + $0x18] sm:$0xff] %v1112
    %1129 = vst [vmem:[#allocation2 + $0x20] sm:$0xff] %v1113
    %1130 = vst [vmem:[#allocation2 + $0x28] sm:$0xff] %v1114
    %1131 = vst [vmem:[#allocation2 + $0x30] sm:$0xff] %v1115
    %1132 = vst [vmem:[#allocation2 + $0x38] sm:$0xff] %v1116
    %1133 = vst [vmem:[#allocation2 + $0x40] sm:$0xff] %v1117
    %1134 = vst [vmem:[#allocation2 + $0x48] sm:$0xff] %v1118
    %1135 = vst [vmem:[#allocation2 + $0x50] sm:$0xff] %v1119
    %1136 = vst [vmem:[#allocation2 + $0x58] sm:$0xff] %v1120
    %1137 = vst [vmem:[#allocation2 + $0x60] sm:$0xff] %v1121
    %1138 = vst [vmem:[#allocation2 + $0x68] sm:$0xff] %v1122
    %1139 = vst [vmem:[#allocation2 + $0x70] sm:$0xff] %v1123
    %1140 = vst [vmem:[#allocation2 + $0x78] sm:$0xff] %v1124
    %v1141 = vld [vmem:[#allocation2] sm:$0xf]
    %v1142 = vld [vmem:[#allocation2 + $0x8] sm:$0xf]
    %v1143 = vld [vmem:[#allocation2 + $0x10] sm:$0xf]
    %v1144 = vld [vmem:[#allocation2 + $0x18] sm:$0xf]
    %v1145 = vld [vmem:[#allocation2 + $0x20] sm:$0xf]
    %v1146 = vld [vmem:[#allocation2 + $0x28] sm:$0xf]
    %v1147 = vld [vmem:[#allocation2 + $0x30] sm:$0xf]
    %v1148 = vld [vmem:[#allocation2 + $0x38] sm:$0xf]
    %v1149 = vld [vmem:[#allocation2 + $0x40] sm:$0xf]
    %v1150 = vld [vmem:[#allocation2 + $0x48] sm:$0xf]
    %v1151 = vld [vmem:[#allocation2 + $0x50] sm:$0xf]
    %v1152 = vld [vmem:[#allocation2 + $0x58] sm:$0xf]
    %v1153 = vld [vmem:[#allocation2 + $0x60] sm:$0xf]
    %v1154 = vld [vmem:[#allocation2 + $0x68] sm:$0xf]
    %v1155 = vld [vmem:[#allocation2 + $0x70] sm:$0xf]
    %v1156 = vld [vmem:[#allocation2 + $0x78] sm:$0xf]
    %v1173 = vunpack.c.l.b16 %v1141
    %v1174 = vunpack.c.l.b16 %v1142
    %v1175 = vunpack.c.l.b16 %v1143
    %v1176 = vunpack.c.l.b16 %v1144
    %v1177 = vunpack.c.l.b16 %v1145
    %v1178 = vunpack.c.l.b16 %v1146
    %v1179 = vunpack.c.l.b16 %v1147
    %v1180 = vunpack.c.l.b16 %v1148
    %v1181 = vunpack.c.l.b16 %v1149
    %v1182 = vunpack.c.l.b16 %v1150
    %v1183 = vunpack.c.l.b16 %v1151
    %v1184 = vunpack.c.l.b16 %v1152
    %v1185 = vunpack.c.l.b16 %v1153
    %v1186 = vunpack.c.l.b16 %v1154
    %v1187 = vunpack.c.l.b16 %v1155
    %v1188 = vunpack.c.l.b16 %v1156
    %v1189 = vld [vmem:[%s3] sm:$0xff]
    %v1190 = vld [vmem:[%s3 + $0x8] sm:$0xff]
    %v1191 = vld [vmem:[%s3 + $0x10] sm:$0xff]
    %v1192 = vld [vmem:[%s3 + $0x18] sm:$0xff]
    %v1193 = vld [vmem:[%s3 + $0x20] sm:$0xff]
    %v1194 = vld [vmem:[%s3 + $0x28] sm:$0xff]
    %v1195 = vld [vmem:[%s3 + $0x30] sm:$0xff]
    %v1196 = vld [vmem:[%s3 + $0x38] sm:$0xff]
    %v1197 = vld [vmem:[%s3 + $0x40] sm:$0xff]
    %v1198 = vld [vmem:[%s3 + $0x48] sm:$0xff]
    %v1199 = vld [vmem:[%s3 + $0x50] sm:$0xff]
    %v1200 = vld [vmem:[%s3 + $0x58] sm:$0xff]
    %v1201 = vld [vmem:[%s3 + $0x60] sm:$0xff]
    %v1202 = vld [vmem:[%s3 + $0x68] sm:$0xff]
    %v1203 = vld [vmem:[%s3 + $0x70] sm:$0xff]
    %v1204 = vld [vmem:[%s3 + $0x78] sm:$0xff]
    %v1205 = vld [vmem:[%s3 + $0x80] sm:$0xff]
    %v1206 = vld [vmem:[%s3 + $0x88] sm:$0xff]
    %v1207 = vld [vmem:[%s3 + $0x90] sm:$0xff]
    %v1208 = vld [vmem:[%s3 + $0x98] sm:$0xff]
    %v1209 = vld [vmem:[%s3 + $0xa0] sm:$0xff]
    %v1210 = vld [vmem:[%s3 + $0xa8] sm:$0xff]
    %v1211 = vld [vmem:[%s3 + $0xb0] sm:$0xff]
    %v1212 = vld [vmem:[%s3 + $0xb8] sm:$0xff]
    %v1213 = vld [vmem:[%s3 + $0xc0] sm:$0xff]
    %v1214 = vld [vmem:[%s3 + $0xc8] sm:$0xff]
    %v1215 = vld [vmem:[%s3 + $0xd0] sm:$0xff]
    %v1216 = vld [vmem:[%s3 + $0xd8] sm:$0xff]
    %v1217 = vld [vmem:[%s3 + $0xe0] sm:$0xff]
    %v1218 = vld [vmem:[%s3 + $0xe8] sm:$0xff]
    %v1219 = vld [vmem:[%s3 + $0xf0] sm:$0xff]
    %v1220 = vld [vmem:[%s3 + $0xf8] sm:$0xff]
    %v1221 = vld [vmem:[%s3 + $0x100] sm:$0xff]
    %v1222 = vld [vmem:[%s3 + $0x108] sm:$0xff]
    %v1223 = vld [vmem:[%s3 + $0x110] sm:$0xff]
    %v1224 = vld [vmem:[%s3 + $0x118] sm:$0xff]
    %v1225 = vld [vmem:[%s3 + $0x120] sm:$0xff]
    %v1226 = vld [vmem:[%s3 + $0x128] sm:$0xff]
    %v1227 = vld [vmem:[%s3 + $0x130] sm:$0xff]
    %v1228 = vld [vmem:[%s3 + $0x138] sm:$0xff]
    %v1229 = vld [vmem:[%s3 + $0x140] sm:$0xff]
    %v1230 = vld [vmem:[%s3 + $0x148] sm:$0xff]
    %v1231 = vld [vmem:[%s3 + $0x150] sm:$0xff]
    %v1232 = vld [vmem:[%s3 + $0x158] sm:$0xff]
    %v1233 = vld [vmem:[%s3 + $0x160] sm:$0xff]
    %v1234 = vld [vmem:[%s3 + $0x168] sm:$0xff]
    %v1235 = vld [vmem:[%s3 + $0x170] sm:$0xff]
    %v1236 = vld [vmem:[%s3 + $0x178] sm:$0xff]
    %v1237 = vld [vmem:[%s3 + $0x180] sm:$0xff]
    %v1238 = vld [vmem:[%s3 + $0x188] sm:$0xff]
    %v1239 = vld [vmem:[%s3 + $0x190] sm:$0xff]
    %v1240 = vld [vmem:[%s3 + $0x198] sm:$0xff]
    %v1241 = vld [vmem:[%s3 + $0x1a0] sm:$0xff]
    %v1242 = vld [vmem:[%s3 + $0x1a8] sm:$0xff]
    %v1243 = vld [vmem:[%s3 + $0x1b0] sm:$0xff]
    %v1244 = vld [vmem:[%s3 + $0x1b8] sm:$0xff]
    %v1245 = vld [vmem:[%s3 + $0x1c0] sm:$0xff]
    %v1246 = vld [vmem:[%s3 + $0x1c8] sm:$0xff]
    %v1247 = vld [vmem:[%s3 + $0x1d0] sm:$0xff]
    %v1248 = vld [vmem:[%s3 + $0x1d8] sm:$0xff]
    %v1249 = vld [vmem:[%s3 + $0x1e0] sm:$0xff]
    %v1250 = vld [vmem:[%s3 + $0x1e8] sm:$0xff]
    %v1251 = vld [vmem:[%s3 + $0x1f0] sm:$0xff]
    %v1252 = vld [vmem:[%s3 + $0x1f8] sm:$0xff]
    %v1253 = vld [vmem:[#allocation2] sm:$0x1f]
    %v1254 = vld [vmem:[#allocation2 + $0x8] sm:$0x1f]
    %v1255 = vld [vmem:[#allocation2 + $0x10] sm:$0x1f]
    %v1256 = vld [vmem:[#allocation2 + $0x18] sm:$0x1f]
    %v1257 = vld [vmem:[#allocation2 + $0x20] sm:$0x1f]
    %v1258 = vld [vmem:[#allocation2 + $0x28] sm:$0x1f]
    %v1259 = vld [vmem:[#allocation2 + $0x30] sm:$0x1f]
    %v1260 = vld [vmem:[#allocation2 + $0x38] sm:$0x1f]
    %v1261 = vld [vmem:[#allocation2 + $0x40] sm:$0x1f]
    %v1262 = vld [vmem:[#allocation2 + $0x48] sm:$0x1f]
    %v1263 = vld [vmem:[#allocation2 + $0x50] sm:$0x1f]
    %v1264 = vld [vmem:[#allocation2 + $0x58] sm:$0x1f]
    %v1265 = vld [vmem:[#allocation2 + $0x60] sm:$0x1f]
    %v1266 = vld [vmem:[#allocation2 + $0x68] sm:$0x1f]
    %v1267 = vld [vmem:[#allocation2 + $0x70] sm:$0x1f]
    %v1268 = vld [vmem:[#allocation2 + $0x78] sm:$0x1f]
    %v1285 = vunpack.c.l.b16 %v1253
    %v1286 = vunpack.c.l.b16 %v1254
    %v1287 = vunpack.c.h.b16 %v1253
    %v1288 = vunpack.c.h.b16 %v1254
    %v1289 = vunpack.c.l.b16 %v1255
    %v1290 = vunpack.c.l.b16 %v1256
    %v1291 = vunpack.c.h.b16 %v1255
    %v1292 = vunpack.c.h.b16 %v1256
    %v1293 = vunpack.c.l.b16 %v1257
    %v1294 = vunpack.c.l.b16 %v1258
    %v1295 = vunpack.c.h.b16 %v1257
    %v1296 = vunpack.c.h.b16 %v1258
    %v1297 = vunpack.c.l.b16 %v1259
    %v1298 = vunpack.c.l.b16 %v1260
    %v1299 = vunpack.c.h.b16 %v1259
    %v1300 = vunpack.c.h.b16 %v1260
    %v1301 = vunpack.c.l.b16 %v1261
    %v1302 = vunpack.c.l.b16 %v1262
    %v1303 = vunpack.c.h.b16 %v1261
    %v1304 = vunpack.c.h.b16 %v1262
    %v1305 = vunpack.c.l.b16 %v1263
    %v1306 = vunpack.c.l.b16 %v1264
    %v1307 = vunpack.c.h.b16 %v1263
    %v1308 = vunpack.c.h.b16 %v1264
    %v1309 = vunpack.c.l.b16 %v1265
    %v1310 = vunpack.c.l.b16 %v1266
    %v1311 = vunpack.c.h.b16 %v1265
    %v1312 = vunpack.c.h.b16 %v1266
    %v1313 = vunpack.c.l.b16 %v1267
    %v1314 = vunpack.c.l.b16 %v1268
    %v1315 = vunpack.c.h.b16 %v1267
    %v1316 = vunpack.c.h.b16 %v1268
    %v1317 = vpack.c.b16 %v1286, %v1285
    %v1318 = vpack.c.b16 %v1288, %v1287
    %v1319 = vpack.c.b16 %v1290, %v1289
    %v1320 = vpack.c.b16 %v1292, %v1291
    %v1321 = vpack.c.b16 %v1294, %v1293
    %v1322 = vpack.c.b16 %v1296, %v1295
    %v1323 = vpack.c.b16 %v1298, %v1297
    %v1324 = vpack.c.b16 %v1300, %v1299
    %v1325 = vpack.c.b16 %v1302, %v1301
    %v1326 = vpack.c.b16 %v1304, %v1303
    %v1327 = vpack.c.b16 %v1306, %v1305
    %v1328 = vpack.c.b16 %v1308, %v1307
    %v1329 = vpack.c.b16 %v1310, %v1309
    %v1330 = vpack.c.b16 %v1312, %v1311
    %v1331 = vpack.c.b16 %v1314, %v1313
    %v1332 = vpack.c.b16 %v1316, %v1315
    %vm1333 = vsmask.f32 3328
    %vm1334 = vsmask.f32 7440
    %vm1335 = vmor %vm1333, %vm1334
    %v1337 = vshrl.u32 %v1317, 16
    %v1339 = vrot.slane %v1337, 4
    %v1340 = vshll.u32 %v1317, 16
    %v1342 = vrot.slane %v1340, 5
    %v1343 = vor.u32 %v1339, %v1342
    %v1344 = vrot.slane %v1343, 4
    %v1346 = vshll.u32 %v1318, 16
    %v1348 = vrot.slane %v1346, 5
    %v1349 = vsel %vm1335, %v1344, %v1348
    %v1351 = vshrl.u32 %v1319, 16
    %v1353 = vrot.slane %v1351, 4
    %v1354 = vshll.u32 %v1319, 16
    %v1356 = vrot.slane %v1354, 5
    %v1357 = vor.u32 %v1353, %v1356
    %v1358 = vrot.slane %v1357, 4
    %v1360 = vshll.u32 %v1320, 16
    %v1362 = vrot.slane %v1360, 5
    %v1363 = vsel %vm1335, %v1358, %v1362
    %v1365 = vshrl.u32 %v1321, 16
    %v1367 = vrot.slane %v1365, 4
    %v1368 = vshll.u32 %v1321, 16
    %v1370 = vrot.slane %v1368, 5
    %v1371 = vor.u32 %v1367, %v1370
    %v1372 = vrot.slane %v1371, 4
    %v1374 = vshll.u32 %v1322, 16
    %v1376 = vrot.slane %v1374, 5
    %v1377 = vsel %vm1335, %v1372, %v1376
    %v1379 = vshrl.u32 %v1323, 16
    %v1381 = vrot.slane %v1379, 4
    %v1382 = vshll.u32 %v1323, 16
    %v1384 = vrot.slane %v1382, 5
    %v1385 = vor.u32 %v1381, %v1384
    %v1386 = vrot.slane %v1385, 4
    %v1388 = vshll.u32 %v1324, 16
    %v1390 = vrot.slane %v1388, 5
    %v1391 = vsel %vm1335, %v1386, %v1390
    %v1393 = vshrl.u32 %v1325, 16
    %v1395 = vrot.slane %v1393, 4
    %v1396 = vshll.u32 %v1325, 16
    %v1398 = vrot.slane %v1396, 5
    %v1399 = vor.u32 %v1395, %v1398
    %v1400 = vrot.slane %v1399, 4
    %v1402 = vshll.u32 %v1326, 16
    %v1404 = vrot.slane %v1402, 5
    %v1405 = vsel %vm1335, %v1400, %v1404
    %v1407 = vshrl.u32 %v1327, 16
    %v1409 = vrot.slane %v1407, 4
    %v1410 = vshll.u32 %v1327, 16
    %v1412 = vrot.slane %v1410, 5
    %v1413 = vor.u32 %v1409, %v1412
    %v1414 = vrot.slane %v1413, 4
    %v1416 = vshll.u32 %v1328, 16
    %v1418 = vrot.slane %v1416, 5
    %v1419 = vsel %vm1335, %v1414, %v1418
    %v1421 = vshrl.u32 %v1329, 16
    %v1423 = vrot.slane %v1421, 4
    %v1424 = vshll.u32 %v1329, 16
    %v1426 = vrot.slane %v1424, 5
    %v1427 = vor.u32 %v1423, %v1426
    %v1428 = vrot.slane %v1427, 4
    %v1430 = vshll.u32 %v1330, 16
    %v1432 = vrot.slane %v1430, 5
    %v1433 = vsel %vm1335, %v1428, %v1432
    %v1435 = vshrl.u32 %v1331, 16
    %v1437 = vrot.slane %v1435, 4
    %v1438 = vshll.u32 %v1331, 16
    %v1440 = vrot.slane %v1438, 5
    %v1441 = vor.u32 %v1437, %v1440
    %v1442 = vrot.slane %v1441, 4
    %v1444 = vshll.u32 %v1332, 16
    %v1446 = vrot.slane %v1444, 5
    %v1447 = vsel %vm1335, %v1442, %v1446
    %s1448 = scalar_lea.vmem %s3, 512
    %v1449 = vld [vmem:[%s1448] sm:$0xff]
    %v1450 = vld [vmem:[%s1448 + $0x8] sm:$0xff]
    %v1451 = vld [vmem:[%s1448 + $0x10] sm:$0xff]
    %v1452 = vld [vmem:[%s1448 + $0x18] sm:$0xff]
    %v1453 = vld [vmem:[%s1448 + $0x20] sm:$0xff]
    %v1454 = vld [vmem:[%s1448 + $0x28] sm:$0xff]
    %v1455 = vld [vmem:[%s1448 + $0x30] sm:$0xff]
    %v1456 = vld [vmem:[%s1448 + $0x38] sm:$0xff]
    %v1457 = vld [vmem:[%s1448 + $0x40] sm:$0xff]
    %v1458 = vld [vmem:[%s1448 + $0x48] sm:$0xff]
    %v1459 = vld [vmem:[%s1448 + $0x50] sm:$0xff]
    %v1460 = vld [vmem:[%s1448 + $0x58] sm:$0xff]
    %v1461 = vld [vmem:[%s1448 + $0x60] sm:$0xff]
    %v1462 = vld [vmem:[%s1448 + $0x68] sm:$0xff]
    %v1463 = vld [vmem:[%s1448 + $0x70] sm:$0xff]
    %v1464 = vld [vmem:[%s1448 + $0x78] sm:$0xff]
    %v1465 = vld [vmem:[%s1448 + $0x80] sm:$0xff]
    %v1466 = vld [vmem:[%s1448 + $0x88] sm:$0xff]
    %v1467 = vld [vmem:[%s1448 + $0x90] sm:$0xff]
    %v1468 = vld [vmem:[%s1448 + $0x98] sm:$0xff]
    %v1469 = vld [vmem:[%s1448 + $0xa0] sm:$0xff]
    %v1470 = vld [vmem:[%s1448 + $0xa8] sm:$0xff]
    %v1471 = vld [vmem:[%s1448 + $0xb0] sm:$0xff]
    %v1472 = vld [vmem:[%s1448 + $0xb8] sm:$0xff]
    %v1473 = vld [vmem:[%s1448 + $0xc0] sm:$0xff]
    %v1474 = vld [vmem:[%s1448 + $0xc8] sm:$0xff]
    %v1475 = vld [vmem:[%s1448 + $0xd0] sm:$0xff]
    %v1476 = vld [vmem:[%s1448 + $0xd8] sm:$0xff]
    %v1477 = vld [vmem:[%s1448 + $0xe0] sm:$0xff]
    %v1478 = vld [vmem:[%s1448 + $0xe8] sm:$0xff]
    %v1479 = vld [vmem:[%s1448 + $0xf0] sm:$0xff]
    %v1480 = vld [vmem:[%s1448 + $0xf8] sm:$0xff]
    %v1481 = vld [vmem:[%s1448 + $0x100] sm:$0xff]
    %v1482 = vld [vmem:[%s1448 + $0x108] sm:$0xff]
    %v1483 = vld [vmem:[%s1448 + $0x110] sm:$0xff]
    %v1484 = vld [vmem:[%s1448 + $0x118] sm:$0xff]
    %v1485 = vld [vmem:[%s1448 + $0x120] sm:$0xff]
    %v1486 = vld [vmem:[%s1448 + $0x128] sm:$0xff]
    %v1487 = vld [vmem:[%s1448 + $0x130] sm:$0xff]
    %v1488 = vld [vmem:[%s1448 + $0x138] sm:$0xff]
    %v1489 = vld [vmem:[%s1448 + $0x140] sm:$0xff]
    %v1490 = vld [vmem:[%s1448 + $0x148] sm:$0xff]
    %v1491 = vld [vmem:[%s1448 + $0x150] sm:$0xff]
    %v1492 = vld [vmem:[%s1448 + $0x158] sm:$0xff]
    %v1493 = vld [vmem:[%s1448 + $0x160] sm:$0xff]
    %v1494 = vld [vmem:[%s1448 + $0x168] sm:$0xff]
    %v1495 = vld [vmem:[%s1448 + $0x170] sm:$0xff]
    %v1496 = vld [vmem:[%s1448 + $0x178] sm:$0xff]
    %v1497 = vld [vmem:[%s1448 + $0x180] sm:$0xff]
    %v1498 = vld [vmem:[%s1448 + $0x188] sm:$0xff]
    %v1499 = vld [vmem:[%s1448 + $0x190] sm:$0xff]
    %v1500 = vld [vmem:[%s1448 + $0x198] sm:$0xff]
    %v1501 = vld [vmem:[%s1448 + $0x1a0] sm:$0xff]
    %v1502 = vld [vmem:[%s1448 + $0x1a8] sm:$0xff]
    %v1503 = vld [vmem:[%s1448 + $0x1b0] sm:$0xff]
    %v1504 = vld [vmem:[%s1448 + $0x1b8] sm:$0xff]
    %v1505 = vld [vmem:[%s1448 + $0x1c0] sm:$0xff]
    %v1506 = vld [vmem:[%s1448 + $0x1c8] sm:$0xff]
    %v1507 = vld [vmem:[%s1448 + $0x1d0] sm:$0xff]
    %v1508 = vld [vmem:[%s1448 + $0x1d8] sm:$0xff]
    %v1509 = vld [vmem:[%s1448 + $0x1e0] sm:$0xff]
    %v1510 = vld [vmem:[%s1448 + $0x1e8] sm:$0xff]
    %v1511 = vld [vmem:[%s1448 + $0x1f0] sm:$0xff]
    %v1512 = vld [vmem:[%s1448 + $0x1f8] sm:$0xff]
    %v1513 = vunpack.c.l.b16 %v1349
    %v1514 = vunpack.c.h.b16 %v1349
    %v1515 = vunpack.c.l.b16 %v1363
    %v1516 = vunpack.c.h.b16 %v1363
    %v1517 = vunpack.c.l.b16 %v1377
    %v1518 = vunpack.c.h.b16 %v1377
    %v1519 = vunpack.c.l.b16 %v1391
    %v1520 = vunpack.c.h.b16 %v1391
    %v1521 = vunpack.c.l.b16 %v1405
    %v1522 = vunpack.c.h.b16 %v1405
    %v1523 = vunpack.c.l.b16 %v1419
    %v1524 = vunpack.c.h.b16 %v1419
    %v1525 = vunpack.c.l.b16 %v1433
    %v1526 = vunpack.c.h.b16 %v1433
    %v1527 = vunpack.c.l.b16 %v1447
    %v1528 = vunpack.c.h.b16 %v1447
    %v1529 = vpack.c.b16 %v1515, %v1513
    %v1530 = vpack.c.b16 %v1516, %v1514
    %v1531 = vpack.c.b16 %v1519, %v1517
    %v1532 = vpack.c.b16 %v1520, %v1518
    %v1533 = vpack.c.b16 %v1523, %v1521
    %v1534 = vpack.c.b16 %v1524, %v1522
    %v1535 = vpack.c.b16 %v1527, %v1525
    %v1536 = vpack.c.b16 %v1528, %v1526
    %v1609 = vunpack.c.l.b16 %v1449
    %v1610 = vunpack.c.h.b16 %v1449
    %v1611 = vunpack.c.l.b16 %v1450
    %v1612 = vunpack.c.h.b16 %v1450
    %v1613 = vunpack.c.l.b16 %v1451
    %v1614 = vunpack.c.h.b16 %v1451
    %v1615 = vunpack.c.l.b16 %v1452
    %v1616 = vunpack.c.h.b16 %v1452
    %v1617 = vunpack.c.l.b16 %v1453
    %v1618 = vunpack.c.h.b16 %v1453
    %v1619 = vunpack.c.l.b16 %v1454
    %v1620 = vunpack.c.h.b16 %v1454
    %v1621 = vunpack.c.l.b16 %v1455
    %v1622 = vunpack.c.h.b16 %v1455
    %v1623 = vunpack.c.l.b16 %v1456
    %v1624 = vunpack.c.h.b16 %v1456
    %v1625 = vunpack.c.l.b16 %v1457
    %v1626 = vunpack.c.h.b16 %v1457
    %v1627 = vunpack.c.l.b16 %v1458
    %v1628 = vunpack.c.h.b16 %v1458
    %v1629 = vunpack.c.l.b16 %v1459
    %v1630 = vunpack.c.h.b16 %v1459
    %v1631 = vunpack.c.l.b16 %v1460
    %v1632 = vunpack.c.h.b16 %v1460
    %v1633 = vunpack.c.l.b16 %v1461
    %v1634 = vunpack.c.h.b16 %v1461
    %v1635 = vunpack.c.l.b16 %v1462
    %v1636 = vunpack.c.h.b16 %v1462
    %v1637 = vunpack.c.l.b16 %v1463
    %v1638 = vunpack.c.h.b16 %v1463
    %v1639 = vunpack.c.l.b16 %v1464
    %v1640 = vunpack.c.h.b16 %v1464
    %v1641 = vunpack.c.l.b16 %v1465
    %v1642 = vunpack.c.h.b16 %v1465
    %v1643 = vunpack.c.l.b16 %v1466
    %v1644 = vunpack.c.h.b16 %v1466
    %v1645 = vunpack.c.l.b16 %v1467
    %v1646 = vunpack.c.h.b16 %v1467
    %v1647 = vunpack.c.l.b16 %v1468
    %v1648 = vunpack.c.h.b16 %v1468
    %v1649 = vunpack.c.l.b16 %v1469
    %v1650 = vunpack.c.h.b16 %v1469
    %v1651 = vunpack.c.l.b16 %v1470
    %v1652 = vunpack.c.h.b16 %v1470
    %v1653 = vunpack.c.l.b16 %v1471
    %v1654 = vunpack.c.h.b16 %v1471
    %v1655 = vunpack.c.l.b16 %v1472
    %v1656 = vunpack.c.h.b16 %v1472
    %v1657 = vunpack.c.l.b16 %v1473
    %v1658 = vunpack.c.h.b16 %v1473
    %v1659 = vunpack.c.l.b16 %v1474
    %v1660 = vunpack.c.h.b16 %v1474
    %v1661 = vunpack.c.l.b16 %v1475
    %v1662 = vunpack.c.h.b16 %v1475
    %v1663 = vunpack.c.l.b16 %v1476
    %v1664 = vunpack.c.h.b16 %v1476
    %v1665 = vunpack.c.l.b16 %v1477
    %v1666 = vunpack.c.h.b16 %v1477
    %v1667 = vunpack.c.l.b16 %v1478
    %v1668 = vunpack.c.h.b16 %v1478
    %v1669 = vunpack.c.l.b16 %v1479
    %v1670 = vunpack.c.h.b16 %v1479
    %v1671 = vunpack.c.l.b16 %v1480
    %v1672 = vunpack.c.h.b16 %v1480
    %v1673 = vunpack.c.l.b16 %v1481
    %v1674 = vunpack.c.h.b16 %v1481
    %v1675 = vunpack.c.l.b16 %v1482
    %v1676 = vunpack.c.h.b16 %v1482
    %v1677 = vunpack.c.l.b16 %v1483
    %v1678 = vunpack.c.h.b16 %v1483
    %v1679 = vunpack.c.l.b16 %v1484
    %v1680 = vunpack.c.h.b16 %v1484
    %v1681 = vunpack.c.l.b16 %v1485
    %v1682 = vunpack.c.h.b16 %v1485
    %v1683 = vunpack.c.l.b16 %v1486
    %v1684 = vunpack.c.h.b16 %v1486
    %v1685 = vunpack.c.l.b16 %v1487
    %v1686 = vunpack.c.h.b16 %v1487
    %v1687 = vunpack.c.l.b16 %v1488
    %v1688 = vunpack.c.h.b16 %v1488
    %v1689 = vunpack.c.l.b16 %v1489
    %v1690 = vunpack.c.h.b16 %v1489
    %v1691 = vunpack.c.l.b16 %v1490
    %v1692 = vunpack.c.h.b16 %v1490
    %v1693 = vunpack.c.l.b16 %v1491
    %v1694 = vunpack.c.h.b16 %v1491
    %v1695 = vunpack.c.l.b16 %v1492
    %v1696 = vunpack.c.h.b16 %v1492
    %v1697 = vunpack.c.l.b16 %v1493
    %v1698 = vunpack.c.h.b16 %v1493
    %v1699 = vunpack.c.l.b16 %v1494
    %v1700 = vunpack.c.h.b16 %v1494
    %v1701 = vunpack.c.l.b16 %v1495
    %v1702 = vunpack.c.h.b16 %v1495
    %v1703 = vunpack.c.l.b16 %v1496
    %v1704 = vunpack.c.h.b16 %v1496
    %v1705 = vunpack.c.l.b16 %v1497
    %v1706 = vunpack.c.h.b16 %v1497
    %v1707 = vunpack.c.l.b16 %v1498
    %v1708 = vunpack.c.h.b16 %v1498
    %v1709 = vunpack.c.l.b16 %v1499
    %v1710 = vunpack.c.h.b16 %v1499
    %v1711 = vunpack.c.l.b16 %v1500
    %v1712 = vunpack.c.h.b16 %v1500
    %v1713 = vunpack.c.l.b16 %v1501
    %v1714 = vunpack.c.h.b16 %v1501
    %v1715 = vunpack.c.l.b16 %v1502
    %v1716 = vunpack.c.h.b16 %v1502
    %v1717 = vunpack.c.l.b16 %v1503
    %v1718 = vunpack.c.h.b16 %v1503
    %v1719 = vunpack.c.l.b16 %v1504
    %v1720 = vunpack.c.h.b16 %v1504
    %v1721 = vunpack.c.l.b16 %v1505
    %v1722 = vunpack.c.h.b16 %v1505
    %v1723 = vunpack.c.l.b16 %v1506
    %v1724 = vunpack.c.h.b16 %v1506
    %v1725 = vunpack.c.l.b16 %v1507
    %v1726 = vunpack.c.h.b16 %v1507
    %v1727 = vunpack.c.l.b16 %v1508
    %v1728 = vunpack.c.h.b16 %v1508
    %v1729 = vunpack.c.l.b16 %v1509
    %v1730 = vunpack.c.h.b16 %v1509
    %v1731 = vunpack.c.l.b16 %v1510
    %v1732 = vunpack.c.h.b16 %v1510
    %v1733 = vunpack.c.l.b16 %v1511
    %v1734 = vunpack.c.h.b16 %v1511
    %v1735 = vunpack.c.l.b16 %v1512
    %v1736 = vunpack.c.h.b16 %v1512
    %v1737 = vpack.c.b16 %v1613, %v1609
    %v1738 = vpack.c.b16 %v1614, %v1610
    %v1739 = vpack.c.b16 %v1615, %v1611
    %v1740 = vpack.c.b16 %v1616, %v1612
    %v1741 = vpack.c.b16 %v1621, %v1617
    %v1742 = vpack.c.b16 %v1622, %v1618
    %v1743 = vpack.c.b16 %v1623, %v1619
    %v1744 = vpack.c.b16 %v1624, %v1620
    %v1745 = vpack.c.b16 %v1629, %v1625
    %v1746 = vpack.c.b16 %v1630, %v1626
    %v1747 = vpack.c.b16 %v1631, %v1627
    %v1748 = vpack.c.b16 %v1632, %v1628
    %v1749 = vpack.c.b16 %v1637, %v1633
    %v1750 = vpack.c.b16 %v1638, %v1634
    %v1751 = vpack.c.b16 %v1639, %v1635
    %v1752 = vpack.c.b16 %v1640, %v1636
    %v1753 = vpack.c.b16 %v1645, %v1641
    %v1754 = vpack.c.b16 %v1646, %v1642
    %v1755 = vpack.c.b16 %v1647, %v1643
    %v1756 = vpack.c.b16 %v1648, %v1644
    %v1757 = vpack.c.b16 %v1653, %v1649
    %v1758 = vpack.c.b16 %v1654, %v1650
    %v1759 = vpack.c.b16 %v1655, %v1651
    %v1760 = vpack.c.b16 %v1656, %v1652
    %v1761 = vpack.c.b16 %v1661, %v1657
    %v1762 = vpack.c.b16 %v1662, %v1658
    %v1763 = vpack.c.b16 %v1663, %v1659
    %v1764 = vpack.c.b16 %v1664, %v1660
    %v1765 = vpack.c.b16 %v1669, %v1665
    %v1766 = vpack.c.b16 %v1670, %v1666
    %v1767 = vpack.c.b16 %v1671, %v1667
    %v1768 = vpack.c.b16 %v1672, %v1668
    %v1769 = vpack.c.b16 %v1677, %v1673
    %v1770 = vpack.c.b16 %v1678, %v1674
    %v1771 = vpack.c.b16 %v1679, %v1675
    %v1772 = vpack.c.b16 %v1680, %v1676
    %v1773 = vpack.c.b16 %v1685, %v1681
    %v1774 = vpack.c.b16 %v1686, %v1682
    %v1775 = vpack.c.b16 %v1687, %v1683
    %v1776 = vpack.c.b16 %v1688, %v1684
    %v1777 = vpack.c.b16 %v1693, %v1689
    %v1778 = vpack.c.b16 %v1694, %v1690
    %v1779 = vpack.c.b16 %v1695, %v1691
    %v1780 = vpack.c.b16 %v1696, %v1692
    %v1781 = vpack.c.b16 %v1701, %v1697
    %v1782 = vpack.c.b16 %v1702, %v1698
    %v1783 = vpack.c.b16 %v1703, %v1699
    %v1784 = vpack.c.b16 %v1704, %v1700
    %v1785 = vpack.c.b16 %v1709, %v1705
    %v1786 = vpack.c.b16 %v1710, %v1706
    %v1787 = vpack.c.b16 %v1711, %v1707
    %v1788 = vpack.c.b16 %v1712, %v1708
    %v1789 = vpack.c.b16 %v1717, %v1713
    %v1790 = vpack.c.b16 %v1718, %v1714
    %v1791 = vpack.c.b16 %v1719, %v1715
    %v1792 = vpack.c.b16 %v1720, %v1716
    %v1793 = vpack.c.b16 %v1725, %v1721
    %v1794 = vpack.c.b16 %v1726, %v1722
    %v1795 = vpack.c.b16 %v1727, %v1723
    %v1796 = vpack.c.b16 %v1728, %v1724
    %v1797 = vpack.c.b16 %v1733, %v1729
    %v1798 = vpack.c.b16 %v1734, %v1730
    %v1799 = vpack.c.b16 %v1735, %v1731
    %v1800 = vpack.c.b16 %v1736, %v1732
    %1865 = vmatprep.subr.bf16.mxu0 %v1738
    %1866 = vmatpush1.bf16.msra.mxu0 %v1737
    %1867 = vmatprep.subr.bf16.mxu0 %v1742
    %1868 = vmatpush1.bf16.msra.mxu0 %v1741
    %1869 = vmatprep.subr.bf16.mxu0 %v1746
    %1870 = vmatpush1.bf16.msra.mxu0 %v1745
    %1871 = vmatprep.subr.bf16.mxu0 %v1750
    %1872 = vmatpush1.bf16.msra.mxu0 %v1749
    %1873 = vmatprep.subr.bf16.mxu0 %v1754
    %1874 = vmatpush1.bf16.msra.mxu0 %v1753
    %1875 = vmatprep.subr.bf16.mxu0 %v1758
    %1876 = vmatpush1.bf16.msra.mxu0 %v1757
    %1877 = vmatprep.subr.bf16.mxu0 %v1762
    %1878 = vmatpush1.bf16.msra.mxu0 %v1761
    %1879 = vmatprep.subr.bf16.mxu0 %v1766
    %1880 = vmatpush1.bf16.msra.mxu0 %v1765
    %1881 = vmatprep.subr.bf16.mxu0 %v1770
    %1882 = vmatpush1.bf16.msra.mxu0 %v1769
    %1883 = vmatprep.subr.bf16.mxu0 %v1774
    %1884 = vmatpush1.bf16.msra.mxu0 %v1773
    %1885 = vmatprep.subr.bf16.mxu0 %v1778
    %1886 = vmatpush1.bf16.msra.mxu0 %v1777
    %1887 = vmatprep.subr.bf16.mxu0 %v1782
    %1888 = vmatpush1.bf16.msra.mxu0 %v1781
    %1889 = vmatprep.subr.bf16.mxu0 %v1786
    %1890 = vmatpush1.bf16.msra.mxu0 %v1785
    %1891 = vmatprep.subr.bf16.mxu0 %v1790
    %1892 = vmatpush1.bf16.msra.mxu0 %v1789
    %1893 = vmatprep.subr.bf16.mxu0 %v1794
    %1894 = vmatpush1.bf16.msra.mxu0 %v1793
    %1895 = vmatprep.subr.bf16.mxu0 %v1798
    %1896 = vmatpush1.bf16.msra.mxu0 %v1797
    %1897 = vmatprep.mubr.bf16.mxu0 %v1530
    %1898 = vmatmul.mubr.bf16.gmra.mrb[0].mxu0 %v1529
    %v1899 = vpop.f32.mrb[0].mxu0
    %v1900 = vadd.f32 0.0, %v1899
    %v1901 = vpop.f32.mrb[0].mxu0
    %v1902 = vadd.f32 0.0, %v1901
    %v1903 = vpop.f32.mrb[0].mxu0
    %v1904 = vadd.f32 0.0, %v1903
    %v1905 = vpop.f32.mrb[0].mxu0
    %v1906 = vadd.f32 0.0, %v1905
    %1907 = vmatprep.mubr.bf16.mxu0 %v1532
    %1908 = vmatmul.mubr.bf16.gmra.mrb[0].mxu0 %v1531
    %v1909 = vpop.f32.mrb[0].mxu0
    %v1910 = vadd.f32 0.0, %v1909
    %v1911 = vpop.f32.mrb[0].mxu0
    %v1912 = vadd.f32 0.0, %v1911
    %v1913 = vpop.f32.mrb[0].mxu0
    %v1914 = vadd.f32 0.0, %v1913
    %v1915 = vpop.f32.mrb[0].mxu0
    %v1916 = vadd.f32 0.0, %v1915
    %1917 = vmatprep.mubr.bf16.mxu0 %v1534
    %1918 = vmatmul.mubr.bf16.gmra.mrb[0].mxu0 %v1533
    %v1919 = vpop.f32.mrb[0].mxu0
    %v1920 = vadd.f32 0.0, %v1919
    %v1921 = vpop.f32.mrb[0].mxu0
    %v1922 = vadd.f32 0.0, %v1921
    %v1923 = vpop.f32.mrb[0].mxu0
    %v1924 = vadd.f32 0.0, %v1923
    %v1925 = vpop.f32.mrb[0].mxu0
    %v1926 = vadd.f32 0.0, %v1925
    %1927 = vmatprep.mubr.bf16.mxu0 %v1536
    %1928 = vmatmul.mubr.bf16.gmra.mrb[0].mxu0 %v1535
    %v1929 = vpop.f32.mrb[0].mxu0
    %v1930 = vadd.f32 0.0, %v1929
    %v1931 = vpop.f32.mrb[0].mxu0
    %v1932 = vadd.f32 0.0, %v1931
    %v1933 = vpop.f32.mrb[0].mxu0
    %v1934 = vadd.f32 0.0, %v1933
    %v1935 = vpop.f32.mrb[0].mxu0
    %v1936 = vadd.f32 0.0, %v1935
    %1937 = vdwg.mxu0
    %1938 = vmatprep.subr.bf16.mxu0 %v1740
    %1939 = vmatpush1.bf16.msra.mxu0 %v1739
    %1940 = vmatprep.subr.bf16.mxu0 %v1744
    %1941 = vmatpush1.bf16.msra.mxu0 %v1743
    %1942 = vmatprep.subr.bf16.mxu0 %v1748
    %1943 = vmatpush1.bf16.msra.mxu0 %v1747
    %1944 = vmatprep.subr.bf16.mxu0 %v1752
    %1945 = vmatpush1.bf16.msra.mxu0 %v1751
    %1946 = vmatprep.subr.bf16.mxu0 %v1756
    %1947 = vmatpush1.bf16.msra.mxu0 %v1755
    %1948 = vmatprep.subr.bf16.mxu0 %v1760
    %1949 = vmatpush1.bf16.msra.mxu0 %v1759
    %1950 = vmatprep.subr.bf16.mxu0 %v1764
    %1951 = vmatpush1.bf16.msra.mxu0 %v1763
    %1952 = vmatprep.subr.bf16.mxu0 %v1768
    %1953 = vmatpush1.bf16.msra.mxu0 %v1767
    %1954 = vmatprep.subr.bf16.mxu0 %v1772
    %1955 = vmatpush1.bf16.msra.mxu0 %v1771
    %1956 = vmatprep.subr.bf16.mxu0 %v1776
    %1957 = vmatpush1.bf16.msra.mxu0 %v1775
    %1958 = vmatprep.subr.bf16.mxu0 %v1780
    %1959 = vmatpush1.bf16.msra.mxu0 %v1779
    %1960 = vmatprep.subr.bf16.mxu0 %v1784
    %1961 = vmatpush1.bf16.msra.mxu0 %v1783
    %1962 = vmatprep.subr.bf16.mxu0 %v1788
    %1963 = vmatpush1.bf16.msra.mxu0 %v1787
    %1964 = vmatprep.subr.bf16.mxu0 %v1792
    %1965 = vmatpush1.bf16.msra.mxu0 %v1791
    %1966 = vmatprep.subr.bf16.mxu0 %v1796
    %1967 = vmatpush1.bf16.msra.mxu0 %v1795
    %1968 = vmatprep.subr.bf16.mxu0 %v1800
    %1969 = vmatpush1.bf16.msra.mxu0 %v1799
    %1970 = vmatprep.mubr.bf16.mxu0 %v1530
    %1971 = vmatmul.mubr.bf16.gmra.mrb[0].mxu0 %v1529
    %v1972 = vpop.f32.mrb[0].mxu0
    %v1973 = vadd.f32 0.0, %v1972
    %v1974 = vpop.f32.mrb[0].mxu0
    %v1975 = vadd.f32 0.0, %v1974
    %v1976 = vpop.f32.mrb[0].mxu0
    %v1977 = vadd.f32 0.0, %v1976
    %v1978 = vpop.f32.mrb[0].mxu0
    %v1979 = vadd.f32 0.0, %v1978
    %1980 = vmatprep.mubr.bf16.mxu0 %v1532
    %1981 = vmatmul.mubr.bf16.gmra.mrb[0].mxu0 %v1531
    %v1982 = vpop.f32.mrb[0].mxu0
    %v1983 = vadd.f32 0.0, %v1982
    %v1984 = vpop.f32.mrb[0].mxu0
    %v1985 = vadd.f32 0.0, %v1984
    %v1986 = vpop.f32.mrb[0].mxu0
    %v1987 = vadd.f32 0.0, %v1986
    %v1988 = vpop.f32.mrb[0].mxu0
    %v1989 = vadd.f32 0.0, %v1988
    %1990 = vmatprep.mubr.bf16.mxu0 %v1534
    %1991 = vmatmul.mubr.bf16.gmra.mrb[0].mxu0 %v1533
    %v1992 = vpop.f32.mrb[0].mxu0
    %v1993 = vadd.f32 0.0, %v1992
    %v1994 = vpop.f32.mrb[0].mxu0
    %v1995 = vadd.f32 0.0, %v1994
    %v1996 = vpop.f32.mrb[0].mxu0
    %v1997 = vadd.f32 0.0, %v1996
    %v1998 = vpop.f32.mrb[0].mxu0
    %v1999 = vadd.f32 0.0, %v1998
    %2000 = vmatprep.mubr.bf16.mxu0 %v1536
    %2001 = vmatmul.mubr.bf16.gmra.mrb[0].mxu0 %v1535
    %v2002 = vpop.f32.mrb[0].mxu0
    %v2003 = vadd.f32 0.0, %v2002
    %v2004 = vpop.f32.mrb[0].mxu0
    %v2005 = vadd.f32 0.0, %v2004
    %v2006 = vpop.f32.mrb[0].mxu0
    %v2007 = vadd.f32 0.0, %v2006
    %v2008 = vpop.f32.mrb[0].mxu0
    %v2009 = vadd.f32 0.0, %v2008
    %2010 = vdwg.mxu0
    %v2011 = vpack.c.b16 %v1175, %v1173
    %v2012 = vpack.c.b16 %v1176, %v1174
    %v2013 = vpack.c.b16 %v1179, %v1177
    %v2014 = vpack.c.b16 %v1180, %v1178
    %v2015 = vpack.c.b16 %v1183, %v1181
    %v2016 = vpack.c.b16 %v1184, %v1182
    %v2017 = vpack.c.b16 %v1187, %v1185
    %v2018 = vpack.c.b16 %v1188, %v1186
    %v2091 = vunpack.c.l.b16 %v1189
    %v2092 = vunpack.c.h.b16 %v1189
    %v2093 = vunpack.c.l.b16 %v1190
    %v2094 = vunpack.c.h.b16 %v1190
    %v2095 = vunpack.c.l.b16 %v1191
    %v2096 = vunpack.c.h.b16 %v1191
    %v2097 = vunpack.c.l.b16 %v1192
    %v2098 = vunpack.c.h.b16 %v1192
    %v2099 = vunpack.c.l.b16 %v1193
    %v2100 = vunpack.c.h.b16 %v1193
    %v2101 = vunpack.c.l.b16 %v1194
    %v2102 = vunpack.c.h.b16 %v1194
    %v2103 = vunpack.c.l.b16 %v1195
    %v2104 = vunpack.c.h.b16 %v1195
    %v2105 = vunpack.c.l.b16 %v1196
    %v2106 = vunpack.c.h.b16 %v1196
    %v2107 = vunpack.c.l.b16 %v1197
    %v2108 = vunpack.c.h.b16 %v1197
    %v2109 = vunpack.c.l.b16 %v1198
    %v2110 = vunpack.c.h.b16 %v1198
    %v2111 = vunpack.c.l.b16 %v1199
    %v2112 = vunpack.c.h.b16 %v1199
    %v2113 = vunpack.c.l.b16 %v1200
    %v2114 = vunpack.c.h.b16 %v1200
    %v2115 = vunpack.c.l.b16 %v1201
    %v2116 = vunpack.c.h.b16 %v1201
    %v2117 = vunpack.c.l.b16 %v1202
    %v2118 = vunpack.c.h.b16 %v1202
    %v2119 = vunpack.c.l.b16 %v1203
    %v2120 = vunpack.c.h.b16 %v1203
    %v2121 = vunpack.c.l.b16 %v1204
    %v2122 = vunpack.c.h.b16 %v1204
    %v2123 = vunpack.c.l.b16 %v1205
    %v2124 = vunpack.c.h.b16 %v1205
    %v2125 = vunpack.c.l.b16 %v1206
    %v2126 = vunpack.c.h.b16 %v1206
    %v2127 = vunpack.c.l.b16 %v1207
    %v2128 = vunpack.c.h.b16 %v1207
    %v2129 = vunpack.c.l.b16 %v1208
    %v2130 = vunpack.c.h.b16 %v1208
    %v2131 = vunpack.c.l.b16 %v1209
    %v2132 = vunpack.c.h.b16 %v1209
    %v2133 = vunpack.c.l.b16 %v1210
    %v2134 = vunpack.c.h.b16 %v1210
    %v2135 = vunpack.c.l.b16 %v1211
    %v2136 = vunpack.c.h.b16 %v1211
    %v2137 = vunpack.c.l.b16 %v1212
    %v2138 = vunpack.c.h.b16 %v1212
    %v2139 = vunpack.c.l.b16 %v1213
    %v2140 = vunpack.c.h.b16 %v1213
    %v2141 = vunpack.c.l.b16 %v1214
    %v2142 = vunpack.c.h.b16 %v1214
    %v2143 = vunpack.c.l.b16 %v1215
    %v2144 = vunpack.c.h.b16 %v1215
    %v2145 = vunpack.c.l.b16 %v1216
    %v2146 = vunpack.c.h.b16 %v1216
    %v2147 = vunpack.c.l.b16 %v1217
    %v2148 = vunpack.c.h.b16 %v1217
    %v2149 = vunpack.c.l.b16 %v1218
    %v2150 = vunpack.c.h.b16 %v1218
    %v2151 = vunpack.c.l.b16 %v1219
    %v2152 = vunpack.c.h.b16 %v1219
    %v2153 = vunpack.c.l.b16 %v1220
    %v2154 = vunpack.c.h.b16 %v1220
    %v2155 = vunpack.c.l.b16 %v1221
    %v2156 = vunpack.c.h.b16 %v1221
    %v2157 = vunpack.c.l.b16 %v1222
    %v2158 = vunpack.c.h.b16 %v1222
    %v2159 = vunpack.c.l.b16 %v1223
    %v2160 = vunpack.c.h.b16 %v1223
    %v2161 = vunpack.c.l.b16 %v1224
    %v2162 = vunpack.c.h.b16 %v1224
    %v2163 = vunpack.c.l.b16 %v1225
    %v2164 = vunpack.c.h.b16 %v1225
    %v2165 = vunpack.c.l.b16 %v1226
    %v2166 = vunpack.c.h.b16 %v1226
    %v2167 = vunpack.c.l.b16 %v1227
    %v2168 = vunpack.c.h.b16 %v1227
    %v2169 = vunpack.c.l.b16 %v1228
    %v2170 = vunpack.c.h.b16 %v1228
    %v2171 = vunpack.c.l.b16 %v1229
    %v2172 = vunpack.c.h.b16 %v1229
    %v2173 = vunpack.c.l.b16 %v1230
    %v2174 = vunpack.c.h.b16 %v1230
    %v2175 = vunpack.c.l.b16 %v1231
    %v2176 = vunpack.c.h.b16 %v1231
    %v2177 = vunpack.c.l.b16 %v1232
    %v2178 = vunpack.c.h.b16 %v1232
    %v2179 = vunpack.c.l.b16 %v1233
    %v2180 = vunpack.c.h.b16 %v1233
    %v2181 = vunpack.c.l.b16 %v1234
    %v2182 = vunpack.c.h.b16 %v1234
    %v2183 = vunpack.c.l.b16 %v1235
    %v2184 = vunpack.c.h.b16 %v1235
    %v2185 = vunpack.c.l.b16 %v1236
    %v2186 = vunpack.c.h.b16 %v1236
    %v2187 = vunpack.c.l.b16 %v1237
    %v2188 = vunpack.c.h.b16 %v1237
    %v2189 = vunpack.c.l.b16 %v1238
    %v2190 = vunpack.c.h.b16 %v1238
    %v2191 = vunpack.c.l.b16 %v1239
    %v2192 = vunpack.c.h.b16 %v1239
    %v2193 = vunpack.c.l.b16 %v1240
    %v2194 = vunpack.c.h.b16 %v1240
    %v2195 = vunpack.c.l.b16 %v1241
    %v2196 = vunpack.c.h.b16 %v1241
    %v2197 = vunpack.c.l.b16 %v1242
    %v2198 = vunpack.c.h.b16 %v1242
    %v2199 = vunpack.c.l.b16 %v1243
    %v2200 = vunpack.c.h.b16 %v1243
    %v2201 = vunpack.c.l.b16 %v1244
    %v2202 = vunpack.c.h.b16 %v1244
    %v2203 = vunpack.c.l.b16 %v1245
    %v2204 = vunpack.c.h.b16 %v1245
    %v2205 = vunpack.c.l.b16 %v1246
    %v2206 = vunpack.c.h.b16 %v1246
    %v2207 = vunpack.c.l.b16 %v1247
    %v2208 = vunpack.c.h.b16 %v1247
    %v2209 = vunpack.c.l.b16 %v1248
    %v2210 = vunpack.c.h.b16 %v1248
    %v2211 = vunpack.c.l.b16 %v1249
    %v2212 = vunpack.c.h.b16 %v1249
    %v2213 = vunpack.c.l.b16 %v1250
    %v2214 = vunpack.c.h.b16 %v1250
    %v2215 = vunpack.c.l.b16 %v1251
    %v2216 = vunpack.c.h.b16 %v1251
    %v2217 = vunpack.c.l.b16 %v1252
    %v2218 = vunpack.c.h.b16 %v1252
    %v2219 = vpack.c.b16 %v2095, %v2091
    %v2220 = vpack.c.b16 %v2096, %v2092
    %v2221 = vpack.c.b16 %v2097, %v2093
    %v2222 = vpack.c.b16 %v2098, %v2094
    %v2223 = vpack.c.b16 %v2103, %v2099
    %v2224 = vpack.c.b16 %v2104, %v2100
    %v2225 = vpack.c.b16 %v2105, %v2101
    %v2226 = vpack.c.b16 %v2106, %v2102
    %v2227 = vpack.c.b16 %v2111, %v2107
    %v2228 = vpack.c.b16 %v2112, %v2108
    %v2229 = vpack.c.b16 %v2113, %v2109
    %v2230 = vpack.c.b16 %v2114, %v2110
    %v2231 = vpack.c.b16 %v2119, %v2115
    %v2232 = vpack.c.b16 %v2120, %v2116
    %v2233 = vpack.c.b16 %v2121, %v2117
    %v2234 = vpack.c.b16 %v2122, %v2118
    %v2235 = vpack.c.b16 %v2127, %v2123
    %v2236 = vpack.c.b16 %v2128, %v2124
    %v2237 = vpack.c.b16 %v2129, %v2125
    %v2238 = vpack.c.b16 %v2130, %v2126
    %v2239 = vpack.c.b16 %v2135, %v2131
    %v2240 = vpack.c.b16 %v2136, %v2132
    %v2241 = vpack.c.b16 %v2137, %v2133
    %v2242 = vpack.c.b16 %v2138, %v2134
    %v2243 = vpack.c.b16 %v2143, %v2139
    %v2244 = vpack.c.b16 %v2144, %v2140
    %v2245 = vpack.c.b16 %v2145, %v2141
    %v2246 = vpack.c.b16 %v2146, %v2142
    %v2247 = vpack.c.b16 %v2151, %v2147
    %v2248 = vpack.c.b16 %v2152, %v2148
    %v2249 = vpack.c.b16 %v2153, %v2149
    %v2250 = vpack.c.b16 %v2154, %v2150
    %v2251 = vpack.c.b16 %v2159, %v2155
    %v2252 = vpack.c.b16 %v2160, %v2156
    %v2253 = vpack.c.b16 %v2161, %v2157
    %v2254 = vpack.c.b16 %v2162, %v2158
    %v2255 = vpack.c.b16 %v2167, %v2163
    %v2256 = vpack.c.b16 %v2168, %v2164
    %v2257 = vpack.c.b16 %v2169, %v2165
    %v2258 = vpack.c.b16 %v2170, %v2166
    %v2259 = vpack.c.b16 %v2175, %v2171
    %v2260 = vpack.c.b16 %v2176, %v2172
    %v2261 = vpack.c.b16 %v2177, %v2173
    %v2262 = vpack.c.b16 %v2178, %v2174
    %v2263 = vpack.c.b16 %v2183, %v2179
    %v2264 = vpack.c.b16 %v2184, %v2180
    %v2265 = vpack.c.b16 %v2185, %v2181
    %v2266 = vpack.c.b16 %v2186, %v2182
    %v2267 = vpack.c.b16 %v2191, %v2187
    %v2268 = vpack.c.b16 %v2192, %v2188
    %v2269 = vpack.c.b16 %v2193, %v2189
    %v2270 = vpack.c.b16 %v2194, %v2190
    %v2271 = vpack.c.b16 %v2199, %v2195
    %v2272 = vpack.c.b16 %v2200, %v2196
    %v2273 = vpack.c.b16 %v2201, %v2197
    %v2274 = vpack.c.b16 %v2202, %v2198
    %v2275 = vpack.c.b16 %v2207, %v2203
    %v2276 = vpack.c.b16 %v2208, %v2204
    %v2277 = vpack.c.b16 %v2209, %v2205
    %v2278 = vpack.c.b16 %v2210, %v2206
    %v2279 = vpack.c.b16 %v2215, %v2211
    %v2280 = vpack.c.b16 %v2216, %v2212
    %v2281 = vpack.c.b16 %v2217, %v2213
    %v2282 = vpack.c.b16 %v2218, %v2214
    %2347 = vmatprep.subr.bf16.mxu0 %v2220
    %2348 = vmatpush1.bf16.msra.mxu0 %v2219
    %2349 = vmatprep.subr.bf16.mxu0 %v2224
    %2350 = vmatpush1.bf16.msra.mxu0 %v2223
    %2351 = vmatprep.subr.bf16.mxu0 %v2228
    %2352 = vmatpush1.bf16.msra.mxu0 %v2227
    %2353 = vmatprep.subr.bf16.mxu0 %v2232
    %2354 = vmatpush1.bf16.msra.mxu0 %v2231
    %2355 = vmatprep.subr.bf16.mxu0 %v2236
    %2356 = vmatpush1.bf16.msra.mxu0 %v2235
    %2357 = vmatprep.subr.bf16.mxu0 %v2240
    %2358 = vmatpush1.bf16.msra.mxu0 %v2239
    %2359 = vmatprep.subr.bf16.mxu0 %v2244
    %2360 = vmatpush1.bf16.msra.mxu0 %v2243
    %2361 = vmatprep.subr.bf16.mxu0 %v2248
    %2362 = vmatpush1.bf16.msra.mxu0 %v2247
    %2363 = vmatprep.subr.bf16.mxu0 %v2252
    %2364 = vmatpush1.bf16.msra.mxu0 %v2251
    %2365 = vmatprep.subr.bf16.mxu0 %v2256
    %2366 = vmatpush1.bf16.msra.mxu0 %v2255
    %2367 = vmatprep.subr.bf16.mxu0 %v2260
    %2368 = vmatpush1.bf16.msra.mxu0 %v2259
    %2369 = vmatprep.subr.bf16.mxu0 %v2264
    %2370 = vmatpush1.bf16.msra.mxu0 %v2263
    %2371 = vmatprep.subr.bf16.mxu0 %v2268
    %2372 = vmatpush1.bf16.msra.mxu0 %v2267
    %2373 = vmatprep.subr.bf16.mxu0 %v2272
    %2374 = vmatpush1.bf16.msra.mxu0 %v2271
    %2375 = vmatprep.subr.bf16.mxu0 %v2276
    %2376 = vmatpush1.bf16.msra.mxu0 %v2275
    %2377 = vmatprep.subr.bf16.mxu0 %v2280
    %2378 = vmatpush1.bf16.msra.mxu0 %v2279
    %2379 = vmatprep.mubr.bf16.mxu0 %v2012
    %2380 = vmatmul.mubr.bf16.gmra.mrb[0].mxu0 %v2011
    %v2381 = vpop.f32.mrb[0].mxu0
    %v2382 = vadd.f32 %v1900, %v2381
    %v2383 = vpop.f32.mrb[0].mxu0
    %v2384 = vadd.f32 %v1902, %v2383
    %v2385 = vpop.f32.mrb[0].mxu0
    %v2386 = vadd.f32 %v1904, %v2385
    %v2387 = vpop.f32.mrb[0].mxu0
    %v2388 = vadd.f32 %v1906, %v2387
    %2389 = vmatprep.mubr.bf16.mxu0 %v2014
    %2390 = vmatmul.mubr.bf16.gmra.mrb[0].mxu0 %v2013
    %v2391 = vpop.f32.mrb[0].mxu0
    %v2392 = vadd.f32 %v1910, %v2391
    %v2393 = vpop.f32.mrb[0].mxu0
    %v2394 = vadd.f32 %v1912, %v2393
    %v2395 = vpop.f32.mrb[0].mxu0
    %v2396 = vadd.f32 %v1914, %v2395
    %v2397 = vpop.f32.mrb[0].mxu0
    %v2398 = vadd.f32 %v1916, %v2397
    %2399 = vmatprep.mubr.bf16.mxu0 %v2016
    %2400 = vmatmul.mubr.bf16.gmra.mrb[0].mxu0 %v2015
    %v2401 = vpop.f32.mrb[0].mxu0
    %v2402 = vadd.f32 %v1920, %v2401
    %v2403 = vpop.f32.mrb[0].mxu0
    %v2404 = vadd.f32 %v1922, %v2403
    %v2405 = vpop.f32.mrb[0].mxu0
    %v2406 = vadd.f32 %v1924, %v2405
    %v2407 = vpop.f32.mrb[0].mxu0
    %v2408 = vadd.f32 %v1926, %v2407
    %2409 = vmatprep.mubr.bf16.mxu0 %v2018
    %2410 = vmatmul.mubr.bf16.gmra.mrb[0].mxu0 %v2017
    %v2411 = vpop.f32.mrb[0].mxu0
    %v2412 = vadd.f32 %v1930, %v2411
    %v2413 = vpop.f32.mrb[0].mxu0
    %v2414 = vadd.f32 %v1932, %v2413
    %v2415 = vpop.f32.mrb[0].mxu0
    %v2416 = vadd.f32 %v1934, %v2415
    %v2417 = vpop.f32.mrb[0].mxu0
    %v2418 = vadd.f32 %v1936, %v2417
    %2419 = vdwg.mxu0
    %2420 = vmatprep.subr.bf16.mxu0 %v2222
    %2421 = vmatpush1.bf16.msra.mxu0 %v2221
    %2422 = vmatprep.subr.bf16.mxu0 %v2226
    %2423 = vmatpush1.bf16.msra.mxu0 %v2225
    %2424 = vmatprep.subr.bf16.mxu0 %v2230
    %2425 = vmatpush1.bf16.msra.mxu0 %v2229
    %2426 = vmatprep.subr.bf16.mxu0 %v2234
    %2427 = vmatpush1.bf16.msra.mxu0 %v2233
    %2428 = vmatprep.subr.bf16.mxu0 %v2238
    %2429 = vmatpush1.bf16.msra.mxu0 %v2237
    %2430 = vmatprep.subr.bf16.mxu0 %v2242
    %2431 = vmatpush1.bf16.msra.mxu0 %v2241
    %2432 = vmatprep.subr.bf16.mxu0 %v2246
    %2433 = vmatpush1.bf16.msra.mxu0 %v2245
    %2434 = vmatprep.subr.bf16.mxu0 %v2250
    %2435 = vmatpush1.bf16.msra.mxu0 %v2249
    %2436 = vmatprep.subr.bf16.mxu0 %v2254
    %2437 = vmatpush1.bf16.msra.mxu0 %v2253
    %2438 = vmatprep.subr.bf16.mxu0 %v2258
    %2439 = vmatpush1.bf16.msra.mxu0 %v2257
    %2440 = vmatprep.subr.bf16.mxu0 %v2262
    %2441 = vmatpush1.bf16.msra.mxu0 %v2261
    %2442 = vmatprep.subr.bf16.mxu0 %v2266
    %2443 = vmatpush1.bf16.msra.mxu0 %v2265
    %2444 = vmatprep.subr.bf16.mxu0 %v2270
    %2445 = vmatpush1.bf16.msra.mxu0 %v2269
    %2446 = vmatprep.subr.bf16.mxu0 %v2274
    %2447 = vmatpush1.bf16.msra.mxu0 %v2273
    %2448 = vmatprep.subr.bf16.mxu0 %v2278
    %2449 = vmatpush1.bf16.msra.mxu0 %v2277
    %2450 = vmatprep.subr.bf16.mxu0 %v2282
    %2451 = vmatpush1.bf16.msra.mxu0 %v2281
    %2452 = vmatprep.mubr.bf16.mxu0 %v2012
    %2453 = vmatmul.mubr.bf16.gmra.mrb[0].mxu0 %v2011
    %v2454 = vpop.f32.mrb[0].mxu0
    %v2455 = vadd.f32 %v1973, %v2454
    %v2456 = vpop.f32.mrb[0].mxu0
    %v2457 = vadd.f32 %v1975, %v2456
    %v2458 = vpop.f32.mrb[0].mxu0
    %v2459 = vadd.f32 %v1977, %v2458
    %v2460 = vpop.f32.mrb[0].mxu0
    %v2461 = vadd.f32 %v1979, %v2460
    %2462 = vmatprep.mubr.bf16.mxu0 %v2014
    %2463 = vmatmul.mubr.bf16.gmra.mrb[0].mxu0 %v2013
    %v2464 = vpop.f32.mrb[0].mxu0
    %v2465 = vadd.f32 %v1983, %v2464
    %v2466 = vpop.f32.mrb[0].mxu0
    %v2467 = vadd.f32 %v1985, %v2466
    %v2468 = vpop.f32.mrb[0].mxu0
    %v2469 = vadd.f32 %v1987, %v2468
    %v2470 = vpop.f32.mrb[0].mxu0
    %v2471 = vadd.f32 %v1989, %v2470
    %2472 = vmatprep.mubr.bf16.mxu0 %v2016
    %2473 = vmatmul.mubr.bf16.gmra.mrb[0].mxu0 %v2015
    %v2474 = vpop.f32.mrb[0].mxu0
    %v2475 = vadd.f32 %v1993, %v2474
    %v2476 = vpop.f32.mrb[0].mxu0
    %v2477 = vadd.f32 %v1995, %v2476
    %v2478 = vpop.f32.mrb[0].mxu0
    %v2479 = vadd.f32 %v1997, %v2478
    %v2480 = vpop.f32.mrb[0].mxu0
    %v2481 = vadd.f32 %v1999, %v2480
    %2482 = vmatprep.mubr.bf16.mxu0 %v2018
    %2483 = vmatmul.mubr.bf16.gmra.mrb[0].mxu0 %v2017
    %v2484 = vpop.f32.mrb[0].mxu0
    %v2485 = vadd.f32 %v2003, %v2484
    %v2486 = vpop.f32.mrb[0].mxu0
    %v2487 = vadd.f32 %v2005, %v2486
    %v2488 = vpop.f32.mrb[0].mxu0
    %v2489 = vadd.f32 %v2007, %v2488
    %v2490 = vpop.f32.mrb[0].mxu0
    %v2491 = vadd.f32 %v2009, %v2490
    %2492 = vdwg.mxu0
    %v2493 = vld [vmem:[#allocation2] sm:$0x1e]
    %v2494 = vld [vmem:[#allocation2 + $0x8] sm:$0x1e]
    %v2495 = vld [vmem:[#allocation2 + $0x10] sm:$0x1e]
    %v2496 = vld [vmem:[#allocation2 + $0x18] sm:$0x1e]
    %v2497 = vld [vmem:[#allocation2 + $0x20] sm:$0x1e]
    %v2498 = vld [vmem:[#allocation2 + $0x28] sm:$0x1e]
    %v2499 = vld [vmem:[#allocation2 + $0x30] sm:$0x1e]
    %v2500 = vld [vmem:[#allocation2 + $0x38] sm:$0x1e]
    %v2501 = vld [vmem:[#allocation2 + $0x40] sm:$0x1e]
    %v2502 = vld [vmem:[#allocation2 + $0x48] sm:$0x1e]
    %v2503 = vld [vmem:[#allocation2 + $0x50] sm:$0x1e]
    %v2504 = vld [vmem:[#allocation2 + $0x58] sm:$0x1e]
    %v2505 = vld [vmem:[#allocation2 + $0x60] sm:$0x1e]
    %v2506 = vld [vmem:[#allocation2 + $0x68] sm:$0x1e]
    %v2507 = vld [vmem:[#allocation2 + $0x70] sm:$0x1e]
    %v2508 = vld [vmem:[#allocation2 + $0x78] sm:$0x1e]
    %v2525 = vunpack.c.l.b16 %v2493
    %v2526 = vunpack.c.l.b16 %v2494
    %v2527 = vunpack.c.h.b16 %v2493
    %v2528 = vunpack.c.h.b16 %v2494
    %v2529 = vunpack.c.l.b16 %v2495
    %v2530 = vunpack.c.l.b16 %v2496
    %v2531 = vunpack.c.h.b16 %v2495
    %v2532 = vunpack.c.h.b16 %v2496
    %v2533 = vunpack.c.l.b16 %v2497
    %v2534 = vunpack.c.l.b16 %v2498
    %v2535 = vunpack.c.h.b16 %v2497
    %v2536 = vunpack.c.h.b16 %v2498
    %v2537 = vunpack.c.l.b16 %v2499
    %v2538 = vunpack.c.l.b16 %v2500
    %v2539 = vunpack.c.h.b16 %v2499
    %v2540 = vunpack.c.h.b16 %v2500
    %v2541 = vunpack.c.l.b16 %v2501
    %v2542 = vunpack.c.l.b16 %v2502
    %v2543 = vunpack.c.h.b16 %v2501
    %v2544 = vunpack.c.h.b16 %v2502
    %v2545 = vunpack.c.l.b16 %v2503
    %v2546 = vunpack.c.l.b16 %v2504
    %v2547 = vunpack.c.h.b16 %v2503
    %v2548 = vunpack.c.h.b16 %v2504
    %v2549 = vunpack.c.l.b16 %v2505
    %v2550 = vunpack.c.l.b16 %v2506
    %v2551 = vunpack.c.h.b16 %v2505
    %v2552 = vunpack.c.h.b16 %v2506
    %v2553 = vunpack.c.l.b16 %v2507
    %v2554 = vunpack.c.l.b16 %v2508
    %v2555 = vunpack.c.h.b16 %v2507
    %v2556 = vunpack.c.h.b16 %v2508
    %v2557 = vpack.c.b16 %v2526, %v2525
    %v2558 = vpack.c.b16 %v2528, %v2527
    %v2559 = vpack.c.b16 %v2530, %v2529
    %v2560 = vpack.c.b16 %v2532, %v2531
    %v2561 = vpack.c.b16 %v2534, %v2533
    %v2562 = vpack.c.b16 %v2536, %v2535
    %v2563 = vpack.c.b16 %v2538, %v2537
    %v2564 = vpack.c.b16 %v2540, %v2539
    %v2565 = vpack.c.b16 %v2542, %v2541
    %v2566 = vpack.c.b16 %v2544, %v2543
    %v2567 = vpack.c.b16 %v2546, %v2545
    %v2568 = vpack.c.b16 %v2548, %v2547
    %v2569 = vpack.c.b16 %v2550, %v2549
    %v2570 = vpack.c.b16 %v2552, %v2551
    %v2571 = vpack.c.b16 %v2554, %v2553
    %v2572 = vpack.c.b16 %v2556, %v2555
    %vm2573 = vcmask 1042432
    %vm2574 = vcmask 1046532
    %vm2575 = vmor %vm2573, %vm2574
    %v2576 = vrot.slane %v2557, 5
    %v2577 = vrot.slane %v2576, 4
    %v2578 = vrot.slane %v2558, 5
    %v2579 = vsel %vm2575, %v2577, %v2578
    %v2580 = vrot.slane %v2559, 5
    %v2581 = vrot.slane %v2580, 4
    %v2582 = vrot.slane %v2560, 5
    %v2583 = vsel %vm2575, %v2581, %v2582
    %v2584 = vrot.slane %v2561, 5
    %v2585 = vrot.slane %v2584, 4
    %v2586 = vrot.slane %v2562, 5
    %v2587 = vsel %vm2575, %v2585, %v2586
    %v2588 = vrot.slane %v2563, 5
    %v2589 = vrot.slane %v2588, 4
    %v2590 = vrot.slane %v2564, 5
    %v2591 = vsel %vm2575, %v2589, %v2590
    %v2592 = vrot.slane %v2565, 5
    %v2593 = vrot.slane %v2592, 4
    %v2594 = vrot.slane %v2566, 5
    %v2595 = vsel %vm2575, %v2593, %v2594
    %v2596 = vrot.slane %v2567, 5
    %v2597 = vrot.slane %v2596, 4
    %v2598 = vrot.slane %v2568, 5
    %v2599 = vsel %vm2575, %v2597, %v2598
    %v2600 = vrot.slane %v2569, 5
    %v2601 = vrot.slane %v2600, 4
    %v2602 = vrot.slane %v2570, 5
    %v2603 = vsel %vm2575, %v2601, %v2602
    %v2604 = vrot.slane %v2571, 5
    %v2605 = vrot.slane %v2604, 4
    %v2606 = vrot.slane %v2572, 5
    %v2607 = vsel %vm2575, %v2605, %v2606
    %s2608 = scalar_lea.vmem %s3, 1024
    %v2609 = vld [vmem:[%s2608] sm:$0xff]
    %v2610 = vld [vmem:[%s2608 + $0x8] sm:$0xff]
    %v2611 = vld [vmem:[%s2608 + $0x10] sm:$0xff]
    %v2612 = vld [vmem:[%s2608 + $0x18] sm:$0xff]
    %v2613 = vld [vmem:[%s2608 + $0x20] sm:$0xff]
    %v2614 = vld [vmem:[%s2608 + $0x28] sm:$0xff]
    %v2615 = vld [vmem:[%s2608 + $0x30] sm:$0xff]
    %v2616 = vld [vmem:[%s2608 + $0x38] sm:$0xff]
    %v2617 = vld [vmem:[%s2608 + $0x40] sm:$0xff]
    %v2618 = vld [vmem:[%s2608 + $0x48] sm:$0xff]
    %v2619 = vld [vmem:[%s2608 + $0x50] sm:$0xff]
    %v2620 = vld [vmem:[%s2608 + $0x58] sm:$0xff]
    %v2621 = vld [vmem:[%s2608 + $0x60] sm:$0xff]
    %v2622 = vld [vmem:[%s2608 + $0x68] sm:$0xff]
    %v2623 = vld [vmem:[%s2608 + $0x70] sm:$0xff]
    %v2624 = vld [vmem:[%s2608 + $0x78] sm:$0xff]
    %v2625 = vld [vmem:[%s2608 + $0x80] sm:$0xff]
    %v2626 = vld [vmem:[%s2608 + $0x88] sm:$0xff]
    %v2627 = vld [vmem:[%s2608 + $0x90] sm:$0xff]
    %v2628 = vld [vmem:[%s2608 + $0x98] sm:$0xff]
    %v2629 = vld [vmem:[%s2608 + $0xa0] sm:$0xff]
    %v2630 = vld [vmem:[%s2608 + $0xa8] sm:$0xff]
    %v2631 = vld [vmem:[%s2608 + $0xb0] sm:$0xff]
    %v2632 = vld [vmem:[%s2608 + $0xb8] sm:$0xff]
    %v2633 = vld [vmem:[%s2608 + $0xc0] sm:$0xff]
    %v2634 = vld [vmem:[%s2608 + $0xc8] sm:$0xff]
    %v2635 = vld [vmem:[%s2608 + $0xd0] sm:$0xff]
    %v2636 = vld [vmem:[%s2608 + $0xd8] sm:$0xff]
    %v2637 = vld [vmem:[%s2608 + $0xe0] sm:$0xff]
    %v2638 = vld [vmem:[%s2608 + $0xe8] sm:$0xff]
    %v2639 = vld [vmem:[%s2608 + $0xf0] sm:$0xff]
    %v2640 = vld [vmem:[%s2608 + $0xf8] sm:$0xff]
    %v2641 = vld [vmem:[%s2608 + $0x100] sm:$0xff]
    %v2642 = vld [vmem:[%s2608 + $0x108] sm:$0xff]
    %v2643 = vld [vmem:[%s2608 + $0x110] sm:$0xff]
    %v2644 = vld [vmem:[%s2608 + $0x118] sm:$0xff]
    %v2645 = vld [vmem:[%s2608 + $0x120] sm:$0xff]
    %v2646 = vld [vmem:[%s2608 + $0x128] sm:$0xff]
    %v2647 = vld [vmem:[%s2608 + $0x130] sm:$0xff]
    %v2648 = vld [vmem:[%s2608 + $0x138] sm:$0xff]
    %v2649 = vld [vmem:[%s2608 + $0x140] sm:$0xff]
    %v2650 = vld [vmem:[%s2608 + $0x148] sm:$0xff]
    %v2651 = vld [vmem:[%s2608 + $0x150] sm:$0xff]
    %v2652 = vld [vmem:[%s2608 + $0x158] sm:$0xff]
    %v2653 = vld [vmem:[%s2608 + $0x160] sm:$0xff]
    %v2654 = vld [vmem:[%s2608 + $0x168] sm:$0xff]
    %v2655 = vld [vmem:[%s2608 + $0x170] sm:$0xff]
    %v2656 = vld [vmem:[%s2608 + $0x178] sm:$0xff]
    %v2657 = vld [vmem:[%s2608 + $0x180] sm:$0xff]
    %v2658 = vld [vmem:[%s2608 + $0x188] sm:$0xff]
    %v2659 = vld [vmem:[%s2608 + $0x190] sm:$0xff]
    %v2660 = vld [vmem:[%s2608 + $0x198] sm:$0xff]
    %v2661 = vld [vmem:[%s2608 + $0x1a0] sm:$0xff]
    %v2662 = vld [vmem:[%s2608 + $0x1a8] sm:$0xff]
    %v2663 = vld [vmem:[%s2608 + $0x1b0] sm:$0xff]
    %v2664 = vld [vmem:[%s2608 + $0x1b8] sm:$0xff]
    %v2665 = vld [vmem:[%s2608 + $0x1c0] sm:$0xff]
    %v2666 = vld [vmem:[%s2608 + $0x1c8] sm:$0xff]
    %v2667 = vld [vmem:[%s2608 + $0x1d0] sm:$0xff]
    %v2668 = vld [vmem:[%s2608 + $0x1d8] sm:$0xff]
    %v2669 = vld [vmem:[%s2608 + $0x1e0] sm:$0xff]
    %v2670 = vld [vmem:[%s2608 + $0x1e8] sm:$0xff]
    %v2671 = vld [vmem:[%s2608 + $0x1f0] sm:$0xff]
    %v2672 = vld [vmem:[%s2608 + $0x1f8] sm:$0xff]
    %v2673 = vunpack.c.l.b16 %v2579
    %v2674 = vunpack.c.h.b16 %v2579
    %v2675 = vunpack.c.l.b16 %v2583
    %v2676 = vunpack.c.h.b16 %v2583
    %v2677 = vunpack.c.l.b16 %v2587
    %v2678 = vunpack.c.h.b16 %v2587
    %v2679 = vunpack.c.l.b16 %v2591
    %v2680 = vunpack.c.h.b16 %v2591
    %v2681 = vunpack.c.l.b16 %v2595
    %v2682 = vunpack.c.h.b16 %v2595
    %v2683 = vunpack.c.l.b16 %v2599
    %v2684 = vunpack.c.h.b16 %v2599
    %v2685 = vunpack.c.l.b16 %v2603
    %v2686 = vunpack.c.h.b16 %v2603
    %v2687 = vunpack.c.l.b16 %v2607
    %v2688 = vunpack.c.h.b16 %v2607
    %v2689 = vpack.c.b16 %v2675, %v2673
    %v2690 = vpack.c.b16 %v2676, %v2674
    %v2691 = vpack.c.b16 %v2679, %v2677
    %v2692 = vpack.c.b16 %v2680, %v2678
    %v2693 = vpack.c.b16 %v2683, %v2681
    %v2694 = vpack.c.b16 %v2684, %v2682
    %v2695 = vpack.c.b16 %v2687, %v2685
    %v2696 = vpack.c.b16 %v2688, %v2686
    %v2769 = vunpack.c.l.b16 %v2609
    %v2770 = vunpack.c.h.b16 %v2609
    %v2771 = vunpack.c.l.b16 %v2610
    %v2772 = vunpack.c.h.b16 %v2610
    %v2773 = vunpack.c.l.b16 %v2611
    %v2774 = vunpack.c.h.b16 %v2611
    %v2775 = vunpack.c.l.b16 %v2612
    %v2776 = vunpack.c.h.b16 %v2612
    %v2777 = vunpack.c.l.b16 %v2613
    %v2778 = vunpack.c.h.b16 %v2613
    %v2779 = vunpack.c.l.b16 %v2614
    %v2780 = vunpack.c.h.b16 %v2614
    %v2781 = vunpack.c.l.b16 %v2615
    %v2782 = vunpack.c.h.b16 %v2615
    %v2783 = vunpack.c.l.b16 %v2616
    %v2784 = vunpack.c.h.b16 %v2616
    %v2785 = vunpack.c.l.b16 %v2617
    %v2786 = vunpack.c.h.b16 %v2617
    %v2787 = vunpack.c.l.b16 %v2618
    %v2788 = vunpack.c.h.b16 %v2618
    %v2789 = vunpack.c.l.b16 %v2619
    %v2790 = vunpack.c.h.b16 %v2619
    %v2791 = vunpack.c.l.b16 %v2620
    %v2792 = vunpack.c.h.b16 %v2620
    %v2793 = vunpack.c.l.b16 %v2621
    %v2794 = vunpack.c.h.b16 %v2621
    %v2795 = vunpack.c.l.b16 %v2622
    %v2796 = vunpack.c.h.b16 %v2622
    %v2797 = vunpack.c.l.b16 %v2623
    %v2798 = vunpack.c.h.b16 %v2623
    %v2799 = vunpack.c.l.b16 %v2624
    %v2800 = vunpack.c.h.b16 %v2624
    %v2801 = vunpack.c.l.b16 %v2625
    %v2802 = vunpack.c.h.b16 %v2625
    %v2803 = vunpack.c.l.b16 %v2626
    %v2804 = vunpack.c.h.b16 %v2626
    %v2805 = vunpack.c.l.b16 %v2627
    %v2806 = vunpack.c.h.b16 %v2627
    %v2807 = vunpack.c.l.b16 %v2628
    %v2808 = vunpack.c.h.b16 %v2628
    %v2809 = vunpack.c.l.b16 %v2629
    %v2810 = vunpack.c.h.b16 %v2629
    %v2811 = vunpack.c.l.b16 %v2630
    %v2812 = vunpack.c.h.b16 %v2630
    %v2813 = vunpack.c.l.b16 %v2631
    %v2814 = vunpack.c.h.b16 %v2631
    %v2815 = vunpack.c.l.b16 %v2632
    %v2816 = vunpack.c.h.b16 %v2632
    %v2817 = vunpack.c.l.b16 %v2633
    %v2818 = vunpack.c.h.b16 %v2633
    %v2819 = vunpack.c.l.b16 %v2634
    %v2820 = vunpack.c.h.b16 %v2634
    %v2821 = vunpack.c.l.b16 %v2635
    %v2822 = vunpack.c.h.b16 %v2635
    %v2823 = vunpack.c.l.b16 %v2636
    %v2824 = vunpack.c.h.b16 %v2636
    %v2825 = vunpack.c.l.b16 %v2637
    %v2826 = vunpack.c.h.b16 %v2637
    %v2827 = vunpack.c.l.b16 %v2638
    %v2828 = vunpack.c.h.b16 %v2638
    %v2829 = vunpack.c.l.b16 %v2639
    %v2830 = vunpack.c.h.b16 %v2639
    %v2831 = vunpack.c.l.b16 %v2640
    %v2832 = vunpack.c.h.b16 %v2640
    %v2833 = vunpack.c.l.b16 %v2641
    %v2834 = vunpack.c.h.b16 %v2641
    %v2835 = vunpack.c.l.b16 %v2642
    %v2836 = vunpack.c.h.b16 %v2642
    %v2837 = vunpack.c.l.b16 %v2643
    %v2838 = vunpack.c.h.b16 %v2643
    %v2839 = vunpack.c.l.b16 %v2644
    %v2840 = vunpack.c.h.b16 %v2644
    %v2841 = vunpack.c.l.b16 %v2645
    %v2842 = vunpack.c.h.b16 %v2645
    %v2843 = vunpack.c.l.b16 %v2646
    %v2844 = vunpack.c.h.b16 %v2646
    %v2845 = vunpack.c.l.b16 %v2647
    %v2846 = vunpack.c.h.b16 %v2647
    %v2847 = vunpack.c.l.b16 %v2648
    %v2848 = vunpack.c.h.b16 %v2648
    %v2849 = vunpack.c.l.b16 %v2649
    %v2850 = vunpack.c.h.b16 %v2649
    %v2851 = vunpack.c.l.b16 %v2650
    %v2852 = vunpack.c.h.b16 %v2650
    %v2853 = vunpack.c.l.b16 %v2651
    %v2854 = vunpack.c.h.b16 %v2651
    %v2855 = vunpack.c.l.b16 %v2652
    %v2856 = vunpack.c.h.b16 %v2652
    %v2857 = vunpack.c.l.b16 %v2653
    %v2858 = vunpack.c.h.b16 %v2653
    %v2859 = vunpack.c.l.b16 %v2654
    %v2860 = vunpack.c.h.b16 %v2654
    %v2861 = vunpack.c.l.b16 %v2655
    %v2862 = vunpack.c.h.b16 %v2655
    %v2863 = vunpack.c.l.b16 %v2656
    %v2864 = vunpack.c.h.b16 %v2656
    %v2865 = vunpack.c.l.b16 %v2657
    %v2866 = vunpack.c.h.b16 %v2657
    %v2867 = vunpack.c.l.b16 %v2658
    %v2868 = vunpack.c.h.b16 %v2658
    %v2869 = vunpack.c.l.b16 %v2659
    %v2870 = vunpack.c.h.b16 %v2659
    %v2871 = vunpack.c.l.b16 %v2660
    %v2872 = vunpack.c.h.b16 %v2660
    %v2873 = vunpack.c.l.b16 %v2661
    %v2874 = vunpack.c.h.b16 %v2661
    %v2875 = vunpack.c.l.b16 %v2662
    %v2876 = vunpack.c.h.b16 %v2662
    %v2877 = vunpack.c.l.b16 %v2663
    %v2878 = vunpack.c.h.b16 %v2663
    %v2879 = vunpack.c.l.b16 %v2664
    %v2880 = vunpack.c.h.b16 %v2664
    %v2881 = vunpack.c.l.b16 %v2665
    %v2882 = vunpack.c.h.b16 %v2665
    %v2883 = vunpack.c.l.b16 %v2666
    %v2884 = vunpack.c.h.b16 %v2666
    %v2885 = vunpack.c.l.b16 %v2667
    %v2886 = vunpack.c.h.b16 %v2667
    %v2887 = vunpack.c.l.b16 %v2668
    %v2888 = vunpack.c.h.b16 %v2668
    %v2889 = vunpack.c.l.b16 %v2669
    %v2890 = vunpack.c.h.b16 %v2669
    %v2891 = vunpack.c.l.b16 %v2670
    %v2892 = vunpack.c.h.b16 %v2670
    %v2893 = vunpack.c.l.b16 %v2671
    %v2894 = vunpack.c.h.b16 %v2671
    %v2895 = vunpack.c.l.b16 %v2672
    %v2896 = vunpack.c.h.b16 %v2672
    %v2897 = vpack.c.b16 %v2773, %v2769
    %v2898 = vpack.c.b16 %v2774, %v2770
    %v2899 = vpack.c.b16 %v2775, %v2771
    %v2900 = vpack.c.b16 %v2776, %v2772
    %v2901 = vpack.c.b16 %v2781, %v2777
    %v2902 = vpack.c.b16 %v2782, %v2778
    %v2903 = vpack.c.b16 %v2783, %v2779
    %v2904 = vpack.c.b16 %v2784, %v2780
    %v2905 = vpack.c.b16 %v2789, %v2785
    %v2906 = vpack.c.b16 %v2790, %v2786
    %v2907 = vpack.c.b16 %v2791, %v2787
    %v2908 = vpack.c.b16 %v2792, %v2788
    %v2909 = vpack.c.b16 %v2797, %v2793
    %v2910 = vpack.c.b16 %v2798, %v2794
    %v2911 = vpack.c.b16 %v2799, %v2795
    %v2912 = vpack.c.b16 %v2800, %v2796
    %v2913 = vpack.c.b16 %v2805, %v2801
    %v2914 = vpack.c.b16 %v2806, %v2802
    %v2915 = vpack.c.b16 %v2807, %v2803
    %v2916 = vpack.c.b16 %v2808, %v2804
    %v2917 = vpack.c.b16 %v2813, %v2809
    %v2918 = vpack.c.b16 %v2814, %v2810
    %v2919 = vpack.c.b16 %v2815, %v2811
    %v2920 = vpack.c.b16 %v2816, %v2812
    %v2921 = vpack.c.b16 %v2821, %v2817
    %v2922 = vpack.c.b16 %v2822, %v2818
    %v2923 = vpack.c.b16 %v2823, %v2819
    %v2924 = vpack.c.b16 %v2824, %v2820
    %v2925 = vpack.c.b16 %v2829, %v2825
    %v2926 = vpack.c.b16 %v2830, %v2826
    %v2927 = vpack.c.b16 %v2831, %v2827
    %v2928 = vpack.c.b16 %v2832, %v2828
    %v2929 = vpack.c.b16 %v2837, %v2833
    %v2930 = vpack.c.b16 %v2838, %v2834
    %v2931 = vpack.c.b16 %v2839, %v2835
    %v2932 = vpack.c.b16 %v2840, %v2836
    %v2933 = vpack.c.b16 %v2845, %v2841
    %v2934 = vpack.c.b16 %v2846, %v2842
    %v2935 = vpack.c.b16 %v2847, %v2843
    %v2936 = vpack.c.b16 %v2848, %v2844
    %v2937 = vpack.c.b16 %v2853, %v2849
    %v2938 = vpack.c.b16 %v2854, %v2850
    %v2939 = vpack.c.b16 %v2855, %v2851
    %v2940 = vpack.c.b16 %v2856, %v2852
    %v2941 = vpack.c.b16 %v2861, %v2857
    %v2942 = vpack.c.b16 %v2862, %v2858
    %v2943 = vpack.c.b16 %v2863, %v2859
    %v2944 = vpack.c.b16 %v2864, %v2860
    %v2945 = vpack.c.b16 %v2869, %v2865
    %v2946 = vpack.c.b16 %v2870, %v2866
    %v2947 = vpack.c.b16 %v2871, %v2867
    %v2948 = vpack.c.b16 %v2872, %v2868
    %v2949 = vpack.c.b16 %v2877, %v2873
    %v2950 = vpack.c.b16 %v2878, %v2874
    %v2951 = vpack.c.b16 %v2879, %v2875
    %v2952 = vpack.c.b16 %v2880, %v2876
    %v2953 = vpack.c.b16 %v2885, %v2881
    %v2954 = vpack.c.b16 %v2886, %v2882
    %v2955 = vpack.c.b16 %v2887, %v2883
    %v2956 = vpack.c.b16 %v2888, %v2884
    %v2957 = vpack.c.b16 %v2893, %v2889
    %v2958 = vpack.c.b16 %v2894, %v2890
    %v2959 = vpack.c.b16 %v2895, %v2891
    %v2960 = vpack.c.b16 %v2896, %v2892
    %3025 = vmatprep.subr.bf16.mxu0 %v2898
    %3026 = vmatpush1.bf16.msra.mxu0 %v2897
    %3027 = vmatprep.subr.bf16.mxu0 %v2902
    %3028 = vmatpush1.bf16.msra.mxu0 %v2901
    %3029 = vmatprep.subr.bf16.mxu0 %v2906
    %3030 = vmatpush1.bf16.msra.mxu0 %v2905
    %3031 = vmatprep.subr.bf16.mxu0 %v2910
    %3032 = vmatpush1.bf16.msra.mxu0 %v2909
    %3033 = vmatprep.subr.bf16.mxu0 %v2914
    %3034 = vmatpush1.bf16.msra.mxu0 %v2913
    %3035 = vmatprep.subr.bf16.mxu0 %v2918
    %3036 = vmatpush1.bf16.msra.mxu0 %v2917
    %3037 = vmatprep.subr.bf16.mxu0 %v2922
    %3038 = vmatpush1.bf16.msra.mxu0 %v2921
    %3039 = vmatprep.subr.bf16.mxu0 %v2926
    %3040 = vmatpush1.bf16.msra.mxu0 %v2925
    %3041 = vmatprep.subr.bf16.mxu0 %v2930
    %3042 = vmatpush1.bf16.msra.mxu0 %v2929
    %3043 = vmatprep.subr.bf16.mxu0 %v2934
    %3044 = vmatpush1.bf16.msra.mxu0 %v2933
    %3045 = vmatprep.subr.bf16.mxu0 %v2938
    %3046 = vmatpush1.bf16.msra.mxu0 %v2937
    %3047 = vmatprep.subr.bf16.mxu0 %v2942
    %3048 = vmatpush1.bf16.msra.mxu0 %v2941
    %3049 = vmatprep.subr.bf16.mxu0 %v2946
    %3050 = vmatpush1.bf16.msra.mxu0 %v2945
    %3051 = vmatprep.subr.bf16.mxu0 %v2950
    %3052 = vmatpush1.bf16.msra.mxu0 %v2949
    %3053 = vmatprep.subr.bf16.mxu0 %v2954
    %3054 = vmatpush1.bf16.msra.mxu0 %v2953
    %3055 = vmatprep.subr.bf16.mxu0 %v2958
    %3056 = vmatpush1.bf16.msra.mxu0 %v2957
    %3057 = vmatprep.mubr.bf16.mxu0 %v2690
    %3058 = vmatmul.mubr.bf16.gmra.mrb[0].mxu0 %v2689
    %v3059 = vpop.f32.mrb[0].mxu0
    %v3060 = vadd.f32 0.0, %v3059
    %v3061 = vpop.f32.mrb[0].mxu0
    %v3062 = vadd.f32 0.0, %v3061
    %v3063 = vpop.f32.mrb[0].mxu0
    %v3064 = vadd.f32 0.0, %v3063
    %v3065 = vpop.f32.mrb[0].mxu0
    %v3066 = vadd.f32 0.0, %v3065
    %3067 = vmatprep.mubr.bf16.mxu0 %v2692
    %3068 = vmatmul.mubr.bf16.gmra.mrb[0].mxu0 %v2691
    %v3069 = vpop.f32.mrb[0].mxu0
    %v3070 = vadd.f32 0.0, %v3069
    %v3071 = vpop.f32.mrb[0].mxu0
    %v3072 = vadd.f32 0.0, %v3071
    %v3073 = vpop.f32.mrb[0].mxu0
    %v3074 = vadd.f32 0.0, %v3073
    %v3075 = vpop.f32.mrb[0].mxu0
    %v3076 = vadd.f32 0.0, %v3075
    %3077 = vmatprep.mubr.bf16.mxu0 %v2694
    %3078 = vmatmul.mubr.bf16.gmra.mrb[0].mxu0 %v2693
    %v3079 = vpop.f32.mrb[0].mxu0
    %v3080 = vadd.f32 0.0, %v3079
    %v3081 = vpop.f32.mrb[0].mxu0
    %v3082 = vadd.f32 0.0, %v3081
    %v3083 = vpop.f32.mrb[0].mxu0
    %v3084 = vadd.f32 0.0, %v3083
    %v3085 = vpop.f32.mrb[0].mxu0
    %v3086 = vadd.f32 0.0, %v3085
    %3087 = vmatprep.mubr.bf16.mxu0 %v2696
    %3088 = vmatmul.mubr.bf16.gmra.mrb[0].mxu0 %v2695
    %v3089 = vpop.f32.mrb[0].mxu0
    %v3090 = vadd.f32 0.0, %v3089
    %v3091 = vpop.f32.mrb[0].mxu0
    %v3092 = vadd.f32 0.0, %v3091
    %v3093 = vpop.f32.mrb[0].mxu0
    %v3094 = vadd.f32 0.0, %v3093
    %v3095 = vpop.f32.mrb[0].mxu0
    %v3096 = vadd.f32 0.0, %v3095
    %3097 = vdwg.mxu0
    %3098 = vmatprep.subr.bf16.mxu0 %v2900
    %3099 = vmatpush1.bf16.msra.mxu0 %v2899
    %3100 = vmatprep.subr.bf16.mxu0 %v2904
    %3101 = vmatpush1.bf16.msra.mxu0 %v2903
    %3102 = vmatprep.subr.bf16.mxu0 %v2908
    %3103 = vmatpush1.bf16.msra.mxu0 %v2907
    %3104 = vmatprep.subr.bf16.mxu0 %v2912
    %3105 = vmatpush1.bf16.msra.mxu0 %v2911
    %3106 = vmatprep.subr.bf16.mxu0 %v2916
    %3107 = vmatpush1.bf16.msra.mxu0 %v2915
    %3108 = vmatprep.subr.bf16.mxu0 %v2920
    %3109 = vmatpush1.bf16.msra.mxu0 %v2919
    %3110 = vmatprep.subr.bf16.mxu0 %v2924
    %3111 = vmatpush1.bf16.msra.mxu0 %v2923
    %3112 = vmatprep.subr.bf16.mxu0 %v2928
    %3113 = vmatpush1.bf16.msra.mxu0 %v2927
    %3114 = vmatprep.subr.bf16.mxu0 %v2932
    %3115 = vmatpush1.bf16.msra.mxu0 %v2931
    %3116 = vmatprep.subr.bf16.mxu0 %v2936
    %3117 = vmatpush1.bf16.msra.mxu0 %v2935
    %3118 = vmatprep.subr.bf16.mxu0 %v2940
    %3119 = vmatpush1.bf16.msra.mxu0 %v2939
    %3120 = vmatprep.subr.bf16.mxu0 %v2944
    %3121 = vmatpush1.bf16.msra.mxu0 %v2943
    %3122 = vmatprep.subr.bf16.mxu0 %v2948
    %3123 = vmatpush1.bf16.msra.mxu0 %v2947
    %3124 = vmatprep.subr.bf16.mxu0 %v2952
    %3125 = vmatpush1.bf16.msra.mxu0 %v2951
    %3126 = vmatprep.subr.bf16.mxu0 %v2956
    %3127 = vmatpush1.bf16.msra.mxu0 %v2955
    %3128 = vmatprep.subr.bf16.mxu0 %v2960
    %3129 = vmatpush1.bf16.msra.mxu0 %v2959
    %3130 = vmatprep.mubr.bf16.mxu0 %v2690
    %3131 = vmatmul.mubr.bf16.gmra.mrb[0].mxu0 %v2689
    %v3132 = vpop.f32.mrb[0].mxu0
    %v3133 = vadd.f32 0.0, %v3132
    %v3134 = vpop.f32.mrb[0].mxu0
    %v3135 = vadd.f32 0.0, %v3134
    %v3136 = vpop.f32.mrb[0].mxu0
    %v3137 = vadd.f32 0.0, %v3136
    %v3138 = vpop.f32.mrb[0].mxu0
    %v3139 = vadd.f32 0.0, %v3138
    %3140 = vmatprep.mubr.bf16.mxu0 %v2692
    %3141 = vmatmul.mubr.bf16.gmra.mrb[0].mxu0 %v2691
    %v3142 = vpop.f32.mrb[0].mxu0
    %v3143 = vadd.f32 0.0, %v3142
    %v3144 = vpop.f32.mrb[0].mxu0
    %v3145 = vadd.f32 0.0, %v3144
    %v3146 = vpop.f32.mrb[0].mxu0
    %v3147 = vadd.f32 0.0, %v3146
    %v3148 = vpop.f32.mrb[0].mxu0
    %v3149 = vadd.f32 0.0, %v3148
    %3150 = vmatprep.mubr.bf16.mxu0 %v2694
    %3151 = vmatmul.mubr.bf16.gmra.mrb[0].mxu0 %v2693
    %v3152 = vpop.f32.mrb[0].mxu0
    %v3153 = vadd.f32 0.0, %v3152
    %v3154 = vpop.f32.mrb[0].mxu0
    %v3155 = vadd.f32 0.0, %v3154
    %v3156 = vpop.f32.mrb[0].mxu0
    %v3157 = vadd.f32 0.0, %v3156
    %v3158 = vpop.f32.mrb[0].mxu0
    %v3159 = vadd.f32 0.0, %v3158
    %3160 = vmatprep.mubr.bf16.mxu0 %v2696
    %3161 = vmatmul.mubr.bf16.gmra.mrb[0].mxu0 %v2695
    %v3162 = vpop.f32.mrb[0].mxu0
    %v3163 = vadd.f32 0.0, %v3162
    %v3164 = vpop.f32.mrb[0].mxu0
    %v3165 = vadd.f32 0.0, %v3164
    %v3166 = vpop.f32.mrb[0].mxu0
    %v3167 = vadd.f32 0.0, %v3166
    %v3168 = vpop.f32.mrb[0].mxu0
    %v3169 = vadd.f32 0.0, %v3168
    %3170 = vdwg.mxu0
    %v3171 = vadd.f32 %v2382, %v3060
    %v3172 = vadd.f32 %v2384, %v3062
    %v3173 = vadd.f32 %v2455, %v3133
    %v3174 = vadd.f32 %v2457, %v3135
    %v3175 = vadd.f32 %v2386, %v3064
    %v3176 = vadd.f32 %v2388, %v3066
    %v3177 = vadd.f32 %v2459, %v3137
    %v3178 = vadd.f32 %v2461, %v3139
    %v3179 = vadd.f32 %v2392, %v3070
    %v3180 = vadd.f32 %v2394, %v3072
    %v3181 = vadd.f32 %v2465, %v3143
    %v3182 = vadd.f32 %v2467, %v3145
    %v3183 = vadd.f32 %v2396, %v3074
    %v3184 = vadd.f32 %v2398, %v3076
    %v3185 = vadd.f32 %v2469, %v3147
    %v3186 = vadd.f32 %v2471, %v3149
    %v3187 = vadd.f32 %v2402, %v3080
    %v3188 = vadd.f32 %v2404, %v3082
    %v3189 = vadd.f32 %v2475, %v3153
    %v3190 = vadd.f32 %v2477, %v3155
    %v3191 = vadd.f32 %v2406, %v3084
    %v3192 = vadd.f32 %v2408, %v3086
    %v3193 = vadd.f32 %v2479, %v3157
    %v3194 = vadd.f32 %v2481, %v3159
    %v3195 = vadd.f32 %v2412, %v3090
    %v3196 = vadd.f32 %v2414, %v3092
    %v3197 = vadd.f32 %v2485, %v3163
    %v3198 = vadd.f32 %v2487, %v3165
    %v3199 = vadd.f32 %v2416, %v3094
    %v3200 = vadd.f32 %v2418, %v3096
    %v3201 = vadd.f32 %v2489, %v3167
    %v3202 = vadd.f32 %v2491, %v3169
    %v3203 = vld [vmem:[#allocation2] sm:$0x3e]
    %v3204 = vld [vmem:[#allocation2 + $0x8] sm:$0x3e]
    %v3205 = vld [vmem:[#allocation2 + $0x10] sm:$0x3e]
    %v3206 = vld [vmem:[#allocation2 + $0x18] sm:$0x3e]
    %v3207 = vld [vmem:[#allocation2 + $0x20] sm:$0x3e]
    %v3208 = vld [vmem:[#allocation2 + $0x28] sm:$0x3e]
    %v3209 = vld [vmem:[#allocation2 + $0x30] sm:$0x3e]
    %v3210 = vld [vmem:[#allocation2 + $0x38] sm:$0x3e]
    %v3211 = vld [vmem:[#allocation2 + $0x40] sm:$0x3e]
    %v3212 = vld [vmem:[#allocation2 + $0x48] sm:$0x3e]
    %v3213 = vld [vmem:[#allocation2 + $0x50] sm:$0x3e]
    %v3214 = vld [vmem:[#allocation2 + $0x58] sm:$0x3e]
    %v3215 = vld [vmem:[#allocation2 + $0x60] sm:$0x3e]
    %v3216 = vld [vmem:[#allocation2 + $0x68] sm:$0x3e]
    %v3217 = vld [vmem:[#allocation2 + $0x70] sm:$0x3e]
    %v3218 = vld [vmem:[#allocation2 + $0x78] sm:$0x3e]
    %v3235 = vunpack.c.l.b16 %v3203
    %v3236 = vunpack.c.l.b16 %v3204
    %v3237 = vunpack.c.h.b16 %v3203
    %v3238 = vunpack.c.h.b16 %v3204
    %v3239 = vunpack.c.l.b16 %v3205
    %v3240 = vunpack.c.l.b16 %v3206
    %v3241 = vunpack.c.h.b16 %v3205
    %v3242 = vunpack.c.h.b16 %v3206
    %v3243 = vunpack.c.l.b16 %v3207
    %v3244 = vunpack.c.l.b16 %v3208
    %v3245 = vunpack.c.h.b16 %v3207
    %v3246 = vunpack.c.h.b16 %v3208
    %v3247 = vunpack.c.l.b16 %v3209
    %v3248 = vunpack.c.l.b16 %v3210
    %v3249 = vunpack.c.h.b16 %v3209
    %v3250 = vunpack.c.h.b16 %v3210
    %v3251 = vunpack.c.l.b16 %v3211
    %v3252 = vunpack.c.l.b16 %v3212
    %v3253 = vunpack.c.h.b16 %v3211
    %v3254 = vunpack.c.h.b16 %v3212
    %v3255 = vunpack.c.l.b16 %v3213
    %v3256 = vunpack.c.l.b16 %v3214
    %v3257 = vunpack.c.h.b16 %v3213
    %v3258 = vunpack.c.h.b16 %v3214
    %v3259 = vunpack.c.l.b16 %v3215
    %v3260 = vunpack.c.l.b16 %v3216
    %v3261 = vunpack.c.h.b16 %v3215
    %v3262 = vunpack.c.h.b16 %v3216
    %v3263 = vunpack.c.l.b16 %v3217
    %v3264 = vunpack.c.l.b16 %v3218
    %v3265 = vunpack.c.h.b16 %v3217
    %v3266 = vunpack.c.h.b16 %v3218
    %v3267 = vpack.c.b16 %v3236, %v3235
    %v3268 = vpack.c.b16 %v3238, %v3237
    %v3269 = vpack.c.b16 %v3240, %v3239
    %v3270 = vpack.c.b16 %v3242, %v3241
    %v3271 = vpack.c.b16 %v3244, %v3243
    %v3272 = vpack.c.b16 %v3246, %v3245
    %v3273 = vpack.c.b16 %v3248, %v3247
    %v3274 = vpack.c.b16 %v3250, %v3249
    %v3275 = vpack.c.b16 %v3252, %v3251
    %v3276 = vpack.c.b16 %v3254, %v3253
    %v3277 = vpack.c.b16 %v3256, %v3255
    %v3278 = vpack.c.b16 %v3258, %v3257
    %v3279 = vpack.c.b16 %v3260, %v3259
    %v3280 = vpack.c.b16 %v3262, %v3261
    %v3281 = vpack.c.b16 %v3264, %v3263
    %v3282 = vpack.c.b16 %v3266, %v3265
    %vm3283 = vsmask.f32 2304
    %vm3284 = vsmask.f32 6416
    %vm3285 = vmor %vm3283, %vm3284
    %v3287 = vshrl.u32 %v3267, 16
    %v3289 = vrot.slane %v3287, 5
    %v3290 = vshll.u32 %v3267, 16
    %v3292 = vrot.slane %v3290, 6
    %v3293 = vor.u32 %v3289, %v3292
    %v3294 = vrot.slane %v3293, 4
    %v3296 = vshrl.u32 %v3268, 16
    %v3298 = vrot.slane %v3296, 5
    %v3299 = vshll.u32 %v3268, 16
    %v3301 = vrot.slane %v3299, 6
    %v3302 = vor.u32 %v3298, %v3301
    %v3303 = vsel %vm3285, %v3294, %v3302
    %v3305 = vshrl.u32 %v3269, 16
    %v3307 = vrot.slane %v3305, 5
    %v3308 = vshll.u32 %v3269, 16
    %v3310 = vrot.slane %v3308, 6
    %v3311 = vor.u32 %v3307, %v3310
    %v3312 = vrot.slane %v3311, 4
    %v3314 = vshrl.u32 %v3270, 16
    %v3316 = vrot.slane %v3314, 5
    %v3317 = vshll.u32 %v3270, 16
    %v3319 = vrot.slane %v3317, 6
    %v3320 = vor.u32 %v3316, %v3319
    %v3321 = vsel %vm3285, %v3312, %v3320
    %v3323 = vshrl.u32 %v3271, 16
    %v3325 = vrot.slane %v3323, 5
    %v3326 = vshll.u32 %v3271, 16
    %v3328 = vrot.slane %v3326, 6
    %v3329 = vor.u32 %v3325, %v3328
    %v3330 = vrot.slane %v3329, 4
    %v3332 = vshrl.u32 %v3272, 16
    %v3334 = vrot.slane %v3332, 5
    %v3335 = vshll.u32 %v3272, 16
    %v3337 = vrot.slane %v3335, 6
    %v3338 = vor.u32 %v3334, %v3337
    %v3339 = vsel %vm3285, %v3330, %v3338
    %v3341 = vshrl.u32 %v3273, 16
    %v3343 = vrot.slane %v3341, 5
    %v3344 = vshll.u32 %v3273, 16
    %v3346 = vrot.slane %v3344, 6
    %v3347 = vor.u32 %v3343, %v3346
    %v3348 = vrot.slane %v3347, 4
    %v3350 = vshrl.u32 %v3274, 16
    %v3352 = vrot.slane %v3350, 5
    %v3353 = vshll.u32 %v3274, 16
    %v3355 = vrot.slane %v3353, 6
    %v3356 = vor.u32 %v3352, %v3355
    %v3357 = vsel %vm3285, %v3348, %v3356
    %v3359 = vshrl.u32 %v3275, 16
    %v3361 = vrot.slane %v3359, 5
    %v3362 = vshll.u32 %v3275, 16
    %v3364 = vrot.slane %v3362, 6
    %v3365 = vor.u32 %v3361, %v3364
    %v3366 = vrot.slane %v3365, 4
    %v3368 = vshrl.u32 %v3276, 16
    %v3370 = vrot.slane %v3368, 5
    %v3371 = vshll.u32 %v3276, 16
    %v3373 = vrot.slane %v3371, 6
    %v3374 = vor.u32 %v3370, %v3373
    %v3375 = vsel %vm3285, %v3366, %v3374
    %v3377 = vshrl.u32 %v3277, 16
    %v3379 = vrot.slane %v3377, 5
    %v3380 = vshll.u32 %v3277, 16
    %v3382 = vrot.slane %v3380, 6
    %v3383 = vor.u32 %v3379, %v3382
    %v3384 = vrot.slane %v3383, 4
    %v3386 = vshrl.u32 %v3278, 16
    %v3388 = vrot.slane %v3386, 5
    %v3389 = vshll.u32 %v3278, 16
    %v3391 = vrot.slane %v3389, 6
    %v3392 = vor.u32 %v3388, %v3391
    %v3393 = vsel %vm3285, %v3384, %v3392
    %v3395 = vshrl.u32 %v3279, 16
    %v3397 = vrot.slane %v3395, 5
    %v3398 = vshll.u32 %v3279, 16
    %v3400 = vrot.slane %v3398, 6
    %v3401 = vor.u32 %v3397, %v3400
    %v3402 = vrot.slane %v3401, 4
    %v3404 = vshrl.u32 %v3280, 16
    %v3406 = vrot.slane %v3404, 5
    %v3407 = vshll.u32 %v3280, 16
    %v3409 = vrot.slane %v3407, 6
    %v3410 = vor.u32 %v3406, %v3409
    %v3411 = vsel %vm3285, %v3402, %v3410
    %v3413 = vshrl.u32 %v3281, 16
    %v3415 = vrot.slane %v3413, 5
    %v3416 = vshll.u32 %v3281, 16
    %v3418 = vrot.slane %v3416, 6
    %v3419 = vor.u32 %v3415, %v3418
    %v3420 = vrot.slane %v3419, 4
    %v3422 = vshrl.u32 %v3282, 16
    %v3424 = vrot.slane %v3422, 5
    %v3425 = vshll.u32 %v3282, 16
    %v3427 = vrot.slane %v3425, 6
    %v3428 = vor.u32 %v3424, %v3427
    %v3429 = vsel %vm3285, %v3420, %v3428
    %s3430 = scalar_lea.vmem %s3, 1536
    %v3431 = vld [vmem:[%s3430] sm:$0xff]
    %v3432 = vld [vmem:[%s3430 + $0x8] sm:$0xff]
    %v3433 = vld [vmem:[%s3430 + $0x10] sm:$0xff]
    %v3434 = vld [vmem:[%s3430 + $0x18] sm:$0xff]
    %v3435 = vld [vmem:[%s3430 + $0x20] sm:$0xff]
    %v3436 = vld [vmem:[%s3430 + $0x28] sm:$0xff]
    %v3437 = vld [vmem:[%s3430 + $0x30] sm:$0xff]
    %v3438 = vld [vmem:[%s3430 + $0x38] sm:$0xff]
    %v3439 = vld [vmem:[%s3430 + $0x40] sm:$0xff]
    %v3440 = vld [vmem:[%s3430 + $0x48] sm:$0xff]
    %v3441 = vld [vmem:[%s3430 + $0x50] sm:$0xff]
    %v3442 = vld [vmem:[%s3430 + $0x58] sm:$0xff]
    %v3443 = vld [vmem:[%s3430 + $0x60] sm:$0xff]
    %v3444 = vld [vmem:[%s3430 + $0x68] sm:$0xff]
    %v3445 = vld [vmem:[%s3430 + $0x70] sm:$0xff]
    %v3446 = vld [vmem:[%s3430 + $0x78] sm:$0xff]
    %v3447 = vld [vmem:[%s3430 + $0x80] sm:$0xff]
    %v3448 = vld [vmem:[%s3430 + $0x88] sm:$0xff]
    %v3449 = vld [vmem:[%s3430 + $0x90] sm:$0xff]
    %v3450 = vld [vmem:[%s3430 + $0x98] sm:$0xff]
    %v3451 = vld [vmem:[%s3430 + $0xa0] sm:$0xff]
    %v3452 = vld [vmem:[%s3430 + $0xa8] sm:$0xff]
    %v3453 = vld [vmem:[%s3430 + $0xb0] sm:$0xff]
    %v3454 = vld [vmem:[%s3430 + $0xb8] sm:$0xff]
    %v3455 = vld [vmem:[%s3430 + $0xc0] sm:$0xff]
    %v3456 = vld [vmem:[%s3430 + $0xc8] sm:$0xff]
    %v3457 = vld [vmem:[%s3430 + $0xd0] sm:$0xff]
    %v3458 = vld [vmem:[%s3430 + $0xd8] sm:$0xff]
    %v3459 = vld [vmem:[%s3430 + $0xe0] sm:$0xff]
    %v3460 = vld [vmem:[%s3430 + $0xe8] sm:$0xff]
    %v3461 = vld [vmem:[%s3430 + $0xf0] sm:$0xff]
    %v3462 = vld [vmem:[%s3430 + $0xf8] sm:$0xff]
    %v3463 = vld [vmem:[%s3430 + $0x100] sm:$0xff]
    %v3464 = vld [vmem:[%s3430 + $0x108] sm:$0xff]
    %v3465 = vld [vmem:[%s3430 + $0x110] sm:$0xff]
    %v3466 = vld [vmem:[%s3430 + $0x118] sm:$0xff]
    %v3467 = vld [vmem:[%s3430 + $0x120] sm:$0xff]
    %v3468 = vld [vmem:[%s3430 + $0x128] sm:$0xff]
    %v3469 = vld [vmem:[%s3430 + $0x130] sm:$0xff]
    %v3470 = vld [vmem:[%s3430 + $0x138] sm:$0xff]
    %v3471 = vld [vmem:[%s3430 + $0x140] sm:$0xff]
    %v3472 = vld [vmem:[%s3430 + $0x148] sm:$0xff]
    %v3473 = vld [vmem:[%s3430 + $0x150] sm:$0xff]
    %v3474 = vld [vmem:[%s3430 + $0x158] sm:$0xff]
    %v3475 = vld [vmem:[%s3430 + $0x160] sm:$0xff]
    %v3476 = vld [vmem:[%s3430 + $0x168] sm:$0xff]
    %v3477 = vld [vmem:[%s3430 + $0x170] sm:$0xff]
    %v3478 = vld [vmem:[%s3430 + $0x178] sm:$0xff]
    %v3479 = vld [vmem:[%s3430 + $0x180] sm:$0xff]
    %v3480 = vld [vmem:[%s3430 + $0x188] sm:$0xff]
    %v3481 = vld [vmem:[%s3430 + $0x190] sm:$0xff]
    %v3482 = vld [vmem:[%s3430 + $0x198] sm:$0xff]
    %v3483 = vld [vmem:[%s3430 + $0x1a0] sm:$0xff]
    %v3484 = vld [vmem:[%s3430 + $0x1a8] sm:$0xff]
    %v3485 = vld [vmem:[%s3430 + $0x1b0] sm:$0xff]
    %v3486 = vld [vmem:[%s3430 + $0x1b8] sm:$0xff]
    %v3487 = vld [vmem:[%s3430 + $0x1c0] sm:$0xff]
    %v3488 = vld [vmem:[%s3430 + $0x1c8] sm:$0xff]
    %v3489 = vld [vmem:[%s3430 + $0x1d0] sm:$0xff]
    %v3490 = vld [vmem:[%s3430 + $0x1d8] sm:$0xff]
    %v3491 = vld [vmem:[%s3430 + $0x1e0] sm:$0xff]
    %v3492 = vld [vmem:[%s3430 + $0x1e8] sm:$0xff]
    %v3493 = vld [vmem:[%s3430 + $0x1f0] sm:$0xff]
    %v3494 = vld [vmem:[%s3430 + $0x1f8] sm:$0xff]
    %v3495 = vunpack.c.l.b16 %v3303
    %v3496 = vunpack.c.h.b16 %v3303
    %v3497 = vunpack.c.l.b16 %v3321
    %v3498 = vunpack.c.h.b16 %v3321
    %v3499 = vunpack.c.l.b16 %v3339
    %v3500 = vunpack.c.h.b16 %v3339
    %v3501 = vunpack.c.l.b16 %v3357
    %v3502 = vunpack.c.h.b16 %v3357
    %v3503 = vunpack.c.l.b16 %v3375
    %v3504 = vunpack.c.h.b16 %v3375
    %v3505 = vunpack.c.l.b16 %v3393
    %v3506 = vunpack.c.h.b16 %v3393
    %v3507 = vunpack.c.l.b16 %v3411
    %v3508 = vunpack.c.h.b16 %v3411
    %v3509 = vunpack.c.l.b16 %v3429
    %v3510 = vunpack.c.h.b16 %v3429
    %v3511 = vpack.c.b16 %v3497, %v3495
    %v3512 = vpack.c.b16 %v3498, %v3496
    %v3513 = vpack.c.b16 %v3501, %v3499
    %v3514 = vpack.c.b16 %v3502, %v3500
    %v3515 = vpack.c.b16 %v3505, %v3503
    %v3516 = vpack.c.b16 %v3506, %v3504
    %v3517 = vpack.c.b16 %v3509, %v3507
    %v3518 = vpack.c.b16 %v3510, %v3508
    %v3591 = vunpack.c.l.b16 %v3431
    %v3592 = vunpack.c.h.b16 %v3431
    %v3593 = vunpack.c.l.b16 %v3432
    %v3594 = vunpack.c.h.b16 %v3432
    %v3595 = vunpack.c.l.b16 %v3433
    %v3596 = vunpack.c.h.b16 %v3433
    %v3597 = vunpack.c.l.b16 %v3434
    %v3598 = vunpack.c.h.b16 %v3434
    %v3599 = vunpack.c.l.b16 %v3435
    %v3600 = vunpack.c.h.b16 %v3435
    %v3601 = vunpack.c.l.b16 %v3436
    %v3602 = vunpack.c.h.b16 %v3436
    %v3603 = vunpack.c.l.b16 %v3437
    %v3604 = vunpack.c.h.b16 %v3437
    %v3605 = vunpack.c.l.b16 %v3438
    %v3606 = vunpack.c.h.b16 %v3438
    %v3607 = vunpack.c.l.b16 %v3439
    %v3608 = vunpack.c.h.b16 %v3439
    %v3609 = vunpack.c.l.b16 %v3440
    %v3610 = vunpack.c.h.b16 %v3440
    %v3611 = vunpack.c.l.b16 %v3441
    %v3612 = vunpack.c.h.b16 %v3441
    %v3613 = vunpack.c.l.b16 %v3442
    %v3614 = vunpack.c.h.b16 %v3442
    %v3615 = vunpack.c.l.b16 %v3443
    %v3616 = vunpack.c.h.b16 %v3443
    %v3617 = vunpack.c.l.b16 %v3444
    %v3618 = vunpack.c.h.b16 %v3444
    %v3619 = vunpack.c.l.b16 %v3445
    %v3620 = vunpack.c.h.b16 %v3445
    %v3621 = vunpack.c.l.b16 %v3446
    %v3622 = vunpack.c.h.b16 %v3446
    %v3623 = vunpack.c.l.b16 %v3447
    %v3624 = vunpack.c.h.b16 %v3447
    %v3625 = vunpack.c.l.b16 %v3448
    %v3626 = vunpack.c.h.b16 %v3448
    %v3627 = vunpack.c.l.b16 %v3449
    %v3628 = vunpack.c.h.b16 %v3449
    %v3629 = vunpack.c.l.b16 %v3450
    %v3630 = vunpack.c.h.b16 %v3450
    %v3631 = vunpack.c.l.b16 %v3451
    %v3632 = vunpack.c.h.b16 %v3451
    %v3633 = vunpack.c.l.b16 %v3452
    %v3634 = vunpack.c.h.b16 %v3452
    %v3635 = vunpack.c.l.b16 %v3453
    %v3636 = vunpack.c.h.b16 %v3453
    %v3637 = vunpack.c.l.b16 %v3454
    %v3638 = vunpack.c.h.b16 %v3454
    %v3639 = vunpack.c.l.b16 %v3455
    %v3640 = vunpack.c.h.b16 %v3455
    %v3641 = vunpack.c.l.b16 %v3456
    %v3642 = vunpack.c.h.b16 %v3456
    %v3643 = vunpack.c.l.b16 %v3457
    %v3644 = vunpack.c.h.b16 %v3457
    %v3645 = vunpack.c.l.b16 %v3458
    %v3646 = vunpack.c.h.b16 %v3458
    %v3647 = vunpack.c.l.b16 %v3459
    %v3648 = vunpack.c.h.b16 %v3459
    %v3649 = vunpack.c.l.b16 %v3460
    %v3650 = vunpack.c.h.b16 %v3460
    %v3651 = vunpack.c.l.b16 %v3461
    %v3652 = vunpack.c.h.b16 %v3461
    %v3653 = vunpack.c.l.b16 %v3462
    %v3654 = vunpack.c.h.b16 %v3462
    %v3655 = vunpack.c.l.b16 %v3463
    %v3656 = vunpack.c.h.b16 %v3463
    %v3657 = vunpack.c.l.b16 %v3464
    %v3658 = vunpack.c.h.b16 %v3464
    %v3659 = vunpack.c.l.b16 %v3465
    %v3660 = vunpack.c.h.b16 %v3465
    %v3661 = vunpack.c.l.b16 %v3466
    %v3662 = vunpack.c.h.b16 %v3466
    %v3663 = vunpack.c.l.b16 %v3467
    %v3664 = vunpack.c.h.b16 %v3467
    %v3665 = vunpack.c.l.b16 %v3468
    %v3666 = vunpack.c.h.b16 %v3468
    %v3667 = vunpack.c.l.b16 %v3469
    %v3668 = vunpack.c.h.b16 %v3469
    %v3669 = vunpack.c.l.b16 %v3470
    %v3670 = vunpack.c.h.b16 %v3470
    %v3671 = vunpack.c.l.b16 %v3471
    %v3672 = vunpack.c.h.b16 %v3471
    %v3673 = vunpack.c.l.b16 %v3472
    %v3674 = vunpack.c.h.b16 %v3472
    %v3675 = vunpack.c.l.b16 %v3473
    %v3676 = vunpack.c.h.b16 %v3473
    %v3677 = vunpack.c.l.b16 %v3474
    %v3678 = vunpack.c.h.b16 %v3474
    %v3679 = vunpack.c.l.b16 %v3475
    %v3680 = vunpack.c.h.b16 %v3475
    %v3681 = vunpack.c.l.b16 %v3476
    %v3682 = vunpack.c.h.b16 %v3476
    %v3683 = vunpack.c.l.b16 %v3477
    %v3684 = vunpack.c.h.b16 %v3477
    %v3685 = vunpack.c.l.b16 %v3478
    %v3686 = vunpack.c.h.b16 %v3478
    %v3687 = vunpack.c.l.b16 %v3479
    %v3688 = vunpack.c.h.b16 %v3479
    %v3689 = vunpack.c.l.b16 %v3480
    %v3690 = vunpack.c.h.b16 %v3480
    %v3691 = vunpack.c.l.b16 %v3481
    %v3692 = vunpack.c.h.b16 %v3481
    %v3693 = vunpack.c.l.b16 %v3482
    %v3694 = vunpack.c.h.b16 %v3482
    %v3695 = vunpack.c.l.b16 %v3483
    %v3696 = vunpack.c.h.b16 %v3483
    %v3697 = vunpack.c.l.b16 %v3484
    %v3698 = vunpack.c.h.b16 %v3484
    %v3699 = vunpack.c.l.b16 %v3485
    %v3700 = vunpack.c.h.b16 %v3485
    %v3701 = vunpack.c.l.b16 %v3486
    %v3702 = vunpack.c.h.b16 %v3486
    %v3703 = vunpack.c.l.b16 %v3487
    %v3704 = vunpack.c.h.b16 %v3487
    %v3705 = vunpack.c.l.b16 %v3488
    %v3706 = vunpack.c.h.b16 %v3488
    %v3707 = vunpack.c.l.b16 %v3489
    %v3708 = vunpack.c.h.b16 %v3489
    %v3709 = vunpack.c.l.b16 %v3490
    %v3710 = vunpack.c.h.b16 %v3490
    %v3711 = vunpack.c.l.b16 %v3491
    %v3712 = vunpack.c.h.b16 %v3491
    %v3713 = vunpack.c.l.b16 %v3492
    %v3714 = vunpack.c.h.b16 %v3492
    %v3715 = vunpack.c.l.b16 %v3493
    %v3716 = vunpack.c.h.b16 %v3493
    %v3717 = vunpack.c.l.b16 %v3494
    %v3718 = vunpack.c.h.b16 %v3494
    %v3719 = vpack.c.b16 %v3595, %v3591
    %v3720 = vpack.c.b16 %v3596, %v3592
    %v3721 = vpack.c.b16 %v3597, %v3593
    %v3722 = vpack.c.b16 %v3598, %v3594
    %v3723 = vpack.c.b16 %v3603, %v3599
    %v3724 = vpack.c.b16 %v3604, %v3600
    %v3725 = vpack.c.b16 %v3605, %v3601
    %v3726 = vpack.c.b16 %v3606, %v3602
    %v3727 = vpack.c.b16 %v3611, %v3607
    %v3728 = vpack.c.b16 %v3612, %v3608
    %v3729 = vpack.c.b16 %v3613, %v3609
    %v3730 = vpack.c.b16 %v3614, %v3610
    %v3731 = vpack.c.b16 %v3619, %v3615
    %v3732 = vpack.c.b16 %v3620, %v3616
    %v3733 = vpack.c.b16 %v3621, %v3617
    %v3734 = vpack.c.b16 %v3622, %v3618
    %v3735 = vpack.c.b16 %v3627, %v3623
    %v3736 = vpack.c.b16 %v3628, %v3624
    %v3737 = vpack.c.b16 %v3629, %v3625
    %v3738 = vpack.c.b16 %v3630, %v3626
    %v3739 = vpack.c.b16 %v3635, %v3631
    %v3740 = vpack.c.b16 %v3636, %v3632
    %v3741 = vpack.c.b16 %v3637, %v3633
    %v3742 = vpack.c.b16 %v3638, %v3634
    %v3743 = vpack.c.b16 %v3643, %v3639
    %v3744 = vpack.c.b16 %v3644, %v3640
    %v3745 = vpack.c.b16 %v3645, %v3641
    %v3746 = vpack.c.b16 %v3646, %v3642
    %v3747 = vpack.c.b16 %v3651, %v3647
    %v3748 = vpack.c.b16 %v3652, %v3648
    %v3749 = vpack.c.b16 %v3653, %v3649
    %v3750 = vpack.c.b16 %v3654, %v3650
    %v3751 = vpack.c.b16 %v3659, %v3655
    %v3752 = vpack.c.b16 %v3660, %v3656
    %v3753 = vpack.c.b16 %v3661, %v3657
    %v3754 = vpack.c.b16 %v3662, %v3658
    %v3755 = vpack.c.b16 %v3667, %v3663
    %v3756 = vpack.c.b16 %v3668, %v3664
    %v3757 = vpack.c.b16 %v3669, %v3665
    %v3758 = vpack.c.b16 %v3670, %v3666
    %v3759 = vpack.c.b16 %v3675, %v3671
    %v3760 = vpack.c.b16 %v3676, %v3672
    %v3761 = vpack.c.b16 %v3677, %v3673
    %v3762 = vpack.c.b16 %v3678, %v3674
    %v3763 = vpack.c.b16 %v3683, %v3679
    %v3764 = vpack.c.b16 %v3684, %v3680
    %v3765 = vpack.c.b16 %v3685, %v3681
    %v3766 = vpack.c.b16 %v3686, %v3682
    %v3767 = vpack.c.b16 %v3691, %v3687
    %v3768 = vpack.c.b16 %v3692, %v3688
    %v3769 = vpack.c.b16 %v3693, %v3689
    %v3770 = vpack.c.b16 %v3694, %v3690
    %v3771 = vpack.c.b16 %v3699, %v3695
    %v3772 = vpack.c.b16 %v3700, %v3696
    %v3773 = vpack.c.b16 %v3701, %v3697
    %v3774 = vpack.c.b16 %v3702, %v3698
    %v3775 = vpack.c.b16 %v3707, %v3703
    %v3776 = vpack.c.b16 %v3708, %v3704
    %v3777 = vpack.c.b16 %v3709, %v3705
    %v3778 = vpack.c.b16 %v3710, %v3706
    %v3779 = vpack.c.b16 %v3715, %v3711
    %v3780 = vpack.c.b16 %v3716, %v3712
    %v3781 = vpack.c.b16 %v3717, %v3713
    %v3782 = vpack.c.b16 %v3718, %v3714
    %3847 = vmatprep.subr.bf16.mxu0 %v3720
    %3848 = vmatpush1.bf16.msra.mxu0 %v3719
    %3849 = vmatprep.subr.bf16.mxu0 %v3724
    %3850 = vmatpush1.bf16.msra.mxu0 %v3723
    %3851 = vmatprep.subr.bf16.mxu0 %v3728
    %3852 = vmatpush1.bf16.msra.mxu0 %v3727
    %3853 = vmatprep.subr.bf16.mxu0 %v3732
    %3854 = vmatpush1.bf16.msra.mxu0 %v3731
    %3855 = vmatprep.subr.bf16.mxu0 %v3736
    %3856 = vmatpush1.bf16.msra.mxu0 %v3735
    %3857 = vmatprep.subr.bf16.mxu0 %v3740
    %3858 = vmatpush1.bf16.msra.mxu0 %v3739
    %3859 = vmatprep.subr.bf16.mxu0 %v3744
    %3860 = vmatpush1.bf16.msra.mxu0 %v3743
    %3861 = vmatprep.subr.bf16.mxu0 %v3748
    %3862 = vmatpush1.bf16.msra.mxu0 %v3747
    %3863 = vmatprep.subr.bf16.mxu0 %v3752
    %3864 = vmatpush1.bf16.msra.mxu0 %v3751
    %3865 = vmatprep.subr.bf16.mxu0 %v3756
    %3866 = vmatpush1.bf16.msra.mxu0 %v3755
    %3867 = vmatprep.subr.bf16.mxu0 %v3760
    %3868 = vmatpush1.bf16.msra.mxu0 %v3759
    %3869 = vmatprep.subr.bf16.mxu0 %v3764
    %3870 = vmatpush1.bf16.msra.mxu0 %v3763
    %3871 = vmatprep.subr.bf16.mxu0 %v3768
    %3872 = vmatpush1.bf16.msra.mxu0 %v3767
    %3873 = vmatprep.subr.bf16.mxu0 %v3772
    %3874 = vmatpush1.bf16.msra.mxu0 %v3771
    %3875 = vmatprep.subr.bf16.mxu0 %v3776
    %3876 = vmatpush1.bf16.msra.mxu0 %v3775
    %3877 = vmatprep.subr.bf16.mxu0 %v3780
    %3878 = vmatpush1.bf16.msra.mxu0 %v3779
    %3879 = vmatprep.mubr.bf16.mxu0 %v3512
    %3880 = vmatmul.mubr.bf16.gmra.mrb[0].mxu0 %v3511
    %v3881 = vpop.f32.mrb[0].mxu0
    %v3882 = vadd.f32 0.0, %v3881
    %v3883 = vpop.f32.mrb[0].mxu0
    %v3884 = vadd.f32 0.0, %v3883
    %v3885 = vpop.f32.mrb[0].mxu0
    %v3886 = vadd.f32 0.0, %v3885
    %v3887 = vpop.f32.mrb[0].mxu0
    %v3888 = vadd.f32 0.0, %v3887
    %3889 = vmatprep.mubr.bf16.mxu0 %v3514
    %3890 = vmatmul.mubr.bf16.gmra.mrb[0].mxu0 %v3513
    %v3891 = vpop.f32.mrb[0].mxu0
    %v3892 = vadd.f32 0.0, %v3891
    %v3893 = vpop.f32.mrb[0].mxu0
    %v3894 = vadd.f32 0.0, %v3893
    %v3895 = vpop.f32.mrb[0].mxu0
    %v3896 = vadd.f32 0.0, %v3895
    %v3897 = vpop.f32.mrb[0].mxu0
    %v3898 = vadd.f32 0.0, %v3897
    %3899 = vmatprep.mubr.bf16.mxu0 %v3516
    %3900 = vmatmul.mubr.bf16.gmra.mrb[0].mxu0 %v3515
    %v3901 = vpop.f32.mrb[0].mxu0
    %v3902 = vadd.f32 0.0, %v3901
    %v3903 = vpop.f32.mrb[0].mxu0
    %v3904 = vadd.f32 0.0, %v3903
    %v3905 = vpop.f32.mrb[0].mxu0
    %v3906 = vadd.f32 0.0, %v3905
    %v3907 = vpop.f32.mrb[0].mxu0
    %v3908 = vadd.f32 0.0, %v3907
    %3909 = vmatprep.mubr.bf16.mxu0 %v3518
    %3910 = vmatmul.mubr.bf16.gmra.mrb[0].mxu0 %v3517
    %v3911 = vpop.f32.mrb[0].mxu0
    %v3912 = vadd.f32 0.0, %v3911
    %v3913 = vpop.f32.mrb[0].mxu0
    %v3914 = vadd.f32 0.0, %v3913
    %v3915 = vpop.f32.mrb[0].mxu0
    %v3916 = vadd.f32 0.0, %v3915
    %v3917 = vpop.f32.mrb[0].mxu0
    %v3918 = vadd.f32 0.0, %v3917
    %3919 = vdwg.mxu0
    %3920 = vmatprep.subr.bf16.mxu0 %v3722
    %3921 = vmatpush1.bf16.msra.mxu0 %v3721
    %3922 = vmatprep.subr.bf16.mxu0 %v3726
    %3923 = vmatpush1.bf16.msra.mxu0 %v3725
    %3924 = vmatprep.subr.bf16.mxu0 %v3730
    %3925 = vmatpush1.bf16.msra.mxu0 %v3729
    %3926 = vmatprep.subr.bf16.mxu0 %v3734
    %3927 = vmatpush1.bf16.msra.mxu0 %v3733
    %3928 = vmatprep.subr.bf16.mxu0 %v3738
    %3929 = vmatpush1.bf16.msra.mxu0 %v3737
    %3930 = vmatprep.subr.bf16.mxu0 %v3742
    %3931 = vmatpush1.bf16.msra.mxu0 %v3741
    %3932 = vmatprep.subr.bf16.mxu0 %v3746
    %3933 = vmatpush1.bf16.msra.mxu0 %v3745
    %3934 = vmatprep.subr.bf16.mxu0 %v3750
    %3935 = vmatpush1.bf16.msra.mxu0 %v3749
    %3936 = vmatprep.subr.bf16.mxu0 %v3754
    %3937 = vmatpush1.bf16.msra.mxu0 %v3753
    %3938 = vmatprep.subr.bf16.mxu0 %v3758
    %3939 = vmatpush1.bf16.msra.mxu0 %v3757
    %3940 = vmatprep.subr.bf16.mxu0 %v3762
    %3941 = vmatpush1.bf16.msra.mxu0 %v3761
    %3942 = vmatprep.subr.bf16.mxu0 %v3766
    %3943 = vmatpush1.bf16.msra.mxu0 %v3765
    %3944 = vmatprep.subr.bf16.mxu0 %v3770
    %3945 = vmatpush1.bf16.msra.mxu0 %v3769
    %3946 = vmatprep.subr.bf16.mxu0 %v3774
    %3947 = vmatpush1.bf16.msra.mxu0 %v3773
    %3948 = vmatprep.subr.bf16.mxu0 %v3778
    %3949 = vmatpush1.bf16.msra.mxu0 %v3777
    %3950 = vmatprep.subr.bf16.mxu0 %v3782
    %3951 = vmatpush1.bf16.msra.mxu0 %v3781
    %3952 = vmatprep.mubr.bf16.mxu0 %v3512
    %3953 = vmatmul.mubr.bf16.gmra.mrb[0].mxu0 %v3511
    %v3954 = vpop.f32.mrb[0].mxu0
    %v3955 = vadd.f32 0.0, %v3954
    %v3956 = vpop.f32.mrb[0].mxu0
    %v3957 = vadd.f32 0.0, %v3956
    %v3958 = vpop.f32.mrb[0].mxu0
    %v3959 = vadd.f32 0.0, %v3958
    %v3960 = vpop.f32.mrb[0].mxu0
    %v3961 = vadd.f32 0.0, %v3960
    %3962 = vmatprep.mubr.bf16.mxu0 %v3514
    %3963 = vmatmul.mubr.bf16.gmra.mrb[0].mxu0 %v3513
    %v3964 = vpop.f32.mrb[0].mxu0
    %v3965 = vadd.f32 0.0, %v3964
    %v3966 = vpop.f32.mrb[0].mxu0
    %v3967 = vadd.f32 0.0, %v3966
    %v3968 = vpop.f32.mrb[0].mxu0
    %v3969 = vadd.f32 0.0, %v3968
    %v3970 = vpop.f32.mrb[0].mxu0
    %v3971 = vadd.f32 0.0, %v3970
    %3972 = vmatprep.mubr.bf16.mxu0 %v3516
    %3973 = vmatmul.mubr.bf16.gmra.mrb[0].mxu0 %v3515
    %v3974 = vpop.f32.mrb[0].mxu0
    %v3975 = vadd.f32 0.0, %v3974
    %v3976 = vpop.f32.mrb[0].mxu0
    %v3977 = vadd.f32 0.0, %v3976
    %v3978 = vpop.f32.mrb[0].mxu0
    %v3979 = vadd.f32 0.0, %v3978
    %v3980 = vpop.f32.mrb[0].mxu0
    %v3981 = vadd.f32 0.0, %v3980
    %3982 = vmatprep.mubr.bf16.mxu0 %v3518
    %3983 = vmatmul.mubr.bf16.gmra.mrb[0].mxu0 %v3517
    %v3984 = vpop.f32.mrb[0].mxu0
    %v3985 = vadd.f32 0.0, %v3984
    %v3986 = vpop.f32.mrb[0].mxu0
    %v3987 = vadd.f32 0.0, %v3986
    %v3988 = vpop.f32.mrb[0].mxu0
    %v3989 = vadd.f32 0.0, %v3988
    %v3990 = vpop.f32.mrb[0].mxu0
    %v3991 = vadd.f32 0.0, %v3990
    %3992 = vdwg.mxu0
    %v3993 = vadd.f32 %v3171, %v3882
    %v3994 = vadd.f32 %v3172, %v3884
    %v3995 = vadd.f32 %v3173, %v3955
    %v3996 = vadd.f32 %v3174, %v3957
    %v3997 = vadd.f32 %v3175, %v3886
    %v3998 = vadd.f32 %v3176, %v3888
    %v3999 = vadd.f32 %v3177, %v3959
    %v4000 = vadd.f32 %v3178, %v3961
    %v4001 = vadd.f32 %v3179, %v3892
    %v4002 = vadd.f32 %v3180, %v3894
    %v4003 = vadd.f32 %v3181, %v3965
    %v4004 = vadd.f32 %v3182, %v3967
    %v4005 = vadd.f32 %v3183, %v3896
    %v4006 = vadd.f32 %v3184, %v3898
    %v4007 = vadd.f32 %v3185, %v3969
    %v4008 = vadd.f32 %v3186, %v3971
    %v4009 = vadd.f32 %v3187, %v3902
    %v4010 = vadd.f32 %v3188, %v3904
    %v4011 = vadd.f32 %v3189, %v3975
    %v4012 = vadd.f32 %v3190, %v3977
    %v4013 = vadd.f32 %v3191, %v3906
    %v4014 = vadd.f32 %v3192, %v3908
    %v4015 = vadd.f32 %v3193, %v3979
    %v4016 = vadd.f32 %v3194, %v3981
    %v4017 = vadd.f32 %v3195, %v3912
    %v4018 = vadd.f32 %v3196, %v3914
    %v4019 = vadd.f32 %v3197, %v3985
    %v4020 = vadd.f32 %v3198, %v3987
    %v4021 = vadd.f32 %v3199, %v3916
    %v4022 = vadd.f32 %v3200, %v3918
    %v4023 = vadd.f32 %v3201, %v3989
    %v4024 = vadd.f32 %v3202, %v3991
    %v4025 = vld [vmem:[#allocation2] sm:$0x3c]
    %v4026 = vld [vmem:[#allocation2 + $0x8] sm:$0x3c]
    %v4027 = vld [vmem:[#allocation2 + $0x10] sm:$0x3c]
    %v4028 = vld [vmem:[#allocation2 + $0x18] sm:$0x3c]
    %v4029 = vld [vmem:[#allocation2 + $0x20] sm:$0x3c]
    %v4030 = vld [vmem:[#allocation2 + $0x28] sm:$0x3c]
    %v4031 = vld [vmem:[#allocation2 + $0x30] sm:$0x3c]
    %v4032 = vld [vmem:[#allocation2 + $0x38] sm:$0x3c]
    %v4033 = vld [vmem:[#allocation2 + $0x40] sm:$0x3c]
    %v4034 = vld [vmem:[#allocation2 + $0x48] sm:$0x3c]
    %v4035 = vld [vmem:[#allocation2 + $0x50] sm:$0x3c]
    %v4036 = vld [vmem:[#allocation2 + $0x58] sm:$0x3c]
    %v4037 = vld [vmem:[#allocation2 + $0x60] sm:$0x3c]
    %v4038 = vld [vmem:[#allocation2 + $0x68] sm:$0x3c]
    %v4039 = vld [vmem:[#allocation2 + $0x70] sm:$0x3c]
    %v4040 = vld [vmem:[#allocation2 + $0x78] sm:$0x3c]
    %v4057 = vunpack.c.l.b16 %v4025
    %v4058 = vunpack.c.l.b16 %v4026
    %v4059 = vunpack.c.h.b16 %v4025
    %v4060 = vunpack.c.h.b16 %v4026
    %v4061 = vunpack.c.l.b16 %v4027
    %v4062 = vunpack.c.l.b16 %v4028
    %v4063 = vunpack.c.h.b16 %v4027
    %v4064 = vunpack.c.h.b16 %v4028
    %v4065 = vunpack.c.l.b16 %v4029
    %v4066 = vunpack.c.l.b16 %v4030
    %v4067 = vunpack.c.h.b16 %v4029
    %v4068 = vunpack.c.h.b16 %v4030
    %v4069 = vunpack.c.l.b16 %v4031
    %v4070 = vunpack.c.l.b16 %v4032
    %v4071 = vunpack.c.h.b16 %v4031
    %v4072 = vunpack.c.h.b16 %v4032
    %v4073 = vunpack.c.l.b16 %v4033
    %v4074 = vunpack.c.l.b16 %v4034
    %v4075 = vunpack.c.h.b16 %v4033
    %v4076 = vunpack.c.h.b16 %v4034
    %v4077 = vunpack.c.l.b16 %v4035
    %v4078 = vunpack.c.l.b16 %v4036
    %v4079 = vunpack.c.h.b16 %v4035
    %v4080 = vunpack.c.h.b16 %v4036
    %v4081 = vunpack.c.l.b16 %v4037
    %v4082 = vunpack.c.l.b16 %v4038
    %v4083 = vunpack.c.h.b16 %v4037
    %v4084 = vunpack.c.h.b16 %v4038
    %v4085 = vunpack.c.l.b16 %v4039
    %v4086 = vunpack.c.l.b16 %v4040
    %v4087 = vunpack.c.h.b16 %v4039
    %v4088 = vunpack.c.h.b16 %v4040
    %v4089 = vpack.c.b16 %v4058, %v4057
    %v4090 = vpack.c.b16 %v4060, %v4059
    %v4091 = vpack.c.b16 %v4062, %v4061
    %v4092 = vpack.c.b16 %v4064, %v4063
    %v4093 = vpack.c.b16 %v4066, %v4065
    %v4094 = vpack.c.b16 %v4068, %v4067
    %v4095 = vpack.c.b16 %v4070, %v4069
    %v4096 = vpack.c.b16 %v4072, %v4071
    %v4097 = vpack.c.b16 %v4074, %v4073
    %v4098 = vpack.c.b16 %v4076, %v4075
    %v4099 = vpack.c.b16 %v4078, %v4077
    %v4100 = vpack.c.b16 %v4080, %v4079
    %v4101 = vpack.c.b16 %v4082, %v4081
    %v4102 = vpack.c.b16 %v4084, %v4083
    %v4103 = vpack.c.b16 %v4086, %v4085
    %v4104 = vpack.c.b16 %v4088, %v4087
    %vm4105 = vcmask 1041408
    %vm4106 = vcmask 1045508
    %vm4107 = vmor %vm4105, %vm4106
    %v4108 = vrot.slane %v4089, 6
    %v4109 = vrot.slane %v4108, 4
    %v4110 = vrot.slane %v4090, 6
    %v4111 = vsel %vm4107, %v4109, %v4110
    %v4112 = vrot.slane %v4091, 6
    %v4113 = vrot.slane %v4112, 4
    %v4114 = vrot.slane %v4092, 6
    %v4115 = vsel %vm4107, %v4113, %v4114
    %v4116 = vrot.slane %v4093, 6
    %v4117 = vrot.slane %v4116, 4
    %v4118 = vrot.slane %v4094, 6
    %v4119 = vsel %vm4107, %v4117, %v4118
    %v4120 = vrot.slane %v4095, 6
    %v4121 = vrot.slane %v4120, 4
    %v4122 = vrot.slane %v4096, 6
    %v4123 = vsel %vm4107, %v4121, %v4122
    %v4124 = vrot.slane %v4097, 6
    %v4125 = vrot.slane %v4124, 4
    %v4126 = vrot.slane %v4098, 6
    %v4127 = vsel %vm4107, %v4125, %v4126
    %v4128 = vrot.slane %v4099, 6
    %v4129 = vrot.slane %v4128, 4
    %v4130 = vrot.slane %v4100, 6
    %v4131 = vsel %vm4107, %v4129, %v4130
    %v4132 = vrot.slane %v4101, 6
    %v4133 = vrot.slane %v4132, 4
    %v4134 = vrot.slane %v4102, 6
    %v4135 = vsel %vm4107, %v4133, %v4134
    %v4136 = vrot.slane %v4103, 6
    %v4137 = vrot.slane %v4136, 4
    %v4138 = vrot.slane %v4104, 6
    %v4139 = vsel %vm4107, %v4137, %v4138
    %s4140 = scalar_lea.vmem %s3, 2048
    %v4141 = vld [vmem:[%s4140] sm:$0xff]
    %v4142 = vld [vmem:[%s4140 + $0x8] sm:$0xff]
    %v4143 = vld [vmem:[%s4140 + $0x10] sm:$0xff]
    %v4144 = vld [vmem:[%s4140 + $0x18] sm:$0xff]
    %v4145 = vld [vmem:[%s4140 + $0x20] sm:$0xff]
    %v4146 = vld [vmem:[%s4140 + $0x28] sm:$0xff]
    %v4147 = vld [vmem:[%s4140 + $0x30] sm:$0xff]
    %v4148 = vld [vmem:[%s4140 + $0x38] sm:$0xff]
    %v4149 = vld [vmem:[%s4140 + $0x40] sm:$0xff]
    %v4150 = vld [vmem:[%s4140 + $0x48] sm:$0xff]
    %v4151 = vld [vmem:[%s4140 + $0x50] sm:$0xff]
    %v4152 = vld [vmem:[%s4140 + $0x58] sm:$0xff]
    %v4153 = vld [vmem:[%s4140 + $0x60] sm:$0xff]
    %v4154 = vld [vmem:[%s4140 + $0x68] sm:$0xff]
    %v4155 = vld [vmem:[%s4140 + $0x70] sm:$0xff]
    %v4156 = vld [vmem:[%s4140 + $0x78] sm:$0xff]
    %v4157 = vld [vmem:[%s4140 + $0x80] sm:$0xff]
    %v4158 = vld [vmem:[%s4140 + $0x88] sm:$0xff]
    %v4159 = vld [vmem:[%s4140 + $0x90] sm:$0xff]
    %v4160 = vld [vmem:[%s4140 + $0x98] sm:$0xff]
    %v4161 = vld [vmem:[%s4140 + $0xa0] sm:$0xff]
    %v4162 = vld [vmem:[%s4140 + $0xa8] sm:$0xff]
    %v4163 = vld [vmem:[%s4140 + $0xb0] sm:$0xff]
    %v4164 = vld [vmem:[%s4140 + $0xb8] sm:$0xff]
    %v4165 = vld [vmem:[%s4140 + $0xc0] sm:$0xff]
    %v4166 = vld [vmem:[%s4140 + $0xc8] sm:$0xff]
    %v4167 = vld [vmem:[%s4140 + $0xd0] sm:$0xff]
    %v4168 = vld [vmem:[%s4140 + $0xd8] sm:$0xff]
    %v4169 = vld [vmem:[%s4140 + $0xe0] sm:$0xff]
    %v4170 = vld [vmem:[%s4140 + $0xe8] sm:$0xff]
    %v4171 = vld [vmem:[%s4140 + $0xf0] sm:$0xff]
    %v4172 = vld [vmem:[%s4140 + $0xf8] sm:$0xff]
    %v4173 = vld [vmem:[%s4140 + $0x100] sm:$0xff]
    %v4174 = vld [vmem:[%s4140 + $0x108] sm:$0xff]
    %v4175 = vld [vmem:[%s4140 + $0x110] sm:$0xff]
    %v4176 = vld [vmem:[%s4140 + $0x118] sm:$0xff]
    %v4177 = vld [vmem:[%s4140 + $0x120] sm:$0xff]
    %v4178 = vld [vmem:[%s4140 + $0x128] sm:$0xff]
    %v4179 = vld [vmem:[%s4140 + $0x130] sm:$0xff]
    %v4180 = vld [vmem:[%s4140 + $0x138] sm:$0xff]
    %v4181 = vld [vmem:[%s4140 + $0x140] sm:$0xff]
    %v4182 = vld [vmem:[%s4140 + $0x148] sm:$0xff]
    %v4183 = vld [vmem:[%s4140 + $0x150] sm:$0xff]
    %v4184 = vld [vmem:[%s4140 + $0x158] sm:$0xff]
    %v4185 = vld [vmem:[%s4140 + $0x160] sm:$0xff]
    %v4186 = vld [vmem:[%s4140 + $0x168] sm:$0xff]
    %v4187 = vld [vmem:[%s4140 + $0x170] sm:$0xff]
    %v4188 = vld [vmem:[%s4140 + $0x178] sm:$0xff]
    %v4189 = vld [vmem:[%s4140 + $0x180] sm:$0xff]
    %v4190 = vld [vmem:[%s4140 + $0x188] sm:$0xff]
    %v4191 = vld [vmem:[%s4140 + $0x190] sm:$0xff]
    %v4192 = vld [vmem:[%s4140 + $0x198] sm:$0xff]
    %v4193 = vld [vmem:[%s4140 + $0x1a0] sm:$0xff]
    %v4194 = vld [vmem:[%s4140 + $0x1a8] sm:$0xff]
    %v4195 = vld [vmem:[%s4140 + $0x1b0] sm:$0xff]
    %v4196 = vld [vmem:[%s4140 + $0x1b8] sm:$0xff]
    %v4197 = vld [vmem:[%s4140 + $0x1c0] sm:$0xff]
    %v4198 = vld [vmem:[%s4140 + $0x1c8] sm:$0xff]
    %v4199 = vld [vmem:[%s4140 + $0x1d0] sm:$0xff]
    %v4200 = vld [vmem:[%s4140 + $0x1d8] sm:$0xff]
    %v4201 = vld [vmem:[%s4140 + $0x1e0] sm:$0xff]
    %v4202 = vld [vmem:[%s4140 + $0x1e8] sm:$0xff]
    %v4203 = vld [vmem:[%s4140 + $0x1f0] sm:$0xff]
    %v4204 = vld [vmem:[%s4140 + $0x1f8] sm:$0xff]
    %v4205 = vunpack.c.l.b16 %v4111
    %v4206 = vunpack.c.h.b16 %v4111
    %v4207 = vunpack.c.l.b16 %v4115
    %v4208 = vunpack.c.h.b16 %v4115
    %v4209 = vunpack.c.l.b16 %v4119
    %v4210 = vunpack.c.h.b16 %v4119
    %v4211 = vunpack.c.l.b16 %v4123
    %v4212 = vunpack.c.h.b16 %v4123
    %v4213 = vunpack.c.l.b16 %v4127
    %v4214 = vunpack.c.h.b16 %v4127
    %v4215 = vunpack.c.l.b16 %v4131
    %v4216 = vunpack.c.h.b16 %v4131
    %v4217 = vunpack.c.l.b16 %v4135
    %v4218 = vunpack.c.h.b16 %v4135
    %v4219 = vunpack.c.l.b16 %v4139
    %v4220 = vunpack.c.h.b16 %v4139
    %v4221 = vpack.c.b16 %v4207, %v4205
    %v4222 = vpack.c.b16 %v4208, %v4206
    %v4223 = vpack.c.b16 %v4211, %v4209
    %v4224 = vpack.c.b16 %v4212, %v4210
    %v4225 = vpack.c.b16 %v4215, %v4213
    %v4226 = vpack.c.b16 %v4216, %v4214
    %v4227 = vpack.c.b16 %v4219, %v4217
    %v4228 = vpack.c.b16 %v4220, %v4218
    %v4301 = vunpack.c.l.b16 %v4141
    %v4302 = vunpack.c.h.b16 %v4141
    %v4303 = vunpack.c.l.b16 %v4142
    %v4304 = vunpack.c.h.b16 %v4142
    %v4305 = vunpack.c.l.b16 %v4143
    %v4306 = vunpack.c.h.b16 %v4143
    %v4307 = vunpack.c.l.b16 %v4144
    %v4308 = vunpack.c.h.b16 %v4144
    %v4309 = vunpack.c.l.b16 %v4145
    %v4310 = vunpack.c.h.b16 %v4145
    %v4311 = vunpack.c.l.b16 %v4146
    %v4312 = vunpack.c.h.b16 %v4146
    %v4313 = vunpack.c.l.b16 %v4147
    %v4314 = vunpack.c.h.b16 %v4147
    %v4315 = vunpack.c.l.b16 %v4148
    %v4316 = vunpack.c.h.b16 %v4148
    %v4317 = vunpack.c.l.b16 %v4149
    %v4318 = vunpack.c.h.b16 %v4149
    %v4319 = vunpack.c.l.b16 %v4150
    %v4320 = vunpack.c.h.b16 %v4150
    %v4321 = vunpack.c.l.b16 %v4151
    %v4322 = vunpack.c.h.b16 %v4151
    %v4323 = vunpack.c.l.b16 %v4152
    %v4324 = vunpack.c.h.b16 %v4152
    %v4325 = vunpack.c.l.b16 %v4153
    %v4326 = vunpack.c.h.b16 %v4153
    %v4327 = vunpack.c.l.b16 %v4154
    %v4328 = vunpack.c.h.b16 %v4154
    %v4329 = vunpack.c.l.b16 %v4155
    %v4330 = vunpack.c.h.b16 %v4155
    %v4331 = vunpack.c.l.b16 %v4156
    %v4332 = vunpack.c.h.b16 %v4156
    %v4333 = vunpack.c.l.b16 %v4157
    %v4334 = vunpack.c.h.b16 %v4157
    %v4335 = vunpack.c.l.b16 %v4158
    %v4336 = vunpack.c.h.b16 %v4158
    %v4337 = vunpack.c.l.b16 %v4159
    %v4338 = vunpack.c.h.b16 %v4159
    %v4339 = vunpack.c.l.b16 %v4160
    %v4340 = vunpack.c.h.b16 %v4160
    %v4341 = vunpack.c.l.b16 %v4161
    %v4342 = vunpack.c.h.b16 %v4161
    %v4343 = vunpack.c.l.b16 %v4162
    %v4344 = vunpack.c.h.b16 %v4162
    %v4345 = vunpack.c.l.b16 %v4163
    %v4346 = vunpack.c.h.b16 %v4163
    %v4347 = vunpack.c.l.b16 %v4164
    %v4348 = vunpack.c.h.b16 %v4164
    %v4349 = vunpack.c.l.b16 %v4165
    %v4350 = vunpack.c.h.b16 %v4165
    %v4351 = vunpack.c.l.b16 %v4166
    %v4352 = vunpack.c.h.b16 %v4166
    %v4353 = vunpack.c.l.b16 %v4167
    %v4354 = vunpack.c.h.b16 %v4167
    %v4355 = vunpack.c.l.b16 %v4168
    %v4356 = vunpack.c.h.b16 %v4168
    %v4357 = vunpack.c.l.b16 %v4169
    %v4358 = vunpack.c.h.b16 %v4169
    %v4359 = vunpack.c.l.b16 %v4170
    %v4360 = vunpack.c.h.b16 %v4170
    %v4361 = vunpack.c.l.b16 %v4171
    %v4362 = vunpack.c.h.b16 %v4171
    %v4363 = vunpack.c.l.b16 %v4172
    %v4364 = vunpack.c.h.b16 %v4172
    %v4365 = vunpack.c.l.b16 %v4173
    %v4366 = vunpack.c.h.b16 %v4173
    %v4367 = vunpack.c.l.b16 %v4174
    %v4368 = vunpack.c.h.b16 %v4174
    %v4369 = vunpack.c.l.b16 %v4175
    %v4370 = vunpack.c.h.b16 %v4175
    %v4371 = vunpack.c.l.b16 %v4176
    %v4372 = vunpack.c.h.b16 %v4176
    %v4373 = vunpack.c.l.b16 %v4177
    %v4374 = vunpack.c.h.b16 %v4177
    %v4375 = vunpack.c.l.b16 %v4178
    %v4376 = vunpack.c.h.b16 %v4178
    %v4377 = vunpack.c.l.b16 %v4179
    %v4378 = vunpack.c.h.b16 %v4179
    %v4379 = vunpack.c.l.b16 %v4180
    %v4380 = vunpack.c.h.b16 %v4180
    %v4381 = vunpack.c.l.b16 %v4181
    %v4382 = vunpack.c.h.b16 %v4181
    %v4383 = vunpack.c.l.b16 %v4182
    %v4384 = vunpack.c.h.b16 %v4182
    %v4385 = vunpack.c.l.b16 %v4183
    %v4386 = vunpack.c.h.b16 %v4183
    %v4387 = vunpack.c.l.b16 %v4184
    %v4388 = vunpack.c.h.b16 %v4184
    %v4389 = vunpack.c.l.b16 %v4185
    %v4390 = vunpack.c.h.b16 %v4185
    %v4391 = vunpack.c.l.b16 %v4186
    %v4392 = vunpack.c.h.b16 %v4186
    %v4393 = vunpack.c.l.b16 %v4187
    %v4394 = vunpack.c.h.b16 %v4187
    %v4395 = vunpack.c.l.b16 %v4188
    %v4396 = vunpack.c.h.b16 %v4188
    %v4397 = vunpack.c.l.b16 %v4189
    %v4398 = vunpack.c.h.b16 %v4189
    %v4399 = vunpack.c.l.b16 %v4190
    %v4400 = vunpack.c.h.b16 %v4190
    %v4401 = vunpack.c.l.b16 %v4191
    %v4402 = vunpack.c.h.b16 %v4191
    %v4403 = vunpack.c.l.b16 %v4192
    %v4404 = vunpack.c.h.b16 %v4192
    %v4405 = vunpack.c.l.b16 %v4193
    %v4406 = vunpack.c.h.b16 %v4193
    %v4407 = vunpack.c.l.b16 %v4194
    %v4408 = vunpack.c.h.b16 %v4194
    %v4409 = vunpack.c.l.b16 %v4195
    %v4410 = vunpack.c.h.b16 %v4195
    %v4411 = vunpack.c.l.b16 %v4196
    %v4412 = vunpack.c.h.b16 %v4196
    %v4413 = vunpack.c.l.b16 %v4197
    %v4414 = vunpack.c.h.b16 %v4197
    %v4415 = vunpack.c.l.b16 %v4198
    %v4416 = vunpack.c.h.b16 %v4198
    %v4417 = vunpack.c.l.b16 %v4199
    %v4418 = vunpack.c.h.b16 %v4199
    %v4419 = vunpack.c.l.b16 %v4200
    %v4420 = vunpack.c.h.b16 %v4200
    %v4421 = vunpack.c.l.b16 %v4201
    %v4422 = vunpack.c.h.b16 %v4201
    %v4423 = vunpack.c.l.b16 %v4202
    %v4424 = vunpack.c.h.b16 %v4202
    %v4425 = vunpack.c.l.b16 %v4203
    %v4426 = vunpack.c.h.b16 %v4203
    %v4427 = vunpack.c.l.b16 %v4204
    %v4428 = vunpack.c.h.b16 %v4204
    %v4429 = vpack.c.b16 %v4305, %v4301
    %v4430 = vpack.c.b16 %v4306, %v4302
    %v4431 = vpack.c.b16 %v4307, %v4303
    %v4432 = vpack.c.b16 %v4308, %v4304
    %v4433 = vpack.c.b16 %v4313, %v4309
    %v4434 = vpack.c.b16 %v4314, %v4310
    %v4435 = vpack.c.b16 %v4315, %v4311
    %v4436 = vpack.c.b16 %v4316, %v4312
    %v4437 = vpack.c.b16 %v4321, %v4317
    %v4438 = vpack.c.b16 %v4322, %v4318
    %v4439 = vpack.c.b16 %v4323, %v4319
    %v4440 = vpack.c.b16 %v4324, %v4320
    %v4441 = vpack.c.b16 %v4329, %v4325
    %v4442 = vpack.c.b16 %v4330, %v4326
    %v4443 = vpack.c.b16 %v4331, %v4327
    %v4444 = vpack.c.b16 %v4332, %v4328
    %v4445 = vpack.c.b16 %v4337, %v4333
    %v4446 = vpack.c.b16 %v4338, %v4334
    %v4447 = vpack.c.b16 %v4339, %v4335
    %v4448 = vpack.c.b16 %v4340, %v4336
    %v4449 = vpack.c.b16 %v4345, %v4341
    %v4450 = vpack.c.b16 %v4346, %v4342
    %v4451 = vpack.c.b16 %v4347, %v4343
    %v4452 = vpack.c.b16 %v4348, %v4344
    %v4453 = vpack.c.b16 %v4353, %v4349
    %v4454 = vpack.c.b16 %v4354, %v4350
    %v4455 = vpack.c.b16 %v4355, %v4351
    %v4456 = vpack.c.b16 %v4356, %v4352
    %v4457 = vpack.c.b16 %v4361, %v4357
    %v4458 = vpack.c.b16 %v4362, %v4358
    %v4459 = vpack.c.b16 %v4363, %v4359
    %v4460 = vpack.c.b16 %v4364, %v4360
    %v4461 = vpack.c.b16 %v4369, %v4365
    %v4462 = vpack.c.b16 %v4370, %v4366
    %v4463 = vpack.c.b16 %v4371, %v4367
    %v4464 = vpack.c.b16 %v4372, %v4368
    %v4465 = vpack.c.b16 %v4377, %v4373
    %v4466 = vpack.c.b16 %v4378, %v4374
    %v4467 = vpack.c.b16 %v4379, %v4375
    %v4468 = vpack.c.b16 %v4380, %v4376
    %v4469 = vpack.c.b16 %v4385, %v4381
    %v4470 = vpack.c.b16 %v4386, %v4382
    %v4471 = vpack.c.b16 %v4387, %v4383
    %v4472 = vpack.c.b16 %v4388, %v4384
    %v4473 = vpack.c.b16 %v4393, %v4389
    %v4474 = vpack.c.b16 %v4394, %v4390
    %v4475 = vpack.c.b16 %v4395, %v4391
    %v4476 = vpack.c.b16 %v4396, %v4392
    %v4477 = vpack.c.b16 %v4401, %v4397
    %v4478 = vpack.c.b16 %v4402, %v4398
    %v4479 = vpack.c.b16 %v4403, %v4399
    %v4480 = vpack.c.b16 %v4404, %v4400
    %v4481 = vpack.c.b16 %v4409, %v4405
    %v4482 = vpack.c.b16 %v4410, %v4406
    %v4483 = vpack.c.b16 %v4411, %v4407
    %v4484 = vpack.c.b16 %v4412, %v4408
    %v4485 = vpack.c.b16 %v4417, %v4413
    %v4486 = vpack.c.b16 %v4418, %v4414
    %v4487 = vpack.c.b16 %v4419, %v4415
    %v4488 = vpack.c.b16 %v4420, %v4416
    %v4489 = vpack.c.b16 %v4425, %v4421
    %v4490 = vpack.c.b16 %v4426, %v4422
    %v4491 = vpack.c.b16 %v4427, %v4423
    %v4492 = vpack.c.b16 %v4428, %v4424
    %4557 = vmatprep.subr.bf16.mxu0 %v4430
    %4558 = vmatpush1.bf16.msra.mxu0 %v4429
    %4559 = vmatprep.subr.bf16.mxu0 %v4434
    %4560 = vmatpush1.bf16.msra.mxu0 %v4433
    %4561 = vmatprep.subr.bf16.mxu0 %v4438
    %4562 = vmatpush1.bf16.msra.mxu0 %v4437
    %4563 = vmatprep.subr.bf16.mxu0 %v4442
    %4564 = vmatpush1.bf16.msra.mxu0 %v4441
    %4565 = vmatprep.subr.bf16.mxu0 %v4446
    %4566 = vmatpush1.bf16.msra.mxu0 %v4445
    %4567 = vmatprep.subr.bf16.mxu0 %v4450
    %4568 = vmatpush1.bf16.msra.mxu0 %v4449
    %4569 = vmatprep.subr.bf16.mxu0 %v4454
    %4570 = vmatpush1.bf16.msra.mxu0 %v4453
    %4571 = vmatprep.subr.bf16.mxu0 %v4458
    %4572 = vmatpush1.bf16.msra.mxu0 %v4457
    %4573 = vmatprep.subr.bf16.mxu0 %v4462
    %4574 = vmatpush1.bf16.msra.mxu0 %v4461
    %4575 = vmatprep.subr.bf16.mxu0 %v4466
    %4576 = vmatpush1.bf16.msra.mxu0 %v4465
    %4577 = vmatprep.subr.bf16.mxu0 %v4470
    %4578 = vmatpush1.bf16.msra.mxu0 %v4469
    %4579 = vmatprep.subr.bf16.mxu0 %v4474
    %4580 = vmatpush1.bf16.msra.mxu0 %v4473
    %4581 = vmatprep.subr.bf16.mxu0 %v4478
    %4582 = vmatpush1.bf16.msra.mxu0 %v4477
    %4583 = vmatprep.subr.bf16.mxu0 %v4482
    %4584 = vmatpush1.bf16.msra.mxu0 %v4481
    %4585 = vmatprep.subr.bf16.mxu0 %v4486
    %4586 = vmatpush1.bf16.msra.mxu0 %v4485
    %4587 = vmatprep.subr.bf16.mxu0 %v4490
    %4588 = vmatpush1.bf16.msra.mxu0 %v4489
    %4589 = vmatprep.mubr.bf16.mxu0 %v4222
    %4590 = vmatmul.mubr.bf16.gmra.mrb[0].mxu0 %v4221
    %v4591 = vpop.f32.mrb[0].mxu0
    %v4592 = vadd.f32 0.0, %v4591
    %v4593 = vpop.f32.mrb[0].mxu0
    %v4594 = vadd.f32 0.0, %v4593
    %v4595 = vpop.f32.mrb[0].mxu0
    %v4596 = vadd.f32 0.0, %v4595
    %v4597 = vpop.f32.mrb[0].mxu0
    %v4598 = vadd.f32 0.0, %v4597
    %4599 = vmatprep.mubr.bf16.mxu0 %v4224
    %4600 = vmatmul.mubr.bf16.gmra.mrb[0].mxu0 %v4223
    %v4601 = vpop.f32.mrb[0].mxu0
    %v4602 = vadd.f32 0.0, %v4601
    %v4603 = vpop.f32.mrb[0].mxu0
    %v4604 = vadd.f32 0.0, %v4603
    %v4605 = vpop.f32.mrb[0].mxu0
    %v4606 = vadd.f32 0.0, %v4605
    %v4607 = vpop.f32.mrb[0].mxu0
    %v4608 = vadd.f32 0.0, %v4607
    %4609 = vmatprep.mubr.bf16.mxu0 %v4226
    %4610 = vmatmul.mubr.bf16.gmra.mrb[0].mxu0 %v4225
    %v4611 = vpop.f32.mrb[0].mxu0
    %v4612 = vadd.f32 0.0, %v4611
    %v4613 = vpop.f32.mrb[0].mxu0
    %v4614 = vadd.f32 0.0, %v4613
    %v4615 = vpop.f32.mrb[0].mxu0
    %v4616 = vadd.f32 0.0, %v4615
    %v4617 = vpop.f32.mrb[0].mxu0
    %v4618 = vadd.f32 0.0, %v4617
    %4619 = vmatprep.mubr.bf16.mxu0 %v4228
    %4620 = vmatmul.mubr.bf16.gmra.mrb[0].mxu0 %v4227
    %v4621 = vpop.f32.mrb[0].mxu0
    %v4622 = vadd.f32 0.0, %v4621
    %v4623 = vpop.f32.mrb[0].mxu0
    %v4624 = vadd.f32 0.0, %v4623
    %v4625 = vpop.f32.mrb[0].mxu0
    %v4626 = vadd.f32 0.0, %v4625
    %v4627 = vpop.f32.mrb[0].mxu0
    %v4628 = vadd.f32 0.0, %v4627
    %4629 = vdwg.mxu0
    %4630 = vmatprep.subr.bf16.mxu0 %v4432
    %4631 = vmatpush1.bf16.msra.mxu0 %v4431
    %4632 = vmatprep.subr.bf16.mxu0 %v4436
    %4633 = vmatpush1.bf16.msra.mxu0 %v4435
    %4634 = vmatprep.subr.bf16.mxu0 %v4440
    %4635 = vmatpush1.bf16.msra.mxu0 %v4439
    %4636 = vmatprep.subr.bf16.mxu0 %v4444
    %4637 = vmatpush1.bf16.msra.mxu0 %v4443
    %4638 = vmatprep.subr.bf16.mxu0 %v4448
    %4639 = vmatpush1.bf16.msra.mxu0 %v4447
    %4640 = vmatprep.subr.bf16.mxu0 %v4452
    %4641 = vmatpush1.bf16.msra.mxu0 %v4451
    %4642 = vmatprep.subr.bf16.mxu0 %v4456
    %4643 = vmatpush1.bf16.msra.mxu0 %v4455
    %4644 = vmatprep.subr.bf16.mxu0 %v4460
    %4645 = vmatpush1.bf16.msra.mxu0 %v4459
    %4646 = vmatprep.subr.bf16.mxu0 %v4464
    %4647 = vmatpush1.bf16.msra.mxu0 %v4463
    %4648 = vmatprep.subr.bf16.mxu0 %v4468
    %4649 = vmatpush1.bf16.msra.mxu0 %v4467
    %4650 = vmatprep.subr.bf16.mxu0 %v4472
    %4651 = vmatpush1.bf16.msra.mxu0 %v4471
    %4652 = vmatprep.subr.bf16.mxu0 %v4476
    %4653 = vmatpush1.bf16.msra.mxu0 %v4475
    %4654 = vmatprep.subr.bf16.mxu0 %v4480
    %4655 = vmatpush1.bf16.msra.mxu0 %v4479
    %4656 = vmatprep.subr.bf16.mxu0 %v4484
    %4657 = vmatpush1.bf16.msra.mxu0 %v4483
    %4658 = vmatprep.subr.bf16.mxu0 %v4488
    %4659 = vmatpush1.bf16.msra.mxu0 %v4487
    %4660 = vmatprep.subr.bf16.mxu0 %v4492
    %4661 = vmatpush1.bf16.msra.mxu0 %v4491
    %4662 = vmatprep.mubr.bf16.mxu0 %v4222
    %4663 = vmatmul.mubr.bf16.gmra.mrb[0].mxu0 %v4221
    %v4664 = vpop.f32.mrb[0].mxu0
    %v4665 = vadd.f32 0.0, %v4664
    %v4666 = vpop.f32.mrb[0].mxu0
    %v4667 = vadd.f32 0.0, %v4666
    %v4668 = vpop.f32.mrb[0].mxu0
    %v4669 = vadd.f32 0.0, %v4668
    %v4670 = vpop.f32.mrb[0].mxu0
    %v4671 = vadd.f32 0.0, %v4670
    %4672 = vmatprep.mubr.bf16.mxu0 %v4224
    %4673 = vmatmul.mubr.bf16.gmra.mrb[0].mxu0 %v4223
    %v4674 = vpop.f32.mrb[0].mxu0
    %v4675 = vadd.f32 0.0, %v4674
    %v4676 = vpop.f32.mrb[0].mxu0
    %v4677 = vadd.f32 0.0, %v4676
    %v4678 = vpop.f32.mrb[0].mxu0
    %v4679 = vadd.f32 0.0, %v4678
    %v4680 = vpop.f32.mrb[0].mxu0
    %v4681 = vadd.f32 0.0, %v4680
    %4682 = vmatprep.mubr.bf16.mxu0 %v4226
    %4683 = vmatmul.mubr.bf16.gmra.mrb[0].mxu0 %v4225
    %v4684 = vpop.f32.mrb[0].mxu0
    %v4685 = vadd.f32 0.0, %v4684
    %v4686 = vpop.f32.mrb[0].mxu0
    %v4687 = vadd.f32 0.0, %v4686
    %v4688 = vpop.f32.mrb[0].mxu0
    %v4689 = vadd.f32 0.0, %v4688
    %v4690 = vpop.f32.mrb[0].mxu0
    %v4691 = vadd.f32 0.0, %v4690
    %4692 = vmatprep.mubr.bf16.mxu0 %v4228
    %4693 = vmatmul.mubr.bf16.gmra.mrb[0].mxu0 %v4227
    %v4694 = vpop.f32.mrb[0].mxu0
    %v4695 = vadd.f32 0.0, %v4694
    %v4696 = vpop.f32.mrb[0].mxu0
    %v4697 = vadd.f32 0.0, %v4696
    %v4698 = vpop.f32.mrb[0].mxu0
    %v4699 = vadd.f32 0.0, %v4698
    %v4700 = vpop.f32.mrb[0].mxu0
    %v4701 = vadd.f32 0.0, %v4700
    %4702 = vdwg.mxu0
    %v4703 = vadd.f32 %v3993, %v4592
    %v4704 = vadd.f32 %v3994, %v4594
    %v4705 = vadd.f32 %v3995, %v4665
    %v4706 = vadd.f32 %v3996, %v4667
    %v4707 = vadd.f32 %v3997, %v4596
    %v4708 = vadd.f32 %v3998, %v4598
    %v4709 = vadd.f32 %v3999, %v4669
    %v4710 = vadd.f32 %v4000, %v4671
    %v4711 = vadd.f32 %v4001, %v4602
    %v4712 = vadd.f32 %v4002, %v4604
    %v4713 = vadd.f32 %v4003, %v4675
    %v4714 = vadd.f32 %v4004, %v4677
    %v4715 = vadd.f32 %v4005, %v4606
    %v4716 = vadd.f32 %v4006, %v4608
    %v4717 = vadd.f32 %v4007, %v4679
    %v4718 = vadd.f32 %v4008, %v4681
    %v4719 = vadd.f32 %v4009, %v4612
    %v4720 = vadd.f32 %v4010, %v4614
    %v4721 = vadd.f32 %v4011, %v4685
    %v4722 = vadd.f32 %v4012, %v4687
    %v4723 = vadd.f32 %v4013, %v4616
    %v4724 = vadd.f32 %v4014, %v4618
    %v4725 = vadd.f32 %v4015, %v4689
    %v4726 = vadd.f32 %v4016, %v4691
    %v4727 = vadd.f32 %v4017, %v4622
    %v4728 = vadd.f32 %v4018, %v4624
    %v4729 = vadd.f32 %v4019, %v4695
    %v4730 = vadd.f32 %v4020, %v4697
    %v4731 = vadd.f32 %v4021, %v4626
    %v4732 = vadd.f32 %v4022, %v4628
    %v4733 = vadd.f32 %v4023, %v4699
    %v4734 = vadd.f32 %v4024, %v4701
    %4735 = vst [vmem:[#allocation3] sm:$0xff] %v4703
    %4736 = vst [vmem:[#allocation3 + $0x8] sm:$0xff] %v4704
    %4737 = vst [vmem:[#allocation3 + $0x10] sm:$0xff] %v4705
    %4738 = vst [vmem:[#allocation3 + $0x18] sm:$0xff] %v4706
    %4739 = vst [vmem:[#allocation3 + $0x20] sm:$0xff] %v4707
    %4740 = vst [vmem:[#allocation3 + $0x28] sm:$0xff] %v4708
    %4741 = vst [vmem:[#allocation3 + $0x30] sm:$0xff] %v4709
    %4742 = vst [vmem:[#allocation3 + $0x38] sm:$0xff] %v4710
    %4743 = vst [vmem:[#allocation3 + $0x40] sm:$0xff] %v4711
    %4744 = vst [vmem:[#allocation3 + $0x48] sm:$0xff] %v4712
    %4745 = vst [vmem:[#allocation3 + $0x50] sm:$0xff] %v4713
    %4746 = vst [vmem:[#allocation3 + $0x58] sm:$0xff] %v4714
    %4747 = vst [vmem:[#allocation3 + $0x60] sm:$0xff] %v4715
    %4748 = vst [vmem:[#allocation3 + $0x68] sm:$0xff] %v4716
    %4749 = vst [vmem:[#allocation3 + $0x70] sm:$0xff] %v4717
    %4750 = vst [vmem:[#allocation3 + $0x78] sm:$0xff] %v4718
    %4751 = vst [vmem:[#allocation3 + $0x80] sm:$0xff] %v4719
    %4752 = vst [vmem:[#allocation3 + $0x88] sm:$0xff] %v4720
    %4753 = vst [vmem:[#allocation3 + $0x90] sm:$0xff] %v4721
    %4754 = vst [vmem:[#allocation3 + $0x98] sm:$0xff] %v4722
    %4755 = vst [vmem:[#allocation3 + $0xa0] sm:$0xff] %v4723
    %4756 = vst [vmem:[#allocation3 + $0xa8] sm:$0xff] %v4724
    %4757 = vst [vmem:[#allocation3 + $0xb0] sm:$0xff] %v4725
    %4758 = vst [vmem:[#allocation3 + $0xb8] sm:$0xff] %v4726
    %4759 = vst [vmem:[#allocation3 + $0xc0] sm:$0xff] %v4727
    %4760 = vst [vmem:[#allocation3 + $0xc8] sm:$0xff] %v4728
    %4761 = vst [vmem:[#allocation3 + $0xd0] sm:$0xff] %v4729
    %4762 = vst [vmem:[#allocation3 + $0xd8] sm:$0xff] %v4730
    %4763 = vst [vmem:[#allocation3 + $0xe0] sm:$0xff] %v4731
    %4764 = vst [vmem:[#allocation3 + $0xe8] sm:$0xff] %v4732
    %4765 = vst [vmem:[#allocation3 + $0xf0] sm:$0xff] %v4733
    %4766 = vst [vmem:[#allocation3 + $0xf8] sm:$0xff] %v4734
    %v4767 = vld [vmem:[#allocation3] ss:$8 sm:$0xf]
    %s4768 = scalar_lea.vmem [#allocation3], 32
    %v4769 = vld [vmem:[%s4768] ss:$8 sm:$0xf]
    %s4770 = scalar_lea.vmem [#allocation3], 64
    %v4771 = vld [vmem:[%s4770] ss:$8 sm:$0xf]
    %s4772 = scalar_lea.vmem [#allocation3], 96
    %v4773 = vld [vmem:[%s4772] ss:$8 sm:$0xf]
    %s4774 = scalar_lea.vmem [#allocation3], 128
    %v4775 = vld [vmem:[%s4774] ss:$8 sm:$0xf]
    %s4776 = scalar_lea.vmem [#allocation3], 160
    %v4777 = vld [vmem:[%s4776] ss:$8 sm:$0xf]
    %s4778 = scalar_lea.vmem [#allocation3], 192
    %v4779 = vld [vmem:[%s4778] ss:$8 sm:$0xf]
    %s4780 = scalar_lea.vmem [#allocation3], 224
    %v4781 = vld [vmem:[%s4780] ss:$8 sm:$0xf]
    %s4782 = scalar_lea.vmem [#allocation3], 1
    %v4783 = vld [vmem:[%s4782] ss:$8 sm:$0xf]
    %s4784 = scalar_lea.vmem [#allocation3], 33
    %v4785 = vld [vmem:[%s4784] ss:$8 sm:$0xf]
    %s4786 = scalar_lea.vmem [#allocation3], 65
    %v4787 = vld [vmem:[%s4786] ss:$8 sm:$0xf]
    %s4788 = scalar_lea.vmem [#allocation3], 97
    %v4789 = vld [vmem:[%s4788] ss:$8 sm:$0xf]
    %s4790 = scalar_lea.vmem [#allocation3], 129
    %v4791 = vld [vmem:[%s4790] ss:$8 sm:$0xf]
    %s4792 = scalar_lea.vmem [#allocation3], 161
    %v4793 = vld [vmem:[%s4792] ss:$8 sm:$0xf]
    %s4794 = scalar_lea.vmem [#allocation3], 193
    %v4795 = vld [vmem:[%s4794] ss:$8 sm:$0xf]
    %s4796 = scalar_lea.vmem [#allocation3], 225
    %v4797 = vld [vmem:[%s4796] ss:$8 sm:$0xf]
    %v4798 = vmax.f32 %v4767, %v4783
    %v4799 = vmax.f32 %v4769, %v4785
    %v4800 = vmax.f32 %v4771, %v4787
    %v4801 = vmax.f32 %v4773, %v4789
    %v4802 = vmax.f32 %v4775, %v4791
    %v4803 = vmax.f32 %v4777, %v4793
    %v4804 = vmax.f32 %v4779, %v4795
    %v4805 = vmax.f32 %v4781, %v4797
    %v4814 = vrot.slane %v4798, 2
    %v4815 = vrot.slane %v4799, 2
    %v4816 = vrot.slane %v4800, 2
    %v4817 = vrot.slane %v4801, 2
    %v4818 = vrot.slane %v4802, 2
    %v4819 = vrot.slane %v4803, 2
    %v4820 = vrot.slane %v4804, 2
    %v4821 = vrot.slane %v4805, 2
    %v4830 = vmax.f32 %v4798, %v4814
    %v4831 = vmax.f32 %v4799, %v4815
    %v4832 = vmax.f32 %v4800, %v4816
    %v4833 = vmax.f32 %v4801, %v4817
    %v4834 = vmax.f32 %v4802, %v4818
    %v4835 = vmax.f32 %v4803, %v4819
    %v4836 = vmax.f32 %v4804, %v4820
    %v4837 = vmax.f32 %v4805, %v4821
    %v4838 = vld [vmem:[%s4] sm:$0x3]
    %v4840 = vlaneseq
    %v4841 = vshrl.u32 %v4840, 7
    %v4842 = vsub.s32 0, %v4841
    %v4843 = vrot.slane %v4838, %v4842
    %v4844 = vlaneseq
    %v4845 = vshrl.u32 %v4844, 7
    %v4846 = vsub.s32 1, %v4845
    %v4847 = vrot.slane %v4838, %v4846
    %v4848 = vcombine.low %v4843, %v4847
    %v4849 = vcombine.high %v4843, %v4847
    %v4851 = vunpack.c.l.s4 1966171168
    %v4852 = vunpack.c.0.s8 %v4851
    %v4853 = vlaneseq
    %v4854 = vshrl.u32 %v4853, 7
    %v4855 = vsub.s32 %v4852, %v4854
    %v4856 = vrot.slane %v4848, %v4855
    %v4858 = vunpack.c.l.s4 1966171168
    %v4859 = vunpack.c.0.s8 %v4858
    %v4860 = vlaneseq
    %v4861 = vshrl.u32 %v4860, 7
    %v4862 = vsub.s32 %v4859, %v4861
    %v4863 = vrot.slane %v4849, %v4862
    %v4864 = vcombine.high %v4856, %v4856
    %v4865 = vcombine.high %v4863, %v4863
    %v4867 = vunpack.c.l.s4 1966171168
    %v4868 = vunpack.c.0.s8 %v4867
    %v4869 = vlaneseq
    %v4870 = vshrl.u32 %v4869, 7
    %v4871 = vsub.s32 %v4868, %v4870
    %v4872 = vrot.slane %v4856, %v4871
    %v4874 = vunpack.c.l.s4 1966171168
    %v4875 = vunpack.c.0.s8 %v4874
    %v4876 = vlaneseq
    %v4877 = vshrl.u32 %v4876, 7
    %v4878 = vsub.s32 %v4875, %v4877
    %v4879 = vrot.slane %v4863, %v4878
    %v4881 = vunpack.c.l.s4 1966171168
    %v4882 = vunpack.c.0.s8 %v4881
    %v4883 = vlaneseq
    %v4884 = vshrl.u32 %v4883, 7
    %v4885 = vsub.s32 %v4882, %v4884
    %v4886 = vrot.slane %v4864, %v4885
    %v4888 = vunpack.c.l.s4 1966171168
    %v4889 = vunpack.c.0.s8 %v4888
    %v4890 = vlaneseq
    %v4891 = vshrl.u32 %v4890, 7
    %v4892 = vsub.s32 %v4889, %v4891
    %v4893 = vrot.slane %v4865, %v4892
    %v4894 = vcombine.high %v4872, %v4872
    %v4895 = vcombine.high %v4879, %v4879
    %v4896 = vcombine.high %v4886, %v4886
    %v4897 = vcombine.high %v4893, %v4893
    %v4906 = vadd.f32 %v4830, %v4872
    %v4907 = vadd.f32 %v4831, %v4886
    %v4908 = vadd.f32 %v4832, %v4894
    %v4909 = vadd.f32 %v4833, %v4896
    %v4910 = vadd.f32 %v4834, %v4879
    %v4911 = vadd.f32 %v4835, %v4893
    %v4912 = vadd.f32 %v4836, %v4895
    %v4913 = vadd.f32 %v4837, %v4897
    %v4914 = vmax.f32 %v4906, 0.0
    %v4915 = vmax.f32 %v4907, 0.0
    %v4916 = vmax.f32 %v4908, 0.0
    %v4917 = vmax.f32 %v4909, 0.0
    %v4918 = vmax.f32 %v4910, 0.0
    %v4919 = vmax.f32 %v4911, 0.0
    %v4920 = vmax.f32 %v4912, 0.0
    %v4921 = vmax.f32 %v4913, 0.0
    %v4930 = vlaneseq
    %v4931 = vshrl.u32 %v4930, 7
    %v4932 = vsub.s32 0, %v4931
    %v4933 = vrot.slane %v4914, %v4932
    %v4934 = vlaneseq
    %v4935 = vshrl.u32 %v4934, 7
    %v4936 = vsub.s32 1, %v4935
    %v4937 = vrot.slane %v4914, %v4936
    %v4938 = vlaneseq
    %v4939 = vshrl.u32 %v4938, 7
    %v4940 = vsub.s32 0, %v4939
    %v4941 = vrot.slane %v4915, %v4940
    %v4942 = vlaneseq
    %v4943 = vshrl.u32 %v4942, 7
    %v4944 = vsub.s32 1, %v4943
    %v4945 = vrot.slane %v4915, %v4944
    %v4946 = vlaneseq
    %v4947 = vshrl.u32 %v4946, 7
    %v4948 = vsub.s32 0, %v4947
    %v4949 = vrot.slane %v4916, %v4948
    %v4950 = vlaneseq
    %v4951 = vshrl.u32 %v4950, 7
    %v4952 = vsub.s32 1, %v4951
    %v4953 = vrot.slane %v4916, %v4952
    %v4954 = vlaneseq
    %v4955 = vshrl.u32 %v4954, 7
    %v4956 = vsub.s32 0, %v4955
    %v4957 = vrot.slane %v4917, %v4956
    %v4958 = vlaneseq
    %v4959 = vshrl.u32 %v4958, 7
    %v4960 = vsub.s32 1, %v4959
    %v4961 = vrot.slane %v4917, %v4960
    %v4962 = vlaneseq
    %v4963 = vshrl.u32 %v4962, 7
    %v4964 = vsub.s32 0, %v4963
    %v4965 = vrot.slane %v4918, %v4964
    %v4966 = vlaneseq
    %v4967 = vshrl.u32 %v4966, 7
    %v4968 = vsub.s32 1, %v4967
    %v4969 = vrot.slane %v4918, %v4968
    %v4970 = vlaneseq
    %v4971 = vshrl.u32 %v4970, 7
    %v4972 = vsub.s32 0, %v4971
    %v4973 = vrot.slane %v4919, %v4972
    %v4974 = vlaneseq
    %v4975 = vshrl.u32 %v4974, 7
    %v4976 = vsub.s32 1, %v4975
    %v4977 = vrot.slane %v4919, %v4976
    %v4978 = vlaneseq
    %v4979 = vshrl.u32 %v4978, 7
    %v4980 = vsub.s32 0, %v4979
    %v4981 = vrot.slane %v4920, %v4980
    %v4982 = vlaneseq
    %v4983 = vshrl.u32 %v4982, 7
    %v4984 = vsub.s32 1, %v4983
    %v4985 = vrot.slane %v4920, %v4984
    %v4986 = vlaneseq
    %v4987 = vshrl.u32 %v4986, 7
    %v4988 = vsub.s32 0, %v4987
    %v4989 = vrot.slane %v4921, %v4988
    %v4990 = vlaneseq
    %v4991 = vshrl.u32 %v4990, 7
    %v4992 = vsub.s32 1, %v4991
    %v4993 = vrot.slane %v4921, %v4992
    %v5010 = vpack.c.bf16 %v4933, %v4933
    %v5011 = vpack.c.bf16 %v4937, %v4937
    %v5012 = vpack.c.bf16 %v4941, %v4941
    %v5013 = vpack.c.bf16 %v4945, %v4945
    %v5014 = vpack.c.bf16 %v4949, %v4949
    %v5015 = vpack.c.bf16 %v4953, %v4953
    %v5016 = vpack.c.bf16 %v4957, %v4957
    %v5017 = vpack.c.bf16 %v4961, %v4961
    %v5018 = vpack.c.bf16 %v4965, %v4965
    %v5019 = vpack.c.bf16 %v4969, %v4969
    %v5020 = vpack.c.bf16 %v4973, %v4973
    %v5021 = vpack.c.bf16 %v4977, %v4977
    %v5022 = vpack.c.bf16 %v4981, %v4981
    %v5023 = vpack.c.bf16 %v4985, %v4985
    %v5024 = vpack.c.bf16 %v4989, %v4989
    %v5025 = vpack.c.bf16 %v4993, %v4993
    %v5026 = vld [vmem:[%s5] sm:$0xff]
    %v5027 = vld [vmem:[%s5 + $0x8] sm:$0xff]
    %v5028 = vld [vmem:[%s5 + $0x10] sm:$0xff]
    %v5029 = vld [vmem:[%s5 + $0x18] sm:$0xff]
    %v5030 = vld [vmem:[%s5 + $0x20] sm:$0xff]
    %v5031 = vld [vmem:[%s5 + $0x28] sm:$0xff]
    %v5032 = vld [vmem:[%s5 + $0x30] sm:$0xff]
    %v5033 = vld [vmem:[%s5 + $0x38] sm:$0xff]
    %v5034 = vld [vmem:[%s5 + $0x40] sm:$0xff]
    %v5035 = vld [vmem:[%s5 + $0x48] sm:$0xff]
    %v5036 = vld [vmem:[%s5 + $0x50] sm:$0xff]
    %v5037 = vld [vmem:[%s5 + $0x58] sm:$0xff]
    %v5038 = vld [vmem:[%s5 + $0x60] sm:$0xff]
    %v5039 = vld [vmem:[%s5 + $0x68] sm:$0xff]
    %v5040 = vld [vmem:[%s5 + $0x70] sm:$0xff]
    %v5041 = vld [vmem:[%s5 + $0x78] sm:$0xff]
    %v5042 = vld [vmem:[%s5 + $0x80] sm:$0xff]
    %v5043 = vld [vmem:[%s5 + $0x88] sm:$0xff]
    %v5044 = vld [vmem:[%s5 + $0x90] sm:$0xff]
    %v5045 = vld [vmem:[%s5 + $0x98] sm:$0xff]
    %v5046 = vld [vmem:[%s5 + $0xa0] sm:$0xff]
    %v5047 = vld [vmem:[%s5 + $0xa8] sm:$0xff]
    %v5048 = vld [vmem:[%s5 + $0xb0] sm:$0xff]
    %v5049 = vld [vmem:[%s5 + $0xb8] sm:$0xff]
    %v5050 = vld [vmem:[%s5 + $0xc0] sm:$0xff]
    %v5051 = vld [vmem:[%s5 + $0xc8] sm:$0xff]
    %v5052 = vld [vmem:[%s5 + $0xd0] sm:$0xff]
    %v5053 = vld [vmem:[%s5 + $0xd8] sm:$0xff]
    %v5054 = vld [vmem:[%s5 + $0xe0] sm:$0xff]
    %v5055 = vld [vmem:[%s5 + $0xe8] sm:$0xff]
    %v5056 = vld [vmem:[%s5 + $0xf0] sm:$0xff]
    %v5057 = vld [vmem:[%s5 + $0xf8] sm:$0xff]
    %v5058 = vld [vmem:[%s5 + $0x100] sm:$0xff]
    %v5059 = vld [vmem:[%s5 + $0x108] sm:$0xff]
    %v5060 = vld [vmem:[%s5 + $0x110] sm:$0xff]
    %v5061 = vld [vmem:[%s5 + $0x118] sm:$0xff]
    %v5062 = vld [vmem:[%s5 + $0x120] sm:$0xff]
    %v5063 = vld [vmem:[%s5 + $0x128] sm:$0xff]
    %v5064 = vld [vmem:[%s5 + $0x130] sm:$0xff]
    %v5065 = vld [vmem:[%s5 + $0x138] sm:$0xff]
    %v5066 = vld [vmem:[%s5 + $0x140] sm:$0xff]
    %v5067 = vld [vmem:[%s5 + $0x148] sm:$0xff]
    %v5068 = vld [vmem:[%s5 + $0x150] sm:$0xff]
    %v5069 = vld [vmem:[%s5 + $0x158] sm:$0xff]
    %v5070 = vld [vmem:[%s5 + $0x160] sm:$0xff]
    %v5071 = vld [vmem:[%s5 + $0x168] sm:$0xff]
    %v5072 = vld [vmem:[%s5 + $0x170] sm:$0xff]
    %v5073 = vld [vmem:[%s5 + $0x178] sm:$0xff]
    %v5074 = vld [vmem:[%s5 + $0x180] sm:$0xff]
    %v5075 = vld [vmem:[%s5 + $0x188] sm:$0xff]
    %v5076 = vld [vmem:[%s5 + $0x190] sm:$0xff]
    %v5077 = vld [vmem:[%s5 + $0x198] sm:$0xff]
    %v5078 = vld [vmem:[%s5 + $0x1a0] sm:$0xff]
    %v5079 = vld [vmem:[%s5 + $0x1a8] sm:$0xff]
    %v5080 = vld [vmem:[%s5 + $0x1b0] sm:$0xff]
    %v5081 = vld [vmem:[%s5 + $0x1b8] sm:$0xff]
    %v5082 = vld [vmem:[%s5 + $0x1c0] sm:$0xff]
    %v5083 = vld [vmem:[%s5 + $0x1c8] sm:$0xff]
    %v5084 = vld [vmem:[%s5 + $0x1d0] sm:$0xff]
    %v5085 = vld [vmem:[%s5 + $0x1d8] sm:$0xff]
    %v5086 = vld [vmem:[%s5 + $0x1e0] sm:$0xff]
    %v5087 = vld [vmem:[%s5 + $0x1e8] sm:$0xff]
    %v5088 = vld [vmem:[%s5 + $0x1f0] sm:$0xff]
    %v5089 = vld [vmem:[%s5 + $0x1f8] sm:$0xff]
    %s5090 = scalar_lea.vmem [#allocation3], 2
    %v5091 = vld [vmem:[%s5090] ss:$8 sm:$0xf]
    %s5092 = scalar_lea.vmem [#allocation3], 34
    %v5093 = vld [vmem:[%s5092] ss:$8 sm:$0xf]
    %s5094 = scalar_lea.vmem [#allocation3], 66
    %v5095 = vld [vmem:[%s5094] ss:$8 sm:$0xf]
    %s5096 = scalar_lea.vmem [#allocation3], 98
    %v5097 = vld [vmem:[%s5096] ss:$8 sm:$0xf]
    %s5098 = scalar_lea.vmem [#allocation3], 130
    %v5099 = vld [vmem:[%s5098] ss:$8 sm:$0xf]
    %s5100 = scalar_lea.vmem [#allocation3], 162
    %v5101 = vld [vmem:[%s5100] ss:$8 sm:$0xf]
    %s5102 = scalar_lea.vmem [#allocation3], 194
    %v5103 = vld [vmem:[%s5102] ss:$8 sm:$0xf]
    %s5104 = scalar_lea.vmem [#allocation3], 226
    %v5105 = vld [vmem:[%s5104] ss:$8 sm:$0xf]
    %s5106 = scalar_lea.vmem [#allocation3], 3
    %v5107 = vld [vmem:[%s5106] ss:$8 sm:$0xf]
    %s5108 = scalar_lea.vmem [#allocation3], 35
    %v5109 = vld [vmem:[%s5108] ss:$8 sm:$0xf]
    %s5110 = scalar_lea.vmem [#allocation3], 67
    %v5111 = vld [vmem:[%s5110] ss:$8 sm:$0xf]
    %s5112 = scalar_lea.vmem [#allocation3], 99
    %v5113 = vld [vmem:[%s5112] ss:$8 sm:$0xf]
    %s5114 = scalar_lea.vmem [#allocation3], 131
    %v5115 = vld [vmem:[%s5114] ss:$8 sm:$0xf]
    %s5116 = scalar_lea.vmem [#allocation3], 163
    %v5117 = vld [vmem:[%s5116] ss:$8 sm:$0xf]
    %s5118 = scalar_lea.vmem [#allocation3], 195
    %v5119 = vld [vmem:[%s5118] ss:$8 sm:$0xf]
    %s5120 = scalar_lea.vmem [#allocation3], 227
    %v5121 = vld [vmem:[%s5120] ss:$8 sm:$0xf]
    %v5122 = vmax.f32 %v5091, %v5107
    %v5123 = vmax.f32 %v5093, %v5109
    %v5124 = vmax.f32 %v5095, %v5111
    %v5125 = vmax.f32 %v5097, %v5113
    %v5126 = vmax.f32 %v5099, %v5115
    %v5127 = vmax.f32 %v5101, %v5117
    %v5128 = vmax.f32 %v5103, %v5119
    %v5129 = vmax.f32 %v5105, %v5121
    %v5138 = vrot.slane %v5122, 2
    %v5139 = vrot.slane %v5123, 2
    %v5140 = vrot.slane %v5124, 2
    %v5141 = vrot.slane %v5125, 2
    %v5142 = vrot.slane %v5126, 2
    %v5143 = vrot.slane %v5127, 2
    %v5144 = vrot.slane %v5128, 2
    %v5145 = vrot.slane %v5129, 2
    %v5154 = vmax.f32 %v5122, %v5138
    %v5155 = vmax.f32 %v5123, %v5139
    %v5156 = vmax.f32 %v5124, %v5140
    %v5157 = vmax.f32 %v5125, %v5141
    %v5158 = vmax.f32 %v5126, %v5142
    %v5159 = vmax.f32 %v5127, %v5143
    %v5160 = vmax.f32 %v5128, %v5144
    %v5161 = vmax.f32 %v5129, %v5145
    %v5162 = vadd.f32 %v5154, %v4872
    %v5163 = vadd.f32 %v5155, %v4886
    %v5164 = vadd.f32 %v5156, %v4894
    %v5165 = vadd.f32 %v5157, %v4896
    %v5166 = vadd.f32 %v5158, %v4879
    %v5167 = vadd.f32 %v5159, %v4893
    %v5168 = vadd.f32 %v5160, %v4895
    %v5169 = vadd.f32 %v5161, %v4897
    %v5170 = vmax.f32 %v5162, 0.0
    %v5171 = vmax.f32 %v5163, 0.0
    %v5172 = vmax.f32 %v5164, 0.0
    %v5173 = vmax.f32 %v5165, 0.0
    %v5174 = vmax.f32 %v5166, 0.0
    %v5175 = vmax.f32 %v5167, 0.0
    %v5176 = vmax.f32 %v5168, 0.0
    %v5177 = vmax.f32 %v5169, 0.0
    %v5186 = vlaneseq
    %v5187 = vshrl.u32 %v5186, 7
    %v5188 = vsub.s32 0, %v5187
    %v5189 = vrot.slane %v5170, %v5188
    %v5190 = vlaneseq
    %v5191 = vshrl.u32 %v5190, 7
    %v5192 = vsub.s32 1, %v5191
    %v5193 = vrot.slane %v5170, %v5192
    %v5194 = vlaneseq
    %v5195 = vshrl.u32 %v5194, 7
    %v5196 = vsub.s32 0, %v5195
    %v5197 = vrot.slane %v5171, %v5196
    %v5198 = vlaneseq
    %v5199 = vshrl.u32 %v5198, 7
    %v5200 = vsub.s32 1, %v5199
    %v5201 = vrot.slane %v5171, %v5200
    %v5202 = vlaneseq
    %v5203 = vshrl.u32 %v5202, 7
    %v5204 = vsub.s32 0, %v5203
    %v5205 = vrot.slane %v5172, %v5204
    %v5206 = vlaneseq
    %v5207 = vshrl.u32 %v5206, 7
    %v5208 = vsub.s32 1, %v5207
    %v5209 = vrot.slane %v5172, %v5208
    %v5210 = vlaneseq
    %v5211 = vshrl.u32 %v5210, 7
    %v5212 = vsub.s32 0, %v5211
    %v5213 = vrot.slane %v5173, %v5212
    %v5214 = vlaneseq
    %v5215 = vshrl.u32 %v5214, 7
    %v5216 = vsub.s32 1, %v5215
    %v5217 = vrot.slane %v5173, %v5216
    %v5218 = vlaneseq
    %v5219 = vshrl.u32 %v5218, 7
    %v5220 = vsub.s32 0, %v5219
    %v5221 = vrot.slane %v5174, %v5220
    %v5222 = vlaneseq
    %v5223 = vshrl.u32 %v5222, 7
    %v5224 = vsub.s32 1, %v5223
    %v5225 = vrot.slane %v5174, %v5224
    %v5226 = vlaneseq
    %v5227 = vshrl.u32 %v5226, 7
    %v5228 = vsub.s32 0, %v5227
    %v5229 = vrot.slane %v5175, %v5228
    %v5230 = vlaneseq
    %v5231 = vshrl.u32 %v5230, 7
    %v5232 = vsub.s32 1, %v5231
    %v5233 = vrot.slane %v5175, %v5232
    %v5234 = vlaneseq
    %v5235 = vshrl.u32 %v5234, 7
    %v5236 = vsub.s32 0, %v5235
    %v5237 = vrot.slane %v5176, %v5236
    %v5238 = vlaneseq
    %v5239 = vshrl.u32 %v5238, 7
    %v5240 = vsub.s32 1, %v5239
    %v5241 = vrot.slane %v5176, %v5240
    %v5242 = vlaneseq
    %v5243 = vshrl.u32 %v5242, 7
    %v5244 = vsub.s32 0, %v5243
    %v5245 = vrot.slane %v5177, %v5244
    %v5246 = vlaneseq
    %v5247 = vshrl.u32 %v5246, 7
    %v5248 = vsub.s32 1, %v5247
    %v5249 = vrot.slane %v5177, %v5248
    %v5266 = vpack.c.bf16 %v5189, %v5189
    %v5267 = vpack.c.bf16 %v5193, %v5193
    %v5268 = vpack.c.bf16 %v5197, %v5197
    %v5269 = vpack.c.bf16 %v5201, %v5201
    %v5270 = vpack.c.bf16 %v5205, %v5205
    %v5271 = vpack.c.bf16 %v5209, %v5209
    %v5272 = vpack.c.bf16 %v5213, %v5213
    %v5273 = vpack.c.bf16 %v5217, %v5217
    %v5274 = vpack.c.bf16 %v5221, %v5221
    %v5275 = vpack.c.bf16 %v5225, %v5225
    %v5276 = vpack.c.bf16 %v5229, %v5229
    %v5277 = vpack.c.bf16 %v5233, %v5233
    %v5278 = vpack.c.bf16 %v5237, %v5237
    %v5279 = vpack.c.bf16 %v5241, %v5241
    %v5280 = vpack.c.bf16 %v5245, %v5245
    %v5281 = vpack.c.bf16 %v5249, %v5249
    %s5282 = scalar_lea.vmem %s5, 512
    %v5283 = vld [vmem:[%s5282] sm:$0xff]
    %v5284 = vld [vmem:[%s5282 + $0x8] sm:$0xff]
    %v5285 = vld [vmem:[%s5282 + $0x10] sm:$0xff]
    %v5286 = vld [vmem:[%s5282 + $0x18] sm:$0xff]
    %v5287 = vld [vmem:[%s5282 + $0x20] sm:$0xff]
    %v5288 = vld [vmem:[%s5282 + $0x28] sm:$0xff]
    %v5289 = vld [vmem:[%s5282 + $0x30] sm:$0xff]
    %v5290 = vld [vmem:[%s5282 + $0x38] sm:$0xff]
    %v5291 = vld [vmem:[%s5282 + $0x40] sm:$0xff]
    %v5292 = vld [vmem:[%s5282 + $0x48] sm:$0xff]
    %v5293 = vld [vmem:[%s5282 + $0x50] sm:$0xff]
    %v5294 = vld [vmem:[%s5282 + $0x58] sm:$0xff]
    %v5295 = vld [vmem:[%s5282 + $0x60] sm:$0xff]
    %v5296 = vld [vmem:[%s5282 + $0x68] sm:$0xff]
    %v5297 = vld [vmem:[%s5282 + $0x70] sm:$0xff]
    %v5298 = vld [vmem:[%s5282 + $0x78] sm:$0xff]
    %v5299 = vld [vmem:[%s5282 + $0x80] sm:$0xff]
    %v5300 = vld [vmem:[%s5282 + $0x88] sm:$0xff]
    %v5301 = vld [vmem:[%s5282 + $0x90] sm:$0xff]
    %v5302 = vld [vmem:[%s5282 + $0x98] sm:$0xff]
    %v5303 = vld [vmem:[%s5282 + $0xa0] sm:$0xff]
    %v5304 = vld [vmem:[%s5282 + $0xa8] sm:$0xff]
    %v5305 = vld [vmem:[%s5282 + $0xb0] sm:$0xff]
    %v5306 = vld [vmem:[%s5282 + $0xb8] sm:$0xff]
    %v5307 = vld [vmem:[%s5282 + $0xc0] sm:$0xff]
    %v5308 = vld [vmem:[%s5282 + $0xc8] sm:$0xff]
    %v5309 = vld [vmem:[%s5282 + $0xd0] sm:$0xff]
    %v5310 = vld [vmem:[%s5282 + $0xd8] sm:$0xff]
    %v5311 = vld [vmem:[%s5282 + $0xe0] sm:$0xff]
    %v5312 = vld [vmem:[%s5282 + $0xe8] sm:$0xff]
    %v5313 = vld [vmem:[%s5282 + $0xf0] sm:$0xff]
    %v5314 = vld [vmem:[%s5282 + $0xf8] sm:$0xff]
    %v5315 = vld [vmem:[%s5282 + $0x100] sm:$0xff]
    %v5316 = vld [vmem:[%s5282 + $0x108] sm:$0xff]
    %v5317 = vld [vmem:[%s5282 + $0x110] sm:$0xff]
    %v5318 = vld [vmem:[%s5282 + $0x118] sm:$0xff]
    %v5319 = vld [vmem:[%s5282 + $0x120] sm:$0xff]
    %v5320 = vld [vmem:[%s5282 + $0x128] sm:$0xff]
    %v5321 = vld [vmem:[%s5282 + $0x130] sm:$0xff]
    %v5322 = vld [vmem:[%s5282 + $0x138] sm:$0xff]
    %v5323 = vld [vmem:[%s5282 + $0x140] sm:$0xff]
    %v5324 = vld [vmem:[%s5282 + $0x148] sm:$0xff]
    %v5325 = vld [vmem:[%s5282 + $0x150] sm:$0xff]
    %v5326 = vld [vmem:[%s5282 + $0x158] sm:$0xff]
    %v5327 = vld [vmem:[%s5282 + $0x160] sm:$0xff]
    %v5328 = vld [vmem:[%s5282 + $0x168] sm:$0xff]
    %v5329 = vld [vmem:[%s5282 + $0x170] sm:$0xff]
    %v5330 = vld [vmem:[%s5282 + $0x178] sm:$0xff]
    %v5331 = vld [vmem:[%s5282 + $0x180] sm:$0xff]
    %v5332 = vld [vmem:[%s5282 + $0x188] sm:$0xff]
    %v5333 = vld [vmem:[%s5282 + $0x190] sm:$0xff]
    %v5334 = vld [vmem:[%s5282 + $0x198] sm:$0xff]
    %v5335 = vld [vmem:[%s5282 + $0x1a0] sm:$0xff]
    %v5336 = vld [vmem:[%s5282 + $0x1a8] sm:$0xff]
    %v5337 = vld [vmem:[%s5282 + $0x1b0] sm:$0xff]
    %v5338 = vld [vmem:[%s5282 + $0x1b8] sm:$0xff]
    %v5339 = vld [vmem:[%s5282 + $0x1c0] sm:$0xff]
    %v5340 = vld [vmem:[%s5282 + $0x1c8] sm:$0xff]
    %v5341 = vld [vmem:[%s5282 + $0x1d0] sm:$0xff]
    %v5342 = vld [vmem:[%s5282 + $0x1d8] sm:$0xff]
    %v5343 = vld [vmem:[%s5282 + $0x1e0] sm:$0xff]
    %v5344 = vld [vmem:[%s5282 + $0x1e8] sm:$0xff]
    %v5345 = vld [vmem:[%s5282 + $0x1f0] sm:$0xff]
    %v5346 = vld [vmem:[%s5282 + $0x1f8] sm:$0xff]
    %v5363 = vunpack.c.l.b16 %v5266
    %v5364 = vunpack.c.l.b16 %v5267
    %v5365 = vunpack.c.l.b16 %v5268
    %v5366 = vunpack.c.l.b16 %v5269
    %v5367 = vunpack.c.l.b16 %v5270
    %v5368 = vunpack.c.l.b16 %v5271
    %v5369 = vunpack.c.l.b16 %v5272
    %v5370 = vunpack.c.l.b16 %v5273
    %v5371 = vunpack.c.l.b16 %v5274
    %v5372 = vunpack.c.l.b16 %v5275
    %v5373 = vunpack.c.l.b16 %v5276
    %v5374 = vunpack.c.l.b16 %v5277
    %v5375 = vunpack.c.l.b16 %v5278
    %v5376 = vunpack.c.l.b16 %v5279
    %v5377 = vunpack.c.l.b16 %v5280
    %v5378 = vunpack.c.l.b16 %v5281
    %v5379 = vrot.slane %v5365, 7
    %vm5380 = vcmask 1041409
    %v5381 = vsel %vm5380, %v5379, %v5363
    %v5382 = vrot.slane %v5367, 6
    %vm5383 = vcmask 1042434
    %v5384 = vsel %vm5383, %v5382, %v5381
    %v5385 = vrot.slane %v5369, 5
    %vm5386 = vcmask 1043459
    %v5387 = vsel %vm5386, %v5385, %v5384
    %v5388 = vrot.slane %v5371, 4
    %vm5389 = vcmask 1044484
    %v5390 = vsel %vm5389, %v5388, %v5387
    %v5391 = vrot.slane %v5373, 3
    %vm5392 = vcmask 1045509
    %v5393 = vsel %vm5392, %v5391, %v5390
    %v5394 = vrot.slane %v5375, 2
    %vm5395 = vcmask 1046534
    %v5396 = vsel %vm5395, %v5394, %v5393
    %v5397 = vrot.slane %v5377, 1
    %vm5398 = vcmask 1047559
    %v5399 = vsel %vm5398, %v5397, %v5396
    %v5400 = vrot.slane %v5366, 7
    %v5401 = vsel %vm5380, %v5400, %v5364
    %v5402 = vrot.slane %v5368, 6
    %v5403 = vsel %vm5383, %v5402, %v5401
    %v5404 = vrot.slane %v5370, 5
    %v5405 = vsel %vm5386, %v5404, %v5403
    %v5406 = vrot.slane %v5372, 4
    %v5407 = vsel %vm5389, %v5406, %v5405
    %v5408 = vrot.slane %v5374, 3
    %v5409 = vsel %vm5392, %v5408, %v5407
    %v5410 = vrot.slane %v5376, 2
    %v5411 = vsel %vm5395, %v5410, %v5409
    %v5412 = vrot.slane %v5378, 1
    %v5413 = vsel %vm5398, %v5412, %v5411
    %v5414 = vpack.c.b16 %v5399, %v5399
    %v5415 = vpack.c.b16 %v5413, %v5413
    %v5482 = vunpack.c.l.b16 %v5283
    %v5483 = vunpack.c.h.b16 %v5283
    %v5484 = vunpack.c.l.b16 %v5284
    %v5485 = vunpack.c.h.b16 %v5284
    %v5486 = vunpack.c.l.b16 %v5285
    %v5487 = vunpack.c.h.b16 %v5285
    %v5488 = vunpack.c.l.b16 %v5286
    %v5489 = vunpack.c.h.b16 %v5286
    %v5490 = vunpack.c.l.b16 %v5287
    %v5491 = vunpack.c.h.b16 %v5287
    %v5492 = vunpack.c.l.b16 %v5288
    %v5493 = vunpack.c.h.b16 %v5288
    %v5494 = vunpack.c.l.b16 %v5289
    %v5495 = vunpack.c.h.b16 %v5289
    %v5496 = vunpack.c.l.b16 %v5290
    %v5497 = vunpack.c.h.b16 %v5290
    %v5498 = vunpack.c.l.b16 %v5291
    %v5499 = vunpack.c.h.b16 %v5291
    %v5500 = vunpack.c.l.b16 %v5292
    %v5501 = vunpack.c.h.b16 %v5292
    %v5502 = vunpack.c.l.b16 %v5293
    %v5503 = vunpack.c.h.b16 %v5293
    %v5504 = vunpack.c.l.b16 %v5294
    %v5505 = vunpack.c.h.b16 %v5294
    %v5506 = vunpack.c.l.b16 %v5295
    %v5507 = vunpack.c.h.b16 %v5295
    %v5508 = vunpack.c.l.b16 %v5296
    %v5509 = vunpack.c.h.b16 %v5296
    %v5510 = vunpack.c.l.b16 %v5297
    %v5511 = vunpack.c.h.b16 %v5297
    %v5512 = vunpack.c.l.b16 %v5298
    %v5513 = vunpack.c.h.b16 %v5298
    %v5514 = vunpack.c.l.b16 %v5299
    %v5515 = vunpack.c.h.b16 %v5299
    %v5516 = vunpack.c.l.b16 %v5300
    %v5517 = vunpack.c.h.b16 %v5300
    %v5518 = vunpack.c.l.b16 %v5301
    %v5519 = vunpack.c.h.b16 %v5301
    %v5520 = vunpack.c.l.b16 %v5302
    %v5521 = vunpack.c.h.b16 %v5302
    %v5522 = vunpack.c.l.b16 %v5303
    %v5523 = vunpack.c.h.b16 %v5303
    %v5524 = vunpack.c.l.b16 %v5304
    %v5525 = vunpack.c.h.b16 %v5304
    %v5526 = vunpack.c.l.b16 %v5305
    %v5527 = vunpack.c.h.b16 %v5305
    %v5528 = vunpack.c.l.b16 %v5306
    %v5529 = vunpack.c.h.b16 %v5306
    %v5530 = vunpack.c.l.b16 %v5307
    %v5531 = vunpack.c.h.b16 %v5307
    %v5532 = vunpack.c.l.b16 %v5308
    %v5533 = vunpack.c.h.b16 %v5308
    %v5534 = vunpack.c.l.b16 %v5309
    %v5535 = vunpack.c.h.b16 %v5309
    %v5536 = vunpack.c.l.b16 %v5310
    %v5537 = vunpack.c.h.b16 %v5310
    %v5538 = vunpack.c.l.b16 %v5311
    %v5539 = vunpack.c.h.b16 %v5311
    %v5540 = vunpack.c.l.b16 %v5312
    %v5541 = vunpack.c.h.b16 %v5312
    %v5542 = vunpack.c.l.b16 %v5313
    %v5543 = vunpack.c.h.b16 %v5313
    %v5544 = vunpack.c.l.b16 %v5314
    %v5545 = vunpack.c.h.b16 %v5314
    %v5546 = vunpack.c.l.b16 %v5315
    %v5547 = vunpack.c.h.b16 %v5315
    %v5548 = vunpack.c.l.b16 %v5316
    %v5549 = vunpack.c.h.b16 %v5316
    %v5550 = vunpack.c.l.b16 %v5317
    %v5551 = vunpack.c.h.b16 %v5317
    %v5552 = vunpack.c.l.b16 %v5318
    %v5553 = vunpack.c.h.b16 %v5318
    %v5554 = vunpack.c.l.b16 %v5319
    %v5555 = vunpack.c.h.b16 %v5319
    %v5556 = vunpack.c.l.b16 %v5320
    %v5557 = vunpack.c.h.b16 %v5320
    %v5558 = vunpack.c.l.b16 %v5321
    %v5559 = vunpack.c.h.b16 %v5321
    %v5560 = vunpack.c.l.b16 %v5322
    %v5561 = vunpack.c.h.b16 %v5322
    %v5562 = vunpack.c.l.b16 %v5323
    %v5563 = vunpack.c.h.b16 %v5323
    %v5564 = vunpack.c.l.b16 %v5324
    %v5565 = vunpack.c.h.b16 %v5324
    %v5566 = vunpack.c.l.b16 %v5325
    %v5567 = vunpack.c.h.b16 %v5325
    %v5568 = vunpack.c.l.b16 %v5326
    %v5569 = vunpack.c.h.b16 %v5326
    %v5570 = vunpack.c.l.b16 %v5327
    %v5571 = vunpack.c.h.b16 %v5327
    %v5572 = vunpack.c.l.b16 %v5328
    %v5573 = vunpack.c.h.b16 %v5328
    %v5574 = vunpack.c.l.b16 %v5329
    %v5575 = vunpack.c.h.b16 %v5329
    %v5576 = vunpack.c.l.b16 %v5330
    %v5577 = vunpack.c.h.b16 %v5330
    %v5578 = vunpack.c.l.b16 %v5331
    %v5579 = vunpack.c.h.b16 %v5331
    %v5580 = vunpack.c.l.b16 %v5332
    %v5581 = vunpack.c.h.b16 %v5332
    %v5582 = vunpack.c.l.b16 %v5333
    %v5583 = vunpack.c.h.b16 %v5333
    %v5584 = vunpack.c.l.b16 %v5334
    %v5585 = vunpack.c.h.b16 %v5334
    %v5586 = vunpack.c.l.b16 %v5335
    %v5587 = vunpack.c.h.b16 %v5335
    %v5588 = vunpack.c.l.b16 %v5336
    %v5589 = vunpack.c.h.b16 %v5336
    %v5590 = vunpack.c.l.b16 %v5337
    %v5591 = vunpack.c.h.b16 %v5337
    %v5592 = vunpack.c.l.b16 %v5338
    %v5593 = vunpack.c.h.b16 %v5338
    %v5594 = vunpack.c.l.b16 %v5339
    %v5595 = vunpack.c.h.b16 %v5339
    %v5596 = vunpack.c.l.b16 %v5340
    %v5597 = vunpack.c.h.b16 %v5340
    %v5598 = vunpack.c.l.b16 %v5341
    %v5599 = vunpack.c.h.b16 %v5341
    %v5600 = vunpack.c.l.b16 %v5342
    %v5601 = vunpack.c.h.b16 %v5342
    %v5602 = vunpack.c.l.b16 %v5343
    %v5603 = vunpack.c.h.b16 %v5343
    %v5604 = vunpack.c.l.b16 %v5344
    %v5605 = vunpack.c.h.b16 %v5344
    %v5606 = vunpack.c.l.b16 %v5345
    %v5607 = vunpack.c.h.b16 %v5345
    %v5608 = vunpack.c.l.b16 %v5346
    %v5609 = vunpack.c.h.b16 %v5346
    %v5610 = vpack.c.b16 %v5486, %v5482
    %v5611 = vpack.c.b16 %v5487, %v5483
    %v5612 = vpack.c.b16 %v5488, %v5484
    %v5613 = vpack.c.b16 %v5489, %v5485
    %v5614 = vpack.c.b16 %v5494, %v5490
    %v5615 = vpack.c.b16 %v5495, %v5491
    %v5616 = vpack.c.b16 %v5496, %v5492
    %v5617 = vpack.c.b16 %v5497, %v5493
    %v5618 = vpack.c.b16 %v5502, %v5498
    %v5619 = vpack.c.b16 %v5503, %v5499
    %v5620 = vpack.c.b16 %v5504, %v5500
    %v5621 = vpack.c.b16 %v5505, %v5501
    %v5622 = vpack.c.b16 %v5510, %v5506
    %v5623 = vpack.c.b16 %v5511, %v5507
    %v5624 = vpack.c.b16 %v5512, %v5508
    %v5625 = vpack.c.b16 %v5513, %v5509
    %v5626 = vpack.c.b16 %v5518, %v5514
    %v5627 = vpack.c.b16 %v5519, %v5515
    %v5628 = vpack.c.b16 %v5520, %v5516
    %v5629 = vpack.c.b16 %v5521, %v5517
    %v5630 = vpack.c.b16 %v5526, %v5522
    %v5631 = vpack.c.b16 %v5527, %v5523
    %v5632 = vpack.c.b16 %v5528, %v5524
    %v5633 = vpack.c.b16 %v5529, %v5525
    %v5634 = vpack.c.b16 %v5534, %v5530
    %v5635 = vpack.c.b16 %v5535, %v5531
    %v5636 = vpack.c.b16 %v5536, %v5532
    %v5637 = vpack.c.b16 %v5537, %v5533
    %v5638 = vpack.c.b16 %v5542, %v5538
    %v5639 = vpack.c.b16 %v5543, %v5539
    %v5640 = vpack.c.b16 %v5544, %v5540
    %v5641 = vpack.c.b16 %v5545, %v5541
    %v5642 = vpack.c.b16 %v5550, %v5546
    %v5643 = vpack.c.b16 %v5551, %v5547
    %v5644 = vpack.c.b16 %v5552, %v5548
    %v5645 = vpack.c.b16 %v5553, %v5549
    %v5646 = vpack.c.b16 %v5558, %v5554
    %v5647 = vpack.c.b16 %v5559, %v5555
    %v5648 = vpack.c.b16 %v5560, %v5556
    %v5649 = vpack.c.b16 %v5561, %v5557
    %v5650 = vpack.c.b16 %v5566, %v5562
    %v5651 = vpack.c.b16 %v5567, %v5563
    %v5652 = vpack.c.b16 %v5568, %v5564
    %v5653 = vpack.c.b16 %v5569, %v5565
    %v5654 = vpack.c.b16 %v5574, %v5570
    %v5655 = vpack.c.b16 %v5575, %v5571
    %v5656 = vpack.c.b16 %v5576, %v5572
    %v5657 = vpack.c.b16 %v5577, %v5573
    %v5658 = vpack.c.b16 %v5582, %v5578
    %v5659 = vpack.c.b16 %v5583, %v5579
    %v5660 = vpack.c.b16 %v5584, %v5580
    %v5661 = vpack.c.b16 %v5585, %v5581
    %v5662 = vpack.c.b16 %v5590, %v5586
    %v5663 = vpack.c.b16 %v5591, %v5587
    %v5664 = vpack.c.b16 %v5592, %v5588
    %v5665 = vpack.c.b16 %v5593, %v5589
    %v5666 = vpack.c.b16 %v5598, %v5594
    %v5667 = vpack.c.b16 %v5599, %v5595
    %v5668 = vpack.c.b16 %v5600, %v5596
    %v5669 = vpack.c.b16 %v5601, %v5597
    %v5670 = vpack.c.b16 %v5606, %v5602
    %v5671 = vpack.c.b16 %v5607, %v5603
    %v5672 = vpack.c.b16 %v5608, %v5604
    %v5673 = vpack.c.b16 %v5609, %v5605
    %5738 = vmatprep.subr.bf16.mxu0 %v5611
    %5739 = vmatpush1.bf16.msra.mxu0 %v5610
    %5740 = vmatprep.subr.bf16.mxu0 %v5615
    %5741 = vmatpush1.bf16.msra.mxu0 %v5614
    %5742 = vmatprep.subr.bf16.mxu0 %v5619
    %5743 = vmatpush1.bf16.msra.mxu0 %v5618
    %5744 = vmatprep.subr.bf16.mxu0 %v5623
    %5745 = vmatpush1.bf16.msra.mxu0 %v5622
    %5746 = vmatprep.subr.bf16.mxu0 %v5627
    %5747 = vmatpush1.bf16.msra.mxu0 %v5626
    %5748 = vmatprep.subr.bf16.mxu0 %v5631
    %5749 = vmatpush1.bf16.msra.mxu0 %v5630
    %5750 = vmatprep.subr.bf16.mxu0 %v5635
    %5751 = vmatpush1.bf16.msra.mxu0 %v5634
    %5752 = vmatprep.subr.bf16.mxu0 %v5639
    %5753 = vmatpush1.bf16.msra.mxu0 %v5638
    %5754 = vmatprep.subr.bf16.mxu0 %v5643
    %5755 = vmatpush1.bf16.msra.mxu0 %v5642
    %5756 = vmatprep.subr.bf16.mxu0 %v5647
    %5757 = vmatpush1.bf16.msra.mxu0 %v5646
    %5758 = vmatprep.subr.bf16.mxu0 %v5651
    %5759 = vmatpush1.bf16.msra.mxu0 %v5650
    %5760 = vmatprep.subr.bf16.mxu0 %v5655
    %5761 = vmatpush1.bf16.msra.mxu0 %v5654
    %5762 = vmatprep.subr.bf16.mxu0 %v5659
    %5763 = vmatpush1.bf16.msra.mxu0 %v5658
    %5764 = vmatprep.subr.bf16.mxu0 %v5663
    %5765 = vmatpush1.bf16.msra.mxu0 %v5662
    %5766 = vmatprep.subr.bf16.mxu0 %v5667
    %5767 = vmatpush1.bf16.msra.mxu0 %v5666
    %5768 = vmatprep.subr.bf16.mxu0 %v5671
    %5769 = vmatpush1.bf16.msra.mxu0 %v5670
    %5770 = vmatprep.mubr.bf16.mxu0 %v5415
    %5771 = vmatmul.mubr.bf16.gmra.mrb[0].mxu0 %v5414
    %v5772 = vpop.f32.mrb[0].mxu0
    %v5773 = vadd.f32 0.0, %v5772
    %v5774 = vpop.f32.mrb[0].mxu0
    %v5775 = vadd.f32 0.0, %v5774
    %v5776 = vpop.f32.mrb[0].mxu0
    %v5777 = vpop.f32.mrb[0].mxu0
    %5778 = vdwg.mxu0
    %5779 = vmatprep.subr.bf16.mxu0 %v5613
    %5780 = vmatpush1.bf16.msra.mxu0 %v5612
    %5781 = vmatprep.subr.bf16.mxu0 %v5617
    %5782 = vmatpush1.bf16.msra.mxu0 %v5616
    %5783 = vmatprep.subr.bf16.mxu0 %v5621
    %5784 = vmatpush1.bf16.msra.mxu0 %v5620
    %5785 = vmatprep.subr.bf16.mxu0 %v5625
    %5786 = vmatpush1.bf16.msra.mxu0 %v5624
    %5787 = vmatprep.subr.bf16.mxu0 %v5629
    %5788 = vmatpush1.bf16.msra.mxu0 %v5628
    %5789 = vmatprep.subr.bf16.mxu0 %v5633
    %5790 = vmatpush1.bf16.msra.mxu0 %v5632
    %5791 = vmatprep.subr.bf16.mxu0 %v5637
    %5792 = vmatpush1.bf16.msra.mxu0 %v5636
    %5793 = vmatprep.subr.bf16.mxu0 %v5641
    %5794 = vmatpush1.bf16.msra.mxu0 %v5640
    %5795 = vmatprep.subr.bf16.mxu0 %v5645
    %5796 = vmatpush1.bf16.msra.mxu0 %v5644
    %5797 = vmatprep.subr.bf16.mxu0 %v5649
    %5798 = vmatpush1.bf16.msra.mxu0 %v5648
    %5799 = vmatprep.subr.bf16.mxu0 %v5653
    %5800 = vmatpush1.bf16.msra.mxu0 %v5652
    %5801 = vmatprep.subr.bf16.mxu0 %v5657
    %5802 = vmatpush1.bf16.msra.mxu0 %v5656
    %5803 = vmatprep.subr.bf16.mxu0 %v5661
    %5804 = vmatpush1.bf16.msra.mxu0 %v5660
    %5805 = vmatprep.subr.bf16.mxu0 %v5665
    %5806 = vmatpush1.bf16.msra.mxu0 %v5664
    %5807 = vmatprep.subr.bf16.mxu0 %v5669
    %5808 = vmatpush1.bf16.msra.mxu0 %v5668
    %5809 = vmatprep.subr.bf16.mxu0 %v5673
    %5810 = vmatpush1.bf16.msra.mxu0 %v5672
    %5811 = vmatprep.mubr.bf16.mxu0 %v5415
    %5812 = vmatmul.mubr.bf16.gmra.mrb[0].mxu0 %v5414
    %v5813 = vpop.f32.mrb[0].mxu0
    %v5814 = vadd.f32 0.0, %v5813
    %v5815 = vpop.f32.mrb[0].mxu0
    %v5816 = vadd.f32 0.0, %v5815
    %v5817 = vpop.f32.mrb[0].mxu0
    %v5818 = vpop.f32.mrb[0].mxu0
    %5819 = vdwg.mxu0
    %v5836 = vunpack.c.l.b16 %v5010
    %v5837 = vunpack.c.l.b16 %v5011
    %v5838 = vunpack.c.l.b16 %v5012
    %v5839 = vunpack.c.l.b16 %v5013
    %v5840 = vunpack.c.l.b16 %v5014
    %v5841 = vunpack.c.l.b16 %v5015
    %v5842 = vunpack.c.l.b16 %v5016
    %v5843 = vunpack.c.l.b16 %v5017
    %v5844 = vunpack.c.l.b16 %v5018
    %v5845 = vunpack.c.l.b16 %v5019
    %v5846 = vunpack.c.l.b16 %v5020
    %v5847 = vunpack.c.l.b16 %v5021
    %v5848 = vunpack.c.l.b16 %v5022
    %v5849 = vunpack.c.l.b16 %v5023
    %v5850 = vunpack.c.l.b16 %v5024
    %v5851 = vunpack.c.l.b16 %v5025
    %v5852 = vrot.slane %v5838, 7
    %v5853 = vsel %vm5380, %v5852, %v5836
    %v5854 = vrot.slane %v5840, 6
    %v5855 = vsel %vm5383, %v5854, %v5853
    %v5856 = vrot.slane %v5842, 5
    %v5857 = vsel %vm5386, %v5856, %v5855
    %v5858 = vrot.slane %v5844, 4
    %v5859 = vsel %vm5389, %v5858, %v5857
    %v5860 = vrot.slane %v5846, 3
    %v5861 = vsel %vm5392, %v5860, %v5859
    %v5862 = vrot.slane %v5848, 2
    %v5863 = vsel %vm5395, %v5862, %v5861
    %v5864 = vrot.slane %v5850, 1
    %v5865 = vsel %vm5398, %v5864, %v5863
    %v5866 = vrot.slane %v5839, 7
    %v5867 = vsel %vm5380, %v5866, %v5837
    %v5868 = vrot.slane %v5841, 6
    %v5869 = vsel %vm5383, %v5868, %v5867
    %v5870 = vrot.slane %v5843, 5
    %v5871 = vsel %vm5386, %v5870, %v5869
    %v5872 = vrot.slane %v5845, 4
    %v5873 = vsel %vm5389, %v5872, %v5871
    %v5874 = vrot.slane %v5847, 3
    %v5875 = vsel %vm5392, %v5874, %v5873
    %v5876 = vrot.slane %v5849, 2
    %v5877 = vsel %vm5395, %v5876, %v5875
    %v5878 = vrot.slane %v5851, 1
    %v5879 = vsel %vm5398, %v5878, %v5877
    %v5880 = vpack.c.b16 %v5865, %v5865
    %v5881 = vpack.c.b16 %v5879, %v5879
    %v5948 = vunpack.c.l.b16 %v5026
    %v5949 = vunpack.c.h.b16 %v5026
    %v5950 = vunpack.c.l.b16 %v5027
    %v5951 = vunpack.c.h.b16 %v5027
    %v5952 = vunpack.c.l.b16 %v5028
    %v5953 = vunpack.c.h.b16 %v5028
    %v5954 = vunpack.c.l.b16 %v5029
    %v5955 = vunpack.c.h.b16 %v5029
    %v5956 = vunpack.c.l.b16 %v5030
    %v5957 = vunpack.c.h.b16 %v5030
    %v5958 = vunpack.c.l.b16 %v5031
    %v5959 = vunpack.c.h.b16 %v5031
    %v5960 = vunpack.c.l.b16 %v5032
    %v5961 = vunpack.c.h.b16 %v5032
    %v5962 = vunpack.c.l.b16 %v5033
    %v5963 = vunpack.c.h.b16 %v5033
    %v5964 = vunpack.c.l.b16 %v5034
    %v5965 = vunpack.c.h.b16 %v5034
    %v5966 = vunpack.c.l.b16 %v5035
    %v5967 = vunpack.c.h.b16 %v5035
    %v5968 = vunpack.c.l.b16 %v5036
    %v5969 = vunpack.c.h.b16 %v5036
    %v5970 = vunpack.c.l.b16 %v5037
    %v5971 = vunpack.c.h.b16 %v5037
    %v5972 = vunpack.c.l.b16 %v5038
    %v5973 = vunpack.c.h.b16 %v5038
    %v5974 = vunpack.c.l.b16 %v5039
    %v5975 = vunpack.c.h.b16 %v5039
    %v5976 = vunpack.c.l.b16 %v5040
    %v5977 = vunpack.c.h.b16 %v5040
    %v5978 = vunpack.c.l.b16 %v5041
    %v5979 = vunpack.c.h.b16 %v5041
    %v5980 = vunpack.c.l.b16 %v5042
    %v5981 = vunpack.c.h.b16 %v5042
    %v5982 = vunpack.c.l.b16 %v5043
    %v5983 = vunpack.c.h.b16 %v5043
    %v5984 = vunpack.c.l.b16 %v5044
    %v5985 = vunpack.c.h.b16 %v5044
    %v5986 = vunpack.c.l.b16 %v5045
    %v5987 = vunpack.c.h.b16 %v5045
    %v5988 = vunpack.c.l.b16 %v5046
    %v5989 = vunpack.c.h.b16 %v5046
    %v5990 = vunpack.c.l.b16 %v5047
    %v5991 = vunpack.c.h.b16 %v5047
    %v5992 = vunpack.c.l.b16 %v5048
    %v5993 = vunpack.c.h.b16 %v5048
    %v5994 = vunpack.c.l.b16 %v5049
    %v5995 = vunpack.c.h.b16 %v5049
    %v5996 = vunpack.c.l.b16 %v5050
    %v5997 = vunpack.c.h.b16 %v5050
    %v5998 = vunpack.c.l.b16 %v5051
    %v5999 = vunpack.c.h.b16 %v5051
    %v6000 = vunpack.c.l.b16 %v5052
    %v6001 = vunpack.c.h.b16 %v5052
    %v6002 = vunpack.c.l.b16 %v5053
    %v6003 = vunpack.c.h.b16 %v5053
    %v6004 = vunpack.c.l.b16 %v5054
    %v6005 = vunpack.c.h.b16 %v5054
    %v6006 = vunpack.c.l.b16 %v5055
    %v6007 = vunpack.c.h.b16 %v5055
    %v6008 = vunpack.c.l.b16 %v5056
    %v6009 = vunpack.c.h.b16 %v5056
    %v6010 = vunpack.c.l.b16 %v5057
    %v6011 = vunpack.c.h.b16 %v5057
    %v6012 = vunpack.c.l.b16 %v5058
    %v6013 = vunpack.c.h.b16 %v5058
    %v6014 = vunpack.c.l.b16 %v5059
    %v6015 = vunpack.c.h.b16 %v5059
    %v6016 = vunpack.c.l.b16 %v5060
    %v6017 = vunpack.c.h.b16 %v5060
    %v6018 = vunpack.c.l.b16 %v5061
    %v6019 = vunpack.c.h.b16 %v5061
    %v6020 = vunpack.c.l.b16 %v5062
    %v6021 = vunpack.c.h.b16 %v5062
    %v6022 = vunpack.c.l.b16 %v5063
    %v6023 = vunpack.c.h.b16 %v5063
    %v6024 = vunpack.c.l.b16 %v5064
    %v6025 = vunpack.c.h.b16 %v5064
    %v6026 = vunpack.c.l.b16 %v5065
    %v6027 = vunpack.c.h.b16 %v5065
    %v6028 = vunpack.c.l.b16 %v5066
    %v6029 = vunpack.c.h.b16 %v5066
    %v6030 = vunpack.c.l.b16 %v5067
    %v6031 = vunpack.c.h.b16 %v5067
    %v6032 = vunpack.c.l.b16 %v5068
    %v6033 = vunpack.c.h.b16 %v5068
    %v6034 = vunpack.c.l.b16 %v5069
    %v6035 = vunpack.c.h.b16 %v5069
    %v6036 = vunpack.c.l.b16 %v5070
    %v6037 = vunpack.c.h.b16 %v5070
    %v6038 = vunpack.c.l.b16 %v5071
    %v6039 = vunpack.c.h.b16 %v5071
    %v6040 = vunpack.c.l.b16 %v5072
    %v6041 = vunpack.c.h.b16 %v5072
    %v6042 = vunpack.c.l.b16 %v5073
    %v6043 = vunpack.c.h.b16 %v5073
    %v6044 = vunpack.c.l.b16 %v5074
    %v6045 = vunpack.c.h.b16 %v5074
    %v6046 = vunpack.c.l.b16 %v5075
    %v6047 = vunpack.c.h.b16 %v5075
    %v6048 = vunpack.c.l.b16 %v5076
    %v6049 = vunpack.c.h.b16 %v5076
    %v6050 = vunpack.c.l.b16 %v5077
    %v6051 = vunpack.c.h.b16 %v5077
    %v6052 = vunpack.c.l.b16 %v5078
    %v6053 = vunpack.c.h.b16 %v5078
    %v6054 = vunpack.c.l.b16 %v5079
    %v6055 = vunpack.c.h.b16 %v5079
    %v6056 = vunpack.c.l.b16 %v5080
    %v6057 = vunpack.c.h.b16 %v5080
    %v6058 = vunpack.c.l.b16 %v5081
    %v6059 = vunpack.c.h.b16 %v5081
    %v6060 = vunpack.c.l.b16 %v5082
    %v6061 = vunpack.c.h.b16 %v5082
    %v6062 = vunpack.c.l.b16 %v5083
    %v6063 = vunpack.c.h.b16 %v5083
    %v6064 = vunpack.c.l.b16 %v5084
    %v6065 = vunpack.c.h.b16 %v5084
    %v6066 = vunpack.c.l.b16 %v5085
    %v6067 = vunpack.c.h.b16 %v5085
    %v6068 = vunpack.c.l.b16 %v5086
    %v6069 = vunpack.c.h.b16 %v5086
    %v6070 = vunpack.c.l.b16 %v5087
    %v6071 = vunpack.c.h.b16 %v5087
    %v6072 = vunpack.c.l.b16 %v5088
    %v6073 = vunpack.c.h.b16 %v5088
    %v6074 = vunpack.c.l.b16 %v5089
    %v6075 = vunpack.c.h.b16 %v5089
    %v6076 = vpack.c.b16 %v5952, %v5948
    %v6077 = vpack.c.b16 %v5953, %v5949
    %v6078 = vpack.c.b16 %v5954, %v5950
    %v6079 = vpack.c.b16 %v5955, %v5951
    %v6080 = vpack.c.b16 %v5960, %v5956
    %v6081 = vpack.c.b16 %v5961, %v5957
    %v6082 = vpack.c.b16 %v5962, %v5958
    %v6083 = vpack.c.b16 %v5963, %v5959
    %v6084 = vpack.c.b16 %v5968, %v5964
    %v6085 = vpack.c.b16 %v5969, %v5965
    %v6086 = vpack.c.b16 %v5970, %v5966
    %v6087 = vpack.c.b16 %v5971, %v5967
    %v6088 = vpack.c.b16 %v5976, %v5972
    %v6089 = vpack.c.b16 %v5977, %v5973
    %v6090 = vpack.c.b16 %v5978, %v5974
    %v6091 = vpack.c.b16 %v5979, %v5975
    %v6092 = vpack.c.b16 %v5984, %v5980
    %v6093 = vpack.c.b16 %v5985, %v5981
    %v6094 = vpack.c.b16 %v5986, %v5982
    %v6095 = vpack.c.b16 %v5987, %v5983
    %v6096 = vpack.c.b16 %v5992, %v5988
    %v6097 = vpack.c.b16 %v5993, %v5989
    %v6098 = vpack.c.b16 %v5994, %v5990
    %v6099 = vpack.c.b16 %v5995, %v5991
    %v6100 = vpack.c.b16 %v6000, %v5996
    %v6101 = vpack.c.b16 %v6001, %v5997
    %v6102 = vpack.c.b16 %v6002, %v5998
    %v6103 = vpack.c.b16 %v6003, %v5999
    %v6104 = vpack.c.b16 %v6008, %v6004
    %v6105 = vpack.c.b16 %v6009, %v6005
    %v6106 = vpack.c.b16 %v6010, %v6006
    %v6107 = vpack.c.b16 %v6011, %v6007
    %v6108 = vpack.c.b16 %v6016, %v6012
    %v6109 = vpack.c.b16 %v6017, %v6013
    %v6110 = vpack.c.b16 %v6018, %v6014
    %v6111 = vpack.c.b16 %v6019, %v6015
    %v6112 = vpack.c.b16 %v6024, %v6020
    %v6113 = vpack.c.b16 %v6025, %v6021
    %v6114 = vpack.c.b16 %v6026, %v6022
    %v6115 = vpack.c.b16 %v6027, %v6023
    %v6116 = vpack.c.b16 %v6032, %v6028
    %v6117 = vpack.c.b16 %v6033, %v6029
    %v6118 = vpack.c.b16 %v6034, %v6030
    %v6119 = vpack.c.b16 %v6035, %v6031
    %v6120 = vpack.c.b16 %v6040, %v6036
    %v6121 = vpack.c.b16 %v6041, %v6037
    %v6122 = vpack.c.b16 %v6042, %v6038
    %v6123 = vpack.c.b16 %v6043, %v6039
    %v6124 = vpack.c.b16 %v6048, %v6044
    %v6125 = vpack.c.b16 %v6049, %v6045
    %v6126 = vpack.c.b16 %v6050, %v6046
    %v6127 = vpack.c.b16 %v6051, %v6047
    %v6128 = vpack.c.b16 %v6056, %v6052
    %v6129 = vpack.c.b16 %v6057, %v6053
    %v6130 = vpack.c.b16 %v6058, %v6054
    %v6131 = vpack.c.b16 %v6059, %v6055
    %v6132 = vpack.c.b16 %v6064, %v6060
    %v6133 = vpack.c.b16 %v6065, %v6061
    %v6134 = vpack.c.b16 %v6066, %v6062
    %v6135 = vpack.c.b16 %v6067, %v6063
    %v6136 = vpack.c.b16 %v6072, %v6068
    %v6137 = vpack.c.b16 %v6073, %v6069
    %v6138 = vpack.c.b16 %v6074, %v6070
    %v6139 = vpack.c.b16 %v6075, %v6071
    %6204 = vmatprep.subr.bf16.mxu0 %v6077
    %6205 = vmatpush1.bf16.msra.mxu0 %v6076
    %6206 = vmatprep.subr.bf16.mxu0 %v6081
    %6207 = vmatpush1.bf16.msra.mxu0 %v6080
    %6208 = vmatprep.subr.bf16.mxu0 %v6085
    %6209 = vmatpush1.bf16.msra.mxu0 %v6084
    %6210 = vmatprep.subr.bf16.mxu0 %v6089
    %6211 = vmatpush1.bf16.msra.mxu0 %v6088
    %6212 = vmatprep.subr.bf16.mxu0 %v6093
    %6213 = vmatpush1.bf16.msra.mxu0 %v6092
    %6214 = vmatprep.subr.bf16.mxu0 %v6097
    %6215 = vmatpush1.bf16.msra.mxu0 %v6096
    %6216 = vmatprep.subr.bf16.mxu0 %v6101
    %6217 = vmatpush1.bf16.msra.mxu0 %v6100
    %6218 = vmatprep.subr.bf16.mxu0 %v6105
    %6219 = vmatpush1.bf16.msra.mxu0 %v6104
    %6220 = vmatprep.subr.bf16.mxu0 %v6109
    %6221 = vmatpush1.bf16.msra.mxu0 %v6108
    %6222 = vmatprep.subr.bf16.mxu0 %v6113
    %6223 = vmatpush1.bf16.msra.mxu0 %v6112
    %6224 = vmatprep.subr.bf16.mxu0 %v6117
    %6225 = vmatpush1.bf16.msra.mxu0 %v6116
    %6226 = vmatprep.subr.bf16.mxu0 %v6121
    %6227 = vmatpush1.bf16.msra.mxu0 %v6120
    %6228 = vmatprep.subr.bf16.mxu0 %v6125
    %6229 = vmatpush1.bf16.msra.mxu0 %v6124
    %6230 = vmatprep.subr.bf16.mxu0 %v6129
    %6231 = vmatpush1.bf16.msra.mxu0 %v6128
    %6232 = vmatprep.subr.bf16.mxu0 %v6133
    %6233 = vmatpush1.bf16.msra.mxu0 %v6132
    %6234 = vmatprep.subr.bf16.mxu0 %v6137
    %6235 = vmatpush1.bf16.msra.mxu0 %v6136
    %6236 = vmatprep.mubr.bf16.mxu0 %v5881
    %6237 = vmatmul.mubr.bf16.gmra.mrb[0].mxu0 %v5880
    %v6238 = vpop.f32.mrb[0].mxu0
    %v6239 = vadd.f32 %v5773, %v6238
    %v6240 = vpop.f32.mrb[0].mxu0
    %v6241 = vadd.f32 %v5775, %v6240
    %v6242 = vpop.f32.mrb[0].mxu0
    %v6243 = vpop.f32.mrb[0].mxu0
    %6244 = vdwg.mxu0
    %6245 = vmatprep.subr.bf16.mxu0 %v6079
    %6246 = vmatpush1.bf16.msra.mxu0 %v6078
    %6247 = vmatprep.subr.bf16.mxu0 %v6083
    %6248 = vmatpush1.bf16.msra.mxu0 %v6082
    %6249 = vmatprep.subr.bf16.mxu0 %v6087
    %6250 = vmatpush1.bf16.msra.mxu0 %v6086
    %6251 = vmatprep.subr.bf16.mxu0 %v6091
    %6252 = vmatpush1.bf16.msra.mxu0 %v6090
    %6253 = vmatprep.subr.bf16.mxu0 %v6095
    %6254 = vmatpush1.bf16.msra.mxu0 %v6094
    %6255 = vmatprep.subr.bf16.mxu0 %v6099
    %6256 = vmatpush1.bf16.msra.mxu0 %v6098
    %6257 = vmatprep.subr.bf16.mxu0 %v6103
    %6258 = vmatpush1.bf16.msra.mxu0 %v6102
    %6259 = vmatprep.subr.bf16.mxu0 %v6107
    %6260 = vmatpush1.bf16.msra.mxu0 %v6106
    %6261 = vmatprep.subr.bf16.mxu0 %v6111
    %6262 = vmatpush1.bf16.msra.mxu0 %v6110
    %6263 = vmatprep.subr.bf16.mxu0 %v6115
    %6264 = vmatpush1.bf16.msra.mxu0 %v6114
    %6265 = vmatprep.subr.bf16.mxu0 %v6119
    %6266 = vmatpush1.bf16.msra.mxu0 %v6118
    %6267 = vmatprep.subr.bf16.mxu0 %v6123
    %6268 = vmatpush1.bf16.msra.mxu0 %v6122
    %6269 = vmatprep.subr.bf16.mxu0 %v6127
    %6270 = vmatpush1.bf16.msra.mxu0 %v6126
    %6271 = vmatprep.subr.bf16.mxu0 %v6131
    %6272 = vmatpush1.bf16.msra.mxu0 %v6130
    %6273 = vmatprep.subr.bf16.mxu0 %v6135
    %6274 = vmatpush1.bf16.msra.mxu0 %v6134
    %6275 = vmatprep.subr.bf16.mxu0 %v6139
    %6276 = vmatpush1.bf16.msra.mxu0 %v6138
    %6277 = vmatprep.mubr.bf16.mxu0 %v5881
    %6278 = vmatmul.mubr.bf16.gmra.mrb[0].mxu0 %v5880
    %v6279 = vpop.f32.mrb[0].mxu0
    %v6280 = vadd.f32 %v5814, %v6279
    %v6281 = vpop.f32.mrb[0].mxu0
    %v6282 = vadd.f32 %v5816, %v6281
    %v6283 = vpop.f32.mrb[0].mxu0
    %v6284 = vpop.f32.mrb[0].mxu0
    %6285 = vdwg.mxu0
    %s6286 = scalar_lea.vmem [#allocation3], 4
    %v6287 = vld [vmem:[%s6286] ss:$8 sm:$0xf]
    %s6288 = scalar_lea.vmem [#allocation3], 36
    %v6289 = vld [vmem:[%s6288] ss:$8 sm:$0xf]
    %s6290 = scalar_lea.vmem [#allocation3], 68
    %v6291 = vld [vmem:[%s6290] ss:$8 sm:$0xf]
    %s6292 = scalar_lea.vmem [#allocation3], 100
    %v6293 = vld [vmem:[%s6292] ss:$8 sm:$0xf]
    %s6294 = scalar_lea.vmem [#allocation3], 132
    %v6295 = vld [vmem:[%s6294] ss:$8 sm:$0xf]
    %s6296 = scalar_lea.vmem [#allocation3], 164
    %v6297 = vld [vmem:[%s6296] ss:$8 sm:$0xf]
    %s6298 = scalar_lea.vmem [#allocation3], 196
    %v6299 = vld [vmem:[%s6298] ss:$8 sm:$0xf]
    %s6300 = scalar_lea.vmem [#allocation3], 228
    %v6301 = vld [vmem:[%s6300] ss:$8 sm:$0xf]
    %s6302 = scalar_lea.vmem [#allocation3], 5
    %v6303 = vld [vmem:[%s6302] ss:$8 sm:$0xf]
    %s6304 = scalar_lea.vmem [#allocation3], 37
    %v6305 = vld [vmem:[%s6304] ss:$8 sm:$0xf]
    %s6306 = scalar_lea.vmem [#allocation3], 69
    %v6307 = vld [vmem:[%s6306] ss:$8 sm:$0xf]
    %s6308 = scalar_lea.vmem [#allocation3], 101
    %v6309 = vld [vmem:[%s6308] ss:$8 sm:$0xf]
    %s6310 = scalar_lea.vmem [#allocation3], 133
    %v6311 = vld [vmem:[%s6310] ss:$8 sm:$0xf]
    %s6312 = scalar_lea.vmem [#allocation3], 165
    %v6313 = vld [vmem:[%s6312] ss:$8 sm:$0xf]
    %s6314 = scalar_lea.vmem [#allocation3], 197
    %v6315 = vld [vmem:[%s6314] ss:$8 sm:$0xf]
    %s6316 = scalar_lea.vmem [#allocation3], 229
    %v6317 = vld [vmem:[%s6316] ss:$8 sm:$0xf]
    %v6318 = vmax.f32 %v6287, %v6303
    %v6319 = vmax.f32 %v6289, %v6305
    %v6320 = vmax.f32 %v6291, %v6307
    %v6321 = vmax.f32 %v6293, %v6309
    %v6322 = vmax.f32 %v6295, %v6311
    %v6323 = vmax.f32 %v6297, %v6313
    %v6324 = vmax.f32 %v6299, %v6315
    %v6325 = vmax.f32 %v6301, %v6317
    %v6334 = vrot.slane %v6318, 2
    %v6335 = vrot.slane %v6319, 2
    %v6336 = vrot.slane %v6320, 2
    %v6337 = vrot.slane %v6321, 2
    %v6338 = vrot.slane %v6322, 2
    %v6339 = vrot.slane %v6323, 2
    %v6340 = vrot.slane %v6324, 2
    %v6341 = vrot.slane %v6325, 2
    %v6350 = vmax.f32 %v6318, %v6334
    %v6351 = vmax.f32 %v6319, %v6335
    %v6352 = vmax.f32 %v6320, %v6336
    %v6353 = vmax.f32 %v6321, %v6337
    %v6354 = vmax.f32 %v6322, %v6338
    %v6355 = vmax.f32 %v6323, %v6339
    %v6356 = vmax.f32 %v6324, %v6340
    %v6357 = vmax.f32 %v6325, %v6341
    %v6358 = vadd.f32 %v6350, %v4872
    %v6359 = vadd.f32 %v6351, %v4886
    %v6360 = vadd.f32 %v6352, %v4894
    %v6361 = vadd.f32 %v6353, %v4896
    %v6362 = vadd.f32 %v6354, %v4879
    %v6363 = vadd.f32 %v6355, %v4893
    %v6364 = vadd.f32 %v6356, %v4895
    %v6365 = vadd.f32 %v6357, %v4897
    %v6366 = vmax.f32 %v6358, 0.0
    %v6367 = vmax.f32 %v6359, 0.0
    %v6368 = vmax.f32 %v6360, 0.0
    %v6369 = vmax.f32 %v6361, 0.0
    %v6370 = vmax.f32 %v6362, 0.0
    %v6371 = vmax.f32 %v6363, 0.0
    %v6372 = vmax.f32 %v6364, 0.0
    %v6373 = vmax.f32 %v6365, 0.0
    %v6382 = vlaneseq
    %v6383 = vshrl.u32 %v6382, 7
    %v6384 = vsub.s32 0, %v6383
    %v6385 = vrot.slane %v6366, %v6384
    %v6386 = vlaneseq
    %v6387 = vshrl.u32 %v6386, 7
    %v6388 = vsub.s32 1, %v6387
    %v6389 = vrot.slane %v6366, %v6388
    %v6390 = vlaneseq
    %v6391 = vshrl.u32 %v6390, 7
    %v6392 = vsub.s32 0, %v6391
    %v6393 = vrot.slane %v6367, %v6392
    %v6394 = vlaneseq
    %v6395 = vshrl.u32 %v6394, 7
    %v6396 = vsub.s32 1, %v6395
    %v6397 = vrot.slane %v6367, %v6396
    %v6398 = vlaneseq
    %v6399 = vshrl.u32 %v6398, 7
    %v6400 = vsub.s32 0, %v6399
    %v6401 = vrot.slane %v6368, %v6400
    %v6402 = vlaneseq
    %v6403 = vshrl.u32 %v6402, 7
    %v6404 = vsub.s32 1, %v6403
    %v6405 = vrot.slane %v6368, %v6404
    %v6406 = vlaneseq
    %v6407 = vshrl.u32 %v6406, 7
    %v6408 = vsub.s32 0, %v6407
    %v6409 = vrot.slane %v6369, %v6408
    %v6410 = vlaneseq
    %v6411 = vshrl.u32 %v6410, 7
    %v6412 = vsub.s32 1, %v6411
    %v6413 = vrot.slane %v6369, %v6412
    %v6414 = vlaneseq
    %v6415 = vshrl.u32 %v6414, 7
    %v6416 = vsub.s32 0, %v6415
    %v6417 = vrot.slane %v6370, %v6416
    %v6418 = vlaneseq
    %v6419 = vshrl.u32 %v6418, 7
    %v6420 = vsub.s32 1, %v6419
    %v6421 = vrot.slane %v6370, %v6420
    %v6422 = vlaneseq
    %v6423 = vshrl.u32 %v6422, 7
    %v6424 = vsub.s32 0, %v6423
    %v6425 = vrot.slane %v6371, %v6424
    %v6426 = vlaneseq
    %v6427 = vshrl.u32 %v6426, 7
    %v6428 = vsub.s32 1, %v6427
    %v6429 = vrot.slane %v6371, %v6428
    %v6430 = vlaneseq
    %v6431 = vshrl.u32 %v6430, 7
    %v6432 = vsub.s32 0, %v6431
    %v6433 = vrot.slane %v6372, %v6432
    %v6434 = vlaneseq
    %v6435 = vshrl.u32 %v6434, 7
    %v6436 = vsub.s32 1, %v6435
    %v6437 = vrot.slane %v6372, %v6436
    %v6438 = vlaneseq
    %v6439 = vshrl.u32 %v6438, 7
    %v6440 = vsub.s32 0, %v6439
    %v6441 = vrot.slane %v6373, %v6440
    %v6442 = vlaneseq
    %v6443 = vshrl.u32 %v6442, 7
    %v6444 = vsub.s32 1, %v6443
    %v6445 = vrot.slane %v6373, %v6444
    %v6462 = vpack.c.bf16 %v6385, %v6385
    %v6463 = vpack.c.bf16 %v6389, %v6389
    %v6464 = vpack.c.bf16 %v6393, %v6393
    %v6465 = vpack.c.bf16 %v6397, %v6397
    %v6466 = vpack.c.bf16 %v6401, %v6401
    %v6467 = vpack.c.bf16 %v6405, %v6405
    %v6468 = vpack.c.bf16 %v6409, %v6409
    %v6469 = vpack.c.bf16 %v6413, %v6413
    %v6470 = vpack.c.bf16 %v6417, %v6417
    %v6471 = vpack.c.bf16 %v6421, %v6421
    %v6472 = vpack.c.bf16 %v6425, %v6425
    %v6473 = vpack.c.bf16 %v6429, %v6429
    %v6474 = vpack.c.bf16 %v6433, %v6433
    %v6475 = vpack.c.bf16 %v6437, %v6437
    %v6476 = vpack.c.bf16 %v6441, %v6441
    %v6477 = vpack.c.bf16 %v6445, %v6445
    %s6478 = scalar_lea.vmem %s5, 1024
    %v6479 = vld [vmem:[%s6478] sm:$0xff]
    %v6480 = vld [vmem:[%s6478 + $0x8] sm:$0xff]
    %v6481 = vld [vmem:[%s6478 + $0x10] sm:$0xff]
    %v6482 = vld [vmem:[%s6478 + $0x18] sm:$0xff]
    %v6483 = vld [vmem:[%s6478 + $0x20] sm:$0xff]
    %v6484 = vld [vmem:[%s6478 + $0x28] sm:$0xff]
    %v6485 = vld [vmem:[%s6478 + $0x30] sm:$0xff]
    %v6486 = vld [vmem:[%s6478 + $0x38] sm:$0xff]
    %v6487 = vld [vmem:[%s6478 + $0x40] sm:$0xff]
    %v6488 = vld [vmem:[%s6478 + $0x48] sm:$0xff]
    %v6489 = vld [vmem:[%s6478 + $0x50] sm:$0xff]
    %v6490 = vld [vmem:[%s6478 + $0x58] sm:$0xff]
    %v6491 = vld [vmem:[%s6478 + $0x60] sm:$0xff]
    %v6492 = vld [vmem:[%s6478 + $0x68] sm:$0xff]
    %v6493 = vld [vmem:[%s6478 + $0x70] sm:$0xff]
    %v6494 = vld [vmem:[%s6478 + $0x78] sm:$0xff]
    %v6495 = vld [vmem:[%s6478 + $0x80] sm:$0xff]
    %v6496 = vld [vmem:[%s6478 + $0x88] sm:$0xff]
    %v6497 = vld [vmem:[%s6478 + $0x90] sm:$0xff]
    %v6498 = vld [vmem:[%s6478 + $0x98] sm:$0xff]
    %v6499 = vld [vmem:[%s6478 + $0xa0] sm:$0xff]
    %v6500 = vld [vmem:[%s6478 + $0xa8] sm:$0xff]
    %v6501 = vld [vmem:[%s6478 + $0xb0] sm:$0xff]
    %v6502 = vld [vmem:[%s6478 + $0xb8] sm:$0xff]
    %v6503 = vld [vmem:[%s6478 + $0xc0] sm:$0xff]
    %v6504 = vld [vmem:[%s6478 + $0xc8] sm:$0xff]
    %v6505 = vld [vmem:[%s6478 + $0xd0] sm:$0xff]
    %v6506 = vld [vmem:[%s6478 + $0xd8] sm:$0xff]
    %v6507 = vld [vmem:[%s6478 + $0xe0] sm:$0xff]
    %v6508 = vld [vmem:[%s6478 + $0xe8] sm:$0xff]
    %v6509 = vld [vmem:[%s6478 + $0xf0] sm:$0xff]
    %v6510 = vld [vmem:[%s6478 + $0xf8] sm:$0xff]
    %v6511 = vld [vmem:[%s6478 + $0x100] sm:$0xff]
    %v6512 = vld [vmem:[%s6478 + $0x108] sm:$0xff]
    %v6513 = vld [vmem:[%s6478 + $0x110] sm:$0xff]
    %v6514 = vld [vmem:[%s6478 + $0x118] sm:$0xff]
    %v6515 = vld [vmem:[%s6478 + $0x120] sm:$0xff]
    %v6516 = vld [vmem:[%s6478 + $0x128] sm:$0xff]
    %v6517 = vld [vmem:[%s6478 + $0x130] sm:$0xff]
    %v6518 = vld [vmem:[%s6478 + $0x138] sm:$0xff]
    %v6519 = vld [vmem:[%s6478 + $0x140] sm:$0xff]
    %v6520 = vld [vmem:[%s6478 + $0x148] sm:$0xff]
    %v6521 = vld [vmem:[%s6478 + $0x150] sm:$0xff]
    %v6522 = vld [vmem:[%s6478 + $0x158] sm:$0xff]
    %v6523 = vld [vmem:[%s6478 + $0x160] sm:$0xff]
    %v6524 = vld [vmem:[%s6478 + $0x168] sm:$0xff]
    %v6525 = vld [vmem:[%s6478 + $0x170] sm:$0xff]
    %v6526 = vld [vmem:[%s6478 + $0x178] sm:$0xff]
    %v6527 = vld [vmem:[%s6478 + $0x180] sm:$0xff]
    %v6528 = vld [vmem:[%s6478 + $0x188] sm:$0xff]
    %v6529 = vld [vmem:[%s6478 + $0x190] sm:$0xff]
    %v6530 = vld [vmem:[%s6478 + $0x198] sm:$0xff]
    %v6531 = vld [vmem:[%s6478 + $0x1a0] sm:$0xff]
    %v6532 = vld [vmem:[%s6478 + $0x1a8] sm:$0xff]
    %v6533 = vld [vmem:[%s6478 + $0x1b0] sm:$0xff]
    %v6534 = vld [vmem:[%s6478 + $0x1b8] sm:$0xff]
    %v6535 = vld [vmem:[%s6478 + $0x1c0] sm:$0xff]
    %v6536 = vld [vmem:[%s6478 + $0x1c8] sm:$0xff]
    %v6537 = vld [vmem:[%s6478 + $0x1d0] sm:$0xff]
    %v6538 = vld [vmem:[%s6478 + $0x1d8] sm:$0xff]
    %v6539 = vld [vmem:[%s6478 + $0x1e0] sm:$0xff]
    %v6540 = vld [vmem:[%s6478 + $0x1e8] sm:$0xff]
    %v6541 = vld [vmem:[%s6478 + $0x1f0] sm:$0xff]
    %v6542 = vld [vmem:[%s6478 + $0x1f8] sm:$0xff]
    %v6559 = vunpack.c.l.b16 %v6462
    %v6560 = vunpack.c.l.b16 %v6463
    %v6561 = vunpack.c.l.b16 %v6464
    %v6562 = vunpack.c.l.b16 %v6465
    %v6563 = vunpack.c.l.b16 %v6466
    %v6564 = vunpack.c.l.b16 %v6467
    %v6565 = vunpack.c.l.b16 %v6468
    %v6566 = vunpack.c.l.b16 %v6469
    %v6567 = vunpack.c.l.b16 %v6470
    %v6568 = vunpack.c.l.b16 %v6471
    %v6569 = vunpack.c.l.b16 %v6472
    %v6570 = vunpack.c.l.b16 %v6473
    %v6571 = vunpack.c.l.b16 %v6474
    %v6572 = vunpack.c.l.b16 %v6475
    %v6573 = vunpack.c.l.b16 %v6476
    %v6574 = vunpack.c.l.b16 %v6477
    %v6575 = vrot.slane %v6561, 7
    %v6576 = vsel %vm5380, %v6575, %v6559
    %v6577 = vrot.slane %v6563, 6
    %v6578 = vsel %vm5383, %v6577, %v6576
    %v6579 = vrot.slane %v6565, 5
    %v6580 = vsel %vm5386, %v6579, %v6578
    %v6581 = vrot.slane %v6567, 4
    %v6582 = vsel %vm5389, %v6581, %v6580
    %v6583 = vrot.slane %v6569, 3
    %v6584 = vsel %vm5392, %v6583, %v6582
    %v6585 = vrot.slane %v6571, 2
    %v6586 = vsel %vm5395, %v6585, %v6584
    %v6587 = vrot.slane %v6573, 1
    %v6588 = vsel %vm5398, %v6587, %v6586
    %v6589 = vrot.slane %v6562, 7
    %v6590 = vsel %vm5380, %v6589, %v6560
    %v6591 = vrot.slane %v6564, 6
    %v6592 = vsel %vm5383, %v6591, %v6590
    %v6593 = vrot.slane %v6566, 5
    %v6594 = vsel %vm5386, %v6593, %v6592
    %v6595 = vrot.slane %v6568, 4
    %v6596 = vsel %vm5389, %v6595, %v6594
    %v6597 = vrot.slane %v6570, 3
    %v6598 = vsel %vm5392, %v6597, %v6596
    %v6599 = vrot.slane %v6572, 2
    %v6600 = vsel %vm5395, %v6599, %v6598
    %v6601 = vrot.slane %v6574, 1
    %v6602 = vsel %vm5398, %v6601, %v6600
    %v6603 = vpack.c.b16 %v6588, %v6588
    %v6604 = vpack.c.b16 %v6602, %v6602
    %v6671 = vunpack.c.l.b16 %v6479
    %v6672 = vunpack.c.h.b16 %v6479
    %v6673 = vunpack.c.l.b16 %v6480
    %v6674 = vunpack.c.h.b16 %v6480
    %v6675 = vunpack.c.l.b16 %v6481
    %v6676 = vunpack.c.h.b16 %v6481
    %v6677 = vunpack.c.l.b16 %v6482
    %v6678 = vunpack.c.h.b16 %v6482
    %v6679 = vunpack.c.l.b16 %v6483
    %v6680 = vunpack.c.h.b16 %v6483
    %v6681 = vunpack.c.l.b16 %v6484
    %v6682 = vunpack.c.h.b16 %v6484
    %v6683 = vunpack.c.l.b16 %v6485
    %v6684 = vunpack.c.h.b16 %v6485
    %v6685 = vunpack.c.l.b16 %v6486
    %v6686 = vunpack.c.h.b16 %v6486
    %v6687 = vunpack.c.l.b16 %v6487
    %v6688 = vunpack.c.h.b16 %v6487
    %v6689 = vunpack.c.l.b16 %v6488
    %v6690 = vunpack.c.h.b16 %v6488
    %v6691 = vunpack.c.l.b16 %v6489
    %v6692 = vunpack.c.h.b16 %v6489
    %v6693 = vunpack.c.l.b16 %v6490
    %v6694 = vunpack.c.h.b16 %v6490
    %v6695 = vunpack.c.l.b16 %v6491
    %v6696 = vunpack.c.h.b16 %v6491
    %v6697 = vunpack.c.l.b16 %v6492
    %v6698 = vunpack.c.h.b16 %v6492
    %v6699 = vunpack.c.l.b16 %v6493
    %v6700 = vunpack.c.h.b16 %v6493
    %v6701 = vunpack.c.l.b16 %v6494
    %v6702 = vunpack.c.h.b16 %v6494
    %v6703 = vunpack.c.l.b16 %v6495
    %v6704 = vunpack.c.h.b16 %v6495
    %v6705 = vunpack.c.l.b16 %v6496
    %v6706 = vunpack.c.h.b16 %v6496
    %v6707 = vunpack.c.l.b16 %v6497
    %v6708 = vunpack.c.h.b16 %v6497
    %v6709 = vunpack.c.l.b16 %v6498
    %v6710 = vunpack.c.h.b16 %v6498
    %v6711 = vunpack.c.l.b16 %v6499
    %v6712 = vunpack.c.h.b16 %v6499
    %v6713 = vunpack.c.l.b16 %v6500
    %v6714 = vunpack.c.h.b16 %v6500
    %v6715 = vunpack.c.l.b16 %v6501
    %v6716 = vunpack.c.h.b16 %v6501
    %v6717 = vunpack.c.l.b16 %v6502
    %v6718 = vunpack.c.h.b16 %v6502
    %v6719 = vunpack.c.l.b16 %v6503
    %v6720 = vunpack.c.h.b16 %v6503
    %v6721 = vunpack.c.l.b16 %v6504
    %v6722 = vunpack.c.h.b16 %v6504
    %v6723 = vunpack.c.l.b16 %v6505
    %v6724 = vunpack.c.h.b16 %v6505
    %v6725 = vunpack.c.l.b16 %v6506
    %v6726 = vunpack.c.h.b16 %v6506
    %v6727 = vunpack.c.l.b16 %v6507
    %v6728 = vunpack.c.h.b16 %v6507
    %v6729 = vunpack.c.l.b16 %v6508
    %v6730 = vunpack.c.h.b16 %v6508
    %v6731 = vunpack.c.l.b16 %v6509
    %v6732 = vunpack.c.h.b16 %v6509
    %v6733 = vunpack.c.l.b16 %v6510
    %v6734 = vunpack.c.h.b16 %v6510
    %v6735 = vunpack.c.l.b16 %v6511
    %v6736 = vunpack.c.h.b16 %v6511
    %v6737 = vunpack.c.l.b16 %v6512
    %v6738 = vunpack.c.h.b16 %v6512
    %v6739 = vunpack.c.l.b16 %v6513
    %v6740 = vunpack.c.h.b16 %v6513
    %v6741 = vunpack.c.l.b16 %v6514
    %v6742 = vunpack.c.h.b16 %v6514
    %v6743 = vunpack.c.l.b16 %v6515
    %v6744 = vunpack.c.h.b16 %v6515
    %v6745 = vunpack.c.l.b16 %v6516
    %v6746 = vunpack.c.h.b16 %v6516
    %v6747 = vunpack.c.l.b16 %v6517
    %v6748 = vunpack.c.h.b16 %v6517
    %v6749 = vunpack.c.l.b16 %v6518
    %v6750 = vunpack.c.h.b16 %v6518
    %v6751 = vunpack.c.l.b16 %v6519
    %v6752 = vunpack.c.h.b16 %v6519
    %v6753 = vunpack.c.l.b16 %v6520
    %v6754 = vunpack.c.h.b16 %v6520
    %v6755 = vunpack.c.l.b16 %v6521
    %v6756 = vunpack.c.h.b16 %v6521
    %v6757 = vunpack.c.l.b16 %v6522
    %v6758 = vunpack.c.h.b16 %v6522
    %v6759 = vunpack.c.l.b16 %v6523
    %v6760 = vunpack.c.h.b16 %v6523
    %v6761 = vunpack.c.l.b16 %v6524
    %v6762 = vunpack.c.h.b16 %v6524
    %v6763 = vunpack.c.l.b16 %v6525
    %v6764 = vunpack.c.h.b16 %v6525
    %v6765 = vunpack.c.l.b16 %v6526
    %v6766 = vunpack.c.h.b16 %v6526
    %v6767 = vunpack.c.l.b16 %v6527
    %v6768 = vunpack.c.h.b16 %v6527
    %v6769 = vunpack.c.l.b16 %v6528
    %v6770 = vunpack.c.h.b16 %v6528
    %v6771 = vunpack.c.l.b16 %v6529
    %v6772 = vunpack.c.h.b16 %v6529
    %v6773 = vunpack.c.l.b16 %v6530
    %v6774 = vunpack.c.h.b16 %v6530
    %v6775 = vunpack.c.l.b16 %v6531
    %v6776 = vunpack.c.h.b16 %v6531
    %v6777 = vunpack.c.l.b16 %v6532
    %v6778 = vunpack.c.h.b16 %v6532
    %v6779 = vunpack.c.l.b16 %v6533
    %v6780 = vunpack.c.h.b16 %v6533
    %v6781 = vunpack.c.l.b16 %v6534
    %v6782 = vunpack.c.h.b16 %v6534
    %v6783 = vunpack.c.l.b16 %v6535
    %v6784 = vunpack.c.h.b16 %v6535
    %v6785 = vunpack.c.l.b16 %v6536
    %v6786 = vunpack.c.h.b16 %v6536
    %v6787 = vunpack.c.l.b16 %v6537
    %v6788 = vunpack.c.h.b16 %v6537
    %v6789 = vunpack.c.l.b16 %v6538
    %v6790 = vunpack.c.h.b16 %v6538
    %v6791 = vunpack.c.l.b16 %v6539
    %v6792 = vunpack.c.h.b16 %v6539
    %v6793 = vunpack.c.l.b16 %v6540
    %v6794 = vunpack.c.h.b16 %v6540
    %v6795 = vunpack.c.l.b16 %v6541
    %v6796 = vunpack.c.h.b16 %v6541
    %v6797 = vunpack.c.l.b16 %v6542
    %v6798 = vunpack.c.h.b16 %v6542
    %v6799 = vpack.c.b16 %v6675, %v6671
    %v6800 = vpack.c.b16 %v6676, %v6672
    %v6801 = vpack.c.b16 %v6677, %v6673
    %v6802 = vpack.c.b16 %v6678, %v6674
    %v6803 = vpack.c.b16 %v6683, %v6679
    %v6804 = vpack.c.b16 %v6684, %v6680
    %v6805 = vpack.c.b16 %v6685, %v6681
    %v6806 = vpack.c.b16 %v6686, %v6682
    %v6807 = vpack.c.b16 %v6691, %v6687
    %v6808 = vpack.c.b16 %v6692, %v6688
    %v6809 = vpack.c.b16 %v6693, %v6689
    %v6810 = vpack.c.b16 %v6694, %v6690
    %v6811 = vpack.c.b16 %v6699, %v6695
    %v6812 = vpack.c.b16 %v6700, %v6696
    %v6813 = vpack.c.b16 %v6701, %v6697
    %v6814 = vpack.c.b16 %v6702, %v6698
    %v6815 = vpack.c.b16 %v6707, %v6703
    %v6816 = vpack.c.b16 %v6708, %v6704
    %v6817 = vpack.c.b16 %v6709, %v6705
    %v6818 = vpack.c.b16 %v6710, %v6706
    %v6819 = vpack.c.b16 %v6715, %v6711
    %v6820 = vpack.c.b16 %v6716, %v6712
    %v6821 = vpack.c.b16 %v6717, %v6713
    %v6822 = vpack.c.b16 %v6718, %v6714
    %v6823 = vpack.c.b16 %v6723, %v6719
    %v6824 = vpack.c.b16 %v6724, %v6720
    %v6825 = vpack.c.b16 %v6725, %v6721
    %v6826 = vpack.c.b16 %v6726, %v6722
    %v6827 = vpack.c.b16 %v6731, %v6727
    %v6828 = vpack.c.b16 %v6732, %v6728
    %v6829 = vpack.c.b16 %v6733, %v6729
    %v6830 = vpack.c.b16 %v6734, %v6730
    %v6831 = vpack.c.b16 %v6739, %v6735
    %v6832 = vpack.c.b16 %v6740, %v6736
    %v6833 = vpack.c.b16 %v6741, %v6737
    %v6834 = vpack.c.b16 %v6742, %v6738
    %v6835 = vpack.c.b16 %v6747, %v6743
    %v6836 = vpack.c.b16 %v6748, %v6744
    %v6837 = vpack.c.b16 %v6749, %v6745
    %v6838 = vpack.c.b16 %v6750, %v6746
    %v6839 = vpack.c.b16 %v6755, %v6751
    %v6840 = vpack.c.b16 %v6756, %v6752
    %v6841 = vpack.c.b16 %v6757, %v6753
    %v6842 = vpack.c.b16 %v6758, %v6754
    %v6843 = vpack.c.b16 %v6763, %v6759
    %v6844 = vpack.c.b16 %v6764, %v6760
    %v6845 = vpack.c.b16 %v6765, %v6761
    %v6846 = vpack.c.b16 %v6766, %v6762
    %v6847 = vpack.c.b16 %v6771, %v6767
    %v6848 = vpack.c.b16 %v6772, %v6768
    %v6849 = vpack.c.b16 %v6773, %v6769
    %v6850 = vpack.c.b16 %v6774, %v6770
    %v6851 = vpack.c.b16 %v6779, %v6775
    %v6852 = vpack.c.b16 %v6780, %v6776
    %v6853 = vpack.c.b16 %v6781, %v6777
    %v6854 = vpack.c.b16 %v6782, %v6778
    %v6855 = vpack.c.b16 %v6787, %v6783
    %v6856 = vpack.c.b16 %v6788, %v6784
    %v6857 = vpack.c.b16 %v6789, %v6785
    %v6858 = vpack.c.b16 %v6790, %v6786
    %v6859 = vpack.c.b16 %v6795, %v6791
    %v6860 = vpack.c.b16 %v6796, %v6792
    %v6861 = vpack.c.b16 %v6797, %v6793
    %v6862 = vpack.c.b16 %v6798, %v6794
    %6927 = vmatprep.subr.bf16.mxu0 %v6800
    %6928 = vmatpush1.bf16.msra.mxu0 %v6799
    %6929 = vmatprep.subr.bf16.mxu0 %v6804
    %6930 = vmatpush1.bf16.msra.mxu0 %v6803
    %6931 = vmatprep.subr.bf16.mxu0 %v6808
    %6932 = vmatpush1.bf16.msra.mxu0 %v6807
    %6933 = vmatprep.subr.bf16.mxu0 %v6812
    %6934 = vmatpush1.bf16.msra.mxu0 %v6811
    %6935 = vmatprep.subr.bf16.mxu0 %v6816
    %6936 = vmatpush1.bf16.msra.mxu0 %v6815
    %6937 = vmatprep.subr.bf16.mxu0 %v6820
    %6938 = vmatpush1.bf16.msra.mxu0 %v6819
    %6939 = vmatprep.subr.bf16.mxu0 %v6824
    %6940 = vmatpush1.bf16.msra.mxu0 %v6823
    %6941 = vmatprep.subr.bf16.mxu0 %v6828
    %6942 = vmatpush1.bf16.msra.mxu0 %v6827
    %6943 = vmatprep.subr.bf16.mxu0 %v6832
    %6944 = vmatpush1.bf16.msra.mxu0 %v6831
    %6945 = vmatprep.subr.bf16.mxu0 %v6836
    %6946 = vmatpush1.bf16.msra.mxu0 %v6835
    %6947 = vmatprep.subr.bf16.mxu0 %v6840
    %6948 = vmatpush1.bf16.msra.mxu0 %v6839
    %6949 = vmatprep.subr.bf16.mxu0 %v6844
    %6950 = vmatpush1.bf16.msra.mxu0 %v6843
    %6951 = vmatprep.subr.bf16.mxu0 %v6848
    %6952 = vmatpush1.bf16.msra.mxu0 %v6847
    %6953 = vmatprep.subr.bf16.mxu0 %v6852
    %6954 = vmatpush1.bf16.msra.mxu0 %v6851
    %6955 = vmatprep.subr.bf16.mxu0 %v6856
    %6956 = vmatpush1.bf16.msra.mxu0 %v6855
    %6957 = vmatprep.subr.bf16.mxu0 %v6860
    %6958 = vmatpush1.bf16.msra.mxu0 %v6859
    %6959 = vmatprep.mubr.bf16.mxu0 %v6604
    %6960 = vmatmul.mubr.bf16.gmra.mrb[0].mxu0 %v6603
    %v6961 = vpop.f32.mrb[0].mxu0
    %v6962 = vadd.f32 0.0, %v6961
    %v6963 = vpop.f32.mrb[0].mxu0
    %v6964 = vadd.f32 0.0, %v6963
    %v6965 = vpop.f32.mrb[0].mxu0
    %v6966 = vpop.f32.mrb[0].mxu0
    %6967 = vdwg.mxu0
    %6968 = vmatprep.subr.bf16.mxu0 %v6802
    %6969 = vmatpush1.bf16.msra.mxu0 %v6801
    %6970 = vmatprep.subr.bf16.mxu0 %v6806
    %6971 = vmatpush1.bf16.msra.mxu0 %v6805
    %6972 = vmatprep.subr.bf16.mxu0 %v6810
    %6973 = vmatpush1.bf16.msra.mxu0 %v6809
    %6974 = vmatprep.subr.bf16.mxu0 %v6814
    %6975 = vmatpush1.bf16.msra.mxu0 %v6813
    %6976 = vmatprep.subr.bf16.mxu0 %v6818
    %6977 = vmatpush1.bf16.msra.mxu0 %v6817
    %6978 = vmatprep.subr.bf16.mxu0 %v6822
    %6979 = vmatpush1.bf16.msra.mxu0 %v6821
    %6980 = vmatprep.subr.bf16.mxu0 %v6826
    %6981 = vmatpush1.bf16.msra.mxu0 %v6825
    %6982 = vmatprep.subr.bf16.mxu0 %v6830
    %6983 = vmatpush1.bf16.msra.mxu0 %v6829
    %6984 = vmatprep.subr.bf16.mxu0 %v6834
    %6985 = vmatpush1.bf16.msra.mxu0 %v6833
    %6986 = vmatprep.subr.bf16.mxu0 %v6838
    %6987 = vmatpush1.bf16.msra.mxu0 %v6837
    %6988 = vmatprep.subr.bf16.mxu0 %v6842
    %6989 = vmatpush1.bf16.msra.mxu0 %v6841
    %6990 = vmatprep.subr.bf16.mxu0 %v6846
    %6991 = vmatpush1.bf16.msra.mxu0 %v6845
    %6992 = vmatprep.subr.bf16.mxu0 %v6850
    %6993 = vmatpush1.bf16.msra.mxu0 %v6849
    %6994 = vmatprep.subr.bf16.mxu0 %v6854
    %6995 = vmatpush1.bf16.msra.mxu0 %v6853
    %6996 = vmatprep.subr.bf16.mxu0 %v6858
    %6997 = vmatpush1.bf16.msra.mxu0 %v6857
    %6998 = vmatprep.subr.bf16.mxu0 %v6862
    %6999 = vmatpush1.bf16.msra.mxu0 %v6861
    %7000 = vmatprep.mubr.bf16.mxu0 %v6604
    %7001 = vmatmul.mubr.bf16.gmra.mrb[0].mxu0 %v6603
    %v7002 = vpop.f32.mrb[0].mxu0
    %v7003 = vadd.f32 0.0, %v7002
    %v7004 = vpop.f32.mrb[0].mxu0
    %v7005 = vadd.f32 0.0, %v7004
    %v7006 = vpop.f32.mrb[0].mxu0
    %v7007 = vpop.f32.mrb[0].mxu0
    %7008 = vdwg.mxu0
    %v7009 = vadd.f32 %v6239, %v6962
    %v7010 = vadd.f32 %v6241, %v6964
    %v7011 = vadd.f32 %v6280, %v7003
    %v7012 = vadd.f32 %v6282, %v7005
    %s7013 = scalar_lea.vmem [#allocation3], 6
    %v7014 = vld [vmem:[%s7013] ss:$8 sm:$0xf]
    %s7015 = scalar_lea.vmem [#allocation3], 38
    %v7016 = vld [vmem:[%s7015] ss:$8 sm:$0xf]
    %s7017 = scalar_lea.vmem [#allocation3], 70
    %v7018 = vld [vmem:[%s7017] ss:$8 sm:$0xf]
    %s7019 = scalar_lea.vmem [#allocation3], 102
    %v7020 = vld [vmem:[%s7019] ss:$8 sm:$0xf]
    %s7021 = scalar_lea.vmem [#allocation3], 134
    %v7022 = vld [vmem:[%s7021] ss:$8 sm:$0xf]
    %s7023 = scalar_lea.vmem [#allocation3], 166
    %v7024 = vld [vmem:[%s7023] ss:$8 sm:$0xf]
    %s7025 = scalar_lea.vmem [#allocation3], 198
    %v7026 = vld [vmem:[%s7025] ss:$8 sm:$0xf]
    %s7027 = scalar_lea.vmem [#allocation3], 230
    %v7028 = vld [vmem:[%s7027] ss:$8 sm:$0xf]
    %s7029 = scalar_lea.vmem [#allocation3], 7
    %v7030 = vld [vmem:[%s7029] ss:$8 sm:$0xf]
    %s7031 = scalar_lea.vmem [#allocation3], 39
    %v7032 = vld [vmem:[%s7031] ss:$8 sm:$0xf]
    %s7033 = scalar_lea.vmem [#allocation3], 71
    %v7034 = vld [vmem:[%s7033] ss:$8 sm:$0xf]
    %s7035 = scalar_lea.vmem [#allocation3], 103
    %v7036 = vld [vmem:[%s7035] ss:$8 sm:$0xf]
    %s7037 = scalar_lea.vmem [#allocation3], 135
    %v7038 = vld [vmem:[%s7037] ss:$8 sm:$0xf]
    %s7039 = scalar_lea.vmem [#allocation3], 167
    %v7040 = vld [vmem:[%s7039] ss:$8 sm:$0xf]
    %s7041 = scalar_lea.vmem [#allocation3], 199
    %v7042 = vld [vmem:[%s7041] ss:$8 sm:$0xf]
    %s7043 = scalar_lea.vmem [#allocation3], 231
    %v7044 = vld [vmem:[%s7043] ss:$8 sm:$0xf]
    %v7045 = vmax.f32 %v7014, %v7030
    %v7046 = vmax.f32 %v7016, %v7032
    %v7047 = vmax.f32 %v7018, %v7034
    %v7048 = vmax.f32 %v7020, %v7036
    %v7049 = vmax.f32 %v7022, %v7038
    %v7050 = vmax.f32 %v7024, %v7040
    %v7051 = vmax.f32 %v7026, %v7042
    %v7052 = vmax.f32 %v7028, %v7044
    %v7061 = vrot.slane %v7045, 2
    %v7062 = vrot.slane %v7046, 2
    %v7063 = vrot.slane %v7047, 2
    %v7064 = vrot.slane %v7048, 2
    %v7065 = vrot.slane %v7049, 2
    %v7066 = vrot.slane %v7050, 2
    %v7067 = vrot.slane %v7051, 2
    %v7068 = vrot.slane %v7052, 2
    %v7077 = vmax.f32 %v7045, %v7061
    %v7078 = vmax.f32 %v7046, %v7062
    %v7079 = vmax.f32 %v7047, %v7063
    %v7080 = vmax.f32 %v7048, %v7064
    %v7081 = vmax.f32 %v7049, %v7065
    %v7082 = vmax.f32 %v7050, %v7066
    %v7083 = vmax.f32 %v7051, %v7067
    %v7084 = vmax.f32 %v7052, %v7068
    %v7085 = vadd.f32 %v7077, %v4872
    %v7086 = vadd.f32 %v7078, %v4886
    %v7087 = vadd.f32 %v7079, %v4894
    %v7088 = vadd.f32 %v7080, %v4896
    %v7089 = vadd.f32 %v7081, %v4879
    %v7090 = vadd.f32 %v7082, %v4893
    %v7091 = vadd.f32 %v7083, %v4895
    %v7092 = vadd.f32 %v7084, %v4897
    %v7093 = vmax.f32 %v7085, 0.0
    %v7094 = vmax.f32 %v7086, 0.0
    %v7095 = vmax.f32 %v7087, 0.0
    %v7096 = vmax.f32 %v7088, 0.0
    %v7097 = vmax.f32 %v7089, 0.0
    %v7098 = vmax.f32 %v7090, 0.0
    %v7099 = vmax.f32 %v7091, 0.0
    %v7100 = vmax.f32 %v7092, 0.0
    %v7109 = vlaneseq
    %v7110 = vshrl.u32 %v7109, 7
    %v7111 = vsub.s32 0, %v7110
    %v7112 = vrot.slane %v7093, %v7111
    %v7113 = vlaneseq
    %v7114 = vshrl.u32 %v7113, 7
    %v7115 = vsub.s32 1, %v7114
    %v7116 = vrot.slane %v7093, %v7115
    %v7117 = vlaneseq
    %v7118 = vshrl.u32 %v7117, 7
    %v7119 = vsub.s32 0, %v7118
    %v7120 = vrot.slane %v7094, %v7119
    %v7121 = vlaneseq
    %v7122 = vshrl.u32 %v7121, 7
    %v7123 = vsub.s32 1, %v7122
    %v7124 = vrot.slane %v7094, %v7123
    %v7125 = vlaneseq
    %v7126 = vshrl.u32 %v7125, 7
    %v7127 = vsub.s32 0, %v7126
    %v7128 = vrot.slane %v7095, %v7127
    %v7129 = vlaneseq
    %v7130 = vshrl.u32 %v7129, 7
    %v7131 = vsub.s32 1, %v7130
    %v7132 = vrot.slane %v7095, %v7131
    %v7133 = vlaneseq
    %v7134 = vshrl.u32 %v7133, 7
    %v7135 = vsub.s32 0, %v7134
    %v7136 = vrot.slane %v7096, %v7135
    %v7137 = vlaneseq
    %v7138 = vshrl.u32 %v7137, 7
    %v7139 = vsub.s32 1, %v7138
    %v7140 = vrot.slane %v7096, %v7139
    %v7141 = vlaneseq
    %v7142 = vshrl.u32 %v7141, 7
    %v7143 = vsub.s32 0, %v7142
    %v7144 = vrot.slane %v7097, %v7143
    %v7145 = vlaneseq
    %v7146 = vshrl.u32 %v7145, 7
    %v7147 = vsub.s32 1, %v7146
    %v7148 = vrot.slane %v7097, %v7147
    %v7149 = vlaneseq
    %v7150 = vshrl.u32 %v7149, 7
    %v7151 = vsub.s32 0, %v7150
    %v7152 = vrot.slane %v7098, %v7151
    %v7153 = vlaneseq
    %v7154 = vshrl.u32 %v7153, 7
    %v7155 = vsub.s32 1, %v7154
    %v7156 = vrot.slane %v7098, %v7155
    %v7157 = vlaneseq
    %v7158 = vshrl.u32 %v7157, 7
    %v7159 = vsub.s32 0, %v7158
    %v7160 = vrot.slane %v7099, %v7159
    %v7161 = vlaneseq
    %v7162 = vshrl.u32 %v7161, 7
    %v7163 = vsub.s32 1, %v7162
    %v7164 = vrot.slane %v7099, %v7163
    %v7165 = vlaneseq
    %v7166 = vshrl.u32 %v7165, 7
    %v7167 = vsub.s32 0, %v7166
    %v7168 = vrot.slane %v7100, %v7167
    %v7169 = vlaneseq
    %v7170 = vshrl.u32 %v7169, 7
    %v7171 = vsub.s32 1, %v7170
    %v7172 = vrot.slane %v7100, %v7171
    %v7189 = vpack.c.bf16 %v7112, %v7112
    %v7190 = vpack.c.bf16 %v7116, %v7116
    %v7191 = vpack.c.bf16 %v7120, %v7120
    %v7192 = vpack.c.bf16 %v7124, %v7124
    %v7193 = vpack.c.bf16 %v7128, %v7128
    %v7194 = vpack.c.bf16 %v7132, %v7132
    %v7195 = vpack.c.bf16 %v7136, %v7136
    %v7196 = vpack.c.bf16 %v7140, %v7140
    %v7197 = vpack.c.bf16 %v7144, %v7144
    %v7198 = vpack.c.bf16 %v7148, %v7148
    %v7199 = vpack.c.bf16 %v7152, %v7152
    %v7200 = vpack.c.bf16 %v7156, %v7156
    %v7201 = vpack.c.bf16 %v7160, %v7160
    %v7202 = vpack.c.bf16 %v7164, %v7164
    %v7203 = vpack.c.bf16 %v7168, %v7168
    %v7204 = vpack.c.bf16 %v7172, %v7172
    %s7205 = scalar_lea.vmem %s5, 1536
    %v7206 = vld [vmem:[%s7205] sm:$0xff]
    %v7207 = vld [vmem:[%s7205 + $0x8] sm:$0xff]
    %v7208 = vld [vmem:[%s7205 + $0x10] sm:$0xff]
    %v7209 = vld [vmem:[%s7205 + $0x18] sm:$0xff]
    %v7210 = vld [vmem:[%s7205 + $0x20] sm:$0xff]
    %v7211 = vld [vmem:[%s7205 + $0x28] sm:$0xff]
    %v7212 = vld [vmem:[%s7205 + $0x30] sm:$0xff]
    %v7213 = vld [vmem:[%s7205 + $0x38] sm:$0xff]
    %v7214 = vld [vmem:[%s7205 + $0x40] sm:$0xff]
    %v7215 = vld [vmem:[%s7205 + $0x48] sm:$0xff]
    %v7216 = vld [vmem:[%s7205 + $0x50] sm:$0xff]
    %v7217 = vld [vmem:[%s7205 + $0x58] sm:$0xff]
    %v7218 = vld [vmem:[%s7205 + $0x60] sm:$0xff]
    %v7219 = vld [vmem:[%s7205 + $0x68] sm:$0xff]
    %v7220 = vld [vmem:[%s7205 + $0x70] sm:$0xff]
    %v7221 = vld [vmem:[%s7205 + $0x78] sm:$0xff]
    %v7222 = vld [vmem:[%s7205 + $0x80] sm:$0xff]
    %v7223 = vld [vmem:[%s7205 + $0x88] sm:$0xff]
    %v7224 = vld [vmem:[%s7205 + $0x90] sm:$0xff]
    %v7225 = vld [vmem:[%s7205 + $0x98] sm:$0xff]
    %v7226 = vld [vmem:[%s7205 + $0xa0] sm:$0xff]
    %v7227 = vld [vmem:[%s7205 + $0xa8] sm:$0xff]
    %v7228 = vld [vmem:[%s7205 + $0xb0] sm:$0xff]
    %v7229 = vld [vmem:[%s7205 + $0xb8] sm:$0xff]
    %v7230 = vld [vmem:[%s7205 + $0xc0] sm:$0xff]
    %v7231 = vld [vmem:[%s7205 + $0xc8] sm:$0xff]
    %v7232 = vld [vmem:[%s7205 + $0xd0] sm:$0xff]
    %v7233 = vld [vmem:[%s7205 + $0xd8] sm:$0xff]
    %v7234 = vld [vmem:[%s7205 + $0xe0] sm:$0xff]
    %v7235 = vld [vmem:[%s7205 + $0xe8] sm:$0xff]
    %v7236 = vld [vmem:[%s7205 + $0xf0] sm:$0xff]
    %v7237 = vld [vmem:[%s7205 + $0xf8] sm:$0xff]
    %v7238 = vld [vmem:[%s7205 + $0x100] sm:$0xff]
    %v7239 = vld [vmem:[%s7205 + $0x108] sm:$0xff]
    %v7240 = vld [vmem:[%s7205 + $0x110] sm:$0xff]
    %v7241 = vld [vmem:[%s7205 + $0x118] sm:$0xff]
    %v7242 = vld [vmem:[%s7205 + $0x120] sm:$0xff]
    %v7243 = vld [vmem:[%s7205 + $0x128] sm:$0xff]
    %v7244 = vld [vmem:[%s7205 + $0x130] sm:$0xff]
    %v7245 = vld [vmem:[%s7205 + $0x138] sm:$0xff]
    %v7246 = vld [vmem:[%s7205 + $0x140] sm:$0xff]
    %v7247 = vld [vmem:[%s7205 + $0x148] sm:$0xff]
    %v7248 = vld [vmem:[%s7205 + $0x150] sm:$0xff]
    %v7249 = vld [vmem:[%s7205 + $0x158] sm:$0xff]
    %v7250 = vld [vmem:[%s7205 + $0x160] sm:$0xff]
    %v7251 = vld [vmem:[%s7205 + $0x168] sm:$0xff]
    %v7252 = vld [vmem:[%s7205 + $0x170] sm:$0xff]
    %v7253 = vld [vmem:[%s7205 + $0x178] sm:$0xff]
    %v7254 = vld [vmem:[%s7205 + $0x180] sm:$0xff]
    %v7255 = vld [vmem:[%s7205 + $0x188] sm:$0xff]
    %v7256 = vld [vmem:[%s7205 + $0x190] sm:$0xff]
    %v7257 = vld [vmem:[%s7205 + $0x198] sm:$0xff]
    %v7258 = vld [vmem:[%s7205 + $0x1a0] sm:$0xff]
    %v7259 = vld [vmem:[%s7205 + $0x1a8] sm:$0xff]
    %v7260 = vld [vmem:[%s7205 + $0x1b0] sm:$0xff]
    %v7261 = vld [vmem:[%s7205 + $0x1b8] sm:$0xff]
    %v7262 = vld [vmem:[%s7205 + $0x1c0] sm:$0xff]
    %v7263 = vld [vmem:[%s7205 + $0x1c8] sm:$0xff]
    %v7264 = vld [vmem:[%s7205 + $0x1d0] sm:$0xff]
    %v7265 = vld [vmem:[%s7205 + $0x1d8] sm:$0xff]
    %v7266 = vld [vmem:[%s7205 + $0x1e0] sm:$0xff]
    %v7267 = vld [vmem:[%s7205 + $0x1e8] sm:$0xff]
    %v7268 = vld [vmem:[%s7205 + $0x1f0] sm:$0xff]
    %v7269 = vld [vmem:[%s7205 + $0x1f8] sm:$0xff]
    %v7286 = vunpack.c.l.b16 %v7189
    %v7287 = vunpack.c.l.b16 %v7190
    %v7288 = vunpack.c.l.b16 %v7191
    %v7289 = vunpack.c.l.b16 %v7192
    %v7290 = vunpack.c.l.b16 %v7193
    %v7291 = vunpack.c.l.b16 %v7194
    %v7292 = vunpack.c.l.b16 %v7195
    %v7293 = vunpack.c.l.b16 %v7196
    %v7294 = vunpack.c.l.b16 %v7197
    %v7295 = vunpack.c.l.b16 %v7198
    %v7296 = vunpack.c.l.b16 %v7199
    %v7297 = vunpack.c.l.b16 %v7200
    %v7298 = vunpack.c.l.b16 %v7201
    %v7299 = vunpack.c.l.b16 %v7202
    %v7300 = vunpack.c.l.b16 %v7203
    %v7301 = vunpack.c.l.b16 %v7204
    %v7302 = vrot.slane %v7288, 7
    %v7303 = vsel %vm5380, %v7302, %v7286
    %v7304 = vrot.slane %v7290, 6
    %v7305 = vsel %vm5383, %v7304, %v7303
    %v7306 = vrot.slane %v7292, 5
    %v7307 = vsel %vm5386, %v7306, %v7305
    %v7308 = vrot.slane %v7294, 4
    %v7309 = vsel %vm5389, %v7308, %v7307
    %v7310 = vrot.slane %v7296, 3
    %v7311 = vsel %vm5392, %v7310, %v7309
    %v7312 = vrot.slane %v7298, 2
    %v7313 = vsel %vm5395, %v7312, %v7311
    %v7314 = vrot.slane %v7300, 1
    %v7315 = vsel %vm5398, %v7314, %v7313
    %v7316 = vrot.slane %v7289, 7
    %v7317 = vsel %vm5380, %v7316, %v7287
    %v7318 = vrot.slane %v7291, 6
    %v7319 = vsel %vm5383, %v7318, %v7317
    %v7320 = vrot.slane %v7293, 5
    %v7321 = vsel %vm5386, %v7320, %v7319
    %v7322 = vrot.slane %v7295, 4
    %v7323 = vsel %vm5389, %v7322, %v7321
    %v7324 = vrot.slane %v7297, 3
    %v7325 = vsel %vm5392, %v7324, %v7323
    %v7326 = vrot.slane %v7299, 2
    %v7327 = vsel %vm5395, %v7326, %v7325
    %v7328 = vrot.slane %v7301, 1
    %v7329 = vsel %vm5398, %v7328, %v7327
    %v7330 = vpack.c.b16 %v7315, %v7315
    %v7331 = vpack.c.b16 %v7329, %v7329
    %v7398 = vunpack.c.l.b16 %v7206
    %v7399 = vunpack.c.h.b16 %v7206
    %v7400 = vunpack.c.l.b16 %v7207
    %v7401 = vunpack.c.h.b16 %v7207
    %v7402 = vunpack.c.l.b16 %v7208
    %v7403 = vunpack.c.h.b16 %v7208
    %v7404 = vunpack.c.l.b16 %v7209
    %v7405 = vunpack.c.h.b16 %v7209
    %v7406 = vunpack.c.l.b16 %v7210
    %v7407 = vunpack.c.h.b16 %v7210
    %v7408 = vunpack.c.l.b16 %v7211
    %v7409 = vunpack.c.h.b16 %v7211
    %v7410 = vunpack.c.l.b16 %v7212
    %v7411 = vunpack.c.h.b16 %v7212
    %v7412 = vunpack.c.l.b16 %v7213
    %v7413 = vunpack.c.h.b16 %v7213
    %v7414 = vunpack.c.l.b16 %v7214
    %v7415 = vunpack.c.h.b16 %v7214
    %v7416 = vunpack.c.l.b16 %v7215
    %v7417 = vunpack.c.h.b16 %v7215
    %v7418 = vunpack.c.l.b16 %v7216
    %v7419 = vunpack.c.h.b16 %v7216
    %v7420 = vunpack.c.l.b16 %v7217
    %v7421 = vunpack.c.h.b16 %v7217
    %v7422 = vunpack.c.l.b16 %v7218
    %v7423 = vunpack.c.h.b16 %v7218
    %v7424 = vunpack.c.l.b16 %v7219
    %v7425 = vunpack.c.h.b16 %v7219
    %v7426 = vunpack.c.l.b16 %v7220
    %v7427 = vunpack.c.h.b16 %v7220
    %v7428 = vunpack.c.l.b16 %v7221
    %v7429 = vunpack.c.h.b16 %v7221
    %v7430 = vunpack.c.l.b16 %v7222
    %v7431 = vunpack.c.h.b16 %v7222
    %v7432 = vunpack.c.l.b16 %v7223
    %v7433 = vunpack.c.h.b16 %v7223
    %v7434 = vunpack.c.l.b16 %v7224
    %v7435 = vunpack.c.h.b16 %v7224
    %v7436 = vunpack.c.l.b16 %v7225
    %v7437 = vunpack.c.h.b16 %v7225
    %v7438 = vunpack.c.l.b16 %v7226
    %v7439 = vunpack.c.h.b16 %v7226
    %v7440 = vunpack.c.l.b16 %v7227
    %v7441 = vunpack.c.h.b16 %v7227
    %v7442 = vunpack.c.l.b16 %v7228
    %v7443 = vunpack.c.h.b16 %v7228
    %v7444 = vunpack.c.l.b16 %v7229
    %v7445 = vunpack.c.h.b16 %v7229
    %v7446 = vunpack.c.l.b16 %v7230
    %v7447 = vunpack.c.h.b16 %v7230
    %v7448 = vunpack.c.l.b16 %v7231
    %v7449 = vunpack.c.h.b16 %v7231
    %v7450 = vunpack.c.l.b16 %v7232
    %v7451 = vunpack.c.h.b16 %v7232
    %v7452 = vunpack.c.l.b16 %v7233
    %v7453 = vunpack.c.h.b16 %v7233
    %v7454 = vunpack.c.l.b16 %v7234
    %v7455 = vunpack.c.h.b16 %v7234
    %v7456 = vunpack.c.l.b16 %v7235
    %v7457 = vunpack.c.h.b16 %v7235
    %v7458 = vunpack.c.l.b16 %v7236
    %v7459 = vunpack.c.h.b16 %v7236
    %v7460 = vunpack.c.l.b16 %v7237
    %v7461 = vunpack.c.h.b16 %v7237
    %v7462 = vunpack.c.l.b16 %v7238
    %v7463 = vunpack.c.h.b16 %v7238
    %v7464 = vunpack.c.l.b16 %v7239
    %v7465 = vunpack.c.h.b16 %v7239
    %v7466 = vunpack.c.l.b16 %v7240
    %v7467 = vunpack.c.h.b16 %v7240
    %v7468 = vunpack.c.l.b16 %v7241
    %v7469 = vunpack.c.h.b16 %v7241
    %v7470 = vunpack.c.l.b16 %v7242
    %v7471 = vunpack.c.h.b16 %v7242
    %v7472 = vunpack.c.l.b16 %v7243
    %v7473 = vunpack.c.h.b16 %v7243
    %v7474 = vunpack.c.l.b16 %v7244
    %v7475 = vunpack.c.h.b16 %v7244
    %v7476 = vunpack.c.l.b16 %v7245
    %v7477 = vunpack.c.h.b16 %v7245
    %v7478 = vunpack.c.l.b16 %v7246
    %v7479 = vunpack.c.h.b16 %v7246
    %v7480 = vunpack.c.l.b16 %v7247
    %v7481 = vunpack.c.h.b16 %v7247
    %v7482 = vunpack.c.l.b16 %v7248
    %v7483 = vunpack.c.h.b16 %v7248
    %v7484 = vunpack.c.l.b16 %v7249
    %v7485 = vunpack.c.h.b16 %v7249
    %v7486 = vunpack.c.l.b16 %v7250
    %v7487 = vunpack.c.h.b16 %v7250
    %v7488 = vunpack.c.l.b16 %v7251
    %v7489 = vunpack.c.h.b16 %v7251
    %v7490 = vunpack.c.l.b16 %v7252
    %v7491 = vunpack.c.h.b16 %v7252
    %v7492 = vunpack.c.l.b16 %v7253
    %v7493 = vunpack.c.h.b16 %v7253
    %v7494 = vunpack.c.l.b16 %v7254
    %v7495 = vunpack.c.h.b16 %v7254
    %v7496 = vunpack.c.l.b16 %v7255
    %v7497 = vunpack.c.h.b16 %v7255
    %v7498 = vunpack.c.l.b16 %v7256
    %v7499 = vunpack.c.h.b16 %v7256
    %v7500 = vunpack.c.l.b16 %v7257
    %v7501 = vunpack.c.h.b16 %v7257
    %v7502 = vunpack.c.l.b16 %v7258
    %v7503 = vunpack.c.h.b16 %v7258
    %v7504 = vunpack.c.l.b16 %v7259
    %v7505 = vunpack.c.h.b16 %v7259
    %v7506 = vunpack.c.l.b16 %v7260
    %v7507 = vunpack.c.h.b16 %v7260
    %v7508 = vunpack.c.l.b16 %v7261
    %v7509 = vunpack.c.h.b16 %v7261
    %v7510 = vunpack.c.l.b16 %v7262
    %v7511 = vunpack.c.h.b16 %v7262
    %v7512 = vunpack.c.l.b16 %v7263
    %v7513 = vunpack.c.h.b16 %v7263
    %v7514 = vunpack.c.l.b16 %v7264
    %v7515 = vunpack.c.h.b16 %v7264
    %v7516 = vunpack.c.l.b16 %v7265
    %v7517 = vunpack.c.h.b16 %v7265
    %v7518 = vunpack.c.l.b16 %v7266
    %v7519 = vunpack.c.h.b16 %v7266
    %v7520 = vunpack.c.l.b16 %v7267
    %v7521 = vunpack.c.h.b16 %v7267
    %v7522 = vunpack.c.l.b16 %v7268
    %v7523 = vunpack.c.h.b16 %v7268
    %v7524 = vunpack.c.l.b16 %v7269
    %v7525 = vunpack.c.h.b16 %v7269
    %v7526 = vpack.c.b16 %v7402, %v7398
    %v7527 = vpack.c.b16 %v7403, %v7399
    %v7528 = vpack.c.b16 %v7404, %v7400
    %v7529 = vpack.c.b16 %v7405, %v7401
    %v7530 = vpack.c.b16 %v7410, %v7406
    %v7531 = vpack.c.b16 %v7411, %v7407
    %v7532 = vpack.c.b16 %v7412, %v7408
    %v7533 = vpack.c.b16 %v7413, %v7409
    %v7534 = vpack.c.b16 %v7418, %v7414
    %v7535 = vpack.c.b16 %v7419, %v7415
    %v7536 = vpack.c.b16 %v7420, %v7416
    %v7537 = vpack.c.b16 %v7421, %v7417
    %v7538 = vpack.c.b16 %v7426, %v7422
    %v7539 = vpack.c.b16 %v7427, %v7423
    %v7540 = vpack.c.b16 %v7428, %v7424
    %v7541 = vpack.c.b16 %v7429, %v7425
    %v7542 = vpack.c.b16 %v7434, %v7430
    %v7543 = vpack.c.b16 %v7435, %v7431
    %v7544 = vpack.c.b16 %v7436, %v7432
    %v7545 = vpack.c.b16 %v7437, %v7433
    %v7546 = vpack.c.b16 %v7442, %v7438
    %v7547 = vpack.c.b16 %v7443, %v7439
    %v7548 = vpack.c.b16 %v7444, %v7440
    %v7549 = vpack.c.b16 %v7445, %v7441
    %v7550 = vpack.c.b16 %v7450, %v7446
    %v7551 = vpack.c.b16 %v7451, %v7447
    %v7552 = vpack.c.b16 %v7452, %v7448
    %v7553 = vpack.c.b16 %v7453, %v7449
    %v7554 = vpack.c.b16 %v7458, %v7454
    %v7555 = vpack.c.b16 %v7459, %v7455
    %v7556 = vpack.c.b16 %v7460, %v7456
    %v7557 = vpack.c.b16 %v7461, %v7457
    %v7558 = vpack.c.b16 %v7466, %v7462
    %v7559 = vpack.c.b16 %v7467, %v7463
    %v7560 = vpack.c.b16 %v7468, %v7464
    %v7561 = vpack.c.b16 %v7469, %v7465
    %v7562 = vpack.c.b16 %v7474, %v7470
    %v7563 = vpack.c.b16 %v7475, %v7471
    %v7564 = vpack.c.b16 %v7476, %v7472
    %v7565 = vpack.c.b16 %v7477, %v7473
    %v7566 = vpack.c.b16 %v7482, %v7478
    %v7567 = vpack.c.b16 %v7483, %v7479
    %v7568 = vpack.c.b16 %v7484, %v7480
    %v7569 = vpack.c.b16 %v7485, %v7481
    %v7570 = vpack.c.b16 %v7490, %v7486
    %v7571 = vpack.c.b16 %v7491, %v7487
    %v7572 = vpack.c.b16 %v7492, %v7488
    %v7573 = vpack.c.b16 %v7493, %v7489
    %v7574 = vpack.c.b16 %v7498, %v7494
    %v7575 = vpack.c.b16 %v7499, %v7495
    %v7576 = vpack.c.b16 %v7500, %v7496
    %v7577 = vpack.c.b16 %v7501, %v7497
    %v7578 = vpack.c.b16 %v7506, %v7502
    %v7579 = vpack.c.b16 %v7507, %v7503
    %v7580 = vpack.c.b16 %v7508, %v7504
    %v7581 = vpack.c.b16 %v7509, %v7505
    %v7582 = vpack.c.b16 %v7514, %v7510
    %v7583 = vpack.c.b16 %v7515, %v7511
    %v7584 = vpack.c.b16 %v7516, %v7512
    %v7585 = vpack.c.b16 %v7517, %v7513
    %v7586 = vpack.c.b16 %v7522, %v7518
    %v7587 = vpack.c.b16 %v7523, %v7519
    %v7588 = vpack.c.b16 %v7524, %v7520
    %v7589 = vpack.c.b16 %v7525, %v7521
    %7654 = vmatprep.subr.bf16.mxu0 %v7527
    %7655 = vmatpush1.bf16.msra.mxu0 %v7526
    %7656 = vmatprep.subr.bf16.mxu0 %v7531
    %7657 = vmatpush1.bf16.msra.mxu0 %v7530
    %7658 = vmatprep.subr.bf16.mxu0 %v7535
    %7659 = vmatpush1.bf16.msra.mxu0 %v7534
    %7660 = vmatprep.subr.bf16.mxu0 %v7539
    %7661 = vmatpush1.bf16.msra.mxu0 %v7538
    %7662 = vmatprep.subr.bf16.mxu0 %v7543
    %7663 = vmatpush1.bf16.msra.mxu0 %v7542
    %7664 = vmatprep.subr.bf16.mxu0 %v7547
    %7665 = vmatpush1.bf16.msra.mxu0 %v7546
    %7666 = vmatprep.subr.bf16.mxu0 %v7551
    %7667 = vmatpush1.bf16.msra.mxu0 %v7550
    %7668 = vmatprep.subr.bf16.mxu0 %v7555
    %7669 = vmatpush1.bf16.msra.mxu0 %v7554
    %7670 = vmatprep.subr.bf16.mxu0 %v7559
    %7671 = vmatpush1.bf16.msra.mxu0 %v7558
    %7672 = vmatprep.subr.bf16.mxu0 %v7563
    %7673 = vmatpush1.bf16.msra.mxu0 %v7562
    %7674 = vmatprep.subr.bf16.mxu0 %v7567
    %7675 = vmatpush1.bf16.msra.mxu0 %v7566
    %7676 = vmatprep.subr.bf16.mxu0 %v7571
    %7677 = vmatpush1.bf16.msra.mxu0 %v7570
    %7678 = vmatprep.subr.bf16.mxu0 %v7575
    %7679 = vmatpush1.bf16.msra.mxu0 %v7574
    %7680 = vmatprep.subr.bf16.mxu0 %v7579
    %7681 = vmatpush1.bf16.msra.mxu0 %v7578
    %7682 = vmatprep.subr.bf16.mxu0 %v7583
    %7683 = vmatpush1.bf16.msra.mxu0 %v7582
    %7684 = vmatprep.subr.bf16.mxu0 %v7587
    %7685 = vmatpush1.bf16.msra.mxu0 %v7586
    %7686 = vmatprep.mubr.bf16.mxu0 %v7331
    %7687 = vmatmul.mubr.bf16.gmra.mrb[0].mxu0 %v7330
    %v7688 = vpop.f32.mrb[0].mxu0
    %v7689 = vadd.f32 0.0, %v7688
    %v7690 = vpop.f32.mrb[0].mxu0
    %v7691 = vadd.f32 0.0, %v7690
    %v7692 = vpop.f32.mrb[0].mxu0
    %v7693 = vpop.f32.mrb[0].mxu0
    %7694 = vdwg.mxu0
    %7695 = vmatprep.subr.bf16.mxu0 %v7529
    %7696 = vmatpush1.bf16.msra.mxu0 %v7528
    %7697 = vmatprep.subr.bf16.mxu0 %v7533
    %7698 = vmatpush1.bf16.msra.mxu0 %v7532
    %7699 = vmatprep.subr.bf16.mxu0 %v7537
    %7700 = vmatpush1.bf16.msra.mxu0 %v7536
    %7701 = vmatprep.subr.bf16.mxu0 %v7541
    %7702 = vmatpush1.bf16.msra.mxu0 %v7540
    %7703 = vmatprep.subr.bf16.mxu0 %v7545
    %7704 = vmatpush1.bf16.msra.mxu0 %v7544
    %7705 = vmatprep.subr.bf16.mxu0 %v7549
    %7706 = vmatpush1.bf16.msra.mxu0 %v7548
    %7707 = vmatprep.subr.bf16.mxu0 %v7553
    %7708 = vmatpush1.bf16.msra.mxu0 %v7552
    %7709 = vmatprep.subr.bf16.mxu0 %v7557
    %7710 = vmatpush1.bf16.msra.mxu0 %v7556
    %7711 = vmatprep.subr.bf16.mxu0 %v7561
    %7712 = vmatpush1.bf16.msra.mxu0 %v7560
    %7713 = vmatprep.subr.bf16.mxu0 %v7565
    %7714 = vmatpush1.bf16.msra.mxu0 %v7564
    %7715 = vmatprep.subr.bf16.mxu0 %v7569
    %7716 = vmatpush1.bf16.msra.mxu0 %v7568
    %7717 = vmatprep.subr.bf16.mxu0 %v7573
    %7718 = vmatpush1.bf16.msra.mxu0 %v7572
    %7719 = vmatprep.subr.bf16.mxu0 %v7577
    %7720 = vmatpush1.bf16.msra.mxu0 %v7576
    %7721 = vmatprep.subr.bf16.mxu0 %v7581
    %7722 = vmatpush1.bf16.msra.mxu0 %v7580
    %7723 = vmatprep.subr.bf16.mxu0 %v7585
    %7724 = vmatpush1.bf16.msra.mxu0 %v7584
    %7725 = vmatprep.subr.bf16.mxu0 %v7589
    %7726 = vmatpush1.bf16.msra.mxu0 %v7588
    %7727 = vmatprep.mubr.bf16.mxu0 %v7331
    %7728 = vmatmul.mubr.bf16.gmra.mrb[0].mxu0 %v7330
    %v7729 = vpop.f32.mrb[0].mxu0
    %v7730 = vadd.f32 0.0, %v7729
    %v7731 = vpop.f32.mrb[0].mxu0
    %v7732 = vadd.f32 0.0, %v7731
    %v7733 = vpop.f32.mrb[0].mxu0
    %v7734 = vpop.f32.mrb[0].mxu0
    %7735 = vdwg.mxu0
    %v7736 = vadd.f32 %v7009, %v7689
    %v7737 = vadd.f32 %v7010, %v7691
    %v7738 = vadd.f32 %v7011, %v7730
    %v7739 = vadd.f32 %v7012, %v7732
    %v7740 = vld [vmem:[%s6] sm:$0xf]
    %v7742 = vlaneseq
    %v7743 = vshrl.u32 %v7742, 7
    %v7744 = vsub.s32 0, %v7743
    %v7745 = vrot.slane %v7740, %v7744
    %v7746 = vlaneseq
    %v7747 = vshrl.u32 %v7746, 7
    %v7748 = vsub.s32 1, %v7747
    %v7749 = vrot.slane %v7740, %v7748
    %v7750 = vlaneseq
    %v7751 = vshrl.u32 %v7750, 7
    %v7752 = vsub.s32 2, %v7751
    %v7753 = vrot.slane %v7740, %v7752
    %v7754 = vlaneseq
    %v7755 = vshrl.u32 %v7754, 7
    %v7756 = vsub.s32 3, %v7755
    %v7757 = vrot.slane %v7740, %v7756
    %v7762 = vadd.f32 %v7736, %v7745
    %v7763 = vadd.f32 %v7737, %v7749
    %v7764 = vadd.f32 %v7738, %v7753
    %v7765 = vadd.f32 %v7739, %v7757
    %v7766 = vmax.f32 %v7762, 0.0
    %v7767 = vmax.f32 %v7763, 0.0
    %v7768 = vmax.f32 %v7764, 0.0
    %v7769 = vmax.f32 %v7765, 0.0
    %v7770 = vpack.c.bf16 %v7766, %v7766
    %v7771 = vpack.c.bf16 %v7767, %v7767
    %v7772 = vpack.c.bf16 %v7768, %v7768
    %v7773 = vpack.c.bf16 %v7769, %v7769
    %v7774 = vld [vmem:[%s7] sm:$0xf]
    %v7775 = vld [vmem:[%s7 + $0x4] sm:$0xf]
    %v7776 = vld [vmem:[%s7 + $0x8] sm:$0xf]
    %v7777 = vld [vmem:[%s7 + $0xc] sm:$0xf]
    %v7778 = vld [vmem:[%s7 + $0x10] sm:$0xf]
    %v7779 = vld [vmem:[%s7 + $0x14] sm:$0xf]
    %v7780 = vld [vmem:[%s7 + $0x18] sm:$0xf]
    %v7781 = vld [vmem:[%s7 + $0x1c] sm:$0xf]
    %v7782 = vld [vmem:[%s7 + $0x20] sm:$0xf]
    %v7783 = vld [vmem:[%s7 + $0x24] sm:$0xf]
    %v7784 = vld [vmem:[%s7 + $0x28] sm:$0xf]
    %v7785 = vld [vmem:[%s7 + $0x2c] sm:$0xf]
    %v7786 = vld [vmem:[%s7 + $0x30] sm:$0xf]
    %v7787 = vld [vmem:[%s7 + $0x34] sm:$0xf]
    %v7788 = vld [vmem:[%s7 + $0x38] sm:$0xf]
    %v7789 = vld [vmem:[%s7 + $0x3c] sm:$0xf]
    %v7790 = vld [vmem:[%s7 + $0x40] sm:$0xf]
    %v7791 = vld [vmem:[%s7 + $0x44] sm:$0xf]
    %v7792 = vld [vmem:[%s7 + $0x48] sm:$0xf]
    %v7793 = vld [vmem:[%s7 + $0x4c] sm:$0xf]
    %v7794 = vld [vmem:[%s7 + $0x50] sm:$0xf]
    %v7795 = vld [vmem:[%s7 + $0x54] sm:$0xf]
    %v7796 = vld [vmem:[%s7 + $0x58] sm:$0xf]
    %v7797 = vld [vmem:[%s7 + $0x5c] sm:$0xf]
    %v7798 = vld [vmem:[%s7 + $0x60] sm:$0xf]
    %v7799 = vld [vmem:[%s7 + $0x64] sm:$0xf]
    %v7800 = vld [vmem:[%s7 + $0x68] sm:$0xf]
    %v7801 = vld [vmem:[%s7 + $0x6c] sm:$0xf]
    %v7802 = vld [vmem:[%s7 + $0x70] sm:$0xf]
    %v7803 = vld [vmem:[%s7 + $0x74] sm:$0xf]
    %v7804 = vld [vmem:[%s7 + $0x78] sm:$0xf]
    %v7805 = vld [vmem:[%s7 + $0x7c] sm:$0xf]
    %v7806 = vld [vmem:[%s7 + $0x80] sm:$0xf]
    %v7807 = vld [vmem:[%s7 + $0x84] sm:$0xf]
    %v7808 = vld [vmem:[%s7 + $0x88] sm:$0xf]
    %v7809 = vld [vmem:[%s7 + $0x8c] sm:$0xf]
    %v7810 = vld [vmem:[%s7 + $0x90] sm:$0xf]
    %v7811 = vld [vmem:[%s7 + $0x94] sm:$0xf]
    %v7812 = vld [vmem:[%s7 + $0x98] sm:$0xf]
    %v7813 = vld [vmem:[%s7 + $0x9c] sm:$0xf]
    %v7814 = vld [vmem:[%s7 + $0xa0] sm:$0xf]
    %v7815 = vld [vmem:[%s7 + $0xa4] sm:$0xf]
    %v7816 = vld [vmem:[%s7 + $0xa8] sm:$0xf]
    %v7817 = vld [vmem:[%s7 + $0xac] sm:$0xf]
    %v7818 = vld [vmem:[%s7 + $0xb0] sm:$0xf]
    %v7819 = vld [vmem:[%s7 + $0xb4] sm:$0xf]
    %v7820 = vld [vmem:[%s7 + $0xb8] sm:$0xf]
    %v7821 = vld [vmem:[%s7 + $0xbc] sm:$0xf]
    %v7822 = vld [vmem:[%s7 + $0xc0] sm:$0xf]
    %v7823 = vld [vmem:[%s7 + $0xc4] sm:$0xf]
    %v7824 = vld [vmem:[%s7 + $0xc8] sm:$0xf]
    %v7825 = vld [vmem:[%s7 + $0xcc] sm:$0xf]
    %v7826 = vld [vmem:[%s7 + $0xd0] sm:$0xf]
    %v7827 = vld [vmem:[%s7 + $0xd4] sm:$0xf]
    %v7828 = vld [vmem:[%s7 + $0xd8] sm:$0xf]
    %v7829 = vld [vmem:[%s7 + $0xdc] sm:$0xf]
    %v7830 = vld [vmem:[%s7 + $0xe0] sm:$0xf]
    %v7831 = vld [vmem:[%s7 + $0xe4] sm:$0xf]
    %v7832 = vld [vmem:[%s7 + $0xe8] sm:$0xf]
    %v7833 = vld [vmem:[%s7 + $0xec] sm:$0xf]
    %v7834 = vld [vmem:[%s7 + $0xf0] sm:$0xf]
    %v7835 = vld [vmem:[%s7 + $0xf4] sm:$0xf]
    %v7836 = vld [vmem:[%s7 + $0xf8] sm:$0x3]
    %v7837 = vld [vmem:[%s8] sm:$0x1]
    %v7839 = vlaneseq
    %v7840 = vshrl.u32 %v7839, 7
    %v7841 = vsub.s32 0, %v7840
    %v7842 = vrot.slane %v7837, %v7841
    %v7907 = vunpack.c.l.b16 %v7774
    %v7908 = vunpack.c.l.b16 %v7775
    %v7909 = vunpack.c.l.b16 %v7776
    %v7910 = vunpack.c.l.b16 %v7777
    %v7911 = vunpack.c.l.b16 %v7778
    %v7912 = vunpack.c.l.b16 %v7779
    %v7913 = vunpack.c.l.b16 %v7780
    %v7914 = vunpack.c.l.b16 %v7781
    %v7915 = vunpack.c.l.b16 %v7782
    %v7916 = vunpack.c.l.b16 %v7783
    %v7917 = vunpack.c.l.b16 %v7784
    %v7918 = vunpack.c.l.b16 %v7785
    %v7919 = vunpack.c.l.b16 %v7786
    %v7920 = vunpack.c.l.b16 %v7787
    %v7921 = vunpack.c.l.b16 %v7788
    %v7922 = vunpack.c.l.b16 %v7789
    %v7923 = vunpack.c.l.b16 %v7790
    %v7924 = vunpack.c.l.b16 %v7791
    %v7925 = vunpack.c.l.b16 %v7792
    %v7926 = vunpack.c.l.b16 %v7793
    %v7927 = vunpack.c.l.b16 %v7794
    %v7928 = vunpack.c.l.b16 %v7795
    %v7929 = vunpack.c.l.b16 %v7796
    %v7930 = vunpack.c.l.b16 %v7797
    %v7931 = vunpack.c.l.b16 %v7798
    %v7932 = vunpack.c.l.b16 %v7799
    %v7933 = vunpack.c.l.b16 %v7800
    %v7934 = vunpack.c.l.b16 %v7801
    %v7935 = vunpack.c.l.b16 %v7802
    %v7936 = vunpack.c.l.b16 %v7803
    %v7937 = vunpack.c.l.b16 %v7804
    %v7938 = vunpack.c.l.b16 %v7805
    %v7939 = vunpack.c.l.b16 %v7806
    %v7940 = vunpack.c.l.b16 %v7807
    %v7941 = vunpack.c.l.b16 %v7808
    %v7942 = vunpack.c.l.b16 %v7809
    %v7943 = vunpack.c.l.b16 %v7810
    %v7944 = vunpack.c.l.b16 %v7811
    %v7945 = vunpack.c.l.b16 %v7812
    %v7946 = vunpack.c.l.b16 %v7813
    %v7947 = vunpack.c.l.b16 %v7814
    %v7948 = vunpack.c.l.b16 %v7815
    %v7949 = vunpack.c.l.b16 %v7816
    %v7950 = vunpack.c.l.b16 %v7817
    %v7951 = vunpack.c.l.b16 %v7818
    %v7952 = vunpack.c.l.b16 %v7819
    %v7953 = vunpack.c.l.b16 %v7820
    %v7954 = vunpack.c.l.b16 %v7821
    %v7955 = vunpack.c.l.b16 %v7822
    %v7956 = vunpack.c.l.b16 %v7823
    %v7957 = vunpack.c.l.b16 %v7824
    %v7958 = vunpack.c.l.b16 %v7825
    %v7959 = vunpack.c.l.b16 %v7826
    %v7960 = vunpack.c.l.b16 %v7827
    %v7961 = vunpack.c.l.b16 %v7828
    %v7962 = vunpack.c.l.b16 %v7829
    %v7963 = vunpack.c.l.b16 %v7830
    %v7964 = vunpack.c.l.b16 %v7831
    %v7965 = vunpack.c.l.b16 %v7832
    %v7966 = vunpack.c.l.b16 %v7833
    %v7967 = vunpack.c.l.b16 %v7834
    %v7968 = vunpack.c.l.b16 %v7835
    %v7969 = vunpack.c.l.b16 %v7836
    %v7970 = vpack.c.b16 %v7908, %v7907
    %v7971 = vpack.c.b16 %v7910, %v7909
    %v7972 = vpack.c.b16 %v7912, %v7911
    %v7973 = vpack.c.b16 %v7914, %v7913
    %v7974 = vpack.c.b16 %v7916, %v7915
    %v7975 = vpack.c.b16 %v7918, %v7917
    %v7976 = vpack.c.b16 %v7920, %v7919
    %v7977 = vpack.c.b16 %v7922, %v7921
    %v7978 = vpack.c.b16 %v7924, %v7923
    %v7979 = vpack.c.b16 %v7926, %v7925
    %v7980 = vpack.c.b16 %v7928, %v7927
    %v7981 = vpack.c.b16 %v7930, %v7929
    %v7982 = vpack.c.b16 %v7932, %v7931
    %v7983 = vpack.c.b16 %v7934, %v7933
    %v7984 = vpack.c.b16 %v7936, %v7935
    %v7985 = vpack.c.b16 %v7938, %v7937
    %v7986 = vpack.c.b16 %v7940, %v7939
    %v7987 = vpack.c.b16 %v7942, %v7941
    %v7988 = vpack.c.b16 %v7944, %v7943
    %v7989 = vpack.c.b16 %v7946, %v7945
    %v7990 = vpack.c.b16 %v7948, %v7947
    %v7991 = vpack.c.b16 %v7950, %v7949
    %v7992 = vpack.c.b16 %v7952, %v7951
    %v7993 = vpack.c.b16 %v7954, %v7953
    %v7994 = vpack.c.b16 %v7956, %v7955
    %v7995 = vpack.c.b16 %v7958, %v7957
    %v7996 = vpack.c.b16 %v7960, %v7959
    %v7997 = vpack.c.b16 %v7962, %v7961
    %v7998 = vpack.c.b16 %v7964, %v7963
    %v7999 = vpack.c.b16 %v7966, %v7965
    %v8000 = vpack.c.b16 %v7968, %v7967
    %v8001 = vpack.c.b16 %v7969, %v7969
    %vm8033 = vcmask 949248
    %v8035 = vsel %vm8033, %v7773, 0
    %vm8037 = vcmask 1041408
    %v8039 = vsel %vm8037, %v8001, 0
    %8041 = vmatprep.subr.bf16.mxu0 0
    %8042 = vmatpush1.bf16.msra.mxu0 %v7970
    %8043 = vmatprep.subr.bf16.mxu0 0
    %8044 = vmatpush1.bf16.msra.mxu0 %v7971
    %8045 = vmatprep.subr.bf16.mxu0 0
    %8046 = vmatpush1.bf16.msra.mxu0 %v7972
    %8047 = vmatprep.subr.bf16.mxu0 0
    %8048 = vmatpush1.bf16.msra.mxu0 %v7973
    %8049 = vmatprep.subr.bf16.mxu0 0
    %8050 = vmatpush1.bf16.msra.mxu0 %v7974
    %8051 = vmatprep.subr.bf16.mxu0 0
    %8052 = vmatpush1.bf16.msra.mxu0 %v7975
    %8053 = vmatprep.subr.bf16.mxu0 0
    %8054 = vmatpush1.bf16.msra.mxu0 %v7976
    %8055 = vmatprep.subr.bf16.mxu0 0
    %8056 = vmatpush1.bf16.msra.mxu0 %v7977
    %8057 = vmatprep.subr.bf16.mxu0 0
    %8058 = vmatpush1.bf16.msra.mxu0 %v7978
    %8059 = vmatprep.subr.bf16.mxu0 0
    %8060 = vmatpush1.bf16.msra.mxu0 %v7979
    %8061 = vmatprep.subr.bf16.mxu0 0
    %8062 = vmatpush1.bf16.msra.mxu0 %v7980
    %8063 = vmatprep.subr.bf16.mxu0 0
    %8064 = vmatpush1.bf16.msra.mxu0 %v7981
    %8065 = vmatprep.subr.bf16.mxu0 0
    %8066 = vmatpush1.bf16.msra.mxu0 %v7982
    %8067 = vmatprep.subr.bf16.mxu0 0
    %8068 = vmatpush1.bf16.msra.mxu0 %v7983
    %8069 = vmatprep.subr.bf16.mxu0 0
    %8070 = vmatpush1.bf16.msra.mxu0 %v7984
    %8071 = vmatprep.subr.bf16.mxu0 0
    %8072 = vmatpush1.bf16.msra.mxu0 %v7985
    %8073 = vmatprep.mubr.bf16.mxu0 %v7771
    %8074 = vmatmul.mubr.bf16.gmra.mrb[0].mxu0 %v7770
    %v8075 = vpop.f32.mrb[0].mxu0
    %v8076 = vadd.f32 %v7842, %v8075
    %v8077 = vpop.f32.mrb[0].mxu0
    %v8078 = vpop.f32.mrb[0].mxu0
    %v8079 = vpop.f32.mrb[0].mxu0
    %8080 = vdwg.mxu0
    %8081 = vmatprep.subr.bf16.mxu0 0
    %8082 = vmatpush1.bf16.msra.mxu0 %v7986
    %8083 = vmatprep.subr.bf16.mxu0 0
    %8084 = vmatpush1.bf16.msra.mxu0 %v7987
    %8085 = vmatprep.subr.bf16.mxu0 0
    %8086 = vmatpush1.bf16.msra.mxu0 %v7988
    %8087 = vmatprep.subr.bf16.mxu0 0
    %8088 = vmatpush1.bf16.msra.mxu0 %v7989
    %8089 = vmatprep.subr.bf16.mxu0 0
    %8090 = vmatpush1.bf16.msra.mxu0 %v7990
    %8091 = vmatprep.subr.bf16.mxu0 0
    %8092 = vmatpush1.bf16.msra.mxu0 %v7991
    %8093 = vmatprep.subr.bf16.mxu0 0
    %8094 = vmatpush1.bf16.msra.mxu0 %v7992
    %8095 = vmatprep.subr.bf16.mxu0 0
    %8096 = vmatpush1.bf16.msra.mxu0 %v7993
    %8097 = vmatprep.subr.bf16.mxu0 0
    %8098 = vmatpush1.bf16.msra.mxu0 %v7994
    %8099 = vmatprep.subr.bf16.mxu0 0
    %8100 = vmatpush1.bf16.msra.mxu0 %v7995
    %8101 = vmatprep.subr.bf16.mxu0 0
    %8102 = vmatpush1.bf16.msra.mxu0 %v7996
    %8103 = vmatprep.subr.bf16.mxu0 0
    %8104 = vmatpush1.bf16.msra.mxu0 %v7997
    %8105 = vmatprep.subr.bf16.mxu0 0
    %8106 = vmatpush1.bf16.msra.mxu0 %v7998
    %8107 = vmatprep.subr.bf16.mxu0 0
    %8108 = vmatpush1.bf16.msra.mxu0 %v7999
    %8109 = vmatprep.subr.bf16.mxu0 0
    %8110 = vmatpush1.bf16.msra.mxu0 %v8000
    %8111 = vmatprep.subr.bf16.mxu0 0
    %8112 = vmatpush1.bf16.msra.mxu0 %v8039
    %8113 = vmatprep.mubr.bf16.mxu0 %v8035
    %8114 = vmatmul.mubr.bf16.gmra.mrb[0].mxu0 %v7772
    %v8115 = vpop.f32.mrb[0].mxu0
    %v8116 = vadd.f32 %v8076, %v8115
    %v8117 = vpop.f32.mrb[0].mxu0
    %v8118 = vpop.f32.mrb[0].mxu0
    %v8119 = vpop.f32.mrb[0].mxu0
    %8120 = vdwg.mxu0
    %vm8121 = vcmask 80896
    %8122 = vst.msk [vmem:[#allocation4] sm:$0xff] %vm8121, %v8116
    // Predicated region
    $region38: #{_lambda_.1} parent=1 // pred_check
      _
    $region39: #{_lambda_.1} parent=1 // pred_check_branch
      %8124 = sbr.rel (0) target = $region41
    $region40: #{_lambda_.1} parent=1 // pred_region
      %s8126 = ssub.s32 128, 128
      %8127 = vsyncadd [#allocation5], %s8126
      %s8129 = sshll.u32 [#allocation4], 4
      %s8130 = int_to_ptr.vmem [resolvable:$true] %s8129
      %8132 = dma.vmem_to_hbm [thread:$0]  %s8130, 128, %s9, [#allocation5]
    $region41: #{_lambda_.1} parent=1 // pred_fallthru
      _
    // Predicated region
    $region42: #{_lambda_.1} parent=1 // pred_check
      _
    $region43: #{_lambda_.1} parent=1 // pred_check_branch
      %8134 = sbr.rel (0) target = $region45
    $region44: #{_lambda_.1} parent=1 // pred_region
      %8135 = dma.done [#allocation5], 128
    $region45: #{_lambda_.1} parent=1 // pred_fallthru
      _
    %8136 = vsyncpa [#allocation5], 1

</llo_original>
